<compile_context>
chip_gen: v5e
topology: v5e:2x2
jax: 0.10.0
libtpu: 0.0.40
codegen_flags: <defaults>
</compile_context>

<pallas_src>
import jax
import jax.numpy as jnp
from jax import lax
from jax.experimental import pallas as pl
from jax.experimental.pallas import tpu as pltpu


_LANE = 128            # last-dim tile (lanes)
_SUBLANE = 8           # second-to-last-dim tile (sublanes, f32)
_UNROLL_FULL_MAX = 32  # fully unroll the time loop up to this length
_FORI_UNROLL = 4       # unroll depth of the fori_loop recurrence beyond that
_MAX_BATCH_TILE = 256  # MXU row count on v6e/v7x


def _round_up(x, m):
    return (x + m - 1) // m * m


def _vmem_limit_bytes():
    """Generation-aware scoped-VMEM request (~85% of physical per-TC VMEM)."""
    try:
        cap = int(pltpu.get_tpu_info().vmem_capacity_bytes)
    except Exception:
        cap = 64 * 1024 * 1024          # conservative: fits every generation
    return min(int(cap * 0.85), 112 * 1024 * 1024)


def _num_tensorcores():
    try:
        dev = jax.devices()[0]
        n = getattr(dev, "num_cores", None)
        if n:
            return int(n)
        kind = (getattr(dev, "device_kind", "") or "").lower()
        return 2 if "v7" in kind else 1
    except Exception:
        return 1


def _auto_batch_tile(N, L, Dp, Hp, Op, nl, mm_bytes, vmem_limit, num_cores):
    """Largest bt (multiple of 8, <=256) fitting the VMEM budget, targeting
    ~one batch tile per TensorCore."""
    budget = int(vmem_limit * 0.75)
    # bt-independent residency: weights (counted double-buffered to be safe).
    w_bytes = 0
    for l in range(nl):
        in_pad = Dp if l == 0 else Hp
        w_bytes += (in_pad + Hp) * 4 * Hp * mm_bytes + 8 * 4 * Hp * 4
    w_bytes += Hp * Op * mm_bytes + 8 * Op * 4
    w_bytes *= 2
    # per-batch-row residency.
    per_bt = (2 * L * Dp * 4                          # x block (double buffered)
              + L * 4 * Hp * 4                        # gates_x scratch
              + (L * Hp * 4 if nl > 1 else 0)         # hseq scratch
              + 2 * Op * 4                            # out block (double buffered)
              + 16 * Hp * 4)                          # live h/c/gates headroom
    avail = max(budget - w_bytes, per_bt * _SUBLANE)
    bt_vmem = max(_SUBLANE, (avail // per_bt) // _SUBLANE * _SUBLANE)
    bt_core = _round_up(max(1, -(-N // max(1, num_cores))), _SUBLANE)
    return int(max(_SUBLANE, min(bt_vmem, bt_core, _MAX_BATCH_TILE)))


# ----------------------------- Pallas kernel --------------------------------

def _make_fused_lstm_kernel(num_layers, L, bt, Dp, Hp, matmul_dtype):
    """Fused kernel: all LSTM layers + last-timestep select + Linear.

    Kernel argument order (after x_ref, lt_ref):
      wih_0..wih_{nl-1}  (D_in_pad, 4*Hp)
      whh_0..whh_{nl-1}  (Hp, 4*Hp)
      b_0..b_{nl-1}      (1, 4*Hp)
      wclf               (Hp, Op)
      bclf               (1, Op)
      out                (bt, Op)
      gates_x scratch    (L, bt, 4*Hp)
      hseq scratch       (L, bt, Hp)      (only if num_layers > 1)
    """

    def kernel(x_ref, lt_ref, *args):
        nl = num_layers
        wih_refs = args[0:nl]
        whh_refs = args[nl:2 * nl]
        b_refs = args[2 * nl:3 * nl]
        wclf_ref = args[3 * nl]
        bclf_ref = args[3 * nl + 1]
        out_ref = args[3 * nl + 2]
        gx_scr = args[3 * nl + 3]
        seq_scr = args[3 * nl + 4] if nl > 1 else None

        # Last valid timestep per batch row (already clamped to [0, L-1] in
        # the wrapper, so lengths==0 / lengths>L behave like clip(len,1,L)).
        last_t = lt_ref[...]                             # (bt, 1) int32

        def run_layer(l, in_seq_2d):
            is_last = (l == nl - 1)

            # Hoisted input projection: one sequence-wide MXU matmul plus a
            # single bias broadcast (not per time step).
            gx = jnp.dot(in_seq_2d.astype(matmul_dtype), wih_refs[l][...],
                         preferred_element_type=jnp.float32)
            gx_scr[...] = gx.reshape(L, bt, 4 * Hp) + b_refs[l][...]

            def step(t, carry):
                h, c, hl = carry
                gates = gx_scr[t] + jnp.dot(
                    h.astype(matmul_dtype), whh_refs[l][...],
                    preferred_element_type=jnp.float32)          # (bt, 4*Hp)
                i = jax.nn.sigmoid(gates[:, 0 * Hp:1 * Hp])
                f = jax.nn.sigmoid(gates[:, 1 * Hp:2 * Hp])
                g = jnp.tanh(gates[:, 2 * Hp:3 * Hp])
                o = jax.nn.sigmoid(gates[:, 3 * Hp:4 * Hp])
                c = f * c + i * g
                h = o * jnp.tanh(c)
                if is_last:
                    # Fused last-timestep gather: lane-wide per-step select on
                    # data already in vregs.
                    hl = jnp.where(t == last_t, h, hl)
                else:
                    # Feed the next layer.  In-place overwrite is safe: layer
                    # l+1's hoisted input projection reads the whole sequence
                    # before its own recurrence starts.
                    seq_scr[t] = h.astype(seq_scr.dtype)
                return (h, c, hl)

            z = jnp.zeros((bt, Hp), jnp.float32)
            carry = (z, z, z)
            if L <= _UNROLL_FULL_MAX:
                # Fully unrolled, static-index recurrence for short sequences.
                for t in range(L):
                    carry = step(t, carry)
            else:
                # unroll=4 lets the scheduler issue next-step weight pushes /
                # gx loads under the current step's EUP+VPU chain.
                carry = lax.fori_loop(0, L, step, carry, unroll=_FORI_UNROLL)
            return carry[2]

        h_last = run_layer(0, x_ref[...].reshape(L * bt, Dp))
        for l in range(1, nl):
            h_last = run_layer(l, seq_scr[...].reshape(L * bt, Hp))

        # Fused classifier (Linear) on the selected last hidden state.
        out_ref[...] = (jnp.dot(h_last.astype(matmul_dtype), wclf_ref[...],
                                preferred_element_type=jnp.float32)
                        + bclf_ref[...]).astype(out_ref.dtype)

    return kernel


# ------------------------------ wrappers -------------------------------------

def _pad_gate_matrix(w_t, in_dim_pad, H, Hp):
    """(in_dim, 4H) -> (in_dim_pad, 4*Hp), padding each [i|f|g|o] gate block."""
    in_dim = w_t.shape[0]
    gates = jnp.split(w_t, 4, axis=1)
    gates = [jnp.pad(g, ((0, in_dim_pad - in_dim), (0, Hp - H))) for g in gates]
    return jnp.concatenate(gates, axis=1)


def _pad_gate_bias(b, H, Hp):
    """(1, 4H) -> (1, 4*Hp), padding each gate block."""
    gates = jnp.split(b, 4, axis=1)
    gates = [jnp.pad(g, ((0, 0), (0, Hp - H))) for g in gates]
    return jnp.concatenate(gates, axis=1)


def basic_lstm_forward(params, x_nld, lengths, *, batch_tile=None,
                       matmul_dtype=jnp.bfloat16):
    """Equivalent of BasicLSTM.forward(x, lengths) with bidirectional=False,
    dropout=0, pad=False.  One fused Pallas kernel, gridded over batch tiles.

    NOTE: perf is only sensible when rnn_size >= 128; smaller H is zero-padded
    up to Hp=128, so the recurrent matmul does (128/H)^2 x the real work.
    """
    layers = params["lstm"]
    nl = len(layers)
    N, L, D = x_nld.shape
    H = layers[0]["whh_t"].shape[0]
    O = params["clf"]["w_t"].shape[1]

    Dp = _round_up(D, _LANE)
    Hp = _round_up(H, _LANE)
    Op = _round_up(O, _LANE)
    mm_bytes = jnp.dtype(matmul_dtype).itemsize
    vmem_limit = _vmem_limit_bytes()

    if batch_tile is None:
        bt = _auto_batch_tile(N, L, Dp, Hp, Op, nl, mm_bytes, vmem_limit,
                              _num_tensorcores())
    else:
        bt = _round_up(max(batch_tile, _SUBLANE), _SUBLANE)
    Np = _round_up(N, bt)
    n_tiles = Np // bt

    # Batch-tile-major HBM layout for x: (tiles, L, bt, Dp) so each grid
    # step's input block is one contiguous DMA.  Zero padding is inert.
    x = x_nld.astype(jnp.float32)
    x = jnp.pad(x, ((0, Np - N), (0, 0), (0, Dp - D)))        # (Np, L, Dp)
    x = x.reshape(n_tiles, bt, L, Dp).transpose(0, 2, 1, 3)   # (tiles, L, bt, Dp)

    # Clamped last-timestep index (lengths==0 / >L behave like clip(len,1,L)).
    last_t = jnp.clip(lengths.astype(jnp.int32), 1, L) - 1
    last_t = jnp.pad(last_t, (0, Np - N)).reshape(Np, 1)
    # TODO(synk): pass last_t via scalar prefetch (SMEM) instead of a padded
    # (bt,1) VMEM tile; minor layout win only.

    wih, whh, bias = [], [], []
    for l, layer in enumerate(layers):
        in_pad = Dp if l == 0 else Hp
        wih.append(_pad_gate_matrix(layer["wih_t"], in_pad, H, Hp)
                   .astype(matmul_dtype))
        whh.append(_pad_gate_matrix(layer["whh_t"], Hp, H, Hp)
                   .astype(matmul_dtype))
        bias.append(_pad_gate_bias(layer["b"], H, Hp))
    wclf = jnp.pad(params["clf"]["w_t"],
                   ((0, Hp - H), (0, Op - O))).astype(matmul_dtype)
    bclf = jnp.pad(params["clf"]["b"], ((0, 0), (0, Op - O)))

    kernel = _make_fused_lstm_kernel(nl, L, bt, Dp, Hp, matmul_dtype)

    scratch_shapes = [pltpu.VMEM((L, bt, 4 * Hp), jnp.float32)]      # gates_x
    if nl > 1:
        scratch_shapes.append(pltpu.VMEM((L, bt, Hp), jnp.float32))  # hseq

    # TODO(synk): for very long sequences (L*bt*5*Hp*4B approaching ~half the
    # per-TC VMEM budget, esp. v7x's 64 MiB), stream gates_x/hseq in T-chunks
    # instead of keeping the full per-tile sequence resident (the auto bt
    # shrinks instead today).
    # TODO(synk): at tiny bt on v5e, holding whh resident in the MXU staging
    # registers (pltpu.matmul_push_rhs/matmul_acc_lhs/matmul_pop) would remove
    # the per-step weight re-push; not needed once bt is large.

    def build_and_run(single_buffer_weights):
        def const_spec(shape):
            ndim = len(shape)
            imap = lambda i, _nd=ndim: (0,) * _nd
            if single_buffer_weights:
                # Constant index map -> single buffer, halves weight VMEM.
                return pl.BlockSpec(shape, imap, pipeline_mode=pl.Buffered(1))
            return pl.BlockSpec(shape, imap)

        in_specs = [
            pl.BlockSpec((1, L, bt, Dp), lambda i: (i, 0, 0, 0)),  # x tile
            pl.BlockSpec((bt, 1), lambda i: (i, 0)),               # last_t
        ]
        in_specs += [const_spec(w.shape) for w in wih]
        in_specs += [const_spec(w.shape) for w in whh]
        in_specs += [const_spec(b.shape) for b in bias]
        in_specs += [const_spec(wclf.shape), const_spec(bclf.shape)]

        return pl.pallas_call(
            kernel,
            out_shape=jax.ShapeDtypeStruct((Np, Op), jnp.float32),
            grid_spec=pltpu.PrefetchScalarGridSpec(
                num_scalar_prefetch=0,
                grid=(n_tiles,),
                in_specs=in_specs,
                out_specs=pl.BlockSpec((bt, Op), lambda i: (i, 0)),
                scratch_shapes=scratch_shapes),
            compiler_params=pltpu.CompilerParams(
                dimension_semantics=("parallel",),   # batch tiles -> TCs (v7x)
                vmem_limit_bytes=vmem_limit),
        )(x, last_t, *wih, *whh, *bias, wclf, bclf)

    try:
        out = build_and_run(True)
    except Exception:
        # pipeline_mode=pl.Buffered(1) unsupported on this jax version ->
        # fall back to default (double-buffered) weight specs.
        out = build_and_run(False)

    return out[:N, :O]


# --------------------------- parameter init ----------------------------------

def init_params(key, input_dim, rnn_size, output_dim, num_layers):
    """Deterministic init mirroring nn.LSTM / nn.Linear shapes (uniform(-k, k))."""
    k = 1.0 / float(rnn_size) ** 0.5
    layers = []
    for l in range(num_layers):
        in_dim = input_dim if l == 0 else rnn_size
        key, k1, k2, k3, k4 = jax.random.split(key, 5)
        w_ih = jax.random.uniform(k1, (4 * rnn_size, in_dim), jnp.float32, -k, k)
        w_hh = jax.random.uniform(k2, (4 * rnn_size, rnn_size), jnp.float32, -k, k)
        b_ih = jax.random.uniform(k3, (4 * rnn_size,), jnp.float32, -k, k)
        b_hh = jax.random.uniform(k4, (4 * rnn_size,), jnp.float32, -k, k)
        layers.append({"wih_t": w_ih.T, "whh_t": w_hh.T,
                       "b": (b_ih + b_hh).reshape(1, -1)})
    feature_size = rnn_size  # unidirectional
    kc = 1.0 / float(feature_size) ** 0.5
    key, k5, k6 = jax.random.split(key, 3)
    w_clf = jax.random.uniform(k5, (output_dim, feature_size), jnp.float32, -kc, kc)
    b_clf = jax.random.uniform(k6, (output_dim,), jnp.float32, -kc, kc)
    return {"lstm": layers, "clf": {"w_t": w_clf.T, "b": b_clf.reshape(1, -1)}}


# --------------------------- pure-JAX reference -------------------------------

def ref_forward(params, x_nld, lengths):
    x = jnp.transpose(x_nld, (1, 0, 2))
    H = params["lstm"][0]["whh_t"].shape[0]
    N = x.shape[1]
    for layer in params["lstm"]:
        def step(carry, x_t, layer=layer):
            h, c = carry
            gates = x_t @ layer["wih_t"] + h @ layer["whh_t"] + layer["b"]
            i, f, g, o = jnp.split(gates, 4, axis=-1)
            c = jax.nn.sigmoid(f) * c + jax.nn.sigmoid(i) * jnp.tanh(g)
            h = jax.nn.sigmoid(o) * jnp.tanh(c)
            return (h, c), h
        init = (jnp.zeros((N, H), jnp.float32), jnp.zeros((N, H), jnp.float32))
        _, x = lax.scan(step, init, x)
    idx = lengths.astype(jnp.int32) - 1
    h_last = x[idx, jnp.arange(N)]                       # last_by_index
    return h_last @ params["clf"]["w_t"] + params["clf"]["b"]


# --------------------------------- main ---------------------------------------

if __name__ == "__main__":
    # Small config consistent with the module: x is N x L x D, lengths is (N,)
    N, L, D = 2, 8, 16
    H, O, NUM_LAYERS = 32, 8, 2

    key = jax.random.PRNGKey(0)
    key, kx = jax.random.split(key)
    x = jax.random.normal(kx, (N, L, D), jnp.float32)
    lengths = jnp.array([8, 5], dtype=jnp.int32)

    params = init_params(jax.random.PRNGKey(1), D, H, O, NUM_LAYERS)

    ref = jax.block_until_ready(ref_forward(params, x, lengths))

    # f32 matmul operands: tight check vs the pure-JAX reference.
    out_f32 = jax.block_until_ready(
        basic_lstm_forward(params, x, lengths, matmul_dtype=jnp.float32))
    assert out_f32.shape == (N, O)
    assert jnp.allclose(out_f32, ref, rtol=2e-3, atol=2e-3), (out_f32, ref)

    # bf16 matmul operands (f32 accumulation) are the performance default;
    # looser tolerance.  Re-validate tolerance for deep stacks / long L.
    out_bf16 = jax.block_until_ready(basic_lstm_forward(params, x, lengths))
    assert out_bf16.shape == (N, O)
    assert jnp.allclose(out_bf16, ref, rtol=5e-2, atol=5e-2), (out_bf16, ref)

    # TODO(synk): pack_padded_sequence/pad_packed_sequence (self.pad=True path)
    # has no Pallas equivalent; pad=False (default) path is implemented, and
    # padding is handled via the clamped length-indexed last-timestep select.
    # TODO(synk): bidirectional=True path not implemented (module default is
    # False); would add a reversed-time pass + concat before the classifier.
    print("KERNEL_OK")
</pallas_src>

<mosaic_0001>
module attributes {stable_mosaic.version = 11 : i64} {
  func.func @kernel(%arg0: i32, %arg1: memref<1x8x8x128xf32, #tpu.memory_space<vmem>>, %arg2: memref<8x1xi32, #tpu.memory_space<vmem>>, %arg3: memref<128x512xf32, #tpu.memory_space<vmem>>, %arg4: memref<128x512xf32, #tpu.memory_space<vmem>>, %arg5: memref<128x512xf32, #tpu.memory_space<vmem>>, %arg6: memref<128x512xf32, #tpu.memory_space<vmem>>, %arg7: memref<1x512xf32, #tpu.memory_space<vmem>>, %arg8: memref<1x512xf32, #tpu.memory_space<vmem>>, %arg9: memref<128x128xf32, #tpu.memory_space<vmem>>, %arg10: memref<1x128xf32, #tpu.memory_space<vmem>>, %arg11: memref<8x128xf32, #tpu.memory_space<vmem>>, %arg12: memref<8x8x512xf32, #tpu.memory_space<vmem>>, %arg13: memref<8x8x128xf32, #tpu.memory_space<vmem>>) attributes {dimension_semantics = [#tpu.dimension_semantics<parallel>], iteration_bounds = array<i64: 1>, scalar_prefetch = 0 : i64, scratch_operands = 2 : i64, tpu.core_type = #tpu.core_type<tc>, window_params = [{transform_indices = @transform_0, window_bounds = array<i64: 1, 8, 8, 128>}, {transform_indices = @transform_1, window_bounds = array<i64: 8, 1>}, {pipeline_mode = #tpu.pipeline_mode<synchronous>, transform_indices = @transform_2, window_bounds = array<i64: 128, 512>}, {pipeline_mode = #tpu.pipeline_mode<synchronous>, transform_indices = @transform_3, window_bounds = array<i64: 128, 512>}, {pipeline_mode = #tpu.pipeline_mode<synchronous>, transform_indices = @transform_4, window_bounds = array<i64: 128, 512>}, {pipeline_mode = #tpu.pipeline_mode<synchronous>, transform_indices = @transform_5, window_bounds = array<i64: 128, 512>}, {pipeline_mode = #tpu.pipeline_mode<synchronous>, transform_indices = @transform_6, window_bounds = array<i64: 1, 512>}, {pipeline_mode = #tpu.pipeline_mode<synchronous>, transform_indices = @transform_7, window_bounds = array<i64: 1, 512>}, {pipeline_mode = #tpu.pipeline_mode<synchronous>, transform_indices = @transform_8, window_bounds = array<i64: 128, 128>}, {pipeline_mode = #tpu.pipeline_mode<synchronous>, transform_indices = @transform_9, window_bounds = array<i64: 1, 128>}, {transform_indices = @transform_10, window_bounds = array<i64: 8, 128>}]} {
    %c0 = arith.constant 0 : index
    %c0_0 = arith.constant 0 : index
    %0 = vector.load %arg2[%c0, %c0_0] : memref<8x1xi32, #tpu.memory_space<vmem>>, vector<8x1xi32>
    %c0_1 = arith.constant 0 : index
    %c0_2 = arith.constant 0 : index
    %c0_3 = arith.constant 0 : index
    %c0_4 = arith.constant 0 : index
    %1 = vector.load %arg1[%c0_1, %c0_2, %c0_3, %c0_4] : memref<1x8x8x128xf32, #tpu.memory_space<vmem>>, vector<1x8x8x128xf32>
    %2 = vector.shape_cast %1 : vector<1x8x8x128xf32> to vector<64x128xf32>
    %c0_5 = arith.constant 0 : index
    %c0_6 = arith.constant 0 : index
    %3 = vector.load %arg3[%c0_5, %c0_6] : memref<128x512xf32, #tpu.memory_space<vmem>>, vector<128x512xf32>
    %cst = arith.constant dense<0.000000e+00> : vector<64x512xf32>
    %4 = tpu.matmul %2, %3, %cst {dimension_numbers = #tpu.dot_dimension_numbers<[1], [0], [0], [1], [0, 0, 1, 1], [], []>} : vector<64x128xf32>, vector<128x512xf32>, vector<64x512xf32> -> vector<64x512xf32>
    %5 = vector.shape_cast %4 : vector<64x512xf32> to vector<8x8x512xf32>
    %c0_7 = arith.constant 0 : index
    %c0_8 = arith.constant 0 : index
    %6 = vector.load %arg7[%c0_7, %c0_8] : memref<1x512xf32, #tpu.memory_space<vmem>>, vector<1x512xf32>
    %7 = vector.shape_cast %6 : vector<1x512xf32> to vector<1x1x512xf32>
    %8 = vector.broadcast %7 : vector<1x1x512xf32> to vector<8x8x512xf32>
    %9 = arith.addf %5, %8 : vector<8x8x512xf32>
    %c0_9 = arith.constant 0 : index
    %c0_10 = arith.constant 0 : index
    %c0_11 = arith.constant 0 : index
    %10 = vector.load %arg12[%c0_9, %c0_10, %c0_11] : memref<8x8x512xf32, #tpu.memory_space<vmem>>, vector<8x8x512xf32>
    tpu.vector_store %arg12[%c0_9, %c0_10, %c0_11], %9 {strides = array<i32>} : memref<8x8x512xf32, #tpu.memory_space<vmem>>, vector<8x8x512xf32>,
    %cst_12 = arith.constant 0.000000e+00 : f32
    %11 = vector.broadcast %cst_12 : f32 to vector<8x128xf32>
    %c0_13 = arith.constant 0 : index
    %c0_14 = arith.constant 0 : index
    %c0_15 = arith.constant 0 : index
    %12 = vector.load %arg12[%c0_13, %c0_14, %c0_15] : memref<8x8x512xf32, #tpu.memory_space<vmem>>, vector<1x8x512xf32>
    %13 = vector.shape_cast %12 : vector<1x8x512xf32> to vector<8x512xf32>
    %c0_16 = arith.constant 0 : index
    %c0_17 = arith.constant 0 : index
    %14 = vector.load %arg5[%c0_16, %c0_17] : memref<128x512xf32, #tpu.memory_space<vmem>>, vector<128x512xf32>
    %cst_18 = arith.constant dense<0.000000e+00> : vector<8x512xf32>
    %15 = tpu.matmul %11, %14, %cst_18 {dimension_numbers = #tpu.dot_dimension_numbers<[1], [0], [0], [1], [0, 0, 1, 1], [], []>} : vector<8x128xf32>, vector<128x512xf32>, vector<8x512xf32> -> vector<8x512xf32>
    %16 = arith.addf %13, %15 : vector<8x512xf32>
    %17 = vector.extract_strided_slice %16 {offsets = [0, 0], sizes = [8, 128], strides = [1, 1]} : vector<8x512xf32> to vector<8x128xf32>
    %18 = arith.negf %17 : vector<8x128xf32>
    %19 = math.exp %18 : vector<8x128xf32>
    %cst_19 = arith.constant 1.000000e+00 : f32
    %20 = vector.broadcast %cst_19 : f32 to vector<8x128xf32>
    %21 = arith.addf %20, %19 : vector<8x128xf32>
    %22 = arith.divf %20, %21 : vector<8x128xf32>
    %23 = vector.extract_strided_slice %16 {offsets = [0, 128], sizes = [8, 128], strides = [1, 1]} : vector<8x512xf32> to vector<8x128xf32>
    %24 = arith.negf %23 : vector<8x128xf32>
    %25 = math.exp %24 : vector<8x128xf32>
    %cst_20 = arith.constant 1.000000e+00 : f32
    %26 = vector.broadcast %cst_20 : f32 to vector<8x128xf32>
    %27 = arith.addf %26, %25 : vector<8x128xf32>
    %28 = arith.divf %26, %27 : vector<8x128xf32>
    %29 = vector.extract_strided_slice %16 {offsets = [0, 256], sizes = [8, 128], strides = [1, 1]} : vector<8x512xf32> to vector<8x128xf32>
    %30 = math.tanh %29 : vector<8x128xf32>
    %31 = vector.extract_strided_slice %16 {offsets = [0, 384], sizes = [8, 128], strides = [1, 1]} : vector<8x512xf32> to vector<8x128xf32>
    %32 = arith.negf %31 : vector<8x128xf32>
    %33 = math.exp %32 : vector<8x128xf32>
    %cst_21 = arith.constant 1.000000e+00 : f32
    %34 = vector.broadcast %cst_21 : f32 to vector<8x128xf32>
    %35 = arith.addf %34, %33 : vector<8x128xf32>
    %36 = arith.divf %34, %35 : vector<8x128xf32>
    %37 = arith.mulf %28, %11 : vector<8x128xf32>
    %38 = arith.mulf %22, %30 : vector<8x128xf32>
    %39 = arith.addf %37, %38 : vector<8x128xf32>
    %40 = math.tanh %39 : vector<8x128xf32>
    %41 = arith.mulf %36, %40 : vector<8x128xf32>
    %c0_22 = arith.constant 0 : index
    %c0_23 = arith.constant 0 : index
    %c0_24 = arith.constant 0 : index
    %42 = vector.load %arg13[%c0_22, %c0_23, %c0_24] : memref<8x8x128xf32, #tpu.memory_space<vmem>>, vector<1x8x128xf32>
    %43 = vector.shape_cast %42 : vector<1x8x128xf32> to vector<8x128xf32>
    %44 = vector.shape_cast %41 : vector<8x128xf32> to vector<1x8x128xf32>
    tpu.vector_store %arg13[%c0_22, %c0_23, %c0_24], %44 {strides = array<i32>} : memref<8x8x128xf32, #tpu.memory_space<vmem>>, vector<1x8x128xf32>,
    %c1 = arith.constant 1 : index
    %c0_25 = arith.constant 0 : index
    %c0_26 = arith.constant 0 : index
    %45 = vector.load %arg12[%c1, %c0_25, %c0_26] : memref<8x8x512xf32, #tpu.memory_space<vmem>>, vector<1x8x512xf32>
    %46 = vector.shape_cast %45 : vector<1x8x512xf32> to vector<8x512xf32>
    %c0_27 = arith.constant 0 : index
    %c0_28 = arith.constant 0 : index
    %47 = vector.load %arg5[%c0_27, %c0_28] : memref<128x512xf32, #tpu.memory_space<vmem>>, vector<128x512xf32>
    %cst_29 = arith.constant dense<0.000000e+00> : vector<8x512xf32>
    %48 = tpu.matmul %41, %47, %cst_29 {dimension_numbers = #tpu.dot_dimension_numbers<[1], [0], [0], [1], [0, 0, 1, 1], [], []>} : vector<8x128xf32>, vector<128x512xf32>, vector<8x512xf32> -> vector<8x512xf32>
    %49 = arith.addf %46, %48 : vector<8x512xf32>
    %50 = vector.extract_strided_slice %49 {offsets = [0, 0], sizes = [8, 128], strides = [1, 1]} : vector<8x512xf32> to vector<8x128xf32>
    %51 = arith.negf %50 : vector<8x128xf32>
    %52 = math.exp %51 : vector<8x128xf32>
    %cst_30 = arith.constant 1.000000e+00 : f32
    %53 = vector.broadcast %cst_30 : f32 to vector<8x128xf32>
    %54 = arith.addf %53, %52 : vector<8x128xf32>
    %55 = arith.divf %53, %54 : vector<8x128xf32>
    %56 = vector.extract_strided_slice %49 {offsets = [0, 128], sizes = [8, 128], strides = [1, 1]} : vector<8x512xf32> to vector<8x128xf32>
    %57 = arith.negf %56 : vector<8x128xf32>
    %58 = math.exp %57 : vector<8x128xf32>
    %cst_31 = arith.constant 1.000000e+00 : f32
    %59 = vector.broadcast %cst_31 : f32 to vector<8x128xf32>
    %60 = arith.addf %59, %58 : vector<8x128xf32>
    %61 = arith.divf %59, %60 : vector<8x128xf32>
    %62 = vector.extract_strided_slice %49 {offsets = [0, 256], sizes = [8, 128], strides = [1, 1]} : vector<8x512xf32> to vector<8x128xf32>
    %63 = math.tanh %62 : vector<8x128xf32>
    %64 = vector.extract_strided_slice %49 {offsets = [0, 384], sizes = [8, 128], strides = [1, 1]} : vector<8x512xf32> to vector<8x128xf32>
    %65 = arith.negf %64 : vector<8x128xf32>
    %66 = math.exp %65 : vector<8x128xf32>
    %cst_32 = arith.constant 1.000000e+00 : f32
    %67 = vector.broadcast %cst_32 : f32 to vector<8x128xf32>
    %68 = arith.addf %67, %66 : vector<8x128xf32>
    %69 = arith.divf %67, %68 : vector<8x128xf32>
    %70 = arith.mulf %61, %39 : vector<8x128xf32>
    %71 = arith.mulf %55, %63 : vector<8x128xf32>
    %72 = arith.addf %70, %71 : vector<8x128xf32>
    %73 = math.tanh %72 : vector<8x128xf32>
    %74 = arith.mulf %69, %73 : vector<8x128xf32>
    %c1_33 = arith.constant 1 : index
    %c0_34 = arith.constant 0 : index
    %c0_35 = arith.constant 0 : index
    %75 = vector.load %arg13[%c1_33, %c0_34, %c0_35] : memref<8x8x128xf32, #tpu.memory_space<vmem>>, vector<1x8x128xf32>
    %76 = vector.shape_cast %75 : vector<1x8x128xf32> to vector<8x128xf32>
    %77 = vector.shape_cast %74 : vector<8x128xf32> to vector<1x8x128xf32>
    tpu.vector_store %arg13[%c1_33, %c0_34, %c0_35], %77 {strides = array<i32>} : memref<8x8x128xf32, #tpu.memory_space<vmem>>, vector<1x8x128xf32>,
    %c2 = arith.constant 2 : index
    %c0_36 = arith.constant 0 : index
    %c0_37 = arith.constant 0 : index
    %78 = vector.load %arg12[%c2, %c0_36, %c0_37] : memref<8x8x512xf32, #tpu.memory_space<vmem>>, vector<1x8x512xf32>
    %79 = vector.shape_cast %78 : vector<1x8x512xf32> to vector<8x512xf32>
    %c0_38 = arith.constant 0 : index
    %c0_39 = arith.constant 0 : index
    %80 = vector.load %arg5[%c0_38, %c0_39] : memref<128x512xf32, #tpu.memory_space<vmem>>, vector<128x512xf32>
    %cst_40 = arith.constant dense<0.000000e+00> : vector<8x512xf32>
    %81 = tpu.matmul %74, %80, %cst_40 {dimension_numbers = #tpu.dot_dimension_numbers<[1], [0], [0], [1], [0, 0, 1, 1], [], []>} : vector<8x128xf32>, vector<128x512xf32>, vector<8x512xf32> -> vector<8x512xf32>
    %82 = arith.addf %79, %81 : vector<8x512xf32>
    %83 = vector.extract_strided_slice %82 {offsets = [0, 0], sizes = [8, 128], strides = [1, 1]} : vector<8x512xf32> to vector<8x128xf32>
    %84 = arith.negf %83 : vector<8x128xf32>
    %85 = math.exp %84 : vector<8x128xf32>
    %cst_41 = arith.constant 1.000000e+00 : f32
    %86 = vector.broadcast %cst_41 : f32 to vector<8x128xf32>
    %87 = arith.addf %86, %85 : vector<8x128xf32>
    %88 = arith.divf %86, %87 : vector<8x128xf32>
    %89 = vector.extract_strided_slice %82 {offsets = [0, 128], sizes = [8, 128], strides = [1, 1]} : vector<8x512xf32> to vector<8x128xf32>
    %90 = arith.negf %89 : vector<8x128xf32>
    %91 = math.exp %90 : vector<8x128xf32>
    %cst_42 = arith.constant 1.000000e+00 : f32
    %92 = vector.broadcast %cst_42 : f32 to vector<8x128xf32>
    %93 = arith.addf %92, %91 : vector<8x128xf32>
    %94 = arith.divf %92, %93 : vector<8x128xf32>
    %95 = vector.extract_strided_slice %82 {offsets = [0, 256], sizes = [8, 128], strides = [1, 1]} : vector<8x512xf32> to vector<8x128xf32>
    %96 = math.tanh %95 : vector<8x128xf32>
    %97 = vector.extract_strided_slice %82 {offsets = [0, 384], sizes = [8, 128], strides = [1, 1]} : vector<8x512xf32> to vector<8x128xf32>
    %98 = arith.negf %97 : vector<8x128xf32>
    %99 = math.exp %98 : vector<8x128xf32>
    %cst_43 = arith.constant 1.000000e+00 : f32
    %100 = vector.broadcast %cst_43 : f32 to vector<8x128xf32>
    %101 = arith.addf %100, %99 : vector<8x128xf32>
    %102 = arith.divf %100, %101 : vector<8x128xf32>
    %103 = arith.mulf %94, %72 : vector<8x128xf32>
    %104 = arith.mulf %88, %96 : vector<8x128xf32>
    %105 = arith.addf %103, %104 : vector<8x128xf32>
    %106 = math.tanh %105 : vector<8x128xf32>
    %107 = arith.mulf %102, %106 : vector<8x128xf32>
    %c2_44 = arith.constant 2 : index
    %c0_45 = arith.constant 0 : index
    %c0_46 = arith.constant 0 : index
    %108 = vector.load %arg13[%c2_44, %c0_45, %c0_46] : memref<8x8x128xf32, #tpu.memory_space<vmem>>, vector<1x8x128xf32>
    %109 = vector.shape_cast %108 : vector<1x8x128xf32> to vector<8x128xf32>
    %110 = vector.shape_cast %107 : vector<8x128xf32> to vector<1x8x128xf32>
    tpu.vector_store %arg13[%c2_44, %c0_45, %c0_46], %110 {strides = array<i32>} : memref<8x8x128xf32, #tpu.memory_space<vmem>>, vector<1x8x128xf32>,
    %c3 = arith.constant 3 : index
    %c0_47 = arith.constant 0 : index
    %c0_48 = arith.constant 0 : index
    %111 = vector.load %arg12[%c3, %c0_47, %c0_48] : memref<8x8x512xf32, #tpu.memory_space<vmem>>, vector<1x8x512xf32>
    %112 = vector.shape_cast %111 : vector<1x8x512xf32> to vector<8x512xf32>
    %c0_49 = arith.constant 0 : index
    %c0_50 = arith.constant 0 : index
    %113 = vector.load %arg5[%c0_49, %c0_50] : memref<128x512xf32, #tpu.memory_space<vmem>>, vector<128x512xf32>
    %cst_51 = arith.constant dense<0.000000e+00> : vector<8x512xf32>
    %114 = tpu.matmul %107, %113, %cst_51 {dimension_numbers = #tpu.dot_dimension_numbers<[1], [0], [0], [1], [0, 0, 1, 1], [], []>} : vector<8x128xf32>, vector<128x512xf32>, vector<8x512xf32> -> vector<8x512xf32>
    %115 = arith.addf %112, %114 : vector<8x512xf32>
    %116 = vector.extract_strided_slice %115 {offsets = [0, 0], sizes = [8, 128], strides = [1, 1]} : vector<8x512xf32> to vector<8x128xf32>
    %117 = arith.negf %116 : vector<8x128xf32>
    %118 = math.exp %117 : vector<8x128xf32>
    %cst_52 = arith.constant 1.000000e+00 : f32
    %119 = vector.broadcast %cst_52 : f32 to vector<8x128xf32>
    %120 = arith.addf %119, %118 : vector<8x128xf32>
    %121 = arith.divf %119, %120 : vector<8x128xf32>
    %122 = vector.extract_strided_slice %115 {offsets = [0, 128], sizes = [8, 128], strides = [1, 1]} : vector<8x512xf32> to vector<8x128xf32>
    %123 = arith.negf %122 : vector<8x128xf32>
    %124 = math.exp %123 : vector<8x128xf32>
    %cst_53 = arith.constant 1.000000e+00 : f32
    %125 = vector.broadcast %cst_53 : f32 to vector<8x128xf32>
    %126 = arith.addf %125, %124 : vector<8x128xf32>
    %127 = arith.divf %125, %126 : vector<8x128xf32>
    %128 = vector.extract_strided_slice %115 {offsets = [0, 256], sizes = [8, 128], strides = [1, 1]} : vector<8x512xf32> to vector<8x128xf32>
    %129 = math.tanh %128 : vector<8x128xf32>
    %130 = vector.extract_strided_slice %115 {offsets = [0, 384], sizes = [8, 128], strides = [1, 1]} : vector<8x512xf32> to vector<8x128xf32>
    %131 = arith.negf %130 : vector<8x128xf32>
    %132 = math.exp %131 : vector<8x128xf32>
    %cst_54 = arith.constant 1.000000e+00 : f32
    %133 = vector.broadcast %cst_54 : f32 to vector<8x128xf32>
    %134 = arith.addf %133, %132 : vector<8x128xf32>
    %135 = arith.divf %133, %134 : vector<8x128xf32>
    %136 = arith.mulf %127, %105 : vector<8x128xf32>
    %137 = arith.mulf %121, %129 : vector<8x128xf32>
    %138 = arith.addf %136, %137 : vector<8x128xf32>
    %139 = math.tanh %138 : vector<8x128xf32>
    %140 = arith.mulf %135, %139 : vector<8x128xf32>
    %c3_55 = arith.constant 3 : index
    %c0_56 = arith.constant 0 : index
    %c0_57 = arith.constant 0 : index
    %141 = vector.load %arg13[%c3_55, %c0_56, %c0_57] : memref<8x8x128xf32, #tpu.memory_space<vmem>>, vector<1x8x128xf32>
    %142 = vector.shape_cast %141 : vector<1x8x128xf32> to vector<8x128xf32>
    %143 = vector.shape_cast %140 : vector<8x128xf32> to vector<1x8x128xf32>
    tpu.vector_store %arg13[%c3_55, %c0_56, %c0_57], %143 {strides = array<i32>} : memref<8x8x128xf32, #tpu.memory_space<vmem>>, vector<1x8x128xf32>,
    %c4 = arith.constant 4 : index
    %c0_58 = arith.constant 0 : index
    %c0_59 = arith.constant 0 : index
    %144 = vector.load %arg12[%c4, %c0_58, %c0_59] : memref<8x8x512xf32, #tpu.memory_space<vmem>>, vector<1x8x512xf32>
    %145 = vector.shape_cast %144 : vector<1x8x512xf32> to vector<8x512xf32>
    %c0_60 = arith.constant 0 : index
    %c0_61 = arith.constant 0 : index
    %146 = vector.load %arg5[%c0_60, %c0_61] : memref<128x512xf32, #tpu.memory_space<vmem>>, vector<128x512xf32>
    %cst_62 = arith.constant dense<0.000000e+00> : vector<8x512xf32>
    %147 = tpu.matmul %140, %146, %cst_62 {dimension_numbers = #tpu.dot_dimension_numbers<[1], [0], [0], [1], [0, 0, 1, 1], [], []>} : vector<8x128xf32>, vector<128x512xf32>, vector<8x512xf32> -> vector<8x512xf32>
    %148 = arith.addf %145, %147 : vector<8x512xf32>
    %149 = vector.extract_strided_slice %148 {offsets = [0, 0], sizes = [8, 128], strides = [1, 1]} : vector<8x512xf32> to vector<8x128xf32>
    %150 = arith.negf %149 : vector<8x128xf32>
    %151 = math.exp %150 : vector<8x128xf32>
    %cst_63 = arith.constant 1.000000e+00 : f32
    %152 = vector.broadcast %cst_63 : f32 to vector<8x128xf32>
    %153 = arith.addf %152, %151 : vector<8x128xf32>
    %154 = arith.divf %152, %153 : vector<8x128xf32>
    %155 = vector.extract_strided_slice %148 {offsets = [0, 128], sizes = [8, 128], strides = [1, 1]} : vector<8x512xf32> to vector<8x128xf32>
    %156 = arith.negf %155 : vector<8x128xf32>
    %157 = math.exp %156 : vector<8x128xf32>
    %cst_64 = arith.constant 1.000000e+00 : f32
    %158 = vector.broadcast %cst_64 : f32 to vector<8x128xf32>
    %159 = arith.addf %158, %157 : vector<8x128xf32>
    %160 = arith.divf %158, %159 : vector<8x128xf32>
    %161 = vector.extract_strided_slice %148 {offsets = [0, 256], sizes = [8, 128], strides = [1, 1]} : vector<8x512xf32> to vector<8x128xf32>
    %162 = math.tanh %161 : vector<8x128xf32>
    %163 = vector.extract_strided_slice %148 {offsets = [0, 384], sizes = [8, 128], strides = [1, 1]} : vector<8x512xf32> to vector<8x128xf32>
    %164 = arith.negf %163 : vector<8x128xf32>
    %165 = math.exp %164 : vector<8x128xf32>
    %cst_65 = arith.constant 1.000000e+00 : f32
    %166 = vector.broadcast %cst_65 : f32 to vector<8x128xf32>
    %167 = arith.addf %166, %165 : vector<8x128xf32>
    %168 = arith.divf %166, %167 : vector<8x128xf32>
    %169 = arith.mulf %160, %138 : vector<8x128xf32>
    %170 = arith.mulf %154, %162 : vector<8x128xf32>
    %171 = arith.addf %169, %170 : vector<8x128xf32>
    %172 = math.tanh %171 : vector<8x128xf32>
    %173 = arith.mulf %168, %172 : vector<8x128xf32>
    %c4_66 = arith.constant 4 : index
    %c0_67 = arith.constant 0 : index
    %c0_68 = arith.constant 0 : index
    %174 = vector.load %arg13[%c4_66, %c0_67, %c0_68] : memref<8x8x128xf32, #tpu.memory_space<vmem>>, vector<1x8x128xf32>
    %175 = vector.shape_cast %174 : vector<1x8x128xf32> to vector<8x128xf32>
    %176 = vector.shape_cast %173 : vector<8x128xf32> to vector<1x8x128xf32>
    tpu.vector_store %arg13[%c4_66, %c0_67, %c0_68], %176 {strides = array<i32>} : memref<8x8x128xf32, #tpu.memory_space<vmem>>, vector<1x8x128xf32>,
    %c5 = arith.constant 5 : index
    %c0_69 = arith.constant 0 : index
    %c0_70 = arith.constant 0 : index
    %177 = vector.load %arg12[%c5, %c0_69, %c0_70] : memref<8x8x512xf32, #tpu.memory_space<vmem>>, vector<1x8x512xf32>
    %178 = vector.shape_cast %177 : vector<1x8x512xf32> to vector<8x512xf32>
    %c0_71 = arith.constant 0 : index
    %c0_72 = arith.constant 0 : index
    %179 = vector.load %arg5[%c0_71, %c0_72] : memref<128x512xf32, #tpu.memory_space<vmem>>, vector<128x512xf32>
    %cst_73 = arith.constant dense<0.000000e+00> : vector<8x512xf32>
    %180 = tpu.matmul %173, %179, %cst_73 {dimension_numbers = #tpu.dot_dimension_numbers<[1], [0], [0], [1], [0, 0, 1, 1], [], []>} : vector<8x128xf32>, vector<128x512xf32>, vector<8x512xf32> -> vector<8x512xf32>
    %181 = arith.addf %178, %180 : vector<8x512xf32>
    %182 = vector.extract_strided_slice %181 {offsets = [0, 0], sizes = [8, 128], strides = [1, 1]} : vector<8x512xf32> to vector<8x128xf32>
    %183 = arith.negf %182 : vector<8x128xf32>
    %184 = math.exp %183 : vector<8x128xf32>
    %cst_74 = arith.constant 1.000000e+00 : f32
    %185 = vector.broadcast %cst_74 : f32 to vector<8x128xf32>
    %186 = arith.addf %185, %184 : vector<8x128xf32>
    %187 = arith.divf %185, %186 : vector<8x128xf32>
    %188 = vector.extract_strided_slice %181 {offsets = [0, 128], sizes = [8, 128], strides = [1, 1]} : vector<8x512xf32> to vector<8x128xf32>
    %189 = arith.negf %188 : vector<8x128xf32>
    %190 = math.exp %189 : vector<8x128xf32>
    %cst_75 = arith.constant 1.000000e+00 : f32
    %191 = vector.broadcast %cst_75 : f32 to vector<8x128xf32>
    %192 = arith.addf %191, %190 : vector<8x128xf32>
    %193 = arith.divf %191, %192 : vector<8x128xf32>
    %194 = vector.extract_strided_slice %181 {offsets = [0, 256], sizes = [8, 128], strides = [1, 1]} : vector<8x512xf32> to vector<8x128xf32>
    %195 = math.tanh %194 : vector<8x128xf32>
    %196 = vector.extract_strided_slice %181 {offsets = [0, 384], sizes = [8, 128], strides = [1, 1]} : vector<8x512xf32> to vector<8x128xf32>
    %197 = arith.negf %196 : vector<8x128xf32>
    %198 = math.exp %197 : vector<8x128xf32>
    %cst_76 = arith.constant 1.000000e+00 : f32
    %199 = vector.broadcast %cst_76 : f32 to vector<8x128xf32>
    %200 = arith.addf %199, %198 : vector<8x128xf32>
    %201 = arith.divf %199, %200 : vector<8x128xf32>
    %202 = arith.mulf %193, %171 : vector<8x128xf32>
    %203 = arith.mulf %187, %195 : vector<8x128xf32>
    %204 = arith.addf %202, %203 : vector<8x128xf32>
    %205 = math.tanh %204 : vector<8x128xf32>
    %206 = arith.mulf %201, %205 : vector<8x128xf32>
    %c5_77 = arith.constant 5 : index
    %c0_78 = arith.constant 0 : index
    %c0_79 = arith.constant 0 : index
    %207 = vector.load %arg13[%c5_77, %c0_78, %c0_79] : memref<8x8x128xf32, #tpu.memory_space<vmem>>, vector<1x8x128xf32>
    %208 = vector.shape_cast %207 : vector<1x8x128xf32> to vector<8x128xf32>
    %209 = vector.shape_cast %206 : vector<8x128xf32> to vector<1x8x128xf32>
    tpu.vector_store %arg13[%c5_77, %c0_78, %c0_79], %209 {strides = array<i32>} : memref<8x8x128xf32, #tpu.memory_space<vmem>>, vector<1x8x128xf32>,
    %c6 = arith.constant 6 : index
    %c0_80 = arith.constant 0 : index
    %c0_81 = arith.constant 0 : index
    %210 = vector.load %arg12[%c6, %c0_80, %c0_81] : memref<8x8x512xf32, #tpu.memory_space<vmem>>, vector<1x8x512xf32>
    %211 = vector.shape_cast %210 : vector<1x8x512xf32> to vector<8x512xf32>
    %c0_82 = arith.constant 0 : index
    %c0_83 = arith.constant 0 : index
    %212 = vector.load %arg5[%c0_82, %c0_83] : memref<128x512xf32, #tpu.memory_space<vmem>>, vector<128x512xf32>
    %cst_84 = arith.constant dense<0.000000e+00> : vector<8x512xf32>
    %213 = tpu.matmul %206, %212, %cst_84 {dimension_numbers = #tpu.dot_dimension_numbers<[1], [0], [0], [1], [0, 0, 1, 1], [], []>} : vector<8x128xf32>, vector<128x512xf32>, vector<8x512xf32> -> vector<8x512xf32>
    %214 = arith.addf %211, %213 : vector<8x512xf32>
    %215 = vector.extract_strided_slice %214 {offsets = [0, 0], sizes = [8, 128], strides = [1, 1]} : vector<8x512xf32> to vector<8x128xf32>
    %216 = arith.negf %215 : vector<8x128xf32>
    %217 = math.exp %216 : vector<8x128xf32>
    %cst_85 = arith.constant 1.000000e+00 : f32
    %218 = vector.broadcast %cst_85 : f32 to vector<8x128xf32>
    %219 = arith.addf %218, %217 : vector<8x128xf32>
    %220 = arith.divf %218, %219 : vector<8x128xf32>
    %221 = vector.extract_strided_slice %214 {offsets = [0, 128], sizes = [8, 128], strides = [1, 1]} : vector<8x512xf32> to vector<8x128xf32>
    %222 = arith.negf %221 : vector<8x128xf32>
    %223 = math.exp %222 : vector<8x128xf32>
    %cst_86 = arith.constant 1.000000e+00 : f32
    %224 = vector.broadcast %cst_86 : f32 to vector<8x128xf32>
    %225 = arith.addf %224, %223 : vector<8x128xf32>
    %226 = arith.divf %224, %225 : vector<8x128xf32>
    %227 = vector.extract_strided_slice %214 {offsets = [0, 256], sizes = [8, 128], strides = [1, 1]} : vector<8x512xf32> to vector<8x128xf32>
    %228 = math.tanh %227 : vector<8x128xf32>
    %229 = vector.extract_strided_slice %214 {offsets = [0, 384], sizes = [8, 128], strides = [1, 1]} : vector<8x512xf32> to vector<8x128xf32>
    %230 = arith.negf %229 : vector<8x128xf32>
    %231 = math.exp %230 : vector<8x128xf32>
    %cst_87 = arith.constant 1.000000e+00 : f32
    %232 = vector.broadcast %cst_87 : f32 to vector<8x128xf32>
    %233 = arith.addf %232, %231 : vector<8x128xf32>
    %234 = arith.divf %232, %233 : vector<8x128xf32>
    %235 = arith.mulf %226, %204 : vector<8x128xf32>
    %236 = arith.mulf %220, %228 : vector<8x128xf32>
    %237 = arith.addf %235, %236 : vector<8x128xf32>
    %238 = math.tanh %237 : vector<8x128xf32>
    %239 = arith.mulf %234, %238 : vector<8x128xf32>
    %c6_88 = arith.constant 6 : index
    %c0_89 = arith.constant 0 : index
    %c0_90 = arith.constant 0 : index
    %240 = vector.load %arg13[%c6_88, %c0_89, %c0_90] : memref<8x8x128xf32, #tpu.memory_space<vmem>>, vector<1x8x128xf32>
    %241 = vector.shape_cast %240 : vector<1x8x128xf32> to vector<8x128xf32>
    %242 = vector.shape_cast %239 : vector<8x128xf32> to vector<1x8x128xf32>
    tpu.vector_store %arg13[%c6_88, %c0_89, %c0_90], %242 {strides = array<i32>} : memref<8x8x128xf32, #tpu.memory_space<vmem>>, vector<1x8x128xf32>,
    %c7 = arith.constant 7 : index
    %c0_91 = arith.constant 0 : index
    %c0_92 = arith.constant 0 : index
    %243 = vector.load %arg12[%c7, %c0_91, %c0_92] : memref<8x8x512xf32, #tpu.memory_space<vmem>>, vector<1x8x512xf32>
    %244 = vector.shape_cast %243 : vector<1x8x512xf32> to vector<8x512xf32>
    %c0_93 = arith.constant 0 : index
    %c0_94 = arith.constant 0 : index
    %245 = vector.load %arg5[%c0_93, %c0_94] : memref<128x512xf32, #tpu.memory_space<vmem>>, vector<128x512xf32>
    %cst_95 = arith.constant dense<0.000000e+00> : vector<8x512xf32>
    %246 = tpu.matmul %239, %245, %cst_95 {dimension_numbers = #tpu.dot_dimension_numbers<[1], [0], [0], [1], [0, 0, 1, 1], [], []>} : vector<8x128xf32>, vector<128x512xf32>, vector<8x512xf32> -> vector<8x512xf32>
    %247 = arith.addf %244, %246 : vector<8x512xf32>
    %248 = vector.extract_strided_slice %247 {offsets = [0, 0], sizes = [8, 128], strides = [1, 1]} : vector<8x512xf32> to vector<8x128xf32>
    %249 = arith.negf %248 : vector<8x128xf32>
    %250 = math.exp %249 : vector<8x128xf32>
    %cst_96 = arith.constant 1.000000e+00 : f32
    %251 = vector.broadcast %cst_96 : f32 to vector<8x128xf32>
    %252 = arith.addf %251, %250 : vector<8x128xf32>
    %253 = arith.divf %251, %252 : vector<8x128xf32>
    %254 = vector.extract_strided_slice %247 {offsets = [0, 128], sizes = [8, 128], strides = [1, 1]} : vector<8x512xf32> to vector<8x128xf32>
    %255 = arith.negf %254 : vector<8x128xf32>
    %256 = math.exp %255 : vector<8x128xf32>
    %cst_97 = arith.constant 1.000000e+00 : f32
    %257 = vector.broadcast %cst_97 : f32 to vector<8x128xf32>
    %258 = arith.addf %257, %256 : vector<8x128xf32>
    %259 = arith.divf %257, %258 : vector<8x128xf32>
    %260 = vector.extract_strided_slice %247 {offsets = [0, 256], sizes = [8, 128], strides = [1, 1]} : vector<8x512xf32> to vector<8x128xf32>
    %261 = math.tanh %260 : vector<8x128xf32>
    %262 = vector.extract_strided_slice %247 {offsets = [0, 384], sizes = [8, 128], strides = [1, 1]} : vector<8x512xf32> to vector<8x128xf32>
    %263 = arith.negf %262 : vector<8x128xf32>
    %264 = math.exp %263 : vector<8x128xf32>
    %cst_98 = arith.constant 1.000000e+00 : f32
    %265 = vector.broadcast %cst_98 : f32 to vector<8x128xf32>
    %266 = arith.addf %265, %264 : vector<8x128xf32>
    %267 = arith.divf %265, %266 : vector<8x128xf32>
    %268 = arith.mulf %259, %237 : vector<8x128xf32>
    %269 = arith.mulf %253, %261 : vector<8x128xf32>
    %270 = arith.addf %268, %269 : vector<8x128xf32>
    %271 = math.tanh %270 : vector<8x128xf32>
    %272 = arith.mulf %267, %271 : vector<8x128xf32>
    %c7_99 = arith.constant 7 : index
    %c0_100 = arith.constant 0 : index
    %c0_101 = arith.constant 0 : index
    %273 = vector.load %arg13[%c7_99, %c0_100, %c0_101] : memref<8x8x128xf32, #tpu.memory_space<vmem>>, vector<1x8x128xf32>
    %274 = vector.shape_cast %273 : vector<1x8x128xf32> to vector<8x128xf32>
    %275 = vector.shape_cast %272 : vector<8x128xf32> to vector<1x8x128xf32>
    tpu.vector_store %arg13[%c7_99, %c0_100, %c0_101], %275 {strides = array<i32>} : memref<8x8x128xf32, #tpu.memory_space<vmem>>, vector<1x8x128xf32>,
    %c0_102 = arith.constant 0 : index
    %c0_103 = arith.constant 0 : index
    %c0_104 = arith.constant 0 : index
    %276 = vector.load %arg13[%c0_102, %c0_103, %c0_104] : memref<8x8x128xf32, #tpu.memory_space<vmem>>, vector<8x8x128xf32>
    %277 = vector.shape_cast %276 : vector<8x8x128xf32> to vector<64x128xf32>
    %c0_105 = arith.constant 0 : index
    %c0_106 = arith.constant 0 : index
    %278 = vector.load %arg4[%c0_105, %c0_106] : memref<128x512xf32, #tpu.memory_space<vmem>>, vector<128x512xf32>
    %cst_107 = arith.constant dense<0.000000e+00> : vector<64x512xf32>
    %279 = tpu.matmul %277, %278, %cst_107 {dimension_numbers = #tpu.dot_dimension_numbers<[1], [0], [0], [1], [0, 0, 1, 1], [], []>} : vector<64x128xf32>, vector<128x512xf32>, vector<64x512xf32> -> vector<64x512xf32>
    %280 = vector.shape_cast %279 : vector<64x512xf32> to vector<8x8x512xf32>
    %c0_108 = arith.constant 0 : index
    %c0_109 = arith.constant 0 : index
    %281 = vector.load %arg8[%c0_108, %c0_109] : memref<1x512xf32, #tpu.memory_space<vmem>>, vector<1x512xf32>
    %282 = vector.shape_cast %281 : vector<1x512xf32> to vector<1x1x512xf32>
    %283 = vector.broadcast %282 : vector<1x1x512xf32> to vector<8x8x512xf32>
    %284 = arith.addf %280, %283 : vector<8x8x512xf32>
    %c0_110 = arith.constant 0 : index
    %c0_111 = arith.constant 0 : index
    %c0_112 = arith.constant 0 : index
    %285 = vector.load %arg12[%c0_110, %c0_111, %c0_112] : memref<8x8x512xf32, #tpu.memory_space<vmem>>, vector<8x8x512xf32>
    tpu.vector_store %arg12[%c0_110, %c0_111, %c0_112], %284 {strides = array<i32>} : memref<8x8x512xf32, #tpu.memory_space<vmem>>, vector<8x8x512xf32>,
    %cst_113 = arith.constant 0.000000e+00 : f32
    %286 = vector.broadcast %cst_113 : f32 to vector<8x128xf32>
    %c0_114 = arith.constant 0 : index
    %c0_115 = arith.constant 0 : index
    %c0_116 = arith.constant 0 : index
    %287 = vector.load %arg12[%c0_114, %c0_115, %c0_116] : memref<8x8x512xf32, #tpu.memory_space<vmem>>, vector<1x8x512xf32>
    %288 = vector.shape_cast %287 : vector<1x8x512xf32> to vector<8x512xf32>
    %c0_117 = arith.constant 0 : index
    %c0_118 = arith.constant 0 : index
    %289 = vector.load %arg6[%c0_117, %c0_118] : memref<128x512xf32, #tpu.memory_space<vmem>>, vector<128x512xf32>
    %cst_119 = arith.constant dense<0.000000e+00> : vector<8x512xf32>
    %290 = tpu.matmul %286, %289, %cst_119 {dimension_numbers = #tpu.dot_dimension_numbers<[1], [0], [0], [1], [0, 0, 1, 1], [], []>} : vector<8x128xf32>, vector<128x512xf32>, vector<8x512xf32> -> vector<8x512xf32>
    %291 = arith.addf %288, %290 : vector<8x512xf32>
    %292 = vector.extract_strided_slice %291 {offsets = [0, 0], sizes = [8, 128], strides = [1, 1]} : vector<8x512xf32> to vector<8x128xf32>
    %293 = arith.negf %292 : vector<8x128xf32>
    %294 = math.exp %293 : vector<8x128xf32>
    %cst_120 = arith.constant 1.000000e+00 : f32
    %295 = vector.broadcast %cst_120 : f32 to vector<8x128xf32>
    %296 = arith.addf %295, %294 : vector<8x128xf32>
    %297 = arith.divf %295, %296 : vector<8x128xf32>
    %298 = vector.extract_strided_slice %291 {offsets = [0, 128], sizes = [8, 128], strides = [1, 1]} : vector<8x512xf32> to vector<8x128xf32>
    %299 = arith.negf %298 : vector<8x128xf32>
    %300 = math.exp %299 : vector<8x128xf32>
    %cst_121 = arith.constant 1.000000e+00 : f32
    %301 = vector.broadcast %cst_121 : f32 to vector<8x128xf32>
    %302 = arith.addf %301, %300 : vector<8x128xf32>
    %303 = arith.divf %301, %302 : vector<8x128xf32>
    %304 = vector.extract_strided_slice %291 {offsets = [0, 256], sizes = [8, 128], strides = [1, 1]} : vector<8x512xf32> to vector<8x128xf32>
    %305 = math.tanh %304 : vector<8x128xf32>
    %306 = vector.extract_strided_slice %291 {offsets = [0, 384], sizes = [8, 128], strides = [1, 1]} : vector<8x512xf32> to vector<8x128xf32>
    %307 = arith.negf %306 : vector<8x128xf32>
    %308 = math.exp %307 : vector<8x128xf32>
    %cst_122 = arith.constant 1.000000e+00 : f32
    %309 = vector.broadcast %cst_122 : f32 to vector<8x128xf32>
    %310 = arith.addf %309, %308 : vector<8x128xf32>
    %311 = arith.divf %309, %310 : vector<8x128xf32>
    %312 = arith.mulf %303, %286 : vector<8x128xf32>
    %313 = arith.mulf %297, %305 : vector<8x128xf32>
    %314 = arith.addf %312, %313 : vector<8x128xf32>
    %315 = math.tanh %314 : vector<8x128xf32>
    %316 = arith.mulf %311, %315 : vector<8x128xf32>
    %c0_i32 = arith.constant 0 : i32
    %317 = vector.broadcast %c0_i32 : i32 to vector<8x1xi32>
    %318 = arith.cmpi eq, %0, %317 : vector<8x1xi32>
    %319 = vector.shape_cast %318 : vector<8x1xi1> to vector<8x1xi1>
    %320 = vector.broadcast %319 : vector<8x1xi1> to vector<8x128xi1>
    %321 = arith.select %320, %316, %286 : vector<8x128xi1>, vector<8x128xf32>
    %c1_123 = arith.constant 1 : index
    %c0_124 = arith.constant 0 : index
    %c0_125 = arith.constant 0 : index
    %322 = vector.load %arg12[%c1_123, %c0_124, %c0_125] : memref<8x8x512xf32, #tpu.memory_space<vmem>>, vector<1x8x512xf32>
    %323 = vector.shape_cast %322 : vector<1x8x512xf32> to vector<8x512xf32>
    %c0_126 = arith.constant 0 : index
    %c0_127 = arith.constant 0 : index
    %324 = vector.load %arg6[%c0_126, %c0_127] : memref<128x512xf32, #tpu.memory_space<vmem>>, vector<128x512xf32>
    %cst_128 = arith.constant dense<0.000000e+00> : vector<8x512xf32>
    %325 = tpu.matmul %316, %324, %cst_128 {dimension_numbers = #tpu.dot_dimension_numbers<[1], [0], [0], [1], [0, 0, 1, 1], [], []>} : vector<8x128xf32>, vector<128x512xf32>, vector<8x512xf32> -> vector<8x512xf32>
    %326 = arith.addf %323, %325 : vector<8x512xf32>
    %327 = vector.extract_strided_slice %326 {offsets = [0, 0], sizes = [8, 128], strides = [1, 1]} : vector<8x512xf32> to vector<8x128xf32>
    %328 = arith.negf %327 : vector<8x128xf32>
    %329 = math.exp %328 : vector<8x128xf32>
    %cst_129 = arith.constant 1.000000e+00 : f32
    %330 = vector.broadcast %cst_129 : f32 to vector<8x128xf32>
    %331 = arith.addf %330, %329 : vector<8x128xf32>
    %332 = arith.divf %330, %331 : vector<8x128xf32>
    %333 = vector.extract_strided_slice %326 {offsets = [0, 128], sizes = [8, 128], strides = [1, 1]} : vector<8x512xf32> to vector<8x128xf32>
    %334 = arith.negf %333 : vector<8x128xf32>
    %335 = math.exp %334 : vector<8x128xf32>
    %cst_130 = arith.constant 1.000000e+00 : f32
    %336 = vector.broadcast %cst_130 : f32 to vector<8x128xf32>
    %337 = arith.addf %336, %335 : vector<8x128xf32>
    %338 = arith.divf %336, %337 : vector<8x128xf32>
    %339 = vector.extract_strided_slice %326 {offsets = [0, 256], sizes = [8, 128], strides = [1, 1]} : vector<8x512xf32> to vector<8x128xf32>
    %340 = math.tanh %339 : vector<8x128xf32>
    %341 = vector.extract_strided_slice %326 {offsets = [0, 384], sizes = [8, 128], strides = [1, 1]} : vector<8x512xf32> to vector<8x128xf32>
    %342 = arith.negf %341 : vector<8x128xf32>
    %343 = math.exp %342 : vector<8x128xf32>
    %cst_131 = arith.constant 1.000000e+00 : f32
    %344 = vector.broadcast %cst_131 : f32 to vector<8x128xf32>
    %345 = arith.addf %344, %343 : vector<8x128xf32>
    %346 = arith.divf %344, %345 : vector<8x128xf32>
    %347 = arith.mulf %338, %314 : vector<8x128xf32>
    %348 = arith.mulf %332, %340 : vector<8x128xf32>
    %349 = arith.addf %347, %348 : vector<8x128xf32>
    %350 = math.tanh %349 : vector<8x128xf32>
    %351 = arith.mulf %346, %350 : vector<8x128xf32>
    %c1_i32 = arith.constant 1 : i32
    %352 = vector.broadcast %c1_i32 : i32 to vector<8x1xi32>
    %353 = arith.cmpi eq, %0, %352 : vector<8x1xi32>
    %354 = vector.shape_cast %353 : vector<8x1xi1> to vector<8x1xi1>
    %355 = vector.broadcast %354 : vector<8x1xi1> to vector<8x128xi1>
    %356 = arith.select %355, %351, %321 : vector<8x128xi1>, vector<8x128xf32>
    %c2_132 = arith.constant 2 : index
    %c0_133 = arith.constant 0 : index
    %c0_134 = arith.constant 0 : index
    %357 = vector.load %arg12[%c2_132, %c0_133, %c0_134] : memref<8x8x512xf32, #tpu.memory_space<vmem>>, vector<1x8x512xf32>
    %358 = vector.shape_cast %357 : vector<1x8x512xf32> to vector<8x512xf32>
    %c0_135 = arith.constant 0 : index
    %c0_136 = arith.constant 0 : index
    %359 = vector.load %arg6[%c0_135, %c0_136] : memref<128x512xf32, #tpu.memory_space<vmem>>, vector<128x512xf32>
    %cst_137 = arith.constant dense<0.000000e+00> : vector<8x512xf32>
    %360 = tpu.matmul %351, %359, %cst_137 {dimension_numbers = #tpu.dot_dimension_numbers<[1], [0], [0], [1], [0, 0, 1, 1], [], []>} : vector<8x128xf32>, vector<128x512xf32>, vector<8x512xf32> -> vector<8x512xf32>
    %361 = arith.addf %358, %360 : vector<8x512xf32>
    %362 = vector.extract_strided_slice %361 {offsets = [0, 0], sizes = [8, 128], strides = [1, 1]} : vector<8x512xf32> to vector<8x128xf32>
    %363 = arith.negf %362 : vector<8x128xf32>
    %364 = math.exp %363 : vector<8x128xf32>
    %cst_138 = arith.constant 1.000000e+00 : f32
    %365 = vector.broadcast %cst_138 : f32 to vector<8x128xf32>
    %366 = arith.addf %365, %364 : vector<8x128xf32>
    %367 = arith.divf %365, %366 : vector<8x128xf32>
    %368 = vector.extract_strided_slice %361 {offsets = [0, 128], sizes = [8, 128], strides = [1, 1]} : vector<8x512xf32> to vector<8x128xf32>
    %369 = arith.negf %368 : vector<8x128xf32>
    %370 = math.exp %369 : vector<8x128xf32>
    %cst_139 = arith.constant 1.000000e+00 : f32
    %371 = vector.broadcast %cst_139 : f32 to vector<8x128xf32>
    %372 = arith.addf %371, %370 : vector<8x128xf32>
    %373 = arith.divf %371, %372 : vector<8x128xf32>
    %374 = vector.extract_strided_slice %361 {offsets = [0, 256], sizes = [8, 128], strides = [1, 1]} : vector<8x512xf32> to vector<8x128xf32>
    %375 = math.tanh %374 : vector<8x128xf32>
    %376 = vector.extract_strided_slice %361 {offsets = [0, 384], sizes = [8, 128], strides = [1, 1]} : vector<8x512xf32> to vector<8x128xf32>
    %377 = arith.negf %376 : vector<8x128xf32>
    %378 = math.exp %377 : vector<8x128xf32>
    %cst_140 = arith.constant 1.000000e+00 : f32
    %379 = vector.broadcast %cst_140 : f32 to vector<8x128xf32>
    %380 = arith.addf %379, %378 : vector<8x128xf32>
    %381 = arith.divf %379, %380 : vector<8x128xf32>
    %382 = arith.mulf %373, %349 : vector<8x128xf32>
    %383 = arith.mulf %367, %375 : vector<8x128xf32>
    %384 = arith.addf %382, %383 : vector<8x128xf32>
    %385 = math.tanh %384 : vector<8x128xf32>
    %386 = arith.mulf %381, %385 : vector<8x128xf32>
    %c2_i32 = arith.constant 2 : i32
    %387 = vector.broadcast %c2_i32 : i32 to vector<8x1xi32>
    %388 = arith.cmpi eq, %0, %387 : vector<8x1xi32>
    %389 = vector.shape_cast %388 : vector<8x1xi1> to vector<8x1xi1>
    %390 = vector.broadcast %389 : vector<8x1xi1> to vector<8x128xi1>
    %391 = arith.select %390, %386, %356 : vector<8x128xi1>, vector<8x128xf32>
    %c3_141 = arith.constant 3 : index
    %c0_142 = arith.constant 0 : index
    %c0_143 = arith.constant 0 : index
    %392 = vector.load %arg12[%c3_141, %c0_142, %c0_143] : memref<8x8x512xf32, #tpu.memory_space<vmem>>, vector<1x8x512xf32>
    %393 = vector.shape_cast %392 : vector<1x8x512xf32> to vector<8x512xf32>
    %c0_144 = arith.constant 0 : index
    %c0_145 = arith.constant 0 : index
    %394 = vector.load %arg6[%c0_144, %c0_145] : memref<128x512xf32, #tpu.memory_space<vmem>>, vector<128x512xf32>
    %cst_146 = arith.constant dense<0.000000e+00> : vector<8x512xf32>
    %395 = tpu.matmul %386, %394, %cst_146 {dimension_numbers = #tpu.dot_dimension_numbers<[1], [0], [0], [1], [0, 0, 1, 1], [], []>} : vector<8x128xf32>, vector<128x512xf32>, vector<8x512xf32> -> vector<8x512xf32>
    %396 = arith.addf %393, %395 : vector<8x512xf32>
    %397 = vector.extract_strided_slice %396 {offsets = [0, 0], sizes = [8, 128], strides = [1, 1]} : vector<8x512xf32> to vector<8x128xf32>
    %398 = arith.negf %397 : vector<8x128xf32>
    %399 = math.exp %398 : vector<8x128xf32>
    %cst_147 = arith.constant 1.000000e+00 : f32
    %400 = vector.broadcast %cst_147 : f32 to vector<8x128xf32>
    %401 = arith.addf %400, %399 : vector<8x128xf32>
    %402 = arith.divf %400, %401 : vector<8x128xf32>
    %403 = vector.extract_strided_slice %396 {offsets = [0, 128], sizes = [8, 128], strides = [1, 1]} : vector<8x512xf32> to vector<8x128xf32>
    %404 = arith.negf %403 : vector<8x128xf32>
    %405 = math.exp %404 : vector<8x128xf32>
    %cst_148 = arith.constant 1.000000e+00 : f32
    %406 = vector.broadcast %cst_148 : f32 to vector<8x128xf32>
    %407 = arith.addf %406, %405 : vector<8x128xf32>
    %408 = arith.divf %406, %407 : vector<8x128xf32>
    %409 = vector.extract_strided_slice %396 {offsets = [0, 256], sizes = [8, 128], strides = [1, 1]} : vector<8x512xf32> to vector<8x128xf32>
    %410 = math.tanh %409 : vector<8x128xf32>
    %411 = vector.extract_strided_slice %396 {offsets = [0, 384], sizes = [8, 128], strides = [1, 1]} : vector<8x512xf32> to vector<8x128xf32>
    %412 = arith.negf %411 : vector<8x128xf32>
    %413 = math.exp %412 : vector<8x128xf32>
    %cst_149 = arith.constant 1.000000e+00 : f32
    %414 = vector.broadcast %cst_149 : f32 to vector<8x128xf32>
    %415 = arith.addf %414, %413 : vector<8x128xf32>
    %416 = arith.divf %414, %415 : vector<8x128xf32>
    %417 = arith.mulf %408, %384 : vector<8x128xf32>
    %418 = arith.mulf %402, %410 : vector<8x128xf32>
    %419 = arith.addf %417, %418 : vector<8x128xf32>
    %420 = math.tanh %419 : vector<8x128xf32>
    %421 = arith.mulf %416, %420 : vector<8x128xf32>
    %c3_i32 = arith.constant 3 : i32
    %422 = vector.broadcast %c3_i32 : i32 to vector<8x1xi32>
    %423 = arith.cmpi eq, %0, %422 : vector<8x1xi32>
    %424 = vector.shape_cast %423 : vector<8x1xi1> to vector<8x1xi1>
    %425 = vector.broadcast %424 : vector<8x1xi1> to vector<8x128xi1>
    %426 = arith.select %425, %421, %391 : vector<8x128xi1>, vector<8x128xf32>
    %c4_150 = arith.constant 4 : index
    %c0_151 = arith.constant 0 : index
    %c0_152 = arith.constant 0 : index
    %427 = vector.load %arg12[%c4_150, %c0_151, %c0_152] : memref<8x8x512xf32, #tpu.memory_space<vmem>>, vector<1x8x512xf32>
    %428 = vector.shape_cast %427 : vector<1x8x512xf32> to vector<8x512xf32>
    %c0_153 = arith.constant 0 : index
    %c0_154 = arith.constant 0 : index
    %429 = vector.load %arg6[%c0_153, %c0_154] : memref<128x512xf32, #tpu.memory_space<vmem>>, vector<128x512xf32>
    %cst_155 = arith.constant dense<0.000000e+00> : vector<8x512xf32>
    %430 = tpu.matmul %421, %429, %cst_155 {dimension_numbers = #tpu.dot_dimension_numbers<[1], [0], [0], [1], [0, 0, 1, 1], [], []>} : vector<8x128xf32>, vector<128x512xf32>, vector<8x512xf32> -> vector<8x512xf32>
    %431 = arith.addf %428, %430 : vector<8x512xf32>
    %432 = vector.extract_strided_slice %431 {offsets = [0, 0], sizes = [8, 128], strides = [1, 1]} : vector<8x512xf32> to vector<8x128xf32>
    %433 = arith.negf %432 : vector<8x128xf32>
    %434 = math.exp %433 : vector<8x128xf32>
    %cst_156 = arith.constant 1.000000e+00 : f32
    %435 = vector.broadcast %cst_156 : f32 to vector<8x128xf32>
    %436 = arith.addf %435, %434 : vector<8x128xf32>
    %437 = arith.divf %435, %436 : vector<8x128xf32>
    %438 = vector.extract_strided_slice %431 {offsets = [0, 128], sizes = [8, 128], strides = [1, 1]} : vector<8x512xf32> to vector<8x128xf32>
    %439 = arith.negf %438 : vector<8x128xf32>
    %440 = math.exp %439 : vector<8x128xf32>
    %cst_157 = arith.constant 1.000000e+00 : f32
    %441 = vector.broadcast %cst_157 : f32 to vector<8x128xf32>
    %442 = arith.addf %441, %440 : vector<8x128xf32>
    %443 = arith.divf %441, %442 : vector<8x128xf32>
    %444 = vector.extract_strided_slice %431 {offsets = [0, 256], sizes = [8, 128], strides = [1, 1]} : vector<8x512xf32> to vector<8x128xf32>
    %445 = math.tanh %444 : vector<8x128xf32>
    %446 = vector.extract_strided_slice %431 {offsets = [0, 384], sizes = [8, 128], strides = [1, 1]} : vector<8x512xf32> to vector<8x128xf32>
    %447 = arith.negf %446 : vector<8x128xf32>
    %448 = math.exp %447 : vector<8x128xf32>
    %cst_158 = arith.constant 1.000000e+00 : f32
    %449 = vector.broadcast %cst_158 : f32 to vector<8x128xf32>
    %450 = arith.addf %449, %448 : vector<8x128xf32>
    %451 = arith.divf %449, %450 : vector<8x128xf32>
    %452 = arith.mulf %443, %419 : vector<8x128xf32>
    %453 = arith.mulf %437, %445 : vector<8x128xf32>
    %454 = arith.addf %452, %453 : vector<8x128xf32>
    %455 = math.tanh %454 : vector<8x128xf32>
    %456 = arith.mulf %451, %455 : vector<8x128xf32>
    %c4_i32 = arith.constant 4 : i32
    %457 = vector.broadcast %c4_i32 : i32 to vector<8x1xi32>
    %458 = arith.cmpi eq, %0, %457 : vector<8x1xi32>
    %459 = vector.shape_cast %458 : vector<8x1xi1> to vector<8x1xi1>
    %460 = vector.broadcast %459 : vector<8x1xi1> to vector<8x128xi1>
    %461 = arith.select %460, %456, %426 : vector<8x128xi1>, vector<8x128xf32>
    %c5_159 = arith.constant 5 : index
    %c0_160 = arith.constant 0 : index
    %c0_161 = arith.constant 0 : index
    %462 = vector.load %arg12[%c5_159, %c0_160, %c0_161] : memref<8x8x512xf32, #tpu.memory_space<vmem>>, vector<1x8x512xf32>
    %463 = vector.shape_cast %462 : vector<1x8x512xf32> to vector<8x512xf32>
    %c0_162 = arith.constant 0 : index
    %c0_163 = arith.constant 0 : index
    %464 = vector.load %arg6[%c0_162, %c0_163] : memref<128x512xf32, #tpu.memory_space<vmem>>, vector<128x512xf32>
    %cst_164 = arith.constant dense<0.000000e+00> : vector<8x512xf32>
    %465 = tpu.matmul %456, %464, %cst_164 {dimension_numbers = #tpu.dot_dimension_numbers<[1], [0], [0], [1], [0, 0, 1, 1], [], []>} : vector<8x128xf32>, vector<128x512xf32>, vector<8x512xf32> -> vector<8x512xf32>
    %466 = arith.addf %463, %465 : vector<8x512xf32>
    %467 = vector.extract_strided_slice %466 {offsets = [0, 0], sizes = [8, 128], strides = [1, 1]} : vector<8x512xf32> to vector<8x128xf32>
    %468 = arith.negf %467 : vector<8x128xf32>
    %469 = math.exp %468 : vector<8x128xf32>
    %cst_165 = arith.constant 1.000000e+00 : f32
    %470 = vector.broadcast %cst_165 : f32 to vector<8x128xf32>
    %471 = arith.addf %470, %469 : vector<8x128xf32>
    %472 = arith.divf %470, %471 : vector<8x128xf32>
    %473 = vector.extract_strided_slice %466 {offsets = [0, 128], sizes = [8, 128], strides = [1, 1]} : vector<8x512xf32> to vector<8x128xf32>
    %474 = arith.negf %473 : vector<8x128xf32>
    %475 = math.exp %474 : vector<8x128xf32>
    %cst_166 = arith.constant 1.000000e+00 : f32
    %476 = vector.broadcast %cst_166 : f32 to vector<8x128xf32>
    %477 = arith.addf %476, %475 : vector<8x128xf32>
    %478 = arith.divf %476, %477 : vector<8x128xf32>
    %479 = vector.extract_strided_slice %466 {offsets = [0, 256], sizes = [8, 128], strides = [1, 1]} : vector<8x512xf32> to vector<8x128xf32>
    %480 = math.tanh %479 : vector<8x128xf32>
    %481 = vector.extract_strided_slice %466 {offsets = [0, 384], sizes = [8, 128], strides = [1, 1]} : vector<8x512xf32> to vector<8x128xf32>
    %482 = arith.negf %481 : vector<8x128xf32>
    %483 = math.exp %482 : vector<8x128xf32>
    %cst_167 = arith.constant 1.000000e+00 : f32
    %484 = vector.broadcast %cst_167 : f32 to vector<8x128xf32>
    %485 = arith.addf %484, %483 : vector<8x128xf32>
    %486 = arith.divf %484, %485 : vector<8x128xf32>
    %487 = arith.mulf %478, %454 : vector<8x128xf32>
    %488 = arith.mulf %472, %480 : vector<8x128xf32>
    %489 = arith.addf %487, %488 : vector<8x128xf32>
    %490 = math.tanh %489 : vector<8x128xf32>
    %491 = arith.mulf %486, %490 : vector<8x128xf32>
    %c5_i32 = arith.constant 5 : i32
    %492 = vector.broadcast %c5_i32 : i32 to vector<8x1xi32>
    %493 = arith.cmpi eq, %0, %492 : vector<8x1xi32>
    %494 = vector.shape_cast %493 : vector<8x1xi1> to vector<8x1xi1>
    %495 = vector.broadcast %494 : vector<8x1xi1> to vector<8x128xi1>
    %496 = arith.select %495, %491, %461 : vector<8x128xi1>, vector<8x128xf32>
    %c6_168 = arith.constant 6 : index
    %c0_169 = arith.constant 0 : index
    %c0_170 = arith.constant 0 : index
    %497 = vector.load %arg12[%c6_168, %c0_169, %c0_170] : memref<8x8x512xf32, #tpu.memory_space<vmem>>, vector<1x8x512xf32>
    %498 = vector.shape_cast %497 : vector<1x8x512xf32> to vector<8x512xf32>
    %c0_171 = arith.constant 0 : index
    %c0_172 = arith.constant 0 : index
    %499 = vector.load %arg6[%c0_171, %c0_172] : memref<128x512xf32, #tpu.memory_space<vmem>>, vector<128x512xf32>
    %cst_173 = arith.constant dense<0.000000e+00> : vector<8x512xf32>
    %500 = tpu.matmul %491, %499, %cst_173 {dimension_numbers = #tpu.dot_dimension_numbers<[1], [0], [0], [1], [0, 0, 1, 1], [], []>} : vector<8x128xf32>, vector<128x512xf32>, vector<8x512xf32> -> vector<8x512xf32>
    %501 = arith.addf %498, %500 : vector<8x512xf32>
    %502 = vector.extract_strided_slice %501 {offsets = [0, 0], sizes = [8, 128], strides = [1, 1]} : vector<8x512xf32> to vector<8x128xf32>
    %503 = arith.negf %502 : vector<8x128xf32>
    %504 = math.exp %503 : vector<8x128xf32>
    %cst_174 = arith.constant 1.000000e+00 : f32
    %505 = vector.broadcast %cst_174 : f32 to vector<8x128xf32>
    %506 = arith.addf %505, %504 : vector<8x128xf32>
    %507 = arith.divf %505, %506 : vector<8x128xf32>
    %508 = vector.extract_strided_slice %501 {offsets = [0, 128], sizes = [8, 128], strides = [1, 1]} : vector<8x512xf32> to vector<8x128xf32>
    %509 = arith.negf %508 : vector<8x128xf32>
    %510 = math.exp %509 : vector<8x128xf32>
    %cst_175 = arith.constant 1.000000e+00 : f32
    %511 = vector.broadcast %cst_175 : f32 to vector<8x128xf32>
    %512 = arith.addf %511, %510 : vector<8x128xf32>
    %513 = arith.divf %511, %512 : vector<8x128xf32>
    %514 = vector.extract_strided_slice %501 {offsets = [0, 256], sizes = [8, 128], strides = [1, 1]} : vector<8x512xf32> to vector<8x128xf32>
    %515 = math.tanh %514 : vector<8x128xf32>
    %516 = vector.extract_strided_slice %501 {offsets = [0, 384], sizes = [8, 128], strides = [1, 1]} : vector<8x512xf32> to vector<8x128xf32>
    %517 = arith.negf %516 : vector<8x128xf32>
    %518 = math.exp %517 : vector<8x128xf32>
    %cst_176 = arith.constant 1.000000e+00 : f32
    %519 = vector.broadcast %cst_176 : f32 to vector<8x128xf32>
    %520 = arith.addf %519, %518 : vector<8x128xf32>
    %521 = arith.divf %519, %520 : vector<8x128xf32>
    %522 = arith.mulf %513, %489 : vector<8x128xf32>
    %523 = arith.mulf %507, %515 : vector<8x128xf32>
    %524 = arith.addf %522, %523 : vector<8x128xf32>
    %525 = math.tanh %524 : vector<8x128xf32>
    %526 = arith.mulf %521, %525 : vector<8x128xf32>
    %c6_i32 = arith.constant 6 : i32
    %527 = vector.broadcast %c6_i32 : i32 to vector<8x1xi32>
    %528 = arith.cmpi eq, %0, %527 : vector<8x1xi32>
    %529 = vector.shape_cast %528 : vector<8x1xi1> to vector<8x1xi1>
    %530 = vector.broadcast %529 : vector<8x1xi1> to vector<8x128xi1>
    %531 = arith.select %530, %526, %496 : vector<8x128xi1>, vector<8x128xf32>
    %c7_177 = arith.constant 7 : index
    %c0_178 = arith.constant 0 : index
    %c0_179 = arith.constant 0 : index
    %532 = vector.load %arg12[%c7_177, %c0_178, %c0_179] : memref<8x8x512xf32, #tpu.memory_space<vmem>>, vector<1x8x512xf32>
    %533 = vector.shape_cast %532 : vector<1x8x512xf32> to vector<8x512xf32>
    %c0_180 = arith.constant 0 : index
    %c0_181 = arith.constant 0 : index
    %534 = vector.load %arg6[%c0_180, %c0_181] : memref<128x512xf32, #tpu.memory_space<vmem>>, vector<128x512xf32>
    %cst_182 = arith.constant dense<0.000000e+00> : vector<8x512xf32>
    %535 = tpu.matmul %526, %534, %cst_182 {dimension_numbers = #tpu.dot_dimension_numbers<[1], [0], [0], [1], [0, 0, 1, 1], [], []>} : vector<8x128xf32>, vector<128x512xf32>, vector<8x512xf32> -> vector<8x512xf32>
    %536 = arith.addf %533, %535 : vector<8x512xf32>
    %537 = vector.extract_strided_slice %536 {offsets = [0, 0], sizes = [8, 128], strides = [1, 1]} : vector<8x512xf32> to vector<8x128xf32>
    %538 = arith.negf %537 : vector<8x128xf32>
    %539 = math.exp %538 : vector<8x128xf32>
    %cst_183 = arith.constant 1.000000e+00 : f32
    %540 = vector.broadcast %cst_183 : f32 to vector<8x128xf32>
    %541 = arith.addf %540, %539 : vector<8x128xf32>
    %542 = arith.divf %540, %541 : vector<8x128xf32>
    %543 = vector.extract_strided_slice %536 {offsets = [0, 128], sizes = [8, 128], strides = [1, 1]} : vector<8x512xf32> to vector<8x128xf32>
    %544 = arith.negf %543 : vector<8x128xf32>
    %545 = math.exp %544 : vector<8x128xf32>
    %cst_184 = arith.constant 1.000000e+00 : f32
    %546 = vector.broadcast %cst_184 : f32 to vector<8x128xf32>
    %547 = arith.addf %546, %545 : vector<8x128xf32>
    %548 = arith.divf %546, %547 : vector<8x128xf32>
    %549 = vector.extract_strided_slice %536 {offsets = [0, 256], sizes = [8, 128], strides = [1, 1]} : vector<8x512xf32> to vector<8x128xf32>
    %550 = math.tanh %549 : vector<8x128xf32>
    %551 = vector.extract_strided_slice %536 {offsets = [0, 384], sizes = [8, 128], strides = [1, 1]} : vector<8x512xf32> to vector<8x128xf32>
    %552 = arith.negf %551 : vector<8x128xf32>
    %553 = math.exp %552 : vector<8x128xf32>
    %cst_185 = arith.constant 1.000000e+00 : f32
    %554 = vector.broadcast %cst_185 : f32 to vector<8x128xf32>
    %555 = arith.addf %554, %553 : vector<8x128xf32>
    %556 = arith.divf %554, %555 : vector<8x128xf32>
    %557 = arith.mulf %548, %524 : vector<8x128xf32>
    %558 = arith.mulf %542, %550 : vector<8x128xf32>
    %559 = arith.addf %557, %558 : vector<8x128xf32>
    %560 = math.tanh %559 : vector<8x128xf32>
    %561 = arith.mulf %556, %560 : vector<8x128xf32>
    %c7_i32 = arith.constant 7 : i32
    %562 = vector.broadcast %c7_i32 : i32 to vector<8x1xi32>
    %563 = arith.cmpi eq, %0, %562 : vector<8x1xi32>
    %564 = vector.shape_cast %563 : vector<8x1xi1> to vector<8x1xi1>
    %565 = vector.broadcast %564 : vector<8x1xi1> to vector<8x128xi1>
    %566 = arith.select %565, %561, %531 : vector<8x128xi1>, vector<8x128xf32>
    %c0_186 = arith.constant 0 : index
    %c0_187 = arith.constant 0 : index
    %567 = vector.load %arg9[%c0_186, %c0_187] : memref<128x128xf32, #tpu.memory_space<vmem>>, vector<128x128xf32>
    %cst_188 = arith.constant dense<0.000000e+00> : vector<8x128xf32>
    %568 = tpu.matmul %566, %567, %cst_188 {dimension_numbers = #tpu.dot_dimension_numbers<[1], [0], [0], [1], [0, 0, 1, 1], [], []>} : vector<8x128xf32>, vector<128x128xf32>, vector<8x128xf32> -> vector<8x128xf32>
    %c0_189 = arith.constant 0 : index
    %c0_190 = arith.constant 0 : index
    %569 = vector.load %arg10[%c0_189, %c0_190] : memref<1x128xf32, #tpu.memory_space<vmem>>, vector<1x128xf32>
    %570 = vector.broadcast %569 : vector<1x128xf32> to vector<8x128xf32>
    %571 = arith.addf %568, %570 : vector<8x128xf32>
    %c0_191 = arith.constant 0 : index
    %c0_192 = arith.constant 0 : index
    %572 = vector.load %arg11[%c0_191, %c0_192] : memref<8x128xf32, #tpu.memory_space<vmem>>, vector<8x128xf32>
    tpu.vector_store %arg11[%c0_191, %c0_192], %571 {strides = array<i32>} : memref<8x128xf32, #tpu.memory_space<vmem>>, vector<8x128xf32>,
    return
  }
  func.func @transform_0(%arg0: i32) -> (i32, i32, i32, i32) {
    %c0_i32 = arith.constant 0 : i32
    %c0_i32_0 = arith.constant 0 : i32
    %c0_i32_1 = arith.constant 0 : i32
    %c0_i32_2 = arith.constant 0 : i32
    return %arg0, %c0_i32, %c0_i32_0, %c0_i32_1 : i32, i32, i32, i32
  }
  func.func @transform_1(%arg0: i32) -> (i32, i32) {
    %c0_i32 = arith.constant 0 : i32
    %c0_i32_0 = arith.constant 0 : i32
    return %arg0, %c0_i32 : i32, i32
  }
  func.func @transform_2(%arg0: i32) -> (i32, i32) {
    %c0_i32 = arith.constant 0 : i32
    %c0_i32_0 = arith.constant 0 : i32
    %c0_i32_1 = arith.constant 0 : i32
    return %c0_i32, %c0_i32_0 : i32, i32
  }
  func.func @transform_3(%arg0: i32) -> (i32, i32) {
    %c0_i32 = arith.constant 0 : i32
    %c0_i32_0 = arith.constant 0 : i32
    %c0_i32_1 = arith.constant 0 : i32
    return %c0_i32, %c0_i32_0 : i32, i32
  }
  func.func @transform_4(%arg0: i32) -> (i32, i32) {
    %c0_i32 = arith.constant 0 : i32
    %c0_i32_0 = arith.constant 0 : i32
    %c0_i32_1 = arith.constant 0 : i32
    return %c0_i32, %c0_i32_0 : i32, i32
  }
  func.func @transform_5(%arg0: i32) -> (i32, i32) {
    %c0_i32 = arith.constant 0 : i32
    %c0_i32_0 = arith.constant 0 : i32
    %c0_i32_1 = arith.constant 0 : i32
    return %c0_i32, %c0_i32_0 : i32, i32
  }
  func.func @transform_6(%arg0: i32) -> (i32, i32) {
    %c0_i32 = arith.constant 0 : i32
    %c0_i32_0 = arith.constant 0 : i32
    %c0_i32_1 = arith.constant 0 : i32
    return %c0_i32, %c0_i32_0 : i32, i32
  }
  func.func @transform_7(%arg0: i32) -> (i32, i32) {
    %c0_i32 = arith.constant 0 : i32
    %c0_i32_0 = arith.constant 0 : i32
    %c0_i32_1 = arith.constant 0 : i32
    return %c0_i32, %c0_i32_0 : i32, i32
  }
  func.func @transform_8(%arg0: i32) -> (i32, i32) {
    %c0_i32 = arith.constant 0 : i32
    %c0_i32_0 = arith.constant 0 : i32
    %c0_i32_1 = arith.constant 0 : i32
    return %c0_i32, %c0_i32_0 : i32, i32
  }
  func.func @transform_9(%arg0: i32) -> (i32, i32) {
    %c0_i32 = arith.constant 0 : i32
    %c0_i32_0 = arith.constant 0 : i32
    %c0_i32_1 = arith.constant 0 : i32
    return %c0_i32, %c0_i32_0 : i32, i32
  }
  func.func @transform_10(%arg0: i32) -> (i32, i32) {
    %c0_i32 = arith.constant 0 : i32
    %c0_i32_0 = arith.constant 0 : i32
    return %arg0, %c0_i32 : i32, i32
  }
}

module attributes {stable_mosaic.version = 11 : i64} {
  func.func @kernel(%arg0: i32, %arg1: memref<1x8x8x128xf32, #tpu.memory_space<vmem>>, %arg2: memref<8x1xi32, #tpu.memory_space<vmem>>, %arg3: memref<128x512xf32, #tpu.memory_space<vmem>>, %arg4: memref<128x512xf32, #tpu.memory_space<vmem>>, %arg5: memref<128x512xf32, #tpu.memory_space<vmem>>, %arg6: memref<128x512xf32, #tpu.memory_space<vmem>>, %arg7: memref<1x512xf32, #tpu.memory_space<vmem>>, %arg8: memref<1x512xf32, #tpu.memory_space<vmem>>, %arg9: memref<128x128xf32, #tpu.memory_space<vmem>>, %arg10: memref<1x128xf32, #tpu.memory_space<vmem>>, %arg11: memref<8x128xf32, #tpu.memory_space<vmem>>, %arg12: memref<8x8x512xf32, #tpu.memory_space<vmem>>, %arg13: memref<8x8x128xf32, #tpu.memory_space<vmem>>) attributes {dimension_semantics = [#tpu.dimension_semantics<parallel>], iteration_bounds = array<i64: 1>, scalar_prefetch = 0 : i64, scratch_operands = 2 : i64, tpu.core_type = #tpu.core_type<tc>, window_params = [{transform_indices = @transform_0, window_bounds = array<i64: 1, 8, 8, 128>}, {transform_indices = @transform_1, window_bounds = array<i64: 8, 1>}, {pipeline_mode = #tpu.pipeline_mode<synchronous>, transform_indices = @transform_2, window_bounds = array<i64: 128, 512>}, {pipeline_mode = #tpu.pipeline_mode<synchronous>, transform_indices = @transform_3, window_bounds = array<i64: 128, 512>}, {pipeline_mode = #tpu.pipeline_mode<synchronous>, transform_indices = @transform_4, window_bounds = array<i64: 128, 512>}, {pipeline_mode = #tpu.pipeline_mode<synchronous>, transform_indices = @transform_5, window_bounds = array<i64: 128, 512>}, {pipeline_mode = #tpu.pipeline_mode<synchronous>, transform_indices = @transform_6, window_bounds = array<i64: 1, 512>}, {pipeline_mode = #tpu.pipeline_mode<synchronous>, transform_indices = @transform_7, window_bounds = array<i64: 1, 512>}, {pipeline_mode = #tpu.pipeline_mode<synchronous>, transform_indices = @transform_8, window_bounds = array<i64: 128, 128>}, {pipeline_mode = #tpu.pipeline_mode<synchronous>, transform_indices = @transform_9, window_bounds = array<i64: 1, 128>}, {transform_indices = @transform_10, window_bounds = array<i64: 8, 128>}]} {
    %c0 = arith.constant 0 : index
    %c0_0 = arith.constant 0 : index
    %0 = vector.load %arg2[%c0, %c0_0] : memref<8x1xi32, #tpu.memory_space<vmem>>, vector<8x1xi32>
    %c0_1 = arith.constant 0 : index
    %c0_2 = arith.constant 0 : index
    %c0_3 = arith.constant 0 : index
    %c0_4 = arith.constant 0 : index
    %1 = vector.load %arg1[%c0_1, %c0_2, %c0_3, %c0_4] : memref<1x8x8x128xf32, #tpu.memory_space<vmem>>, vector<1x8x8x128xf32>
    %2 = vector.shape_cast %1 : vector<1x8x8x128xf32> to vector<64x128xf32>
    %c0_5 = arith.constant 0 : index
    %c0_6 = arith.constant 0 : index
    %3 = vector.load %arg3[%c0_5, %c0_6] : memref<128x512xf32, #tpu.memory_space<vmem>>, vector<128x512xf32>
    %cst = arith.constant dense<0.000000e+00> : vector<64x512xf32>
    %4 = tpu.matmul %2, %3, %cst {dimension_numbers = #tpu.dot_dimension_numbers<[1], [0], [0], [1], [0, 0, 1, 1], [], []>} : vector<64x128xf32>, vector<128x512xf32>, vector<64x512xf32> -> vector<64x512xf32>
    %5 = vector.shape_cast %4 : vector<64x512xf32> to vector<8x8x512xf32>
    %c0_7 = arith.constant 0 : index
    %c0_8 = arith.constant 0 : index
    %6 = vector.load %arg7[%c0_7, %c0_8] : memref<1x512xf32, #tpu.memory_space<vmem>>, vector<1x512xf32>
    %7 = vector.shape_cast %6 : vector<1x512xf32> to vector<1x1x512xf32>
    %8 = vector.broadcast %7 : vector<1x1x512xf32> to vector<8x8x512xf32>
    %9 = arith.addf %5, %8 : vector<8x8x512xf32>
    %c0_9 = arith.constant 0 : index
    %c0_10 = arith.constant 0 : index
    %c0_11 = arith.constant 0 : index
    %10 = vector.load %arg12[%c0_9, %c0_10, %c0_11] : memref<8x8x512xf32, #tpu.memory_space<vmem>>, vector<8x8x512xf32>
    tpu.vector_store %arg12[%c0_9, %c0_10, %c0_11], %9 {strides = array<i32>} : memref<8x8x512xf32, #tpu.memory_space<vmem>>, vector<8x8x512xf32>,
    %cst_12 = arith.constant 0.000000e+00 : f32
    %11 = vector.broadcast %cst_12 : f32 to vector<8x128xf32>
    %c0_13 = arith.constant 0 : index
    %c0_14 = arith.constant 0 : index
    %c0_15 = arith.constant 0 : index
    %12 = vector.load %arg12[%c0_13, %c0_14, %c0_15] : memref<8x8x512xf32, #tpu.memory_space<vmem>>, vector<1x8x512xf32>
    %13 = vector.shape_cast %12 : vector<1x8x512xf32> to vector<8x512xf32>
    %c0_16 = arith.constant 0 : index
    %c0_17 = arith.constant 0 : index
    %14 = vector.load %arg5[%c0_16, %c0_17] : memref<128x512xf32, #tpu.memory_space<vmem>>, vector<128x512xf32>
    %cst_18 = arith.constant dense<0.000000e+00> : vector<8x512xf32>
    %15 = tpu.matmul %11, %14, %cst_18 {dimension_numbers = #tpu.dot_dimension_numbers<[1], [0], [0], [1], [0, 0, 1, 1], [], []>} : vector<8x128xf32>, vector<128x512xf32>, vector<8x512xf32> -> vector<8x512xf32>
    %16 = arith.addf %13, %15 : vector<8x512xf32>
    %17 = vector.extract_strided_slice %16 {offsets = [0, 0], sizes = [8, 128], strides = [1, 1]} : vector<8x512xf32> to vector<8x128xf32>
    %18 = arith.negf %17 : vector<8x128xf32>
    %19 = math.exp %18 : vector<8x128xf32>
    %cst_19 = arith.constant 1.000000e+00 : f32
    %20 = vector.broadcast %cst_19 : f32 to vector<8x128xf32>
    %21 = arith.addf %20, %19 : vector<8x128xf32>
    %22 = arith.divf %20, %21 : vector<8x128xf32>
    %23 = vector.extract_strided_slice %16 {offsets = [0, 128], sizes = [8, 128], strides = [1, 1]} : vector<8x512xf32> to vector<8x128xf32>
    %24 = arith.negf %23 : vector<8x128xf32>
    %25 = math.exp %24 : vector<8x128xf32>
    %cst_20 = arith.constant 1.000000e+00 : f32
    %26 = vector.broadcast %cst_20 : f32 to vector<8x128xf32>
    %27 = arith.addf %26, %25 : vector<8x128xf32>
    %28 = arith.divf %26, %27 : vector<8x128xf32>
    %29 = vector.extract_strided_slice %16 {offsets = [0, 256], sizes = [8, 128], strides = [1, 1]} : vector<8x512xf32> to vector<8x128xf32>
    %30 = math.tanh %29 : vector<8x128xf32>
    %31 = vector.extract_strided_slice %16 {offsets = [0, 384], sizes = [8, 128], strides = [1, 1]} : vector<8x512xf32> to vector<8x128xf32>
    %32 = arith.negf %31 : vector<8x128xf32>
    %33 = math.exp %32 : vector<8x128xf32>
    %cst_21 = arith.constant 1.000000e+00 : f32
    %34 = vector.broadcast %cst_21 : f32 to vector<8x128xf32>
    %35 = arith.addf %34, %33 : vector<8x128xf32>
    %36 = arith.divf %34, %35 : vector<8x128xf32>
    %37 = arith.mulf %28, %11 : vector<8x128xf32>
    %38 = arith.mulf %22, %30 : vector<8x128xf32>
    %39 = arith.addf %37, %38 : vector<8x128xf32>
    %40 = math.tanh %39 : vector<8x128xf32>
    %41 = arith.mulf %36, %40 : vector<8x128xf32>
    %c0_22 = arith.constant 0 : index
    %c0_23 = arith.constant 0 : index
    %c0_24 = arith.constant 0 : index
    %42 = vector.load %arg13[%c0_22, %c0_23, %c0_24] : memref<8x8x128xf32, #tpu.memory_space<vmem>>, vector<1x8x128xf32>
    %43 = vector.shape_cast %42 : vector<1x8x128xf32> to vector<8x128xf32>
    %44 = vector.shape_cast %41 : vector<8x128xf32> to vector<1x8x128xf32>
    tpu.vector_store %arg13[%c0_22, %c0_23, %c0_24], %44 {strides = array<i32>} : memref<8x8x128xf32, #tpu.memory_space<vmem>>, vector<1x8x128xf32>,
    %c1 = arith.constant 1 : index
    %c0_25 = arith.constant 0 : index
    %c0_26 = arith.constant 0 : index
    %45 = vector.load %arg12[%c1, %c0_25, %c0_26] : memref<8x8x512xf32, #tpu.memory_space<vmem>>, vector<1x8x512xf32>
    %46 = vector.shape_cast %45 : vector<1x8x512xf32> to vector<8x512xf32>
    %c0_27 = arith.constant 0 : index
    %c0_28 = arith.constant 0 : index
    %47 = vector.load %arg5[%c0_27, %c0_28] : memref<128x512xf32, #tpu.memory_space<vmem>>, vector<128x512xf32>
    %cst_29 = arith.constant dense<0.000000e+00> : vector<8x512xf32>
    %48 = tpu.matmul %41, %47, %cst_29 {dimension_numbers = #tpu.dot_dimension_numbers<[1], [0], [0], [1], [0, 0, 1, 1], [], []>} : vector<8x128xf32>, vector<128x512xf32>, vector<8x512xf32> -> vector<8x512xf32>
    %49 = arith.addf %46, %48 : vector<8x512xf32>
    %50 = vector.extract_strided_slice %49 {offsets = [0, 0], sizes = [8, 128], strides = [1, 1]} : vector<8x512xf32> to vector<8x128xf32>
    %51 = arith.negf %50 : vector<8x128xf32>
    %52 = math.exp %51 : vector<8x128xf32>
    %cst_30 = arith.constant 1.000000e+00 : f32
    %53 = vector.broadcast %cst_30 : f32 to vector<8x128xf32>
    %54 = arith.addf %53, %52 : vector<8x128xf32>
    %55 = arith.divf %53, %54 : vector<8x128xf32>
    %56 = vector.extract_strided_slice %49 {offsets = [0, 128], sizes = [8, 128], strides = [1, 1]} : vector<8x512xf32> to vector<8x128xf32>
    %57 = arith.negf %56 : vector<8x128xf32>
    %58 = math.exp %57 : vector<8x128xf32>
    %cst_31 = arith.constant 1.000000e+00 : f32
    %59 = vector.broadcast %cst_31 : f32 to vector<8x128xf32>
    %60 = arith.addf %59, %58 : vector<8x128xf32>
    %61 = arith.divf %59, %60 : vector<8x128xf32>
    %62 = vector.extract_strided_slice %49 {offsets = [0, 256], sizes = [8, 128], strides = [1, 1]} : vector<8x512xf32> to vector<8x128xf32>
    %63 = math.tanh %62 : vector<8x128xf32>
    %64 = vector.extract_strided_slice %49 {offsets = [0, 384], sizes = [8, 128], strides = [1, 1]} : vector<8x512xf32> to vector<8x128xf32>
    %65 = arith.negf %64 : vector<8x128xf32>
    %66 = math.exp %65 : vector<8x128xf32>
    %cst_32 = arith.constant 1.000000e+00 : f32
    %67 = vector.broadcast %cst_32 : f32 to vector<8x128xf32>
    %68 = arith.addf %67, %66 : vector<8x128xf32>
    %69 = arith.divf %67, %68 : vector<8x128xf32>
    %70 = arith.mulf %61, %39 : vector<8x128xf32>
    %71 = arith.mulf %55, %63 : vector<8x128xf32>
    %72 = arith.addf %70, %71 : vector<8x128xf32>
    %73 = math.tanh %72 : vector<8x128xf32>
    %74 = arith.mulf %69, %73 : vector<8x128xf32>
    %c1_33 = arith.constant 1 : index
    %c0_34 = arith.constant 0 : index
    %c0_35 = arith.constant 0 : index
    %75 = vector.load %arg13[%c1_33, %c0_34, %c0_35] : memref<8x8x128xf32, #tpu.memory_space<vmem>>, vector<1x8x128xf32>
    %76 = vector.shape_cast %75 : vector<1x8x128xf32> to vector<8x128xf32>
    %77 = vector.shape_cast %74 : vector<8x128xf32> to vector<1x8x128xf32>
    tpu.vector_store %arg13[%c1_33, %c0_34, %c0_35], %77 {strides = array<i32>} : memref<8x8x128xf32, #tpu.memory_space<vmem>>, vector<1x8x128xf32>,
    %c2 = arith.constant 2 : index
    %c0_36 = arith.constant 0 : index
    %c0_37 = arith.constant 0 : index
    %78 = vector.load %arg12[%c2, %c0_36, %c0_37] : memref<8x8x512xf32, #tpu.memory_space<vmem>>, vector<1x8x512xf32>
    %79 = vector.shape_cast %78 : vector<1x8x512xf32> to vector<8x512xf32>
    %c0_38 = arith.constant 0 : index
    %c0_39 = arith.constant 0 : index
    %80 = vector.load %arg5[%c0_38, %c0_39] : memref<128x512xf32, #tpu.memory_space<vmem>>, vector<128x512xf32>
    %cst_40 = arith.constant dense<0.000000e+00> : vector<8x512xf32>
    %81 = tpu.matmul %74, %80, %cst_40 {dimension_numbers = #tpu.dot_dimension_numbers<[1], [0], [0], [1], [0, 0, 1, 1], [], []>} : vector<8x128xf32>, vector<128x512xf32>, vector<8x512xf32> -> vector<8x512xf32>
    %82 = arith.addf %79, %81 : vector<8x512xf32>
    %83 = vector.extract_strided_slice %82 {offsets = [0, 0], sizes = [8, 128], strides = [1, 1]} : vector<8x512xf32> to vector<8x128xf32>
    %84 = arith.negf %83 : vector<8x128xf32>
    %85 = math.exp %84 : vector<8x128xf32>
    %cst_41 = arith.constant 1.000000e+00 : f32
    %86 = vector.broadcast %cst_41 : f32 to vector<8x128xf32>
    %87 = arith.addf %86, %85 : vector<8x128xf32>
    %88 = arith.divf %86, %87 : vector<8x128xf32>
    %89 = vector.extract_strided_slice %82 {offsets = [0, 128], sizes = [8, 128], strides = [1, 1]} : vector<8x512xf32> to vector<8x128xf32>
    %90 = arith.negf %89 : vector<8x128xf32>
    %91 = math.exp %90 : vector<8x128xf32>
    %cst_42 = arith.constant 1.000000e+00 : f32
    %92 = vector.broadcast %cst_42 : f32 to vector<8x128xf32>
    %93 = arith.addf %92, %91 : vector<8x128xf32>
    %94 = arith.divf %92, %93 : vector<8x128xf32>
    %95 = vector.extract_strided_slice %82 {offsets = [0, 256], sizes = [8, 128], strides = [1, 1]} : vector<8x512xf32> to vector<8x128xf32>
    %96 = math.tanh %95 : vector<8x128xf32>
    %97 = vector.extract_strided_slice %82 {offsets = [0, 384], sizes = [8, 128], strides = [1, 1]} : vector<8x512xf32> to vector<8x128xf32>
    %98 = arith.negf %97 : vector<8x128xf32>
    %99 = math.exp %98 : vector<8x128xf32>
    %cst_43 = arith.constant 1.000000e+00 : f32
    %100 = vector.broadcast %cst_43 : f32 to vector<8x128xf32>
    %101 = arith.addf %100, %99 : vector<8x128xf32>
    %102 = arith.divf %100, %101 : vector<8x128xf32>
    %103 = arith.mulf %94, %72 : vector<8x128xf32>
    %104 = arith.mulf %88, %96 : vector<8x128xf32>
    %105 = arith.addf %103, %104 : vector<8x128xf32>
    %106 = math.tanh %105 : vector<8x128xf32>
    %107 = arith.mulf %102, %106 : vector<8x128xf32>
    %c2_44 = arith.constant 2 : index
    %c0_45 = arith.constant 0 : index
    %c0_46 = arith.constant 0 : index
    %108 = vector.load %arg13[%c2_44, %c0_45, %c0_46] : memref<8x8x128xf32, #tpu.memory_space<vmem>>, vector<1x8x128xf32>
    %109 = vector.shape_cast %108 : vector<1x8x128xf32> to vector<8x128xf32>
    %110 = vector.shape_cast %107 : vector<8x128xf32> to vector<1x8x128xf32>
    tpu.vector_store %arg13[%c2_44, %c0_45, %c0_46], %110 {strides = array<i32>} : memref<8x8x128xf32, #tpu.memory_space<vmem>>, vector<1x8x128xf32>,
    %c3 = arith.constant 3 : index
    %c0_47 = arith.constant 0 : index
    %c0_48 = arith.constant 0 : index
    %111 = vector.load %arg12[%c3, %c0_47, %c0_48] : memref<8x8x512xf32, #tpu.memory_space<vmem>>, vector<1x8x512xf32>
    %112 = vector.shape_cast %111 : vector<1x8x512xf32> to vector<8x512xf32>
    %c0_49 = arith.constant 0 : index
    %c0_50 = arith.constant 0 : index
    %113 = vector.load %arg5[%c0_49, %c0_50] : memref<128x512xf32, #tpu.memory_space<vmem>>, vector<128x512xf32>
    %cst_51 = arith.constant dense<0.000000e+00> : vector<8x512xf32>
    %114 = tpu.matmul %107, %113, %cst_51 {dimension_numbers = #tpu.dot_dimension_numbers<[1], [0], [0], [1], [0, 0, 1, 1], [], []>} : vector<8x128xf32>, vector<128x512xf32>, vector<8x512xf32> -> vector<8x512xf32>
    %115 = arith.addf %112, %114 : vector<8x512xf32>
    %116 = vector.extract_strided_slice %115 {offsets = [0, 0], sizes = [8, 128], strides = [1, 1]} : vector<8x512xf32> to vector<8x128xf32>
    %117 = arith.negf %116 : vector<8x128xf32>
    %118 = math.exp %117 : vector<8x128xf32>
    %cst_52 = arith.constant 1.000000e+00 : f32
    %119 = vector.broadcast %cst_52 : f32 to vector<8x128xf32>
    %120 = arith.addf %119, %118 : vector<8x128xf32>
    %121 = arith.divf %119, %120 : vector<8x128xf32>
    %122 = vector.extract_strided_slice %115 {offsets = [0, 128], sizes = [8, 128], strides = [1, 1]} : vector<8x512xf32> to vector<8x128xf32>
    %123 = arith.negf %122 : vector<8x128xf32>
    %124 = math.exp %123 : vector<8x128xf32>
    %cst_53 = arith.constant 1.000000e+00 : f32
    %125 = vector.broadcast %cst_53 : f32 to vector<8x128xf32>
    %126 = arith.addf %125, %124 : vector<8x128xf32>
    %127 = arith.divf %125, %126 : vector<8x128xf32>
    %128 = vector.extract_strided_slice %115 {offsets = [0, 256], sizes = [8, 128], strides = [1, 1]} : vector<8x512xf32> to vector<8x128xf32>
    %129 = math.tanh %128 : vector<8x128xf32>
    %130 = vector.extract_strided_slice %115 {offsets = [0, 384], sizes = [8, 128], strides = [1, 1]} : vector<8x512xf32> to vector<8x128xf32>
    %131 = arith.negf %130 : vector<8x128xf32>
    %132 = math.exp %131 : vector<8x128xf32>
    %cst_54 = arith.constant 1.000000e+00 : f32
    %133 = vector.broadcast %cst_54 : f32 to vector<8x128xf32>
    %134 = arith.addf %133, %132 : vector<8x128xf32>
    %135 = arith.divf %133, %134 : vector<8x128xf32>
    %136 = arith.mulf %127, %105 : vector<8x128xf32>
    %137 = arith.mulf %121, %129 : vector<8x128xf32>
    %138 = arith.addf %136, %137 : vector<8x128xf32>
    %139 = math.tanh %138 : vector<8x128xf32>
    %140 = arith.mulf %135, %139 : vector<8x128xf32>
    %c3_55 = arith.constant 3 : index
    %c0_56 = arith.constant 0 : index
    %c0_57 = arith.constant 0 : index
    %141 = vector.load %arg13[%c3_55, %c0_56, %c0_57] : memref<8x8x128xf32, #tpu.memory_space<vmem>>, vector<1x8x128xf32>
    %142 = vector.shape_cast %141 : vector<1x8x128xf32> to vector<8x128xf32>
    %143 = vector.shape_cast %140 : vector<8x128xf32> to vector<1x8x128xf32>
    tpu.vector_store %arg13[%c3_55, %c0_56, %c0_57], %143 {strides = array<i32>} : memref<8x8x128xf32, #tpu.memory_space<vmem>>, vector<1x8x128xf32>,
    %c4 = arith.constant 4 : index
    %c0_58 = arith.constant 0 : index
    %c0_59 = arith.constant 0 : index
    %144 = vector.load %arg12[%c4, %c0_58, %c0_59] : memref<8x8x512xf32, #tpu.memory_space<vmem>>, vector<1x8x512xf32>
    %145 = vector.shape_cast %144 : vector<1x8x512xf32> to vector<8x512xf32>
    %c0_60 = arith.constant 0 : index
    %c0_61 = arith.constant 0 : index
    %146 = vector.load %arg5[%c0_60, %c0_61] : memref<128x512xf32, #tpu.memory_space<vmem>>, vector<128x512xf32>
    %cst_62 = arith.constant dense<0.000000e+00> : vector<8x512xf32>
    %147 = tpu.matmul %140, %146, %cst_62 {dimension_numbers = #tpu.dot_dimension_numbers<[1], [0], [0], [1], [0, 0, 1, 1], [], []>} : vector<8x128xf32>, vector<128x512xf32>, vector<8x512xf32> -> vector<8x512xf32>
    %148 = arith.addf %145, %147 : vector<8x512xf32>
    %149 = vector.extract_strided_slice %148 {offsets = [0, 0], sizes = [8, 128], strides = [1, 1]} : vector<8x512xf32> to vector<8x128xf32>
    %150 = arith.negf %149 : vector<8x128xf32>
    %151 = math.exp %150 : vector<8x128xf32>
    %cst_63 = arith.constant 1.000000e+00 : f32
    %152 = vector.broadcast %cst_63 : f32 to vector<8x128xf32>
    %153 = arith.addf %152, %151 : vector<8x128xf32>
    %154 = arith.divf %152, %153 : vector<8x128xf32>
    %155 = vector.extract_strided_slice %148 {offsets = [0, 128], sizes = [8, 128], strides = [1, 1]} : vector<8x512xf32> to vector<8x128xf32>
    %156 = arith.negf %155 : vector<8x128xf32>
    %157 = math.exp %156 : vector<8x128xf32>
    %cst_64 = arith.constant 1.000000e+00 : f32
    %158 = vector.broadcast %cst_64 : f32 to vector<8x128xf32>
    %159 = arith.addf %158, %157 : vector<8x128xf32>
    %160 = arith.divf %158, %159 : vector<8x128xf32>
    %161 = vector.extract_strided_slice %148 {offsets = [0, 256], sizes = [8, 128], strides = [1, 1]} : vector<8x512xf32> to vector<8x128xf32>
    %162 = math.tanh %161 : vector<8x128xf32>
    %163 = vector.extract_strided_slice %148 {offsets = [0, 384], sizes = [8, 128], strides = [1, 1]} : vector<8x512xf32> to vector<8x128xf32>
    %164 = arith.negf %163 : vector<8x128xf32>
    %165 = math.exp %164 : vector<8x128xf32>
    %cst_65 = arith.constant 1.000000e+00 : f32
    %166 = vector.broadcast %cst_65 : f32 to vector<8x128xf32>
    %167 = arith.addf %166, %165 : vector<8x128xf32>
    %168 = arith.divf %166, %167 : vector<8x128xf32>
    %169 = arith.mulf %160, %138 : vector<8x128xf32>
    %170 = arith.mulf %154, %162 : vector<8x128xf32>
    %171 = arith.addf %169, %170 : vector<8x128xf32>
    %172 = math.tanh %171 : vector<8x128xf32>
    %173 = arith.mulf %168, %172 : vector<8x128xf32>
    %c4_66 = arith.constant 4 : index
    %c0_67 = arith.constant 0 : index
    %c0_68 = arith.constant 0 : index
    %174 = vector.load %arg13[%c4_66, %c0_67, %c0_68] : memref<8x8x128xf32, #tpu.memory_space<vmem>>, vector<1x8x128xf32>
    %175 = vector.shape_cast %174 : vector<1x8x128xf32> to vector<8x128xf32>
    %176 = vector.shape_cast %173 : vector<8x128xf32> to vector<1x8x128xf32>
    tpu.vector_store %arg13[%c4_66, %c0_67, %c0_68], %176 {strides = array<i32>} : memref<8x8x128xf32, #tpu.memory_space<vmem>>, vector<1x8x128xf32>,
    %c5 = arith.constant 5 : index
    %c0_69 = arith.constant 0 : index
    %c0_70 = arith.constant 0 : index
    %177 = vector.load %arg12[%c5, %c0_69, %c0_70] : memref<8x8x512xf32, #tpu.memory_space<vmem>>, vector<1x8x512xf32>
    %178 = vector.shape_cast %177 : vector<1x8x512xf32> to vector<8x512xf32>
    %c0_71 = arith.constant 0 : index
    %c0_72 = arith.constant 0 : index
    %179 = vector.load %arg5[%c0_71, %c0_72] : memref<128x512xf32, #tpu.memory_space<vmem>>, vector<128x512xf32>
    %cst_73 = arith.constant dense<0.000000e+00> : vector<8x512xf32>
    %180 = tpu.matmul %173, %179, %cst_73 {dimension_numbers = #tpu.dot_dimension_numbers<[1], [0], [0], [1], [0, 0, 1, 1], [], []>} : vector<8x128xf32>, vector<128x512xf32>, vector<8x512xf32> -> vector<8x512xf32>
    %181 = arith.addf %178, %180 : vector<8x512xf32>
    %182 = vector.extract_strided_slice %181 {offsets = [0, 0], sizes = [8, 128], strides = [1, 1]} : vector<8x512xf32> to vector<8x128xf32>
    %183 = arith.negf %182 : vector<8x128xf32>
    %184 = math.exp %183 : vector<8x128xf32>
    %cst_74 = arith.constant 1.000000e+00 : f32
    %185 = vector.broadcast %cst_74 : f32 to vector<8x128xf32>
    %186 = arith.addf %185, %184 : vector<8x128xf32>
    %187 = arith.divf %185, %186 : vector<8x128xf32>
    %188 = vector.extract_strided_slice %181 {offsets = [0, 128], sizes = [8, 128], strides = [1, 1]} : vector<8x512xf32> to vector<8x128xf32>
    %189 = arith.negf %188 : vector<8x128xf32>
    %190 = math.exp %189 : vector<8x128xf32>
    %cst_75 = arith.constant 1.000000e+00 : f32
    %191 = vector.broadcast %cst_75 : f32 to vector<8x128xf32>
    %192 = arith.addf %191, %190 : vector<8x128xf32>
    %193 = arith.divf %191, %192 : vector<8x128xf32>
    %194 = vector.extract_strided_slice %181 {offsets = [0, 256], sizes = [8, 128], strides = [1, 1]} : vector<8x512xf32> to vector<8x128xf32>
    %195 = math.tanh %194 : vector<8x128xf32>
    %196 = vector.extract_strided_slice %181 {offsets = [0, 384], sizes = [8, 128], strides = [1, 1]} : vector<8x512xf32> to vector<8x128xf32>
    %197 = arith.negf %196 : vector<8x128xf32>
    %198 = math.exp %197 : vector<8x128xf32>
    %cst_76 = arith.constant 1.000000e+00 : f32
    %199 = vector.broadcast %cst_76 : f32 to vector<8x128xf32>
    %200 = arith.addf %199, %198 : vector<8x128xf32>
    %201 = arith.divf %199, %200 : vector<8x128xf32>
    %202 = arith.mulf %193, %171 : vector<8x128xf32>
    %203 = arith.mulf %187, %195 : vector<8x128xf32>
    %204 = arith.addf %202, %203 : vector<8x128xf32>
    %205 = math.tanh %204 : vector<8x128xf32>
    %206 = arith.mulf %201, %205 : vector<8x128xf32>
    %c5_77 = arith.constant 5 : index
    %c0_78 = arith.constant 0 : index
    %c0_79 = arith.constant 0 : index
    %207 = vector.load %arg13[%c5_77, %c0_78, %c0_79] : memref<8x8x128xf32, #tpu.memory_space<vmem>>, vector<1x8x128xf32>
    %208 = vector.shape_cast %207 : vector<1x8x128xf32> to vector<8x128xf32>
    %209 = vector.shape_cast %206 : vector<8x128xf32> to vector<1x8x128xf32>
    tpu.vector_store %arg13[%c5_77, %c0_78, %c0_79], %209 {strides = array<i32>} : memref<8x8x128xf32, #tpu.memory_space<vmem>>, vector<1x8x128xf32>,
    %c6 = arith.constant 6 : index
    %c0_80 = arith.constant 0 : index
    %c0_81 = arith.constant 0 : index
    %210 = vector.load %arg12[%c6, %c0_80, %c0_81] : memref<8x8x512xf32, #tpu.memory_space<vmem>>, vector<1x8x512xf32>
    %211 = vector.shape_cast %210 : vector<1x8x512xf32> to vector<8x512xf32>
    %c0_82 = arith.constant 0 : index
    %c0_83 = arith.constant 0 : index
    %212 = vector.load %arg5[%c0_82, %c0_83] : memref<128x512xf32, #tpu.memory_space<vmem>>, vector<128x512xf32>
    %cst_84 = arith.constant dense<0.000000e+00> : vector<8x512xf32>
    %213 = tpu.matmul %206, %212, %cst_84 {dimension_numbers = #tpu.dot_dimension_numbers<[1], [0], [0], [1], [0, 0, 1, 1], [], []>} : vector<8x128xf32>, vector<128x512xf32>, vector<8x512xf32> -> vector<8x512xf32>
    %214 = arith.addf %211, %213 : vector<8x512xf32>
    %215 = vector.extract_strided_slice %214 {offsets = [0, 0], sizes = [8, 128], strides = [1, 1]} : vector<8x512xf32> to vector<8x128xf32>
    %216 = arith.negf %215 : vector<8x128xf32>
    %217 = math.exp %216 : vector<8x128xf32>
    %cst_85 = arith.constant 1.000000e+00 : f32
    %218 = vector.broadcast %cst_85 : f32 to vector<8x128xf32>
    %219 = arith.addf %218, %217 : vector<8x128xf32>
    %220 = arith.divf %218, %219 : vector<8x128xf32>
    %221 = vector.extract_strided_slice %214 {offsets = [0, 128], sizes = [8, 128], strides = [1, 1]} : vector<8x512xf32> to vector<8x128xf32>
    %222 = arith.negf %221 : vector<8x128xf32>
    %223 = math.exp %222 : vector<8x128xf32>
    %cst_86 = arith.constant 1.000000e+00 : f32
    %224 = vector.broadcast %cst_86 : f32 to vector<8x128xf32>
    %225 = arith.addf %224, %223 : vector<8x128xf32>
    %226 = arith.divf %224, %225 : vector<8x128xf32>
    %227 = vector.extract_strided_slice %214 {offsets = [0, 256], sizes = [8, 128], strides = [1, 1]} : vector<8x512xf32> to vector<8x128xf32>
    %228 = math.tanh %227 : vector<8x128xf32>
    %229 = vector.extract_strided_slice %214 {offsets = [0, 384], sizes = [8, 128], strides = [1, 1]} : vector<8x512xf32> to vector<8x128xf32>
    %230 = arith.negf %229 : vector<8x128xf32>
    %231 = math.exp %230 : vector<8x128xf32>
    %cst_87 = arith.constant 1.000000e+00 : f32
    %232 = vector.broadcast %cst_87 : f32 to vector<8x128xf32>
    %233 = arith.addf %232, %231 : vector<8x128xf32>
    %234 = arith.divf %232, %233 : vector<8x128xf32>
    %235 = arith.mulf %226, %204 : vector<8x128xf32>
    %236 = arith.mulf %220, %228 : vector<8x128xf32>
    %237 = arith.addf %235, %236 : vector<8x128xf32>
    %238 = math.tanh %237 : vector<8x128xf32>
    %239 = arith.mulf %234, %238 : vector<8x128xf32>
    %c6_88 = arith.constant 6 : index
    %c0_89 = arith.constant 0 : index
    %c0_90 = arith.constant 0 : index
    %240 = vector.load %arg13[%c6_88, %c0_89, %c0_90] : memref<8x8x128xf32, #tpu.memory_space<vmem>>, vector<1x8x128xf32>
    %241 = vector.shape_cast %240 : vector<1x8x128xf32> to vector<8x128xf32>
    %242 = vector.shape_cast %239 : vector<8x128xf32> to vector<1x8x128xf32>
    tpu.vector_store %arg13[%c6_88, %c0_89, %c0_90], %242 {strides = array<i32>} : memref<8x8x128xf32, #tpu.memory_space<vmem>>, vector<1x8x128xf32>,
    %c7 = arith.constant 7 : index
    %c0_91 = arith.constant 0 : index
    %c0_92 = arith.constant 0 : index
    %243 = vector.load %arg12[%c7, %c0_91, %c0_92] : memref<8x8x512xf32, #tpu.memory_space<vmem>>, vector<1x8x512xf32>
    %244 = vector.shape_cast %243 : vector<1x8x512xf32> to vector<8x512xf32>
    %c0_93 = arith.constant 0 : index
    %c0_94 = arith.constant 0 : index
    %245 = vector.load %arg5[%c0_93, %c0_94] : memref<128x512xf32, #tpu.memory_space<vmem>>, vector<128x512xf32>
    %cst_95 = arith.constant dense<0.000000e+00> : vector<8x512xf32>
    %246 = tpu.matmul %239, %245, %cst_95 {dimension_numbers = #tpu.dot_dimension_numbers<[1], [0], [0], [1], [0, 0, 1, 1], [], []>} : vector<8x128xf32>, vector<128x512xf32>, vector<8x512xf32> -> vector<8x512xf32>
    %247 = arith.addf %244, %246 : vector<8x512xf32>
    %248 = vector.extract_strided_slice %247 {offsets = [0, 0], sizes = [8, 128], strides = [1, 1]} : vector<8x512xf32> to vector<8x128xf32>
    %249 = arith.negf %248 : vector<8x128xf32>
    %250 = math.exp %249 : vector<8x128xf32>
    %cst_96 = arith.constant 1.000000e+00 : f32
    %251 = vector.broadcast %cst_96 : f32 to vector<8x128xf32>
    %252 = arith.addf %251, %250 : vector<8x128xf32>
    %253 = arith.divf %251, %252 : vector<8x128xf32>
    %254 = vector.extract_strided_slice %247 {offsets = [0, 128], sizes = [8, 128], strides = [1, 1]} : vector<8x512xf32> to vector<8x128xf32>
    %255 = arith.negf %254 : vector<8x128xf32>
    %256 = math.exp %255 : vector<8x128xf32>
    %cst_97 = arith.constant 1.000000e+00 : f32
    %257 = vector.broadcast %cst_97 : f32 to vector<8x128xf32>
    %258 = arith.addf %257, %256 : vector<8x128xf32>
    %259 = arith.divf %257, %258 : vector<8x128xf32>
    %260 = vector.extract_strided_slice %247 {offsets = [0, 256], sizes = [8, 128], strides = [1, 1]} : vector<8x512xf32> to vector<8x128xf32>
    %261 = math.tanh %260 : vector<8x128xf32>
    %262 = vector.extract_strided_slice %247 {offsets = [0, 384], sizes = [8, 128], strides = [1, 1]} : vector<8x512xf32> to vector<8x128xf32>
    %263 = arith.negf %262 : vector<8x128xf32>
    %264 = math.exp %263 : vector<8x128xf32>
    %cst_98 = arith.constant 1.000000e+00 : f32
    %265 = vector.broadcast %cst_98 : f32 to vector<8x128xf32>
    %266 = arith.addf %265, %264 : vector<8x128xf32>
    %267 = arith.divf %265, %266 : vector<8x128xf32>
    %268 = arith.mulf %259, %237 : vector<8x128xf32>
    %269 = arith.mulf %253, %261 : vector<8x128xf32>
    %270 = arith.addf %268, %269 : vector<8x128xf32>
    %271 = math.tanh %270 : vector<8x128xf32>
    %272 = arith.mulf %267, %271 : vector<8x128xf32>
    %c7_99 = arith.constant 7 : index
    %c0_100 = arith.constant 0 : index
    %c0_101 = arith.constant 0 : index
    %273 = vector.load %arg13[%c7_99, %c0_100, %c0_101] : memref<8x8x128xf32, #tpu.memory_space<vmem>>, vector<1x8x128xf32>
    %274 = vector.shape_cast %273 : vector<1x8x128xf32> to vector<8x128xf32>
    %275 = vector.shape_cast %272 : vector<8x128xf32> to vector<1x8x128xf32>
    tpu.vector_store %arg13[%c7_99, %c0_100, %c0_101], %275 {strides = array<i32>} : memref<8x8x128xf32, #tpu.memory_space<vmem>>, vector<1x8x128xf32>,
    %c0_102 = arith.constant 0 : index
    %c0_103 = arith.constant 0 : index
    %c0_104 = arith.constant 0 : index
    %276 = vector.load %arg13[%c0_102, %c0_103, %c0_104] : memref<8x8x128xf32, #tpu.memory_space<vmem>>, vector<8x8x128xf32>
    %277 = vector.shape_cast %276 : vector<8x8x128xf32> to vector<64x128xf32>
    %c0_105 = arith.constant 0 : index
    %c0_106 = arith.constant 0 : index
    %278 = vector.load %arg4[%c0_105, %c0_106] : memref<128x512xf32, #tpu.memory_space<vmem>>, vector<128x512xf32>
    %cst_107 = arith.constant dense<0.000000e+00> : vector<64x512xf32>
    %279 = tpu.matmul %277, %278, %cst_107 {dimension_numbers = #tpu.dot_dimension_numbers<[1], [0], [0], [1], [0, 0, 1, 1], [], []>} : vector<64x128xf32>, vector<128x512xf32>, vector<64x512xf32> -> vector<64x512xf32>
    %280 = vector.shape_cast %279 : vector<64x512xf32> to vector<8x8x512xf32>
    %c0_108 = arith.constant 0 : index
    %c0_109 = arith.constant 0 : index
    %281 = vector.load %arg8[%c0_108, %c0_109] : memref<1x512xf32, #tpu.memory_space<vmem>>, vector<1x512xf32>
    %282 = vector.shape_cast %281 : vector<1x512xf32> to vector<1x1x512xf32>
    %283 = vector.broadcast %282 : vector<1x1x512xf32> to vector<8x8x512xf32>
    %284 = arith.addf %280, %283 : vector<8x8x512xf32>
    %c0_110 = arith.constant 0 : index
    %c0_111 = arith.constant 0 : index
    %c0_112 = arith.constant 0 : index
    %285 = vector.load %arg12[%c0_110, %c0_111, %c0_112] : memref<8x8x512xf32, #tpu.memory_space<vmem>>, vector<8x8x512xf32>
    tpu.vector_store %arg12[%c0_110, %c0_111, %c0_112], %284 {strides = array<i32>} : memref<8x8x512xf32, #tpu.memory_space<vmem>>, vector<8x8x512xf32>,
    %cst_113 = arith.constant 0.000000e+00 : f32
    %286 = vector.broadcast %cst_113 : f32 to vector<8x128xf32>
    %c0_114 = arith.constant 0 : index
    %c0_115 = arith.constant 0 : index
    %c0_116 = arith.constant 0 : index
    %287 = vector.load %arg12[%c0_114, %c0_115, %c0_116] : memref<8x8x512xf32, #tpu.memory_space<vmem>>, vector<1x8x512xf32>
    %288 = vector.shape_cast %287 : vector<1x8x512xf32> to vector<8x512xf32>
    %c0_117 = arith.constant 0 : index
    %c0_118 = arith.constant 0 : index
    %289 = vector.load %arg6[%c0_117, %c0_118] : memref<128x512xf32, #tpu.memory_space<vmem>>, vector<128x512xf32>
    %cst_119 = arith.constant dense<0.000000e+00> : vector<8x512xf32>
    %290 = tpu.matmul %286, %289, %cst_119 {dimension_numbers = #tpu.dot_dimension_numbers<[1], [0], [0], [1], [0, 0, 1, 1], [], []>} : vector<8x128xf32>, vector<128x512xf32>, vector<8x512xf32> -> vector<8x512xf32>
    %291 = arith.addf %288, %290 : vector<8x512xf32>
    %292 = vector.extract_strided_slice %291 {offsets = [0, 0], sizes = [8, 128], strides = [1, 1]} : vector<8x512xf32> to vector<8x128xf32>
    %293 = arith.negf %292 : vector<8x128xf32>
    %294 = math.exp %293 : vector<8x128xf32>
    %cst_120 = arith.constant 1.000000e+00 : f32
    %295 = vector.broadcast %cst_120 : f32 to vector<8x128xf32>
    %296 = arith.addf %295, %294 : vector<8x128xf32>
    %297 = arith.divf %295, %296 : vector<8x128xf32>
    %298 = vector.extract_strided_slice %291 {offsets = [0, 128], sizes = [8, 128], strides = [1, 1]} : vector<8x512xf32> to vector<8x128xf32>
    %299 = arith.negf %298 : vector<8x128xf32>
    %300 = math.exp %299 : vector<8x128xf32>
    %cst_121 = arith.constant 1.000000e+00 : f32
    %301 = vector.broadcast %cst_121 : f32 to vector<8x128xf32>
    %302 = arith.addf %301, %300 : vector<8x128xf32>
    %303 = arith.divf %301, %302 : vector<8x128xf32>
    %304 = vector.extract_strided_slice %291 {offsets = [0, 256], sizes = [8, 128], strides = [1, 1]} : vector<8x512xf32> to vector<8x128xf32>
    %305 = math.tanh %304 : vector<8x128xf32>
    %306 = vector.extract_strided_slice %291 {offsets = [0, 384], sizes = [8, 128], strides = [1, 1]} : vector<8x512xf32> to vector<8x128xf32>
    %307 = arith.negf %306 : vector<8x128xf32>
    %308 = math.exp %307 : vector<8x128xf32>
    %cst_122 = arith.constant 1.000000e+00 : f32
    %309 = vector.broadcast %cst_122 : f32 to vector<8x128xf32>
    %310 = arith.addf %309, %308 : vector<8x128xf32>
    %311 = arith.divf %309, %310 : vector<8x128xf32>
    %312 = arith.mulf %303, %286 : vector<8x128xf32>
    %313 = arith.mulf %297, %305 : vector<8x128xf32>
    %314 = arith.addf %312, %313 : vector<8x128xf32>
    %315 = math.tanh %314 : vector<8x128xf32>
    %316 = arith.mulf %311, %315 : vector<8x128xf32>
    %c0_i32 = arith.constant 0 : i32
    %317 = vector.broadcast %c0_i32 : i32 to vector<8x1xi32>
    %318 = arith.cmpi eq, %0, %317 : vector<8x1xi32>
    %319 = vector.shape_cast %318 : vector<8x1xi1> to vector<8x1xi1>
    %320 = vector.broadcast %319 : vector<8x1xi1> to vector<8x128xi1>
    %321 = arith.select %320, %316, %286 : vector<8x128xi1>, vector<8x128xf32>
    %c1_123 = arith.constant 1 : index
    %c0_124 = arith.constant 0 : index
    %c0_125 = arith.constant 0 : index
    %322 = vector.load %arg12[%c1_123, %c0_124, %c0_125] : memref<8x8x512xf32, #tpu.memory_space<vmem>>, vector<1x8x512xf32>
    %323 = vector.shape_cast %322 : vector<1x8x512xf32> to vector<8x512xf32>
    %c0_126 = arith.constant 0 : index
    %c0_127 = arith.constant 0 : index
    %324 = vector.load %arg6[%c0_126, %c0_127] : memref<128x512xf32, #tpu.memory_space<vmem>>, vector<128x512xf32>
    %cst_128 = arith.constant dense<0.000000e+00> : vector<8x512xf32>
    %325 = tpu.matmul %316, %324, %cst_128 {dimension_numbers = #tpu.dot_dimension_numbers<[1], [0], [0], [1], [0, 0, 1, 1], [], []>} : vector<8x128xf32>, vector<128x512xf32>, vector<8x512xf32> -> vector<8x512xf32>
    %326 = arith.addf %323, %325 : vector<8x512xf32>
    %327 = vector.extract_strided_slice %326 {offsets = [0, 0], sizes = [8, 128], strides = [1, 1]} : vector<8x512xf32> to vector<8x128xf32>
    %328 = arith.negf %327 : vector<8x128xf32>
    %329 = math.exp %328 : vector<8x128xf32>
    %cst_129 = arith.constant 1.000000e+00 : f32
    %330 = vector.broadcast %cst_129 : f32 to vector<8x128xf32>
    %331 = arith.addf %330, %329 : vector<8x128xf32>
    %332 = arith.divf %330, %331 : vector<8x128xf32>
    %333 = vector.extract_strided_slice %326 {offsets = [0, 128], sizes = [8, 128], strides = [1, 1]} : vector<8x512xf32> to vector<8x128xf32>
    %334 = arith.negf %333 : vector<8x128xf32>
    %335 = math.exp %334 : vector<8x128xf32>
    %cst_130 = arith.constant 1.000000e+00 : f32
    %336 = vector.broadcast %cst_130 : f32 to vector<8x128xf32>
    %337 = arith.addf %336, %335 : vector<8x128xf32>
    %338 = arith.divf %336, %337 : vector<8x128xf32>
    %339 = vector.extract_strided_slice %326 {offsets = [0, 256], sizes = [8, 128], strides = [1, 1]} : vector<8x512xf32> to vector<8x128xf32>
    %340 = math.tanh %339 : vector<8x128xf32>
    %341 = vector.extract_strided_slice %326 {offsets = [0, 384], sizes = [8, 128], strides = [1, 1]} : vector<8x512xf32> to vector<8x128xf32>
    %342 = arith.negf %341 : vector<8x128xf32>
    %343 = math.exp %342 : vector<8x128xf32>
    %cst_131 = arith.constant 1.000000e+00 : f32
    %344 = vector.broadcast %cst_131 : f32 to vector<8x128xf32>
    %345 = arith.addf %344, %343 : vector<8x128xf32>
    %346 = arith.divf %344, %345 : vector<8x128xf32>
    %347 = arith.mulf %338, %314 : vector<8x128xf32>
    %348 = arith.mulf %332, %340 : vector<8x128xf32>
    %349 = arith.addf %347, %348 : vector<8x128xf32>
    %350 = math.tanh %349 : vector<8x128xf32>
    %351 = arith.mulf %346, %350 : vector<8x128xf32>
    %c1_i32 = arith.constant 1 : i32
    %352 = vector.broadcast %c1_i32 : i32 to vector<8x1xi32>
    %353 = arith.cmpi eq, %0, %352 : vector<8x1xi32>
    %354 = vector.shape_cast %353 : vector<8x1xi1> to vector<8x1xi1>
    %355 = vector.broadcast %354 : vector<8x1xi1> to vector<8x128xi1>
    %356 = arith.select %355, %351, %321 : vector<8x128xi1>, vector<8x128xf32>
    %c2_132 = arith.constant 2 : index
    %c0_133 = arith.constant 0 : index
    %c0_134 = arith.constant 0 : index
    %357 = vector.load %arg12[%c2_132, %c0_133, %c0_134] : memref<8x8x512xf32, #tpu.memory_space<vmem>>, vector<1x8x512xf32>
    %358 = vector.shape_cast %357 : vector<1x8x512xf32> to vector<8x512xf32>
    %c0_135 = arith.constant 0 : index
    %c0_136 = arith.constant 0 : index
    %359 = vector.load %arg6[%c0_135, %c0_136] : memref<128x512xf32, #tpu.memory_space<vmem>>, vector<128x512xf32>
    %cst_137 = arith.constant dense<0.000000e+00> : vector<8x512xf32>
    %360 = tpu.matmul %351, %359, %cst_137 {dimension_numbers = #tpu.dot_dimension_numbers<[1], [0], [0], [1], [0, 0, 1, 1], [], []>} : vector<8x128xf32>, vector<128x512xf32>, vector<8x512xf32> -> vector<8x512xf32>
    %361 = arith.addf %358, %360 : vector<8x512xf32>
    %362 = vector.extract_strided_slice %361 {offsets = [0, 0], sizes = [8, 128], strides = [1, 1]} : vector<8x512xf32> to vector<8x128xf32>
    %363 = arith.negf %362 : vector<8x128xf32>
    %364 = math.exp %363 : vector<8x128xf32>
    %cst_138 = arith.constant 1.000000e+00 : f32
    %365 = vector.broadcast %cst_138 : f32 to vector<8x128xf32>
    %366 = arith.addf %365, %364 : vector<8x128xf32>
    %367 = arith.divf %365, %366 : vector<8x128xf32>
    %368 = vector.extract_strided_slice %361 {offsets = [0, 128], sizes = [8, 128], strides = [1, 1]} : vector<8x512xf32> to vector<8x128xf32>
    %369 = arith.negf %368 : vector<8x128xf32>
    %370 = math.exp %369 : vector<8x128xf32>
    %cst_139 = arith.constant 1.000000e+00 : f32
    %371 = vector.broadcast %cst_139 : f32 to vector<8x128xf32>
    %372 = arith.addf %371, %370 : vector<8x128xf32>
    %373 = arith.divf %371, %372 : vector<8x128xf32>
    %374 = vector.extract_strided_slice %361 {offsets = [0, 256], sizes = [8, 128], strides = [1, 1]} : vector<8x512xf32> to vector<8x128xf32>
    %375 = math.tanh %374 : vector<8x128xf32>
    %376 = vector.extract_strided_slice %361 {offsets = [0, 384], sizes = [8, 128], strides = [1, 1]} : vector<8x512xf32> to vector<8x128xf32>
    %377 = arith.negf %376 : vector<8x128xf32>
    %378 = math.exp %377 : vector<8x128xf32>
    %cst_140 = arith.constant 1.000000e+00 : f32
    %379 = vector.broadcast %cst_140 : f32 to vector<8x128xf32>
    %380 = arith.addf %379, %378 : vector<8x128xf32>
    %381 = arith.divf %379, %380 : vector<8x128xf32>
    %382 = arith.mulf %373, %349 : vector<8x128xf32>
    %383 = arith.mulf %367, %375 : vector<8x128xf32>
    %384 = arith.addf %382, %383 : vector<8x128xf32>
    %385 = math.tanh %384 : vector<8x128xf32>
    %386 = arith.mulf %381, %385 : vector<8x128xf32>
    %c2_i32 = arith.constant 2 : i32
    %387 = vector.broadcast %c2_i32 : i32 to vector<8x1xi32>
    %388 = arith.cmpi eq, %0, %387 : vector<8x1xi32>
    %389 = vector.shape_cast %388 : vector<8x1xi1> to vector<8x1xi1>
    %390 = vector.broadcast %389 : vector<8x1xi1> to vector<8x128xi1>
    %391 = arith.select %390, %386, %356 : vector<8x128xi1>, vector<8x128xf32>
    %c3_141 = arith.constant 3 : index
    %c0_142 = arith.constant 0 : index
    %c0_143 = arith.constant 0 : index
    %392 = vector.load %arg12[%c3_141, %c0_142, %c0_143] : memref<8x8x512xf32, #tpu.memory_space<vmem>>, vector<1x8x512xf32>
    %393 = vector.shape_cast %392 : vector<1x8x512xf32> to vector<8x512xf32>
    %c0_144 = arith.constant 0 : index
    %c0_145 = arith.constant 0 : index
    %394 = vector.load %arg6[%c0_144, %c0_145] : memref<128x512xf32, #tpu.memory_space<vmem>>, vector<128x512xf32>
    %cst_146 = arith.constant dense<0.000000e+00> : vector<8x512xf32>
    %395 = tpu.matmul %386, %394, %cst_146 {dimension_numbers = #tpu.dot_dimension_numbers<[1], [0], [0], [1], [0, 0, 1, 1], [], []>} : vector<8x128xf32>, vector<128x512xf32>, vector<8x512xf32> -> vector<8x512xf32>
    %396 = arith.addf %393, %395 : vector<8x512xf32>
    %397 = vector.extract_strided_slice %396 {offsets = [0, 0], sizes = [8, 128], strides = [1, 1]} : vector<8x512xf32> to vector<8x128xf32>
    %398 = arith.negf %397 : vector<8x128xf32>
    %399 = math.exp %398 : vector<8x128xf32>
    %cst_147 = arith.constant 1.000000e+00 : f32
    %400 = vector.broadcast %cst_147 : f32 to vector<8x128xf32>
    %401 = arith.addf %400, %399 : vector<8x128xf32>
    %402 = arith.divf %400, %401 : vector<8x128xf32>
    %403 = vector.extract_strided_slice %396 {offsets = [0, 128], sizes = [8, 128], strides = [1, 1]} : vector<8x512xf32> to vector<8x128xf32>
    %404 = arith.negf %403 : vector<8x128xf32>
    %405 = math.exp %404 : vector<8x128xf32>
    %cst_148 = arith.constant 1.000000e+00 : f32
    %406 = vector.broadcast %cst_148 : f32 to vector<8x128xf32>
    %407 = arith.addf %406, %405 : vector<8x128xf32>
    %408 = arith.divf %406, %407 : vector<8x128xf32>
    %409 = vector.extract_strided_slice %396 {offsets = [0, 256], sizes = [8, 128], strides = [1, 1]} : vector<8x512xf32> to vector<8x128xf32>
    %410 = math.tanh %409 : vector<8x128xf32>
    %411 = vector.extract_strided_slice %396 {offsets = [0, 384], sizes = [8, 128], strides = [1, 1]} : vector<8x512xf32> to vector<8x128xf32>
    %412 = arith.negf %411 : vector<8x128xf32>
    %413 = math.exp %412 : vector<8x128xf32>
    %cst_149 = arith.constant 1.000000e+00 : f32
    %414 = vector.broadcast %cst_149 : f32 to vector<8x128xf32>
    %415 = arith.addf %414, %413 : vector<8x128xf32>
    %416 = arith.divf %414, %415 : vector<8x128xf32>
    %417 = arith.mulf %408, %384 : vector<8x128xf32>
    %418 = arith.mulf %402, %410 : vector<8x128xf32>
    %419 = arith.addf %417, %418 : vector<8x128xf32>
    %420 = math.tanh %419 : vector<8x128xf32>
    %421 = arith.mulf %416, %420 : vector<8x128xf32>
    %c3_i32 = arith.constant 3 : i32
    %422 = vector.broadcast %c3_i32 : i32 to vector<8x1xi32>
    %423 = arith.cmpi eq, %0, %422 : vector<8x1xi32>
    %424 = vector.shape_cast %423 : vector<8x1xi1> to vector<8x1xi1>
    %425 = vector.broadcast %424 : vector<8x1xi1> to vector<8x128xi1>
    %426 = arith.select %425, %421, %391 : vector<8x128xi1>, vector<8x128xf32>
    %c4_150 = arith.constant 4 : index
    %c0_151 = arith.constant 0 : index
    %c0_152 = arith.constant 0 : index
    %427 = vector.load %arg12[%c4_150, %c0_151, %c0_152] : memref<8x8x512xf32, #tpu.memory_space<vmem>>, vector<1x8x512xf32>
    %428 = vector.shape_cast %427 : vector<1x8x512xf32> to vector<8x512xf32>
    %c0_153 = arith.constant 0 : index
    %c0_154 = arith.constant 0 : index
    %429 = vector.load %arg6[%c0_153, %c0_154] : memref<128x512xf32, #tpu.memory_space<vmem>>, vector<128x512xf32>
    %cst_155 = arith.constant dense<0.000000e+00> : vector<8x512xf32>
    %430 = tpu.matmul %421, %429, %cst_155 {dimension_numbers = #tpu.dot_dimension_numbers<[1], [0], [0], [1], [0, 0, 1, 1], [], []>} : vector<8x128xf32>, vector<128x512xf32>, vector<8x512xf32> -> vector<8x512xf32>
    %431 = arith.addf %428, %430 : vector<8x512xf32>
    %432 = vector.extract_strided_slice %431 {offsets = [0, 0], sizes = [8, 128], strides = [1, 1]} : vector<8x512xf32> to vector<8x128xf32>
    %433 = arith.negf %432 : vector<8x128xf32>
    %434 = math.exp %433 : vector<8x128xf32>
    %cst_156 = arith.constant 1.000000e+00 : f32
    %435 = vector.broadcast %cst_156 : f32 to vector<8x128xf32>
    %436 = arith.addf %435, %434 : vector<8x128xf32>
    %437 = arith.divf %435, %436 : vector<8x128xf32>
    %438 = vector.extract_strided_slice %431 {offsets = [0, 128], sizes = [8, 128], strides = [1, 1]} : vector<8x512xf32> to vector<8x128xf32>
    %439 = arith.negf %438 : vector<8x128xf32>
    %440 = math.exp %439 : vector<8x128xf32>
    %cst_157 = arith.constant 1.000000e+00 : f32
    %441 = vector.broadcast %cst_157 : f32 to vector<8x128xf32>
    %442 = arith.addf %441, %440 : vector<8x128xf32>
    %443 = arith.divf %441, %442 : vector<8x128xf32>
    %444 = vector.extract_strided_slice %431 {offsets = [0, 256], sizes = [8, 128], strides = [1, 1]} : vector<8x512xf32> to vector<8x128xf32>
    %445 = math.tanh %444 : vector<8x128xf32>
    %446 = vector.extract_strided_slice %431 {offsets = [0, 384], sizes = [8, 128], strides = [1, 1]} : vector<8x512xf32> to vector<8x128xf32>
    %447 = arith.negf %446 : vector<8x128xf32>
    %448 = math.exp %447 : vector<8x128xf32>
    %cst_158 = arith.constant 1.000000e+00 : f32
    %449 = vector.broadcast %cst_158 : f32 to vector<8x128xf32>
    %450 = arith.addf %449, %448 : vector<8x128xf32>
    %451 = arith.divf %449, %450 : vector<8x128xf32>
    %452 = arith.mulf %443, %419 : vector<8x128xf32>
    %453 = arith.mulf %437, %445 : vector<8x128xf32>
    %454 = arith.addf %452, %453 : vector<8x128xf32>
    %455 = math.tanh %454 : vector<8x128xf32>
    %456 = arith.mulf %451, %455 : vector<8x128xf32>
    %c4_i32 = arith.constant 4 : i32
    %457 = vector.broadcast %c4_i32 : i32 to vector<8x1xi32>
    %458 = arith.cmpi eq, %0, %457 : vector<8x1xi32>
    %459 = vector.shape_cast %458 : vector<8x1xi1> to vector<8x1xi1>
    %460 = vector.broadcast %459 : vector<8x1xi1> to vector<8x128xi1>
    %461 = arith.select %460, %456, %426 : vector<8x128xi1>, vector<8x128xf32>
    %c5_159 = arith.constant 5 : index
    %c0_160 = arith.constant 0 : index
    %c0_161 = arith.constant 0 : index
    %462 = vector.load %arg12[%c5_159, %c0_160, %c0_161] : memref<8x8x512xf32, #tpu.memory_space<vmem>>, vector<1x8x512xf32>
    %463 = vector.shape_cast %462 : vector<1x8x512xf32> to vector<8x512xf32>
    %c0_162 = arith.constant 0 : index
    %c0_163 = arith.constant 0 : index
    %464 = vector.load %arg6[%c0_162, %c0_163] : memref<128x512xf32, #tpu.memory_space<vmem>>, vector<128x512xf32>
    %cst_164 = arith.constant dense<0.000000e+00> : vector<8x512xf32>
    %465 = tpu.matmul %456, %464, %cst_164 {dimension_numbers = #tpu.dot_dimension_numbers<[1], [0], [0], [1], [0, 0, 1, 1], [], []>} : vector<8x128xf32>, vector<128x512xf32>, vector<8x512xf32> -> vector<8x512xf32>
    %466 = arith.addf %463, %465 : vector<8x512xf32>
    %467 = vector.extract_strided_slice %466 {offsets = [0, 0], sizes = [8, 128], strides = [1, 1]} : vector<8x512xf32> to vector<8x128xf32>
    %468 = arith.negf %467 : vector<8x128xf32>
    %469 = math.exp %468 : vector<8x128xf32>
    %cst_165 = arith.constant 1.000000e+00 : f32
    %470 = vector.broadcast %cst_165 : f32 to vector<8x128xf32>
    %471 = arith.addf %470, %469 : vector<8x128xf32>
    %472 = arith.divf %470, %471 : vector<8x128xf32>
    %473 = vector.extract_strided_slice %466 {offsets = [0, 128], sizes = [8, 128], strides = [1, 1]} : vector<8x512xf32> to vector<8x128xf32>
    %474 = arith.negf %473 : vector<8x128xf32>
    %475 = math.exp %474 : vector<8x128xf32>
    %cst_166 = arith.constant 1.000000e+00 : f32
    %476 = vector.broadcast %cst_166 : f32 to vector<8x128xf32>
    %477 = arith.addf %476, %475 : vector<8x128xf32>
    %478 = arith.divf %476, %477 : vector<8x128xf32>
    %479 = vector.extract_strided_slice %466 {offsets = [0, 256], sizes = [8, 128], strides = [1, 1]} : vector<8x512xf32> to vector<8x128xf32>
    %480 = math.tanh %479 : vector<8x128xf32>
    %481 = vector.extract_strided_slice %466 {offsets = [0, 384], sizes = [8, 128], strides = [1, 1]} : vector<8x512xf32> to vector<8x128xf32>
    %482 = arith.negf %481 : vector<8x128xf32>
    %483 = math.exp %482 : vector<8x128xf32>
    %cst_167 = arith.constant 1.000000e+00 : f32
    %484 = vector.broadcast %cst_167 : f32 to vector<8x128xf32>
    %485 = arith.addf %484, %483 : vector<8x128xf32>
    %486 = arith.divf %484, %485 : vector<8x128xf32>
    %487 = arith.mulf %478, %454 : vector<8x128xf32>
    %488 = arith.mulf %472, %480 : vector<8x128xf32>
    %489 = arith.addf %487, %488 : vector<8x128xf32>
    %490 = math.tanh %489 : vector<8x128xf32>
    %491 = arith.mulf %486, %490 : vector<8x128xf32>
    %c5_i32 = arith.constant 5 : i32
    %492 = vector.broadcast %c5_i32 : i32 to vector<8x1xi32>
    %493 = arith.cmpi eq, %0, %492 : vector<8x1xi32>
    %494 = vector.shape_cast %493 : vector<8x1xi1> to vector<8x1xi1>
    %495 = vector.broadcast %494 : vector<8x1xi1> to vector<8x128xi1>
    %496 = arith.select %495, %491, %461 : vector<8x128xi1>, vector<8x128xf32>
    %c6_168 = arith.constant 6 : index
    %c0_169 = arith.constant 0 : index
    %c0_170 = arith.constant 0 : index
    %497 = vector.load %arg12[%c6_168, %c0_169, %c0_170] : memref<8x8x512xf32, #tpu.memory_space<vmem>>, vector<1x8x512xf32>
    %498 = vector.shape_cast %497 : vector<1x8x512xf32> to vector<8x512xf32>
    %c0_171 = arith.constant 0 : index
    %c0_172 = arith.constant 0 : index
    %499 = vector.load %arg6[%c0_171, %c0_172] : memref<128x512xf32, #tpu.memory_space<vmem>>, vector<128x512xf32>
    %cst_173 = arith.constant dense<0.000000e+00> : vector<8x512xf32>
    %500 = tpu.matmul %491, %499, %cst_173 {dimension_numbers = #tpu.dot_dimension_numbers<[1], [0], [0], [1], [0, 0, 1, 1], [], []>} : vector<8x128xf32>, vector<128x512xf32>, vector<8x512xf32> -> vector<8x512xf32>
    %501 = arith.addf %498, %500 : vector<8x512xf32>
    %502 = vector.extract_strided_slice %501 {offsets = [0, 0], sizes = [8, 128], strides = [1, 1]} : vector<8x512xf32> to vector<8x128xf32>
    %503 = arith.negf %502 : vector<8x128xf32>
    %504 = math.exp %503 : vector<8x128xf32>
    %cst_174 = arith.constant 1.000000e+00 : f32
    %505 = vector.broadcast %cst_174 : f32 to vector<8x128xf32>
    %506 = arith.addf %505, %504 : vector<8x128xf32>
    %507 = arith.divf %505, %506 : vector<8x128xf32>
    %508 = vector.extract_strided_slice %501 {offsets = [0, 128], sizes = [8, 128], strides = [1, 1]} : vector<8x512xf32> to vector<8x128xf32>
    %509 = arith.negf %508 : vector<8x128xf32>
    %510 = math.exp %509 : vector<8x128xf32>
    %cst_175 = arith.constant 1.000000e+00 : f32
    %511 = vector.broadcast %cst_175 : f32 to vector<8x128xf32>
    %512 = arith.addf %511, %510 : vector<8x128xf32>
    %513 = arith.divf %511, %512 : vector<8x128xf32>
    %514 = vector.extract_strided_slice %501 {offsets = [0, 256], sizes = [8, 128], strides = [1, 1]} : vector<8x512xf32> to vector<8x128xf32>
    %515 = math.tanh %514 : vector<8x128xf32>
    %516 = vector.extract_strided_slice %501 {offsets = [0, 384], sizes = [8, 128], strides = [1, 1]} : vector<8x512xf32> to vector<8x128xf32>
    %517 = arith.negf %516 : vector<8x128xf32>
    %518 = math.exp %517 : vector<8x128xf32>
    %cst_176 = arith.constant 1.000000e+00 : f32
    %519 = vector.broadcast %cst_176 : f32 to vector<8x128xf32>
    %520 = arith.addf %519, %518 : vector<8x128xf32>
    %521 = arith.divf %519, %520 : vector<8x128xf32>
    %522 = arith.mulf %513, %489 : vector<8x128xf32>
    %523 = arith.mulf %507, %515 : vector<8x128xf32>
    %524 = arith.addf %522, %523 : vector<8x128xf32>
    %525 = math.tanh %524 : vector<8x128xf32>
    %526 = arith.mulf %521, %525 : vector<8x128xf32>
    %c6_i32 = arith.constant 6 : i32
    %527 = vector.broadcast %c6_i32 : i32 to vector<8x1xi32>
    %528 = arith.cmpi eq, %0, %527 : vector<8x1xi32>
    %529 = vector.shape_cast %528 : vector<8x1xi1> to vector<8x1xi1>
    %530 = vector.broadcast %529 : vector<8x1xi1> to vector<8x128xi1>
    %531 = arith.select %530, %526, %496 : vector<8x128xi1>, vector<8x128xf32>
    %c7_177 = arith.constant 7 : index
    %c0_178 = arith.constant 0 : index
    %c0_179 = arith.constant 0 : index
    %532 = vector.load %arg12[%c7_177, %c0_178, %c0_179] : memref<8x8x512xf32, #tpu.memory_space<vmem>>, vector<1x8x512xf32>
    %533 = vector.shape_cast %532 : vector<1x8x512xf32> to vector<8x512xf32>
    %c0_180 = arith.constant 0 : index
    %c0_181 = arith.constant 0 : index
    %534 = vector.load %arg6[%c0_180, %c0_181] : memref<128x512xf32, #tpu.memory_space<vmem>>, vector<128x512xf32>
    %cst_182 = arith.constant dense<0.000000e+00> : vector<8x512xf32>
    %535 = tpu.matmul %526, %534, %cst_182 {dimension_numbers = #tpu.dot_dimension_numbers<[1], [0], [0], [1], [0, 0, 1, 1], [], []>} : vector<8x128xf32>, vector<128x512xf32>, vector<8x512xf32> -> vector<8x512xf32>
    %536 = arith.addf %533, %535 : vector<8x512xf32>
    %537 = vector.extract_strided_slice %536 {offsets = [0, 0], sizes = [8, 128], strides = [1, 1]} : vector<8x512xf32> to vector<8x128xf32>
    %538 = arith.negf %537 : vector<8x128xf32>
    %539 = math.exp %538 : vector<8x128xf32>
    %cst_183 = arith.constant 1.000000e+00 : f32
    %540 = vector.broadcast %cst_183 : f32 to vector<8x128xf32>
    %541 = arith.addf %540, %539 : vector<8x128xf32>
    %542 = arith.divf %540, %541 : vector<8x128xf32>
    %543 = vector.extract_strided_slice %536 {offsets = [0, 128], sizes = [8, 128], strides = [1, 1]} : vector<8x512xf32> to vector<8x128xf32>
    %544 = arith.negf %543 : vector<8x128xf32>
    %545 = math.exp %544 : vector<8x128xf32>
    %cst_184 = arith.constant 1.000000e+00 : f32
    %546 = vector.broadcast %cst_184 : f32 to vector<8x128xf32>
    %547 = arith.addf %546, %545 : vector<8x128xf32>
    %548 = arith.divf %546, %547 : vector<8x128xf32>
    %549 = vector.extract_strided_slice %536 {offsets = [0, 256], sizes = [8, 128], strides = [1, 1]} : vector<8x512xf32> to vector<8x128xf32>
    %550 = math.tanh %549 : vector<8x128xf32>
    %551 = vector.extract_strided_slice %536 {offsets = [0, 384], sizes = [8, 128], strides = [1, 1]} : vector<8x512xf32> to vector<8x128xf32>
    %552 = arith.negf %551 : vector<8x128xf32>
    %553 = math.exp %552 : vector<8x128xf32>
    %cst_185 = arith.constant 1.000000e+00 : f32
    %554 = vector.broadcast %cst_185 : f32 to vector<8x128xf32>
    %555 = arith.addf %554, %553 : vector<8x128xf32>
    %556 = arith.divf %554, %555 : vector<8x128xf32>
    %557 = arith.mulf %548, %524 : vector<8x128xf32>
    %558 = arith.mulf %542, %550 : vector<8x128xf32>
    %559 = arith.addf %557, %558 : vector<8x128xf32>
    %560 = math.tanh %559 : vector<8x128xf32>
    %561 = arith.mulf %556, %560 : vector<8x128xf32>
    %c7_i32 = arith.constant 7 : i32
    %562 = vector.broadcast %c7_i32 : i32 to vector<8x1xi32>
    %563 = arith.cmpi eq, %0, %562 : vector<8x1xi32>
    %564 = vector.shape_cast %563 : vector<8x1xi1> to vector<8x1xi1>
    %565 = vector.broadcast %564 : vector<8x1xi1> to vector<8x128xi1>
    %566 = arith.select %565, %561, %531 : vector<8x128xi1>, vector<8x128xf32>
    %c0_186 = arith.constant 0 : index
    %c0_187 = arith.constant 0 : index
    %567 = vector.load %arg9[%c0_186, %c0_187] : memref<128x128xf32, #tpu.memory_space<vmem>>, vector<128x128xf32>
    %cst_188 = arith.constant dense<0.000000e+00> : vector<8x128xf32>
    %568 = tpu.matmul %566, %567, %cst_188 {dimension_numbers = #tpu.dot_dimension_numbers<[1], [0], [0], [1], [0, 0, 1, 1], [], []>} : vector<8x128xf32>, vector<128x128xf32>, vector<8x128xf32> -> vector<8x128xf32>
    %c0_189 = arith.constant 0 : index
    %c0_190 = arith.constant 0 : index
    %569 = vector.load %arg10[%c0_189, %c0_190] : memref<1x128xf32, #tpu.memory_space<vmem>>, vector<1x128xf32>
    %570 = vector.broadcast %569 : vector<1x128xf32> to vector<8x128xf32>
    %571 = arith.addf %568, %570 : vector<8x128xf32>
    %c0_191 = arith.constant 0 : index
    %c0_192 = arith.constant 0 : index
    %572 = vector.load %arg11[%c0_191, %c0_192] : memref<8x128xf32, #tpu.memory_space<vmem>>, vector<8x128xf32>
    tpu.vector_store %arg11[%c0_191, %c0_192], %571 {strides = array<i32>} : memref<8x128xf32, #tpu.memory_space<vmem>>, vector<8x128xf32>,
    return
  }
  func.func @transform_0(%arg0: i32) -> (i32, i32, i32, i32) {
    %c0_i32 = arith.constant 0 : i32
    %c0_i32_0 = arith.constant 0 : i32
    %c0_i32_1 = arith.constant 0 : i32
    %c0_i32_2 = arith.constant 0 : i32
    return %arg0, %c0_i32, %c0_i32_0, %c0_i32_1 : i32, i32, i32, i32
  }
  func.func @transform_1(%arg0: i32) -> (i32, i32) {
    %c0_i32 = arith.constant 0 : i32
    %c0_i32_0 = arith.constant 0 : i32
    return %arg0, %c0_i32 : i32, i32
  }
  func.func @transform_2(%arg0: i32) -> (i32, i32) {
    %c0_i32 = arith.constant 0 : i32
    %c0_i32_0 = arith.constant 0 : i32
    %c0_i32_1 = arith.constant 0 : i32
    return %c0_i32, %c0_i32_0 : i32, i32
  }
  func.func @transform_3(%arg0: i32) -> (i32, i32) {
    %c0_i32 = arith.constant 0 : i32
    %c0_i32_0 = arith.constant 0 : i32
    %c0_i32_1 = arith.constant 0 : i32
    return %c0_i32, %c0_i32_0 : i32, i32
  }
  func.func @transform_4(%arg0: i32) -> (i32, i32) {
    %c0_i32 = arith.constant 0 : i32
    %c0_i32_0 = arith.constant 0 : i32
    %c0_i32_1 = arith.constant 0 : i32
    return %c0_i32, %c0_i32_0 : i32, i32
  }
  func.func @transform_5(%arg0: i32) -> (i32, i32) {
    %c0_i32 = arith.constant 0 : i32
    %c0_i32_0 = arith.constant 0 : i32
    %c0_i32_1 = arith.constant 0 : i32
    return %c0_i32, %c0_i32_0 : i32, i32
  }
  func.func @transform_6(%arg0: i32) -> (i32, i32) {
    %c0_i32 = arith.constant 0 : i32
    %c0_i32_0 = arith.constant 0 : i32
    %c0_i32_1 = arith.constant 0 : i32
    return %c0_i32, %c0_i32_0 : i32, i32
  }
  func.func @transform_7(%arg0: i32) -> (i32, i32) {
    %c0_i32 = arith.constant 0 : i32
    %c0_i32_0 = arith.constant 0 : i32
    %c0_i32_1 = arith.constant 0 : i32
    return %c0_i32, %c0_i32_0 : i32, i32
  }
  func.func @transform_8(%arg0: i32) -> (i32, i32) {
    %c0_i32 = arith.constant 0 : i32
    %c0_i32_0 = arith.constant 0 : i32
    %c0_i32_1 = arith.constant 0 : i32
    return %c0_i32, %c0_i32_0 : i32, i32
  }
  func.func @transform_9(%arg0: i32) -> (i32, i32) {
    %c0_i32 = arith.constant 0 : i32
    %c0_i32_0 = arith.constant 0 : i32
    %c0_i32_1 = arith.constant 0 : i32
    return %c0_i32, %c0_i32_0 : i32, i32
  }
  func.func @transform_10(%arg0: i32) -> (i32, i32) {
    %c0_i32 = arith.constant 0 : i32
    %c0_i32_0 = arith.constant 0 : i32
    return %arg0, %c0_i32 : i32, i32
  }
}

</mosaic_0001>

<llo_original>
// kernel: tpu_custom_call.1
$region0: #{tpu_custom_call.1}
  #allocation0 [shape = 'u32[]', space=smem, size = 0x4, offset = 0x4, fixed_abs, tag = 'smem constant byte address 0x4 - core index']
  #allocation1 [shape = 'u32[72,128]{1,0:T(1,128)}', space=vmem, size = 0x9000, scoped, tag = 'internal scratch']
  #allocation2 [shape = 'f32[8,8,512]{2,1,0:T(8,128)}', space=vmem, size = 0x20000, scoped, tag = 'scratch operand']
  #allocation3 [shape = 'f32[8,8,128]{2,1,0:T(8,128)}', space=vmem, size = 0x8000, scoped, tag = 'scratch operand']
  %s0 = inlined_call_operand.hbm [shape: f32[1,8,8,128], index: 0, kind: input, shape index: {}]
  %s1 = inlined_call_operand.vmem [shape: s32[8,1], index: 1, kind: input, shape index: {}]
  %s2 = inlined_call_operand.hbm [shape: f32[128,512], index: 2, kind: input, shape index: {}]
  %s3 = inlined_call_operand.hbm [shape: f32[128,512], index: 3, kind: input, shape index: {}]
  %s4 = inlined_call_operand.hbm [shape: f32[128,512], index: 4, kind: input, shape index: {}]
  %s5 = inlined_call_operand.hbm [shape: f32[128,512], index: 5, kind: input, shape index: {}]
  %s6 = inlined_call_operand.vmem [shape: f32[1,512], index: 6, kind: input, shape index: {}]
  %s7 = inlined_call_operand.vmem [shape: f32[1,512], index: 7, kind: input, shape index: {}]
  %s8 = inlined_call_operand.hbm [shape: f32[128,128], index: 8, kind: input, shape index: {}]
  %s9 = inlined_call_operand.vmem [shape: f32[1,128], index: 9, kind: input, shape index: {}]
  %s10 = inlined_call_operand.hbm [shape: f32[8,128], index: 10, kind: output, shape index: {}]
  %s11 = sld [smem:[#allocation0]]
  $region74: #{tpu_custom_call.1} parent=0
    _
  %s13 = ssub.s32 1, %s11
  %s14 = scalar_select 0, %s13, %s11
  $region1: #{tpu_custom_call.1} parent=0
    #allocation4 [shape = 'u8[32768]{0}', space=vmem, size = 0x8000, scoped, tag = 'input window, operand 0, single buffered']
    #allocation5 [shape = 's32[1]{0}', space=sflag, size = 0x4, scoped, tag = 'scoped memory for tpu_custom_call.1']
    #allocation6 [shape = 's32[1]{0}', space=sflag, size = 0x4, scoped, tag = 'scoped memory for tpu_custom_call.1']
    #allocation7 [shape = 'u8[262144]{0}', space=vmem, size = 0x40000, scoped, tag = 'input window, operand 2, single buffered']
    #allocation8 [shape = 's32[1]{0}', space=sflag, size = 0x4, scoped, tag = 'scoped memory for tpu_custom_call.1']
    #allocation9 [shape = 'u8[262144]{0}', space=vmem, size = 0x40000, scoped, tag = 'input window, operand 3, single buffered']
    #allocation10 [shape = 'u8[262144]{0}', space=vmem, size = 0x40000, scoped, tag = 'input window, operand 4, single buffered']
    #allocation11 [shape = 's32[1]{0}', space=sflag, size = 0x4, scoped, tag = 'scoped memory for tpu_custom_call.1']
    #allocation12 [shape = 'u8[262144]{0}', space=vmem, size = 0x40000, scoped, tag = 'input window, operand 5, single buffered']
    #allocation13 [shape = 'u8[65536]{0}', space=vmem, size = 0x10000, scoped, tag = 'input window, operand 8, single buffered']
    #allocation14 [shape = 's32[1]{0}', space=sflag, size = 0x4, scoped, tag = 'scoped memory for tpu_custom_call.1']
    #allocation15 [shape = 'u8[4096]{0}', space=vmem, size = 0x1000, scoped, tag = 'output window, operand 0, single buffered']
    %15 = vsyncpa [#allocation5], 0
    %16 = vsyncpa [#allocation8], 0
    %17 = vsyncpa [#allocation11], 0
    %18 = vsyncpa [#allocation14], 0
    %19 = vsyncpa [#allocation6], 0
    // Predicated region
    $region2: #{tpu_custom_call.1} parent=1 // pred_check
      _
    $region3: #{tpu_custom_call.1} parent=1 // pred_check_branch
      %21 = sbr.rel (0) target = $region5
    $region4: #{tpu_custom_call.1} parent=1 // pred_region
      %23 = vsyncadd [#allocation5], 0
      %s24 = sshll.u32 %s0, 4
      %s25 = int_to_ptr.hbm [resolvable:$true] %s24
      %s26 = sshll.u32 [#allocation4], 4
      %s27 = int_to_ptr.vmem [resolvable:$true] %s26
      %32 = dma.hbm_to_vmem [thread:$0]  %s25, 1024, %s27, [#allocation5], 128, 128, 8
    $region5: #{tpu_custom_call.1} parent=1 // pred_fallthru
      _
    // Predicated region
    $region6: #{tpu_custom_call.1} parent=1 // pred_check
      _
    $region7: #{tpu_custom_call.1} parent=1 // pred_check_branch
      %34 = sbr.rel (0) target = $region9
    $region8: #{tpu_custom_call.1} parent=1 // pred_region
      _
    $region9: #{tpu_custom_call.1} parent=1 // pred_fallthru
      _
    // Predicated region
    $region10: #{tpu_custom_call.1} parent=1 // pred_check
      _
    $region11: #{tpu_custom_call.1} parent=1 // pred_check_branch
      %36 = sbr.rel (0) target = $region13
    $region12: #{tpu_custom_call.1} parent=1 // pred_region
      %38 = vsyncadd [#allocation8], 0
      %s39 = sshll.u32 %s2, 4
      %s40 = int_to_ptr.hbm [resolvable:$true] %s39
      %s41 = sshll.u32 [#allocation7], 4
      %s42 = int_to_ptr.vmem [resolvable:$true] %s41
      %47 = dma.hbm_to_vmem [thread:$0]  %s40, 8192, %s42, [#allocation8], 512, 512, 32
    $region13: #{tpu_custom_call.1} parent=1 // pred_fallthru
      _
    // Predicated region
    $region14: #{tpu_custom_call.1} parent=1 // pred_check
      _
    $region15: #{tpu_custom_call.1} parent=1 // pred_check_branch
      %49 = sbr.rel (0) target = $region17
    $region16: #{tpu_custom_call.1} parent=1 // pred_region
      %51 = vsyncadd [#allocation8], 0
      %s52 = sshll.u32 %s3, 4
      %s53 = int_to_ptr.hbm [resolvable:$true] %s52
      %s54 = sshll.u32 [#allocation9], 4
      %s55 = int_to_ptr.vmem [resolvable:$true] %s54
      %60 = dma.hbm_to_vmem [thread:$0]  %s53, 8192, %s55, [#allocation8], 512, 512, 32
    $region17: #{tpu_custom_call.1} parent=1 // pred_fallthru
      _
    // Predicated region
    $region18: #{tpu_custom_call.1} parent=1 // pred_check
      _
    $region19: #{tpu_custom_call.1} parent=1 // pred_check_branch
      %62 = sbr.rel (0) target = $region21
    $region20: #{tpu_custom_call.1} parent=1 // pred_region
      %64 = vsyncadd [#allocation11], 0
      %s65 = sshll.u32 %s4, 4
      %s66 = int_to_ptr.hbm [resolvable:$true] %s65
      %s67 = sshll.u32 [#allocation10], 4
      %s68 = int_to_ptr.vmem [resolvable:$true] %s67
      %73 = dma.hbm_to_vmem [thread:$0]  %s66, 8192, %s68, [#allocation11], 512, 512, 32
    $region21: #{tpu_custom_call.1} parent=1 // pred_fallthru
      _
    // Predicated region
    $region22: #{tpu_custom_call.1} parent=1 // pred_check
      _
    $region23: #{tpu_custom_call.1} parent=1 // pred_check_branch
      %75 = sbr.rel (0) target = $region25
    $region24: #{tpu_custom_call.1} parent=1 // pred_region
      %77 = vsyncadd [#allocation11], 0
      %s78 = sshll.u32 %s5, 4
      %s79 = int_to_ptr.hbm [resolvable:$true] %s78
      %s80 = sshll.u32 [#allocation12], 4
      %s81 = int_to_ptr.vmem [resolvable:$true] %s80
      %86 = dma.hbm_to_vmem [thread:$0]  %s79, 8192, %s81, [#allocation11], 512, 512, 32
    $region25: #{tpu_custom_call.1} parent=1 // pred_fallthru
      _
    // Predicated region
    $region26: #{tpu_custom_call.1} parent=1 // pred_check
      _
    $region27: #{tpu_custom_call.1} parent=1 // pred_check_branch
      %88 = sbr.rel (0) target = $region29
    $region28: #{tpu_custom_call.1} parent=1 // pred_region
      _
    $region29: #{tpu_custom_call.1} parent=1 // pred_fallthru
      _
    // Predicated region
    $region30: #{tpu_custom_call.1} parent=1 // pred_check
      _
    $region31: #{tpu_custom_call.1} parent=1 // pred_check_branch
      %90 = sbr.rel (0) target = $region33
    $region32: #{tpu_custom_call.1} parent=1 // pred_region
      _
    $region33: #{tpu_custom_call.1} parent=1 // pred_fallthru
      _
    // Predicated region
    $region34: #{tpu_custom_call.1} parent=1 // pred_check
      _
    $region35: #{tpu_custom_call.1} parent=1 // pred_check_branch
      %92 = sbr.rel (0) target = $region37
    $region36: #{tpu_custom_call.1} parent=1 // pred_region
      %94 = vsyncadd [#allocation14], 0
      %s95 = sshll.u32 %s8, 4
      %s96 = int_to_ptr.hbm [resolvable:$true] %s95
      %s97 = sshll.u32 [#allocation13], 4
      %s98 = int_to_ptr.vmem [resolvable:$true] %s97
      %103 = dma.hbm_to_vmem [thread:$0]  %s96, 2048, %s98, [#allocation14], 128, 128, 8
    $region37: #{tpu_custom_call.1} parent=1 // pred_fallthru
      _
    // Predicated region
    $region38: #{tpu_custom_call.1} parent=1 // pred_check
      _
    $region39: #{tpu_custom_call.1} parent=1 // pred_check_branch
      %105 = sbr.rel (0) target = $region41
    $region40: #{tpu_custom_call.1} parent=1 // pred_region
      _
    $region41: #{tpu_custom_call.1} parent=1 // pred_fallthru
      _
    // Predicated region
    $region42: #{tpu_custom_call.1} parent=1 // pred_check
      _
    $region43: #{tpu_custom_call.1} parent=1 // pred_check_branch
      %107 = sbr.rel (0) target = $region45
    $region44: #{tpu_custom_call.1} parent=1 // pred_region
      %109 = dma.done [#allocation5], 1024
    $region45: #{tpu_custom_call.1} parent=1 // pred_fallthru
      _
    // Predicated region
    $region46: #{tpu_custom_call.1} parent=1 // pred_check
      _
    $region47: #{tpu_custom_call.1} parent=1 // pred_check_branch
      %111 = sbr.rel (0) target = $region49
    $region48: #{tpu_custom_call.1} parent=1 // pred_region
      %113 = dma.done [#allocation8], 8192
    $region49: #{tpu_custom_call.1} parent=1 // pred_fallthru
      _
    // Predicated region
    $region50: #{tpu_custom_call.1} parent=1 // pred_check
      _
    $region51: #{tpu_custom_call.1} parent=1 // pred_check_branch
      %115 = sbr.rel (0) target = $region53
    $region52: #{tpu_custom_call.1} parent=1 // pred_region
      %117 = dma.done [#allocation8], 8192
    $region53: #{tpu_custom_call.1} parent=1 // pred_fallthru
      _
    // Predicated region
    $region54: #{tpu_custom_call.1} parent=1 // pred_check
      _
    $region55: #{tpu_custom_call.1} parent=1 // pred_check_branch
      %119 = sbr.rel (0) target = $region57
    $region56: #{tpu_custom_call.1} parent=1 // pred_region
      %121 = dma.done [#allocation11], 8192
    $region57: #{tpu_custom_call.1} parent=1 // pred_fallthru
      _
    // Predicated region
    $region58: #{tpu_custom_call.1} parent=1 // pred_check
      _
    $region59: #{tpu_custom_call.1} parent=1 // pred_check_branch
      %123 = sbr.rel (0) target = $region61
    $region60: #{tpu_custom_call.1} parent=1 // pred_region
      %125 = dma.done [#allocation11], 8192
    $region61: #{tpu_custom_call.1} parent=1 // pred_fallthru
      _
    // Predicated region
    $region62: #{tpu_custom_call.1} parent=1 // pred_check
      _
    $region63: #{tpu_custom_call.1} parent=1 // pred_check_branch
      %127 = sbr.rel (0) target = $region65
    $region64: #{tpu_custom_call.1} parent=1 // pred_region
      %129 = dma.done [#allocation14], 2048
    $region65: #{tpu_custom_call.1} parent=1 // pred_fallthru
      _
    %v130 = vld [vmem:[%s1] sm:$0xff]
    %v131 = vld [vmem:[#allocation4] sm:$0xff]
    %v132 = vld [vmem:[#allocation4 + $0x8] sm:$0xff]
    %v133 = vld [vmem:[#allocation4 + $0x10] sm:$0xff]
    %v134 = vld [vmem:[#allocation4 + $0x18] sm:$0xff]
    %v135 = vld [vmem:[#allocation4 + $0x20] sm:$0xff]
    %v136 = vld [vmem:[#allocation4 + $0x28] sm:$0xff]
    %v137 = vld [vmem:[#allocation4 + $0x30] sm:$0xff]
    %v138 = vld [vmem:[#allocation4 + $0x38] sm:$0xff]
    %v139 = vld [vmem:[#allocation7] sm:$0xff]
    %v140 = vld [vmem:[#allocation7 + $0x8] sm:$0xff]
    %v141 = vld [vmem:[#allocation7 + $0x10] sm:$0xff]
    %v142 = vld [vmem:[#allocation7 + $0x18] sm:$0xff]
    %v143 = vld [vmem:[#allocation7 + $0x20] sm:$0xff]
    %v144 = vld [vmem:[#allocation7 + $0x28] sm:$0xff]
    %v145 = vld [vmem:[#allocation7 + $0x30] sm:$0xff]
    %v146 = vld [vmem:[#allocation7 + $0x38] sm:$0xff]
    %v147 = vld [vmem:[#allocation7 + $0x40] sm:$0xff]
    %v148 = vld [vmem:[#allocation7 + $0x48] sm:$0xff]
    %v149 = vld [vmem:[#allocation7 + $0x50] sm:$0xff]
    %v150 = vld [vmem:[#allocation7 + $0x58] sm:$0xff]
    %v151 = vld [vmem:[#allocation7 + $0x60] sm:$0xff]
    %v152 = vld [vmem:[#allocation7 + $0x68] sm:$0xff]
    %v153 = vld [vmem:[#allocation7 + $0x70] sm:$0xff]
    %v154 = vld [vmem:[#allocation7 + $0x78] sm:$0xff]
    %v155 = vld [vmem:[#allocation7 + $0x80] sm:$0xff]
    %v156 = vld [vmem:[#allocation7 + $0x88] sm:$0xff]
    %v157 = vld [vmem:[#allocation7 + $0x90] sm:$0xff]
    %v158 = vld [vmem:[#allocation7 + $0x98] sm:$0xff]
    %v159 = vld [vmem:[#allocation7 + $0xa0] sm:$0xff]
    %v160 = vld [vmem:[#allocation7 + $0xa8] sm:$0xff]
    %v161 = vld [vmem:[#allocation7 + $0xb0] sm:$0xff]
    %v162 = vld [vmem:[#allocation7 + $0xb8] sm:$0xff]
    %v163 = vld [vmem:[#allocation7 + $0xc0] sm:$0xff]
    %v164 = vld [vmem:[#allocation7 + $0xc8] sm:$0xff]
    %v165 = vld [vmem:[#allocation7 + $0xd0] sm:$0xff]
    %v166 = vld [vmem:[#allocation7 + $0xd8] sm:$0xff]
    %v167 = vld [vmem:[#allocation7 + $0xe0] sm:$0xff]
    %v168 = vld [vmem:[#allocation7 + $0xe8] sm:$0xff]
    %v169 = vld [vmem:[#allocation7 + $0xf0] sm:$0xff]
    %v170 = vld [vmem:[#allocation7 + $0xf8] sm:$0xff]
    %v171 = vld [vmem:[#allocation7 + $0x100] sm:$0xff]
    %v172 = vld [vmem:[#allocation7 + $0x108] sm:$0xff]
    %v173 = vld [vmem:[#allocation7 + $0x110] sm:$0xff]
    %v174 = vld [vmem:[#allocation7 + $0x118] sm:$0xff]
    %v175 = vld [vmem:[#allocation7 + $0x120] sm:$0xff]
    %v176 = vld [vmem:[#allocation7 + $0x128] sm:$0xff]
    %v177 = vld [vmem:[#allocation7 + $0x130] sm:$0xff]
    %v178 = vld [vmem:[#allocation7 + $0x138] sm:$0xff]
    %v179 = vld [vmem:[#allocation7 + $0x140] sm:$0xff]
    %v180 = vld [vmem:[#allocation7 + $0x148] sm:$0xff]
    %v181 = vld [vmem:[#allocation7 + $0x150] sm:$0xff]
    %v182 = vld [vmem:[#allocation7 + $0x158] sm:$0xff]
    %v183 = vld [vmem:[#allocation7 + $0x160] sm:$0xff]
    %v184 = vld [vmem:[#allocation7 + $0x168] sm:$0xff]
    %v185 = vld [vmem:[#allocation7 + $0x170] sm:$0xff]
    %v186 = vld [vmem:[#allocation7 + $0x178] sm:$0xff]
    %v187 = vld [vmem:[#allocation7 + $0x180] sm:$0xff]
    %v188 = vld [vmem:[#allocation7 + $0x188] sm:$0xff]
    %v189 = vld [vmem:[#allocation7 + $0x190] sm:$0xff]
    %v190 = vld [vmem:[#allocation7 + $0x198] sm:$0xff]
    %v191 = vld [vmem:[#allocation7 + $0x1a0] sm:$0xff]
    %v192 = vld [vmem:[#allocation7 + $0x1a8] sm:$0xff]
    %v193 = vld [vmem:[#allocation7 + $0x1b0] sm:$0xff]
    %v194 = vld [vmem:[#allocation7 + $0x1b8] sm:$0xff]
    %v195 = vld [vmem:[#allocation7 + $0x1c0] sm:$0xff]
    %v196 = vld [vmem:[#allocation7 + $0x1c8] sm:$0xff]
    %v197 = vld [vmem:[#allocation7 + $0x1d0] sm:$0xff]
    %v198 = vld [vmem:[#allocation7 + $0x1d8] sm:$0xff]
    %v199 = vld [vmem:[#allocation7 + $0x1e0] sm:$0xff]
    %v200 = vld [vmem:[#allocation7 + $0x1e8] sm:$0xff]
    %v201 = vld [vmem:[#allocation7 + $0x1f0] sm:$0xff]
    %v202 = vld [vmem:[#allocation7 + $0x1f8] sm:$0xff]
    %203 = vmatpush.msra.mxu0 %v199
    %204 = vmatpush.msra.mxu0 %v195
    %205 = vmatpush.msra.mxu0 %v191
    %206 = vmatpush.msra.mxu0 %v187
    %207 = vmatpush.msra.mxu0 %v183
    %208 = vmatpush.msra.mxu0 %v179
    %209 = vmatpush.msra.mxu0 %v175
    %210 = vmatpush.msra.mxu0 %v171
    %211 = vmatpush.msra.mxu0 %v167
    %212 = vmatpush.msra.mxu0 %v163
    %213 = vmatpush.msra.mxu0 %v159
    %214 = vmatpush.msra.mxu0 %v155
    %215 = vmatpush.msra.mxu0 %v151
    %216 = vmatpush.msra.mxu0 %v147
    %217 = vmatpush.msra.mxu0 %v143
    %218 = vmatpush.msra.mxu0 %v139
    %219 = vmatmul.f32.gmra.mxu0 %v131
    %v220 = vpop.f32.mrf.mxu0
    %v221 = vadd.f32 0.0, %v220
    %222 = vmatmul.f32.gmra.mxu0 %v132
    %v223 = vpop.f32.mrf.mxu0
    %v224 = vadd.f32 0.0, %v223
    %225 = vmatmul.f32.gmra.mxu0 %v133
    %v226 = vpop.f32.mrf.mxu0
    %v227 = vadd.f32 0.0, %v226
    %228 = vmatmul.f32.gmra.mxu0 %v134
    %v229 = vpop.f32.mrf.mxu0
    %v230 = vadd.f32 0.0, %v229
    %231 = vmatmul.f32.gmra.mxu0 %v135
    %v232 = vpop.f32.mrf.mxu0
    %v233 = vadd.f32 0.0, %v232
    %234 = vmatmul.f32.gmra.mxu0 %v136
    %v235 = vpop.f32.mrf.mxu0
    %v236 = vadd.f32 0.0, %v235
    %237 = vmatmul.f32.gmra.mxu0 %v137
    %v238 = vpop.f32.mrf.mxu0
    %v239 = vadd.f32 0.0, %v238
    %240 = vmatmul.f32.gmra.mxu0 %v138
    %v241 = vpop.f32.mrf.mxu0
    %v242 = vadd.f32 0.0, %v241
    %243 = vdwg.mxu0
    %244 = vmatpush.msra.mxu0 %v200
    %245 = vmatpush.msra.mxu0 %v196
    %246 = vmatpush.msra.mxu0 %v192
    %247 = vmatpush.msra.mxu0 %v188
    %248 = vmatpush.msra.mxu0 %v184
    %249 = vmatpush.msra.mxu0 %v180
    %250 = vmatpush.msra.mxu0 %v176
    %251 = vmatpush.msra.mxu0 %v172
    %252 = vmatpush.msra.mxu0 %v168
    %253 = vmatpush.msra.mxu0 %v164
    %254 = vmatpush.msra.mxu0 %v160
    %255 = vmatpush.msra.mxu0 %v156
    %256 = vmatpush.msra.mxu0 %v152
    %257 = vmatpush.msra.mxu0 %v148
    %258 = vmatpush.msra.mxu0 %v144
    %259 = vmatpush.msra.mxu0 %v140
    %260 = vmatmul.f32.gmra.mxu0 %v131
    %v261 = vpop.f32.mrf.mxu0
    %v262 = vadd.f32 0.0, %v261
    %263 = vmatmul.f32.gmra.mxu0 %v132
    %v264 = vpop.f32.mrf.mxu0
    %v265 = vadd.f32 0.0, %v264
    %266 = vmatmul.f32.gmra.mxu0 %v133
    %v267 = vpop.f32.mrf.mxu0
    %v268 = vadd.f32 0.0, %v267
    %269 = vmatmul.f32.gmra.mxu0 %v134
    %v270 = vpop.f32.mrf.mxu0
    %v271 = vadd.f32 0.0, %v270
    %272 = vmatmul.f32.gmra.mxu0 %v135
    %v273 = vpop.f32.mrf.mxu0
    %v274 = vadd.f32 0.0, %v273
    %275 = vmatmul.f32.gmra.mxu0 %v136
    %v276 = vpop.f32.mrf.mxu0
    %v277 = vadd.f32 0.0, %v276
    %278 = vmatmul.f32.gmra.mxu0 %v137
    %v279 = vpop.f32.mrf.mxu0
    %v280 = vadd.f32 0.0, %v279
    %281 = vmatmul.f32.gmra.mxu0 %v138
    %v282 = vpop.f32.mrf.mxu0
    %v283 = vadd.f32 0.0, %v282
    %284 = vdwg.mxu0
    %285 = vmatpush.msra.mxu0 %v201
    %286 = vmatpush.msra.mxu0 %v197
    %287 = vmatpush.msra.mxu0 %v193
    %288 = vmatpush.msra.mxu0 %v189
    %289 = vmatpush.msra.mxu0 %v185
    %290 = vmatpush.msra.mxu0 %v181
    %291 = vmatpush.msra.mxu0 %v177
    %292 = vmatpush.msra.mxu0 %v173
    %293 = vmatpush.msra.mxu0 %v169
    %294 = vmatpush.msra.mxu0 %v165
    %295 = vmatpush.msra.mxu0 %v161
    %296 = vmatpush.msra.mxu0 %v157
    %297 = vmatpush.msra.mxu0 %v153
    %298 = vmatpush.msra.mxu0 %v149
    %299 = vmatpush.msra.mxu0 %v145
    %300 = vmatpush.msra.mxu0 %v141
    %301 = vmatmul.f32.gmra.mxu0 %v131
    %v302 = vpop.f32.mrf.mxu0
    %v303 = vadd.f32 0.0, %v302
    %304 = vmatmul.f32.gmra.mxu0 %v132
    %v305 = vpop.f32.mrf.mxu0
    %v306 = vadd.f32 0.0, %v305
    %307 = vmatmul.f32.gmra.mxu0 %v133
    %v308 = vpop.f32.mrf.mxu0
    %v309 = vadd.f32 0.0, %v308
    %310 = vmatmul.f32.gmra.mxu0 %v134
    %v311 = vpop.f32.mrf.mxu0
    %v312 = vadd.f32 0.0, %v311
    %313 = vmatmul.f32.gmra.mxu0 %v135
    %v314 = vpop.f32.mrf.mxu0
    %v315 = vadd.f32 0.0, %v314
    %316 = vmatmul.f32.gmra.mxu0 %v136
    %v317 = vpop.f32.mrf.mxu0
    %v318 = vadd.f32 0.0, %v317
    %319 = vmatmul.f32.gmra.mxu0 %v137
    %v320 = vpop.f32.mrf.mxu0
    %v321 = vadd.f32 0.0, %v320
    %322 = vmatmul.f32.gmra.mxu0 %v138
    %v323 = vpop.f32.mrf.mxu0
    %v324 = vadd.f32 0.0, %v323
    %325 = vdwg.mxu0
    %326 = vmatpush.msra.mxu0 %v202
    %327 = vmatpush.msra.mxu0 %v198
    %328 = vmatpush.msra.mxu0 %v194
    %329 = vmatpush.msra.mxu0 %v190
    %330 = vmatpush.msra.mxu0 %v186
    %331 = vmatpush.msra.mxu0 %v182
    %332 = vmatpush.msra.mxu0 %v178
    %333 = vmatpush.msra.mxu0 %v174
    %334 = vmatpush.msra.mxu0 %v170
    %335 = vmatpush.msra.mxu0 %v166
    %336 = vmatpush.msra.mxu0 %v162
    %337 = vmatpush.msra.mxu0 %v158
    %338 = vmatpush.msra.mxu0 %v154
    %339 = vmatpush.msra.mxu0 %v150
    %340 = vmatpush.msra.mxu0 %v146
    %341 = vmatpush.msra.mxu0 %v142
    %342 = vmatmul.f32.gmra.mxu0 %v131
    %v343 = vpop.f32.mrf.mxu0
    %v344 = vadd.f32 0.0, %v343
    %345 = vmatmul.f32.gmra.mxu0 %v132
    %v346 = vpop.f32.mrf.mxu0
    %v347 = vadd.f32 0.0, %v346
    %348 = vmatmul.f32.gmra.mxu0 %v133
    %v349 = vpop.f32.mrf.mxu0
    %v350 = vadd.f32 0.0, %v349
    %351 = vmatmul.f32.gmra.mxu0 %v134
    %v352 = vpop.f32.mrf.mxu0
    %v353 = vadd.f32 0.0, %v352
    %354 = vmatmul.f32.gmra.mxu0 %v135
    %v355 = vpop.f32.mrf.mxu0
    %v356 = vadd.f32 0.0, %v355
    %357 = vmatmul.f32.gmra.mxu0 %v136
    %v358 = vpop.f32.mrf.mxu0
    %v359 = vadd.f32 0.0, %v358
    %360 = vmatmul.f32.gmra.mxu0 %v137
    %v361 = vpop.f32.mrf.mxu0
    %v362 = vadd.f32 0.0, %v361
    %363 = vmatmul.f32.gmra.mxu0 %v138
    %v364 = vpop.f32.mrf.mxu0
    %v365 = vadd.f32 0.0, %v364
    %366 = vdwg.mxu0
    %v367 = vld [vmem:[%s6] sm:$0xf]
    %v369 = vperm.slane %v367, 0
    %v370 = vperm.slane %v367, 1
    %v371 = vperm.slane %v367, 2
    %v372 = vperm.slane %v367, 3
    %v377 = vadd.f32 %v221, %v369
    %v378 = vadd.f32 %v262, %v370
    %v379 = vadd.f32 %v303, %v371
    %v380 = vadd.f32 %v344, %v372
    %v381 = vadd.f32 %v224, %v369
    %v382 = vadd.f32 %v265, %v370
    %v383 = vadd.f32 %v306, %v371
    %v384 = vadd.f32 %v347, %v372
    %v385 = vadd.f32 %v227, %v369
    %v386 = vadd.f32 %v268, %v370
    %v387 = vadd.f32 %v309, %v371
    %v388 = vadd.f32 %v350, %v372
    %v389 = vadd.f32 %v230, %v369
    %v390 = vadd.f32 %v271, %v370
    %v391 = vadd.f32 %v312, %v371
    %v392 = vadd.f32 %v353, %v372
    %v393 = vadd.f32 %v233, %v369
    %v394 = vadd.f32 %v274, %v370
    %v395 = vadd.f32 %v315, %v371
    %v396 = vadd.f32 %v356, %v372
    %v397 = vadd.f32 %v236, %v369
    %v398 = vadd.f32 %v277, %v370
    %v399 = vadd.f32 %v318, %v371
    %v400 = vadd.f32 %v359, %v372
    %v401 = vadd.f32 %v239, %v369
    %v402 = vadd.f32 %v280, %v370
    %v403 = vadd.f32 %v321, %v371
    %v404 = vadd.f32 %v362, %v372
    %v405 = vadd.f32 %v242, %v369
    %v406 = vadd.f32 %v283, %v370
    %v407 = vadd.f32 %v324, %v371
    %v408 = vadd.f32 %v365, %v372
    %409 = vst [vmem:[#allocation2] sm:$0xff] %v377
    %410 = vst [vmem:[#allocation2 + $0x8] sm:$0xff] %v378
    %411 = vst [vmem:[#allocation2 + $0x10] sm:$0xff] %v379
    %412 = vst [vmem:[#allocation2 + $0x18] sm:$0xff] %v380
    %413 = vst [vmem:[#allocation2 + $0x20] sm:$0xff] %v381
    %414 = vst [vmem:[#allocation2 + $0x28] sm:$0xff] %v382
    %415 = vst [vmem:[#allocation2 + $0x30] sm:$0xff] %v383
    %416 = vst [vmem:[#allocation2 + $0x38] sm:$0xff] %v384
    %417 = vst [vmem:[#allocation2 + $0x40] sm:$0xff] %v385
    %418 = vst [vmem:[#allocation2 + $0x48] sm:$0xff] %v386
    %419 = vst [vmem:[#allocation2 + $0x50] sm:$0xff] %v387
    %420 = vst [vmem:[#allocation2 + $0x58] sm:$0xff] %v388
    %421 = vst [vmem:[#allocation2 + $0x60] sm:$0xff] %v389
    %422 = vst [vmem:[#allocation2 + $0x68] sm:$0xff] %v390
    %423 = vst [vmem:[#allocation2 + $0x70] sm:$0xff] %v391
    %424 = vst [vmem:[#allocation2 + $0x78] sm:$0xff] %v392
    %425 = vst [vmem:[#allocation2 + $0x80] sm:$0xff] %v393
    %426 = vst [vmem:[#allocation2 + $0x88] sm:$0xff] %v394
    %427 = vst [vmem:[#allocation2 + $0x90] sm:$0xff] %v395
    %428 = vst [vmem:[#allocation2 + $0x98] sm:$0xff] %v396
    %429 = vst [vmem:[#allocation2 + $0xa0] sm:$0xff] %v397
    %430 = vst [vmem:[#allocation2 + $0xa8] sm:$0xff] %v398
    %431 = vst [vmem:[#allocation2 + $0xb0] sm:$0xff] %v399
    %432 = vst [vmem:[#allocation2 + $0xb8] sm:$0xff] %v400
    %433 = vst [vmem:[#allocation2 + $0xc0] sm:$0xff] %v401
    %434 = vst [vmem:[#allocation2 + $0xc8] sm:$0xff] %v402
    %435 = vst [vmem:[#allocation2 + $0xd0] sm:$0xff] %v403
    %436 = vst [vmem:[#allocation2 + $0xd8] sm:$0xff] %v404
    %437 = vst [vmem:[#allocation2 + $0xe0] sm:$0xff] %v405
    %438 = vst [vmem:[#allocation2 + $0xe8] sm:$0xff] %v406
    %439 = vst [vmem:[#allocation2 + $0xf0] sm:$0xff] %v407
    %440 = vst [vmem:[#allocation2 + $0xf8] sm:$0xff] %v408
    %v441 = vld [vmem:[#allocation2] sm:$0xff]
    %v442 = vld [vmem:[#allocation2 + $0x8] sm:$0xff]
    %v443 = vld [vmem:[#allocation2 + $0x10] sm:$0xff]
    %v444 = vld [vmem:[#allocation2 + $0x18] sm:$0xff]
    %v445 = vld [vmem:[#allocation10] sm:$0xff]
    %v446 = vld [vmem:[#allocation10 + $0x8] sm:$0xff]
    %v447 = vld [vmem:[#allocation10 + $0x10] sm:$0xff]
    %v448 = vld [vmem:[#allocation10 + $0x18] sm:$0xff]
    %v449 = vld [vmem:[#allocation10 + $0x20] sm:$0xff]
    %v450 = vld [vmem:[#allocation10 + $0x28] sm:$0xff]
    %v451 = vld [vmem:[#allocation10 + $0x30] sm:$0xff]
    %v452 = vld [vmem:[#allocation10 + $0x38] sm:$0xff]
    %v453 = vld [vmem:[#allocation10 + $0x40] sm:$0xff]
    %v454 = vld [vmem:[#allocation10 + $0x48] sm:$0xff]
    %v455 = vld [vmem:[#allocation10 + $0x50] sm:$0xff]
    %v456 = vld [vmem:[#allocation10 + $0x58] sm:$0xff]
    %v457 = vld [vmem:[#allocation10 + $0x60] sm:$0xff]
    %v458 = vld [vmem:[#allocation10 + $0x68] sm:$0xff]
    %v459 = vld [vmem:[#allocation10 + $0x70] sm:$0xff]
    %v460 = vld [vmem:[#allocation10 + $0x78] sm:$0xff]
    %v461 = vld [vmem:[#allocation10 + $0x80] sm:$0xff]
    %v462 = vld [vmem:[#allocation10 + $0x88] sm:$0xff]
    %v463 = vld [vmem:[#allocation10 + $0x90] sm:$0xff]
    %v464 = vld [vmem:[#allocation10 + $0x98] sm:$0xff]
    %v465 = vld [vmem:[#allocation10 + $0xa0] sm:$0xff]
    %v466 = vld [vmem:[#allocation10 + $0xa8] sm:$0xff]
    %v467 = vld [vmem:[#allocation10 + $0xb0] sm:$0xff]
    %v468 = vld [vmem:[#allocation10 + $0xb8] sm:$0xff]
    %v469 = vld [vmem:[#allocation10 + $0xc0] sm:$0xff]
    %v470 = vld [vmem:[#allocation10 + $0xc8] sm:$0xff]
    %v471 = vld [vmem:[#allocation10 + $0xd0] sm:$0xff]
    %v472 = vld [vmem:[#allocation10 + $0xd8] sm:$0xff]
    %v473 = vld [vmem:[#allocation10 + $0xe0] sm:$0xff]
    %v474 = vld [vmem:[#allocation10 + $0xe8] sm:$0xff]
    %v475 = vld [vmem:[#allocation10 + $0xf0] sm:$0xff]
    %v476 = vld [vmem:[#allocation10 + $0xf8] sm:$0xff]
    %v477 = vld [vmem:[#allocation10 + $0x100] sm:$0xff]
    %v478 = vld [vmem:[#allocation10 + $0x108] sm:$0xff]
    %v479 = vld [vmem:[#allocation10 + $0x110] sm:$0xff]
    %v480 = vld [vmem:[#allocation10 + $0x118] sm:$0xff]
    %v481 = vld [vmem:[#allocation10 + $0x120] sm:$0xff]
    %v482 = vld [vmem:[#allocation10 + $0x128] sm:$0xff]
    %v483 = vld [vmem:[#allocation10 + $0x130] sm:$0xff]
    %v484 = vld [vmem:[#allocation10 + $0x138] sm:$0xff]
    %v485 = vld [vmem:[#allocation10 + $0x140] sm:$0xff]
    %v486 = vld [vmem:[#allocation10 + $0x148] sm:$0xff]
    %v487 = vld [vmem:[#allocation10 + $0x150] sm:$0xff]
    %v488 = vld [vmem:[#allocation10 + $0x158] sm:$0xff]
    %v489 = vld [vmem:[#allocation10 + $0x160] sm:$0xff]
    %v490 = vld [vmem:[#allocation10 + $0x168] sm:$0xff]
    %v491 = vld [vmem:[#allocation10 + $0x170] sm:$0xff]
    %v492 = vld [vmem:[#allocation10 + $0x178] sm:$0xff]
    %v493 = vld [vmem:[#allocation10 + $0x180] sm:$0xff]
    %v494 = vld [vmem:[#allocation10 + $0x188] sm:$0xff]
    %v495 = vld [vmem:[#allocation10 + $0x190] sm:$0xff]
    %v496 = vld [vmem:[#allocation10 + $0x198] sm:$0xff]
    %v497 = vld [vmem:[#allocation10 + $0x1a0] sm:$0xff]
    %v498 = vld [vmem:[#allocation10 + $0x1a8] sm:$0xff]
    %v499 = vld [vmem:[#allocation10 + $0x1b0] sm:$0xff]
    %v500 = vld [vmem:[#allocation10 + $0x1b8] sm:$0xff]
    %v501 = vld [vmem:[#allocation10 + $0x1c0] sm:$0xff]
    %v502 = vld [vmem:[#allocation10 + $0x1c8] sm:$0xff]
    %v503 = vld [vmem:[#allocation10 + $0x1d0] sm:$0xff]
    %v504 = vld [vmem:[#allocation10 + $0x1d8] sm:$0xff]
    %v505 = vld [vmem:[#allocation10 + $0x1e0] sm:$0xff]
    %v506 = vld [vmem:[#allocation10 + $0x1e8] sm:$0xff]
    %v507 = vld [vmem:[#allocation10 + $0x1f0] sm:$0xff]
    %v508 = vld [vmem:[#allocation10 + $0x1f8] sm:$0xff]
    %509 = vmatpush.msra.mxu0 %v505
    %510 = vmatpush.msra.mxu0 %v501
    %511 = vmatpush.msra.mxu0 %v497
    %512 = vmatpush.msra.mxu0 %v493
    %513 = vmatpush.msra.mxu0 %v489
    %514 = vmatpush.msra.mxu0 %v485
    %515 = vmatpush.msra.mxu0 %v481
    %516 = vmatpush.msra.mxu0 %v477
    %517 = vmatpush.msra.mxu0 %v473
    %518 = vmatpush.msra.mxu0 %v469
    %519 = vmatpush.msra.mxu0 %v465
    %520 = vmatpush.msra.mxu0 %v461
    %521 = vmatpush.msra.mxu0 %v457
    %522 = vmatpush.msra.mxu0 %v453
    %523 = vmatpush.msra.mxu0 %v449
    %524 = vmatpush.msra.mxu0 %v445
    %525 = vmatmul.f32.gmra.mxu0 0.0
    %v526 = vpop.f32.mrf.mxu0
    %v527 = vadd.f32 0.0, %v526
    %528 = vdwg.mxu0
    %529 = vmatpush.msra.mxu0 %v506
    %530 = vmatpush.msra.mxu0 %v502
    %531 = vmatpush.msra.mxu0 %v498
    %532 = vmatpush.msra.mxu0 %v494
    %533 = vmatpush.msra.mxu0 %v490
    %534 = vmatpush.msra.mxu0 %v486
    %535 = vmatpush.msra.mxu0 %v482
    %536 = vmatpush.msra.mxu0 %v478
    %537 = vmatpush.msra.mxu0 %v474
    %538 = vmatpush.msra.mxu0 %v470
    %539 = vmatpush.msra.mxu0 %v466
    %540 = vmatpush.msra.mxu0 %v462
    %541 = vmatpush.msra.mxu0 %v458
    %542 = vmatpush.msra.mxu0 %v454
    %543 = vmatpush.msra.mxu0 %v450
    %544 = vmatpush.msra.mxu0 %v446
    %545 = vmatmul.f32.gmra.mxu0 0.0
    %v546 = vpop.f32.mrf.mxu0
    %v547 = vadd.f32 0.0, %v546
    %548 = vdwg.mxu0
    %549 = vmatpush.msra.mxu0 %v507
    %550 = vmatpush.msra.mxu0 %v503
    %551 = vmatpush.msra.mxu0 %v499
    %552 = vmatpush.msra.mxu0 %v495
    %553 = vmatpush.msra.mxu0 %v491
    %554 = vmatpush.msra.mxu0 %v487
    %555 = vmatpush.msra.mxu0 %v483
    %556 = vmatpush.msra.mxu0 %v479
    %557 = vmatpush.msra.mxu0 %v475
    %558 = vmatpush.msra.mxu0 %v471
    %559 = vmatpush.msra.mxu0 %v467
    %560 = vmatpush.msra.mxu0 %v463
    %561 = vmatpush.msra.mxu0 %v459
    %562 = vmatpush.msra.mxu0 %v455
    %563 = vmatpush.msra.mxu0 %v451
    %564 = vmatpush.msra.mxu0 %v447
    %565 = vmatmul.f32.gmra.mxu0 0.0
    %v566 = vpop.f32.mrf.mxu0
    %v567 = vadd.f32 0.0, %v566
    %568 = vdwg.mxu0
    %569 = vmatpush.msra.mxu0 %v508
    %570 = vmatpush.msra.mxu0 %v504
    %571 = vmatpush.msra.mxu0 %v500
    %572 = vmatpush.msra.mxu0 %v496
    %573 = vmatpush.msra.mxu0 %v492
    %574 = vmatpush.msra.mxu0 %v488
    %575 = vmatpush.msra.mxu0 %v484
    %576 = vmatpush.msra.mxu0 %v480
    %577 = vmatpush.msra.mxu0 %v476
    %578 = vmatpush.msra.mxu0 %v472
    %579 = vmatpush.msra.mxu0 %v468
    %580 = vmatpush.msra.mxu0 %v464
    %581 = vmatpush.msra.mxu0 %v460
    %582 = vmatpush.msra.mxu0 %v456
    %583 = vmatpush.msra.mxu0 %v452
    %584 = vmatpush.msra.mxu0 %v448
    %585 = vmatmul.f32.gmra.mxu0 0.0
    %v586 = vpop.f32.mrf.mxu0
    %v587 = vadd.f32 0.0, %v586
    %588 = vdwg.mxu0
    %v589 = vadd.f32 %v441, %v527
    %v590 = vadd.f32 %v442, %v547
    %v591 = vadd.f32 %v443, %v567
    %v592 = vadd.f32 %v444, %v587
    %v593 = vxor.u32 %v589, 2147483648
    %v594 = vmul.f32 %v593, 1.442695
    %v595 = vpow.pop %v594
    %v596 = vadd.f32 %v595, 1.0
    %v597 = vrcp.pop %v596
    %v598 = vmul.f32 %v596, %v597
    %v599 = vsub.f32 1.0, %v598
    %v600 = vmul.f32 %v597, %v599
    %v601 = vadd.f32 %v597, %v600
    %vm602 = vweird.f32 %v596
    %vm603 = vweird.f32 %v597
    %vm604 = vmor %vm602, %vm603
    %v605 = vsel %vm604, %v597, %v601
    %v606 = vand.u32 2147483647, %v596
    %vm607 = vcmp.eq.f32.partialorder %v606, 8.507059e+37
    %v608 = vand.u32 %v596, 2147483648
    %v609 = vor.u32 1.1754944e-38, %v608
    %v610 = vsel %vm607, %v609, %v605
    %v611 = vmul.f32 1.0, %v610
    %v612 = vxor.u32 %v590, 2147483648
    %v613 = vmul.f32 %v612, 1.442695
    %v614 = vpow.pop %v613
    %v615 = vadd.f32 %v614, 1.0
    %v616 = vrcp.pop %v615
    %v617 = vmul.f32 %v615, %v616
    %v618 = vsub.f32 1.0, %v617
    %v619 = vmul.f32 %v616, %v618
    %v620 = vadd.f32 %v616, %v619
    %vm621 = vweird.f32 %v615
    %vm622 = vweird.f32 %v616
    %vm623 = vmor %vm621, %vm622
    %v624 = vsel %vm623, %v616, %v620
    %v625 = vand.u32 2147483647, %v615
    %vm626 = vcmp.eq.f32.partialorder %v625, 8.507059e+37
    %v627 = vand.u32 %v615, 2147483648
    %v628 = vor.u32 1.1754944e-38, %v627
    %v629 = vsel %vm626, %v628, %v624
    %v630 = vmul.f32 1.0, %v629
    %v631 = vtanh.pop %v591
    %v632 = vxor.u32 %v592, 2147483648
    %v633 = vmul.f32 %v632, 1.442695
    %v634 = vpow.pop %v633
    %v635 = vadd.f32 %v634, 1.0
    %v636 = vrcp.pop %v635
    %v637 = vmul.f32 %v635, %v636
    %v638 = vsub.f32 1.0, %v637
    %v639 = vmul.f32 %v636, %v638
    %v640 = vadd.f32 %v636, %v639
    %vm641 = vweird.f32 %v635
    %vm642 = vweird.f32 %v636
    %vm643 = vmor %vm641, %vm642
    %v644 = vsel %vm643, %v636, %v640
    %v645 = vand.u32 2147483647, %v635
    %vm646 = vcmp.eq.f32.partialorder %v645, 8.507059e+37
    %v647 = vand.u32 %v635, 2147483648
    %v648 = vor.u32 1.1754944e-38, %v647
    %v649 = vsel %vm646, %v648, %v644
    %v650 = vmul.f32 1.0, %v649
    %v651 = vmul.f32 %v630, 0.0
    %v652 = vmul.f32 %v611, %v631
    %v653 = vadd.f32 %v651, %v652
    %v654 = vtanh.pop %v653
    %v655 = vmul.f32 %v650, %v654
    %656 = vst [vmem:[#allocation3] sm:$0xff] %v655
    %s657 = scalar_lea.vmem [#allocation2], 32
    %v658 = vld [vmem:[%s657] sm:$0xff]
    %v659 = vld [vmem:[%s657 + $0x8] sm:$0xff]
    %v660 = vld [vmem:[%s657 + $0x10] sm:$0xff]
    %v661 = vld [vmem:[%s657 + $0x18] sm:$0xff]
    %v662 = vld [vmem:[#allocation10] sm:$0xff]
    %v663 = vld [vmem:[#allocation10 + $0x8] sm:$0xff]
    %v664 = vld [vmem:[#allocation10 + $0x10] sm:$0xff]
    %v665 = vld [vmem:[#allocation10 + $0x18] sm:$0xff]
    %v666 = vld [vmem:[#allocation10 + $0x20] sm:$0xff]
    %v667 = vld [vmem:[#allocation10 + $0x28] sm:$0xff]
    %v668 = vld [vmem:[#allocation10 + $0x30] sm:$0xff]
    %v669 = vld [vmem:[#allocation10 + $0x38] sm:$0xff]
    %v670 = vld [vmem:[#allocation10 + $0x40] sm:$0xff]
    %v671 = vld [vmem:[#allocation10 + $0x48] sm:$0xff]
    %v672 = vld [vmem:[#allocation10 + $0x50] sm:$0xff]
    %v673 = vld [vmem:[#allocation10 + $0x58] sm:$0xff]
    %v674 = vld [vmem:[#allocation10 + $0x60] sm:$0xff]
    %v675 = vld [vmem:[#allocation10 + $0x68] sm:$0xff]
    %v676 = vld [vmem:[#allocation10 + $0x70] sm:$0xff]
    %v677 = vld [vmem:[#allocation10 + $0x78] sm:$0xff]
    %v678 = vld [vmem:[#allocation10 + $0x80] sm:$0xff]
    %v679 = vld [vmem:[#allocation10 + $0x88] sm:$0xff]
    %v680 = vld [vmem:[#allocation10 + $0x90] sm:$0xff]
    %v681 = vld [vmem:[#allocation10 + $0x98] sm:$0xff]
    %v682 = vld [vmem:[#allocation10 + $0xa0] sm:$0xff]
    %v683 = vld [vmem:[#allocation10 + $0xa8] sm:$0xff]
    %v684 = vld [vmem:[#allocation10 + $0xb0] sm:$0xff]
    %v685 = vld [vmem:[#allocation10 + $0xb8] sm:$0xff]
    %v686 = vld [vmem:[#allocation10 + $0xc0] sm:$0xff]
    %v687 = vld [vmem:[#allocation10 + $0xc8] sm:$0xff]
    %v688 = vld [vmem:[#allocation10 + $0xd0] sm:$0xff]
    %v689 = vld [vmem:[#allocation10 + $0xd8] sm:$0xff]
    %v690 = vld [vmem:[#allocation10 + $0xe0] sm:$0xff]
    %v691 = vld [vmem:[#allocation10 + $0xe8] sm:$0xff]
    %v692 = vld [vmem:[#allocation10 + $0xf0] sm:$0xff]
    %v693 = vld [vmem:[#allocation10 + $0xf8] sm:$0xff]
    %v694 = vld [vmem:[#allocation10 + $0x100] sm:$0xff]
    %v695 = vld [vmem:[#allocation10 + $0x108] sm:$0xff]
    %v696 = vld [vmem:[#allocation10 + $0x110] sm:$0xff]
    %v697 = vld [vmem:[#allocation10 + $0x118] sm:$0xff]
    %v698 = vld [vmem:[#allocation10 + $0x120] sm:$0xff]
    %v699 = vld [vmem:[#allocation10 + $0x128] sm:$0xff]
    %v700 = vld [vmem:[#allocation10 + $0x130] sm:$0xff]
    %v701 = vld [vmem:[#allocation10 + $0x138] sm:$0xff]
    %v702 = vld [vmem:[#allocation10 + $0x140] sm:$0xff]
    %v703 = vld [vmem:[#allocation10 + $0x148] sm:$0xff]
    %v704 = vld [vmem:[#allocation10 + $0x150] sm:$0xff]
    %v705 = vld [vmem:[#allocation10 + $0x158] sm:$0xff]
    %v706 = vld [vmem:[#allocation10 + $0x160] sm:$0xff]
    %v707 = vld [vmem:[#allocation10 + $0x168] sm:$0xff]
    %v708 = vld [vmem:[#allocation10 + $0x170] sm:$0xff]
    %v709 = vld [vmem:[#allocation10 + $0x178] sm:$0xff]
    %v710 = vld [vmem:[#allocation10 + $0x180] sm:$0xff]
    %v711 = vld [vmem:[#allocation10 + $0x188] sm:$0xff]
    %v712 = vld [vmem:[#allocation10 + $0x190] sm:$0xff]
    %v713 = vld [vmem:[#allocation10 + $0x198] sm:$0xff]
    %v714 = vld [vmem:[#allocation10 + $0x1a0] sm:$0xff]
    %v715 = vld [vmem:[#allocation10 + $0x1a8] sm:$0xff]
    %v716 = vld [vmem:[#allocation10 + $0x1b0] sm:$0xff]
    %v717 = vld [vmem:[#allocation10 + $0x1b8] sm:$0xff]
    %v718 = vld [vmem:[#allocation10 + $0x1c0] sm:$0xff]
    %v719 = vld [vmem:[#allocation10 + $0x1c8] sm:$0xff]
    %v720 = vld [vmem:[#allocation10 + $0x1d0] sm:$0xff]
    %v721 = vld [vmem:[#allocation10 + $0x1d8] sm:$0xff]
    %v722 = vld [vmem:[#allocation10 + $0x1e0] sm:$0xff]
    %v723 = vld [vmem:[#allocation10 + $0x1e8] sm:$0xff]
    %v724 = vld [vmem:[#allocation10 + $0x1f0] sm:$0xff]
    %v725 = vld [vmem:[#allocation10 + $0x1f8] sm:$0xff]
    %726 = vmatpush.msra.mxu0 %v722
    %727 = vmatpush.msra.mxu0 %v718
    %728 = vmatpush.msra.mxu0 %v714
    %729 = vmatpush.msra.mxu0 %v710
    %730 = vmatpush.msra.mxu0 %v706
    %731 = vmatpush.msra.mxu0 %v702
    %732 = vmatpush.msra.mxu0 %v698
    %733 = vmatpush.msra.mxu0 %v694
    %734 = vmatpush.msra.mxu0 %v690
    %735 = vmatpush.msra.mxu0 %v686
    %736 = vmatpush.msra.mxu0 %v682
    %737 = vmatpush.msra.mxu0 %v678
    %738 = vmatpush.msra.mxu0 %v674
    %739 = vmatpush.msra.mxu0 %v670
    %740 = vmatpush.msra.mxu0 %v666
    %741 = vmatpush.msra.mxu0 %v662
    %742 = vmatmul.f32.gmra.mxu0 %v655
    %v743 = vpop.f32.mrf.mxu0
    %v744 = vadd.f32 0.0, %v743
    %745 = vdwg.mxu0
    %746 = vmatpush.msra.mxu0 %v723
    %747 = vmatpush.msra.mxu0 %v719
    %748 = vmatpush.msra.mxu0 %v715
    %749 = vmatpush.msra.mxu0 %v711
    %750 = vmatpush.msra.mxu0 %v707
    %751 = vmatpush.msra.mxu0 %v703
    %752 = vmatpush.msra.mxu0 %v699
    %753 = vmatpush.msra.mxu0 %v695
    %754 = vmatpush.msra.mxu0 %v691
    %755 = vmatpush.msra.mxu0 %v687
    %756 = vmatpush.msra.mxu0 %v683
    %757 = vmatpush.msra.mxu0 %v679
    %758 = vmatpush.msra.mxu0 %v675
    %759 = vmatpush.msra.mxu0 %v671
    %760 = vmatpush.msra.mxu0 %v667
    %761 = vmatpush.msra.mxu0 %v663
    %762 = vmatmul.f32.gmra.mxu0 %v655
    %v763 = vpop.f32.mrf.mxu0
    %v764 = vadd.f32 0.0, %v763
    %765 = vdwg.mxu0
    %766 = vmatpush.msra.mxu0 %v724
    %767 = vmatpush.msra.mxu0 %v720
    %768 = vmatpush.msra.mxu0 %v716
    %769 = vmatpush.msra.mxu0 %v712
    %770 = vmatpush.msra.mxu0 %v708
    %771 = vmatpush.msra.mxu0 %v704
    %772 = vmatpush.msra.mxu0 %v700
    %773 = vmatpush.msra.mxu0 %v696
    %774 = vmatpush.msra.mxu0 %v692
    %775 = vmatpush.msra.mxu0 %v688
    %776 = vmatpush.msra.mxu0 %v684
    %777 = vmatpush.msra.mxu0 %v680
    %778 = vmatpush.msra.mxu0 %v676
    %779 = vmatpush.msra.mxu0 %v672
    %780 = vmatpush.msra.mxu0 %v668
    %781 = vmatpush.msra.mxu0 %v664
    %782 = vmatmul.f32.gmra.mxu0 %v655
    %v783 = vpop.f32.mrf.mxu0
    %v784 = vadd.f32 0.0, %v783
    %785 = vdwg.mxu0
    %786 = vmatpush.msra.mxu0 %v725
    %787 = vmatpush.msra.mxu0 %v721
    %788 = vmatpush.msra.mxu0 %v717
    %789 = vmatpush.msra.mxu0 %v713
    %790 = vmatpush.msra.mxu0 %v709
    %791 = vmatpush.msra.mxu0 %v705
    %792 = vmatpush.msra.mxu0 %v701
    %793 = vmatpush.msra.mxu0 %v697
    %794 = vmatpush.msra.mxu0 %v693
    %795 = vmatpush.msra.mxu0 %v689
    %796 = vmatpush.msra.mxu0 %v685
    %797 = vmatpush.msra.mxu0 %v681
    %798 = vmatpush.msra.mxu0 %v677
    %799 = vmatpush.msra.mxu0 %v673
    %800 = vmatpush.msra.mxu0 %v669
    %801 = vmatpush.msra.mxu0 %v665
    %802 = vmatmul.f32.gmra.mxu0 %v655
    %v803 = vpop.f32.mrf.mxu0
    %v804 = vadd.f32 0.0, %v803
    %805 = vdwg.mxu0
    %v806 = vadd.f32 %v658, %v744
    %v807 = vadd.f32 %v659, %v764
    %v808 = vadd.f32 %v660, %v784
    %v809 = vadd.f32 %v661, %v804
    %v810 = vxor.u32 %v806, 2147483648
    %v811 = vmul.f32 %v810, 1.442695
    %v812 = vpow.pop %v811
    %v813 = vadd.f32 %v812, 1.0
    %v814 = vrcp.pop %v813
    %v815 = vmul.f32 %v813, %v814
    %v816 = vsub.f32 1.0, %v815
    %v817 = vmul.f32 %v814, %v816
    %v818 = vadd.f32 %v814, %v817
    %vm819 = vweird.f32 %v813
    %vm820 = vweird.f32 %v814
    %vm821 = vmor %vm819, %vm820
    %v822 = vsel %vm821, %v814, %v818
    %v823 = vand.u32 2147483647, %v813
    %vm824 = vcmp.eq.f32.partialorder %v823, 8.507059e+37
    %v825 = vand.u32 %v813, 2147483648
    %v826 = vor.u32 1.1754944e-38, %v825
    %v827 = vsel %vm824, %v826, %v822
    %v828 = vmul.f32 1.0, %v827
    %v829 = vxor.u32 %v807, 2147483648
    %v830 = vmul.f32 %v829, 1.442695
    %v831 = vpow.pop %v830
    %v832 = vadd.f32 %v831, 1.0
    %v833 = vrcp.pop %v832
    %v834 = vmul.f32 %v832, %v833
    %v835 = vsub.f32 1.0, %v834
    %v836 = vmul.f32 %v833, %v835
    %v837 = vadd.f32 %v833, %v836
    %vm838 = vweird.f32 %v832
    %vm839 = vweird.f32 %v833
    %vm840 = vmor %vm838, %vm839
    %v841 = vsel %vm840, %v833, %v837
    %v842 = vand.u32 2147483647, %v832
    %vm843 = vcmp.eq.f32.partialorder %v842, 8.507059e+37
    %v844 = vand.u32 %v832, 2147483648
    %v845 = vor.u32 1.1754944e-38, %v844
    %v846 = vsel %vm843, %v845, %v841
    %v847 = vmul.f32 1.0, %v846
    %v848 = vtanh.pop %v808
    %v849 = vxor.u32 %v809, 2147483648
    %v850 = vmul.f32 %v849, 1.442695
    %v851 = vpow.pop %v850
    %v852 = vadd.f32 %v851, 1.0
    %v853 = vrcp.pop %v852
    %v854 = vmul.f32 %v852, %v853
    %v855 = vsub.f32 1.0, %v854
    %v856 = vmul.f32 %v853, %v855
    %v857 = vadd.f32 %v853, %v856
    %vm858 = vweird.f32 %v852
    %vm859 = vweird.f32 %v853
    %vm860 = vmor %vm858, %vm859
    %v861 = vsel %vm860, %v853, %v857
    %v862 = vand.u32 2147483647, %v852
    %vm863 = vcmp.eq.f32.partialorder %v862, 8.507059e+37
    %v864 = vand.u32 %v852, 2147483648
    %v865 = vor.u32 1.1754944e-38, %v864
    %v866 = vsel %vm863, %v865, %v861
    %v867 = vmul.f32 1.0, %v866
    %v868 = vmul.f32 %v847, %v653
    %v869 = vmul.f32 %v828, %v848
    %v870 = vadd.f32 %v868, %v869
    %v871 = vtanh.pop %v870
    %v872 = vmul.f32 %v867, %v871
    %s873 = scalar_lea.vmem [#allocation3], 8
    %874 = vst [vmem:[%s873] sm:$0xff] %v872
    %s875 = scalar_lea.vmem [#allocation2], 64
    %v876 = vld [vmem:[%s875] sm:$0xff]
    %v877 = vld [vmem:[%s875 + $0x8] sm:$0xff]
    %v878 = vld [vmem:[%s875 + $0x10] sm:$0xff]
    %v879 = vld [vmem:[%s875 + $0x18] sm:$0xff]
    %v880 = vld [vmem:[#allocation10] sm:$0xff]
    %v881 = vld [vmem:[#allocation10 + $0x8] sm:$0xff]
    %v882 = vld [vmem:[#allocation10 + $0x10] sm:$0xff]
    %v883 = vld [vmem:[#allocation10 + $0x18] sm:$0xff]
    %v884 = vld [vmem:[#allocation10 + $0x20] sm:$0xff]
    %v885 = vld [vmem:[#allocation10 + $0x28] sm:$0xff]
    %v886 = vld [vmem:[#allocation10 + $0x30] sm:$0xff]
    %v887 = vld [vmem:[#allocation10 + $0x38] sm:$0xff]
    %v888 = vld [vmem:[#allocation10 + $0x40] sm:$0xff]
    %v889 = vld [vmem:[#allocation10 + $0x48] sm:$0xff]
    %v890 = vld [vmem:[#allocation10 + $0x50] sm:$0xff]
    %v891 = vld [vmem:[#allocation10 + $0x58] sm:$0xff]
    %v892 = vld [vmem:[#allocation10 + $0x60] sm:$0xff]
    %v893 = vld [vmem:[#allocation10 + $0x68] sm:$0xff]
    %v894 = vld [vmem:[#allocation10 + $0x70] sm:$0xff]
    %v895 = vld [vmem:[#allocation10 + $0x78] sm:$0xff]
    %v896 = vld [vmem:[#allocation10 + $0x80] sm:$0xff]
    %v897 = vld [vmem:[#allocation10 + $0x88] sm:$0xff]
    %v898 = vld [vmem:[#allocation10 + $0x90] sm:$0xff]
    %v899 = vld [vmem:[#allocation10 + $0x98] sm:$0xff]
    %v900 = vld [vmem:[#allocation10 + $0xa0] sm:$0xff]
    %v901 = vld [vmem:[#allocation10 + $0xa8] sm:$0xff]
    %v902 = vld [vmem:[#allocation10 + $0xb0] sm:$0xff]
    %v903 = vld [vmem:[#allocation10 + $0xb8] sm:$0xff]
    %v904 = vld [vmem:[#allocation10 + $0xc0] sm:$0xff]
    %v905 = vld [vmem:[#allocation10 + $0xc8] sm:$0xff]
    %v906 = vld [vmem:[#allocation10 + $0xd0] sm:$0xff]
    %v907 = vld [vmem:[#allocation10 + $0xd8] sm:$0xff]
    %v908 = vld [vmem:[#allocation10 + $0xe0] sm:$0xff]
    %v909 = vld [vmem:[#allocation10 + $0xe8] sm:$0xff]
    %v910 = vld [vmem:[#allocation10 + $0xf0] sm:$0xff]
    %v911 = vld [vmem:[#allocation10 + $0xf8] sm:$0xff]
    %v912 = vld [vmem:[#allocation10 + $0x100] sm:$0xff]
    %v913 = vld [vmem:[#allocation10 + $0x108] sm:$0xff]
    %v914 = vld [vmem:[#allocation10 + $0x110] sm:$0xff]
    %v915 = vld [vmem:[#allocation10 + $0x118] sm:$0xff]
    %v916 = vld [vmem:[#allocation10 + $0x120] sm:$0xff]
    %v917 = vld [vmem:[#allocation10 + $0x128] sm:$0xff]
    %v918 = vld [vmem:[#allocation10 + $0x130] sm:$0xff]
    %v919 = vld [vmem:[#allocation10 + $0x138] sm:$0xff]
    %v920 = vld [vmem:[#allocation10 + $0x140] sm:$0xff]
    %v921 = vld [vmem:[#allocation10 + $0x148] sm:$0xff]
    %v922 = vld [vmem:[#allocation10 + $0x150] sm:$0xff]
    %v923 = vld [vmem:[#allocation10 + $0x158] sm:$0xff]
    %v924 = vld [vmem:[#allocation10 + $0x160] sm:$0xff]
    %v925 = vld [vmem:[#allocation10 + $0x168] sm:$0xff]
    %v926 = vld [vmem:[#allocation10 + $0x170] sm:$0xff]
    %v927 = vld [vmem:[#allocation10 + $0x178] sm:$0xff]
    %v928 = vld [vmem:[#allocation10 + $0x180] sm:$0xff]
    %v929 = vld [vmem:[#allocation10 + $0x188] sm:$0xff]
    %v930 = vld [vmem:[#allocation10 + $0x190] sm:$0xff]
    %v931 = vld [vmem:[#allocation10 + $0x198] sm:$0xff]
    %v932 = vld [vmem:[#allocation10 + $0x1a0] sm:$0xff]
    %v933 = vld [vmem:[#allocation10 + $0x1a8] sm:$0xff]
    %v934 = vld [vmem:[#allocation10 + $0x1b0] sm:$0xff]
    %v935 = vld [vmem:[#allocation10 + $0x1b8] sm:$0xff]
    %v936 = vld [vmem:[#allocation10 + $0x1c0] sm:$0xff]
    %v937 = vld [vmem:[#allocation10 + $0x1c8] sm:$0xff]
    %v938 = vld [vmem:[#allocation10 + $0x1d0] sm:$0xff]
    %v939 = vld [vmem:[#allocation10 + $0x1d8] sm:$0xff]
    %v940 = vld [vmem:[#allocation10 + $0x1e0] sm:$0xff]
    %v941 = vld [vmem:[#allocation10 + $0x1e8] sm:$0xff]
    %v942 = vld [vmem:[#allocation10 + $0x1f0] sm:$0xff]
    %v943 = vld [vmem:[#allocation10 + $0x1f8] sm:$0xff]
    %944 = vmatpush.msra.mxu0 %v940
    %945 = vmatpush.msra.mxu0 %v936
    %946 = vmatpush.msra.mxu0 %v932
    %947 = vmatpush.msra.mxu0 %v928
    %948 = vmatpush.msra.mxu0 %v924
    %949 = vmatpush.msra.mxu0 %v920
    %950 = vmatpush.msra.mxu0 %v916
    %951 = vmatpush.msra.mxu0 %v912
    %952 = vmatpush.msra.mxu0 %v908
    %953 = vmatpush.msra.mxu0 %v904
    %954 = vmatpush.msra.mxu0 %v900
    %955 = vmatpush.msra.mxu0 %v896
    %956 = vmatpush.msra.mxu0 %v892
    %957 = vmatpush.msra.mxu0 %v888
    %958 = vmatpush.msra.mxu0 %v884
    %959 = vmatpush.msra.mxu0 %v880
    %960 = vmatmul.f32.gmra.mxu0 %v872
    %v961 = vpop.f32.mrf.mxu0
    %v962 = vadd.f32 0.0, %v961
    %963 = vdwg.mxu0
    %964 = vmatpush.msra.mxu0 %v941
    %965 = vmatpush.msra.mxu0 %v937
    %966 = vmatpush.msra.mxu0 %v933
    %967 = vmatpush.msra.mxu0 %v929
    %968 = vmatpush.msra.mxu0 %v925
    %969 = vmatpush.msra.mxu0 %v921
    %970 = vmatpush.msra.mxu0 %v917
    %971 = vmatpush.msra.mxu0 %v913
    %972 = vmatpush.msra.mxu0 %v909
    %973 = vmatpush.msra.mxu0 %v905
    %974 = vmatpush.msra.mxu0 %v901
    %975 = vmatpush.msra.mxu0 %v897
    %976 = vmatpush.msra.mxu0 %v893
    %977 = vmatpush.msra.mxu0 %v889
    %978 = vmatpush.msra.mxu0 %v885
    %979 = vmatpush.msra.mxu0 %v881
    %980 = vmatmul.f32.gmra.mxu0 %v872
    %v981 = vpop.f32.mrf.mxu0
    %v982 = vadd.f32 0.0, %v981
    %983 = vdwg.mxu0
    %984 = vmatpush.msra.mxu0 %v942
    %985 = vmatpush.msra.mxu0 %v938
    %986 = vmatpush.msra.mxu0 %v934
    %987 = vmatpush.msra.mxu0 %v930
    %988 = vmatpush.msra.mxu0 %v926
    %989 = vmatpush.msra.mxu0 %v922
    %990 = vmatpush.msra.mxu0 %v918
    %991 = vmatpush.msra.mxu0 %v914
    %992 = vmatpush.msra.mxu0 %v910
    %993 = vmatpush.msra.mxu0 %v906
    %994 = vmatpush.msra.mxu0 %v902
    %995 = vmatpush.msra.mxu0 %v898
    %996 = vmatpush.msra.mxu0 %v894
    %997 = vmatpush.msra.mxu0 %v890
    %998 = vmatpush.msra.mxu0 %v886
    %999 = vmatpush.msra.mxu0 %v882
    %1000 = vmatmul.f32.gmra.mxu0 %v872
    %v1001 = vpop.f32.mrf.mxu0
    %v1002 = vadd.f32 0.0, %v1001
    %1003 = vdwg.mxu0
    %1004 = vmatpush.msra.mxu0 %v943
    %1005 = vmatpush.msra.mxu0 %v939
    %1006 = vmatpush.msra.mxu0 %v935
    %1007 = vmatpush.msra.mxu0 %v931
    %1008 = vmatpush.msra.mxu0 %v927
    %1009 = vmatpush.msra.mxu0 %v923
    %1010 = vmatpush.msra.mxu0 %v919
    %1011 = vmatpush.msra.mxu0 %v915
    %1012 = vmatpush.msra.mxu0 %v911
    %1013 = vmatpush.msra.mxu0 %v907
    %1014 = vmatpush.msra.mxu0 %v903
    %1015 = vmatpush.msra.mxu0 %v899
    %1016 = vmatpush.msra.mxu0 %v895
    %1017 = vmatpush.msra.mxu0 %v891
    %1018 = vmatpush.msra.mxu0 %v887
    %1019 = vmatpush.msra.mxu0 %v883
    %1020 = vmatmul.f32.gmra.mxu0 %v872
    %v1021 = vpop.f32.mrf.mxu0
    %v1022 = vadd.f32 0.0, %v1021
    %1023 = vdwg.mxu0
    %v1024 = vadd.f32 %v876, %v962
    %v1025 = vadd.f32 %v877, %v982
    %v1026 = vadd.f32 %v878, %v1002
    %v1027 = vadd.f32 %v879, %v1022
    %v1028 = vxor.u32 %v1024, 2147483648
    %v1029 = vmul.f32 %v1028, 1.442695
    %v1030 = vpow.pop %v1029
    %v1031 = vadd.f32 %v1030, 1.0
    %v1032 = vrcp.pop %v1031
    %v1033 = vmul.f32 %v1031, %v1032
    %v1034 = vsub.f32 1.0, %v1033
    %v1035 = vmul.f32 %v1032, %v1034
    %v1036 = vadd.f32 %v1032, %v1035
    %vm1037 = vweird.f32 %v1031
    %vm1038 = vweird.f32 %v1032
    %vm1039 = vmor %vm1037, %vm1038
    %v1040 = vsel %vm1039, %v1032, %v1036
    %v1041 = vand.u32 2147483647, %v1031
    %vm1042 = vcmp.eq.f32.partialorder %v1041, 8.507059e+37
    %v1043 = vand.u32 %v1031, 2147483648
    %v1044 = vor.u32 1.1754944e-38, %v1043
    %v1045 = vsel %vm1042, %v1044, %v1040
    %v1046 = vmul.f32 1.0, %v1045
    %v1047 = vxor.u32 %v1025, 2147483648
    %v1048 = vmul.f32 %v1047, 1.442695
    %v1049 = vpow.pop %v1048
    %v1050 = vadd.f32 %v1049, 1.0
    %v1051 = vrcp.pop %v1050
    %v1052 = vmul.f32 %v1050, %v1051
    %v1053 = vsub.f32 1.0, %v1052
    %v1054 = vmul.f32 %v1051, %v1053
    %v1055 = vadd.f32 %v1051, %v1054
    %vm1056 = vweird.f32 %v1050
    %vm1057 = vweird.f32 %v1051
    %vm1058 = vmor %vm1056, %vm1057
    %v1059 = vsel %vm1058, %v1051, %v1055
    %v1060 = vand.u32 2147483647, %v1050
    %vm1061 = vcmp.eq.f32.partialorder %v1060, 8.507059e+37
    %v1062 = vand.u32 %v1050, 2147483648
    %v1063 = vor.u32 1.1754944e-38, %v1062
    %v1064 = vsel %vm1061, %v1063, %v1059
    %v1065 = vmul.f32 1.0, %v1064
    %v1066 = vtanh.pop %v1026
    %v1067 = vxor.u32 %v1027, 2147483648
    %v1068 = vmul.f32 %v1067, 1.442695
    %v1069 = vpow.pop %v1068
    %v1070 = vadd.f32 %v1069, 1.0
    %v1071 = vrcp.pop %v1070
    %v1072 = vmul.f32 %v1070, %v1071
    %v1073 = vsub.f32 1.0, %v1072
    %v1074 = vmul.f32 %v1071, %v1073
    %v1075 = vadd.f32 %v1071, %v1074
    %vm1076 = vweird.f32 %v1070
    %vm1077 = vweird.f32 %v1071
    %vm1078 = vmor %vm1076, %vm1077
    %v1079 = vsel %vm1078, %v1071, %v1075
    %v1080 = vand.u32 2147483647, %v1070
    %vm1081 = vcmp.eq.f32.partialorder %v1080, 8.507059e+37
    %v1082 = vand.u32 %v1070, 2147483648
    %v1083 = vor.u32 1.1754944e-38, %v1082
    %v1084 = vsel %vm1081, %v1083, %v1079
    %v1085 = vmul.f32 1.0, %v1084
    %v1086 = vmul.f32 %v1065, %v870
    %v1087 = vmul.f32 %v1046, %v1066
    %v1088 = vadd.f32 %v1086, %v1087
    %v1089 = vtanh.pop %v1088
    %v1090 = vmul.f32 %v1085, %v1089
    %s1091 = scalar_lea.vmem [#allocation3], 16
    %1092 = vst [vmem:[%s1091] sm:$0xff] %v1090
    %s1093 = scalar_lea.vmem [#allocation2], 96
    %v1094 = vld [vmem:[%s1093] sm:$0xff]
    %v1095 = vld [vmem:[%s1093 + $0x8] sm:$0xff]
    %v1096 = vld [vmem:[%s1093 + $0x10] sm:$0xff]
    %v1097 = vld [vmem:[%s1093 + $0x18] sm:$0xff]
    %v1098 = vld [vmem:[#allocation10] sm:$0xff]
    %v1099 = vld [vmem:[#allocation10 + $0x8] sm:$0xff]
    %v1100 = vld [vmem:[#allocation10 + $0x10] sm:$0xff]
    %v1101 = vld [vmem:[#allocation10 + $0x18] sm:$0xff]
    %v1102 = vld [vmem:[#allocation10 + $0x20] sm:$0xff]
    %v1103 = vld [vmem:[#allocation10 + $0x28] sm:$0xff]
    %v1104 = vld [vmem:[#allocation10 + $0x30] sm:$0xff]
    %v1105 = vld [vmem:[#allocation10 + $0x38] sm:$0xff]
    %v1106 = vld [vmem:[#allocation10 + $0x40] sm:$0xff]
    %v1107 = vld [vmem:[#allocation10 + $0x48] sm:$0xff]
    %v1108 = vld [vmem:[#allocation10 + $0x50] sm:$0xff]
    %v1109 = vld [vmem:[#allocation10 + $0x58] sm:$0xff]
    %v1110 = vld [vmem:[#allocation10 + $0x60] sm:$0xff]
    %v1111 = vld [vmem:[#allocation10 + $0x68] sm:$0xff]
    %v1112 = vld [vmem:[#allocation10 + $0x70] sm:$0xff]
    %v1113 = vld [vmem:[#allocation10 + $0x78] sm:$0xff]
    %v1114 = vld [vmem:[#allocation10 + $0x80] sm:$0xff]
    %v1115 = vld [vmem:[#allocation10 + $0x88] sm:$0xff]
    %v1116 = vld [vmem:[#allocation10 + $0x90] sm:$0xff]
    %v1117 = vld [vmem:[#allocation10 + $0x98] sm:$0xff]
    %v1118 = vld [vmem:[#allocation10 + $0xa0] sm:$0xff]
    %v1119 = vld [vmem:[#allocation10 + $0xa8] sm:$0xff]
    %v1120 = vld [vmem:[#allocation10 + $0xb0] sm:$0xff]
    %v1121 = vld [vmem:[#allocation10 + $0xb8] sm:$0xff]
    %v1122 = vld [vmem:[#allocation10 + $0xc0] sm:$0xff]
    %v1123 = vld [vmem:[#allocation10 + $0xc8] sm:$0xff]
    %v1124 = vld [vmem:[#allocation10 + $0xd0] sm:$0xff]
    %v1125 = vld [vmem:[#allocation10 + $0xd8] sm:$0xff]
    %v1126 = vld [vmem:[#allocation10 + $0xe0] sm:$0xff]
    %v1127 = vld [vmem:[#allocation10 + $0xe8] sm:$0xff]
    %v1128 = vld [vmem:[#allocation10 + $0xf0] sm:$0xff]
    %v1129 = vld [vmem:[#allocation10 + $0xf8] sm:$0xff]
    %v1130 = vld [vmem:[#allocation10 + $0x100] sm:$0xff]
    %v1131 = vld [vmem:[#allocation10 + $0x108] sm:$0xff]
    %v1132 = vld [vmem:[#allocation10 + $0x110] sm:$0xff]
    %v1133 = vld [vmem:[#allocation10 + $0x118] sm:$0xff]
    %v1134 = vld [vmem:[#allocation10 + $0x120] sm:$0xff]
    %v1135 = vld [vmem:[#allocation10 + $0x128] sm:$0xff]
    %v1136 = vld [vmem:[#allocation10 + $0x130] sm:$0xff]
    %v1137 = vld [vmem:[#allocation10 + $0x138] sm:$0xff]
    %v1138 = vld [vmem:[#allocation10 + $0x140] sm:$0xff]
    %v1139 = vld [vmem:[#allocation10 + $0x148] sm:$0xff]
    %v1140 = vld [vmem:[#allocation10 + $0x150] sm:$0xff]
    %v1141 = vld [vmem:[#allocation10 + $0x158] sm:$0xff]
    %v1142 = vld [vmem:[#allocation10 + $0x160] sm:$0xff]
    %v1143 = vld [vmem:[#allocation10 + $0x168] sm:$0xff]
    %v1144 = vld [vmem:[#allocation10 + $0x170] sm:$0xff]
    %v1145 = vld [vmem:[#allocation10 + $0x178] sm:$0xff]
    %v1146 = vld [vmem:[#allocation10 + $0x180] sm:$0xff]
    %v1147 = vld [vmem:[#allocation10 + $0x188] sm:$0xff]
    %v1148 = vld [vmem:[#allocation10 + $0x190] sm:$0xff]
    %v1149 = vld [vmem:[#allocation10 + $0x198] sm:$0xff]
    %v1150 = vld [vmem:[#allocation10 + $0x1a0] sm:$0xff]
    %v1151 = vld [vmem:[#allocation10 + $0x1a8] sm:$0xff]
    %v1152 = vld [vmem:[#allocation10 + $0x1b0] sm:$0xff]
    %v1153 = vld [vmem:[#allocation10 + $0x1b8] sm:$0xff]
    %v1154 = vld [vmem:[#allocation10 + $0x1c0] sm:$0xff]
    %v1155 = vld [vmem:[#allocation10 + $0x1c8] sm:$0xff]
    %v1156 = vld [vmem:[#allocation10 + $0x1d0] sm:$0xff]
    %v1157 = vld [vmem:[#allocation10 + $0x1d8] sm:$0xff]
    %v1158 = vld [vmem:[#allocation10 + $0x1e0] sm:$0xff]
    %v1159 = vld [vmem:[#allocation10 + $0x1e8] sm:$0xff]
    %v1160 = vld [vmem:[#allocation10 + $0x1f0] sm:$0xff]
    %v1161 = vld [vmem:[#allocation10 + $0x1f8] sm:$0xff]
    %1162 = vmatpush.msra.mxu0 %v1158
    %1163 = vmatpush.msra.mxu0 %v1154
    %1164 = vmatpush.msra.mxu0 %v1150
    %1165 = vmatpush.msra.mxu0 %v1146
    %1166 = vmatpush.msra.mxu0 %v1142
    %1167 = vmatpush.msra.mxu0 %v1138
    %1168 = vmatpush.msra.mxu0 %v1134
    %1169 = vmatpush.msra.mxu0 %v1130
    %1170 = vmatpush.msra.mxu0 %v1126
    %1171 = vmatpush.msra.mxu0 %v1122
    %1172 = vmatpush.msra.mxu0 %v1118
    %1173 = vmatpush.msra.mxu0 %v1114
    %1174 = vmatpush.msra.mxu0 %v1110
    %1175 = vmatpush.msra.mxu0 %v1106
    %1176 = vmatpush.msra.mxu0 %v1102
    %1177 = vmatpush.msra.mxu0 %v1098
    %1178 = vmatmul.f32.gmra.mxu0 %v1090
    %v1179 = vpop.f32.mrf.mxu0
    %v1180 = vadd.f32 0.0, %v1179
    %1181 = vdwg.mxu0
    %1182 = vmatpush.msra.mxu0 %v1159
    %1183 = vmatpush.msra.mxu0 %v1155
    %1184 = vmatpush.msra.mxu0 %v1151
    %1185 = vmatpush.msra.mxu0 %v1147
    %1186 = vmatpush.msra.mxu0 %v1143
    %1187 = vmatpush.msra.mxu0 %v1139
    %1188 = vmatpush.msra.mxu0 %v1135
    %1189 = vmatpush.msra.mxu0 %v1131
    %1190 = vmatpush.msra.mxu0 %v1127
    %1191 = vmatpush.msra.mxu0 %v1123
    %1192 = vmatpush.msra.mxu0 %v1119
    %1193 = vmatpush.msra.mxu0 %v1115
    %1194 = vmatpush.msra.mxu0 %v1111
    %1195 = vmatpush.msra.mxu0 %v1107
    %1196 = vmatpush.msra.mxu0 %v1103
    %1197 = vmatpush.msra.mxu0 %v1099
    %1198 = vmatmul.f32.gmra.mxu0 %v1090
    %v1199 = vpop.f32.mrf.mxu0
    %v1200 = vadd.f32 0.0, %v1199
    %1201 = vdwg.mxu0
    %1202 = vmatpush.msra.mxu0 %v1160
    %1203 = vmatpush.msra.mxu0 %v1156
    %1204 = vmatpush.msra.mxu0 %v1152
    %1205 = vmatpush.msra.mxu0 %v1148
    %1206 = vmatpush.msra.mxu0 %v1144
    %1207 = vmatpush.msra.mxu0 %v1140
    %1208 = vmatpush.msra.mxu0 %v1136
    %1209 = vmatpush.msra.mxu0 %v1132
    %1210 = vmatpush.msra.mxu0 %v1128
    %1211 = vmatpush.msra.mxu0 %v1124
    %1212 = vmatpush.msra.mxu0 %v1120
    %1213 = vmatpush.msra.mxu0 %v1116
    %1214 = vmatpush.msra.mxu0 %v1112
    %1215 = vmatpush.msra.mxu0 %v1108
    %1216 = vmatpush.msra.mxu0 %v1104
    %1217 = vmatpush.msra.mxu0 %v1100
    %1218 = vmatmul.f32.gmra.mxu0 %v1090
    %v1219 = vpop.f32.mrf.mxu0
    %v1220 = vadd.f32 0.0, %v1219
    %1221 = vdwg.mxu0
    %1222 = vmatpush.msra.mxu0 %v1161
    %1223 = vmatpush.msra.mxu0 %v1157
    %1224 = vmatpush.msra.mxu0 %v1153
    %1225 = vmatpush.msra.mxu0 %v1149
    %1226 = vmatpush.msra.mxu0 %v1145
    %1227 = vmatpush.msra.mxu0 %v1141
    %1228 = vmatpush.msra.mxu0 %v1137
    %1229 = vmatpush.msra.mxu0 %v1133
    %1230 = vmatpush.msra.mxu0 %v1129
    %1231 = vmatpush.msra.mxu0 %v1125
    %1232 = vmatpush.msra.mxu0 %v1121
    %1233 = vmatpush.msra.mxu0 %v1117
    %1234 = vmatpush.msra.mxu0 %v1113
    %1235 = vmatpush.msra.mxu0 %v1109
    %1236 = vmatpush.msra.mxu0 %v1105
    %1237 = vmatpush.msra.mxu0 %v1101
    %1238 = vmatmul.f32.gmra.mxu0 %v1090
    %v1239 = vpop.f32.mrf.mxu0
    %v1240 = vadd.f32 0.0, %v1239
    %1241 = vdwg.mxu0
    %v1242 = vadd.f32 %v1094, %v1180
    %v1243 = vadd.f32 %v1095, %v1200
    %v1244 = vadd.f32 %v1096, %v1220
    %v1245 = vadd.f32 %v1097, %v1240
    %v1246 = vxor.u32 %v1242, 2147483648
    %v1247 = vmul.f32 %v1246, 1.442695
    %v1248 = vpow.pop %v1247
    %v1249 = vadd.f32 %v1248, 1.0
    %v1250 = vrcp.pop %v1249
    %v1251 = vmul.f32 %v1249, %v1250
    %v1252 = vsub.f32 1.0, %v1251
    %v1253 = vmul.f32 %v1250, %v1252
    %v1254 = vadd.f32 %v1250, %v1253
    %vm1255 = vweird.f32 %v1249
    %vm1256 = vweird.f32 %v1250
    %vm1257 = vmor %vm1255, %vm1256
    %v1258 = vsel %vm1257, %v1250, %v1254
    %v1259 = vand.u32 2147483647, %v1249
    %vm1260 = vcmp.eq.f32.partialorder %v1259, 8.507059e+37
    %v1261 = vand.u32 %v1249, 2147483648
    %v1262 = vor.u32 1.1754944e-38, %v1261
    %v1263 = vsel %vm1260, %v1262, %v1258
    %v1264 = vmul.f32 1.0, %v1263
    %v1265 = vxor.u32 %v1243, 2147483648
    %v1266 = vmul.f32 %v1265, 1.442695
    %v1267 = vpow.pop %v1266
    %v1268 = vadd.f32 %v1267, 1.0
    %v1269 = vrcp.pop %v1268
    %v1270 = vmul.f32 %v1268, %v1269
    %v1271 = vsub.f32 1.0, %v1270
    %v1272 = vmul.f32 %v1269, %v1271
    %v1273 = vadd.f32 %v1269, %v1272
    %vm1274 = vweird.f32 %v1268
    %vm1275 = vweird.f32 %v1269
    %vm1276 = vmor %vm1274, %vm1275
    %v1277 = vsel %vm1276, %v1269, %v1273
    %v1278 = vand.u32 2147483647, %v1268
    %vm1279 = vcmp.eq.f32.partialorder %v1278, 8.507059e+37
    %v1280 = vand.u32 %v1268, 2147483648
    %v1281 = vor.u32 1.1754944e-38, %v1280
    %v1282 = vsel %vm1279, %v1281, %v1277
    %v1283 = vmul.f32 1.0, %v1282
    %v1284 = vtanh.pop %v1244
    %v1285 = vxor.u32 %v1245, 2147483648
    %v1286 = vmul.f32 %v1285, 1.442695
    %v1287 = vpow.pop %v1286
    %v1288 = vadd.f32 %v1287, 1.0
    %v1289 = vrcp.pop %v1288
    %v1290 = vmul.f32 %v1288, %v1289
    %v1291 = vsub.f32 1.0, %v1290
    %v1292 = vmul.f32 %v1289, %v1291
    %v1293 = vadd.f32 %v1289, %v1292
    %vm1294 = vweird.f32 %v1288
    %vm1295 = vweird.f32 %v1289
    %vm1296 = vmor %vm1294, %vm1295
    %v1297 = vsel %vm1296, %v1289, %v1293
    %v1298 = vand.u32 2147483647, %v1288
    %vm1299 = vcmp.eq.f32.partialorder %v1298, 8.507059e+37
    %v1300 = vand.u32 %v1288, 2147483648
    %v1301 = vor.u32 1.1754944e-38, %v1300
    %v1302 = vsel %vm1299, %v1301, %v1297
    %v1303 = vmul.f32 1.0, %v1302
    %v1304 = vmul.f32 %v1283, %v1088
    %v1305 = vmul.f32 %v1264, %v1284
    %v1306 = vadd.f32 %v1304, %v1305
    %v1307 = vtanh.pop %v1306
    %v1308 = vmul.f32 %v1303, %v1307
    %s1309 = scalar_lea.vmem [#allocation3], 24
    %1310 = vst [vmem:[%s1309] sm:$0xff] %v1308
    %s1311 = scalar_lea.vmem [#allocation2], 128
    %v1312 = vld [vmem:[%s1311] sm:$0xff]
    %v1313 = vld [vmem:[%s1311 + $0x8] sm:$0xff]
    %v1314 = vld [vmem:[%s1311 + $0x10] sm:$0xff]
    %v1315 = vld [vmem:[%s1311 + $0x18] sm:$0xff]
    %v1316 = vld [vmem:[#allocation10] sm:$0xff]
    %v1317 = vld [vmem:[#allocation10 + $0x8] sm:$0xff]
    %v1318 = vld [vmem:[#allocation10 + $0x10] sm:$0xff]
    %v1319 = vld [vmem:[#allocation10 + $0x18] sm:$0xff]
    %v1320 = vld [vmem:[#allocation10 + $0x20] sm:$0xff]
    %v1321 = vld [vmem:[#allocation10 + $0x28] sm:$0xff]
    %v1322 = vld [vmem:[#allocation10 + $0x30] sm:$0xff]
    %v1323 = vld [vmem:[#allocation10 + $0x38] sm:$0xff]
    %v1324 = vld [vmem:[#allocation10 + $0x40] sm:$0xff]
    %v1325 = vld [vmem:[#allocation10 + $0x48] sm:$0xff]
    %v1326 = vld [vmem:[#allocation10 + $0x50] sm:$0xff]
    %v1327 = vld [vmem:[#allocation10 + $0x58] sm:$0xff]
    %v1328 = vld [vmem:[#allocation10 + $0x60] sm:$0xff]
    %v1329 = vld [vmem:[#allocation10 + $0x68] sm:$0xff]
    %v1330 = vld [vmem:[#allocation10 + $0x70] sm:$0xff]
    %v1331 = vld [vmem:[#allocation10 + $0x78] sm:$0xff]
    %v1332 = vld [vmem:[#allocation10 + $0x80] sm:$0xff]
    %v1333 = vld [vmem:[#allocation10 + $0x88] sm:$0xff]
    %v1334 = vld [vmem:[#allocation10 + $0x90] sm:$0xff]
    %v1335 = vld [vmem:[#allocation10 + $0x98] sm:$0xff]
    %v1336 = vld [vmem:[#allocation10 + $0xa0] sm:$0xff]
    %v1337 = vld [vmem:[#allocation10 + $0xa8] sm:$0xff]
    %v1338 = vld [vmem:[#allocation10 + $0xb0] sm:$0xff]
    %v1339 = vld [vmem:[#allocation10 + $0xb8] sm:$0xff]
    %v1340 = vld [vmem:[#allocation10 + $0xc0] sm:$0xff]
    %v1341 = vld [vmem:[#allocation10 + $0xc8] sm:$0xff]
    %v1342 = vld [vmem:[#allocation10 + $0xd0] sm:$0xff]
    %v1343 = vld [vmem:[#allocation10 + $0xd8] sm:$0xff]
    %v1344 = vld [vmem:[#allocation10 + $0xe0] sm:$0xff]
    %v1345 = vld [vmem:[#allocation10 + $0xe8] sm:$0xff]
    %v1346 = vld [vmem:[#allocation10 + $0xf0] sm:$0xff]
    %v1347 = vld [vmem:[#allocation10 + $0xf8] sm:$0xff]
    %v1348 = vld [vmem:[#allocation10 + $0x100] sm:$0xff]
    %v1349 = vld [vmem:[#allocation10 + $0x108] sm:$0xff]
    %v1350 = vld [vmem:[#allocation10 + $0x110] sm:$0xff]
    %v1351 = vld [vmem:[#allocation10 + $0x118] sm:$0xff]
    %v1352 = vld [vmem:[#allocation10 + $0x120] sm:$0xff]
    %v1353 = vld [vmem:[#allocation10 + $0x128] sm:$0xff]
    %v1354 = vld [vmem:[#allocation10 + $0x130] sm:$0xff]
    %v1355 = vld [vmem:[#allocation10 + $0x138] sm:$0xff]
    %v1356 = vld [vmem:[#allocation10 + $0x140] sm:$0xff]
    %v1357 = vld [vmem:[#allocation10 + $0x148] sm:$0xff]
    %v1358 = vld [vmem:[#allocation10 + $0x150] sm:$0xff]
    %v1359 = vld [vmem:[#allocation10 + $0x158] sm:$0xff]
    %v1360 = vld [vmem:[#allocation10 + $0x160] sm:$0xff]
    %v1361 = vld [vmem:[#allocation10 + $0x168] sm:$0xff]
    %v1362 = vld [vmem:[#allocation10 + $0x170] sm:$0xff]
    %v1363 = vld [vmem:[#allocation10 + $0x178] sm:$0xff]
    %v1364 = vld [vmem:[#allocation10 + $0x180] sm:$0xff]
    %v1365 = vld [vmem:[#allocation10 + $0x188] sm:$0xff]
    %v1366 = vld [vmem:[#allocation10 + $0x190] sm:$0xff]
    %v1367 = vld [vmem:[#allocation10 + $0x198] sm:$0xff]
    %v1368 = vld [vmem:[#allocation10 + $0x1a0] sm:$0xff]
    %v1369 = vld [vmem:[#allocation10 + $0x1a8] sm:$0xff]
    %v1370 = vld [vmem:[#allocation10 + $0x1b0] sm:$0xff]
    %v1371 = vld [vmem:[#allocation10 + $0x1b8] sm:$0xff]
    %v1372 = vld [vmem:[#allocation10 + $0x1c0] sm:$0xff]
    %v1373 = vld [vmem:[#allocation10 + $0x1c8] sm:$0xff]
    %v1374 = vld [vmem:[#allocation10 + $0x1d0] sm:$0xff]
    %v1375 = vld [vmem:[#allocation10 + $0x1d8] sm:$0xff]
    %v1376 = vld [vmem:[#allocation10 + $0x1e0] sm:$0xff]
    %v1377 = vld [vmem:[#allocation10 + $0x1e8] sm:$0xff]
    %v1378 = vld [vmem:[#allocation10 + $0x1f0] sm:$0xff]
    %v1379 = vld [vmem:[#allocation10 + $0x1f8] sm:$0xff]
    %1380 = vmatpush.msra.mxu0 %v1376
    %1381 = vmatpush.msra.mxu0 %v1372
    %1382 = vmatpush.msra.mxu0 %v1368
    %1383 = vmatpush.msra.mxu0 %v1364
    %1384 = vmatpush.msra.mxu0 %v1360
    %1385 = vmatpush.msra.mxu0 %v1356
    %1386 = vmatpush.msra.mxu0 %v1352
    %1387 = vmatpush.msra.mxu0 %v1348
    %1388 = vmatpush.msra.mxu0 %v1344
    %1389 = vmatpush.msra.mxu0 %v1340
    %1390 = vmatpush.msra.mxu0 %v1336
    %1391 = vmatpush.msra.mxu0 %v1332
    %1392 = vmatpush.msra.mxu0 %v1328
    %1393 = vmatpush.msra.mxu0 %v1324
    %1394 = vmatpush.msra.mxu0 %v1320
    %1395 = vmatpush.msra.mxu0 %v1316
    %1396 = vmatmul.f32.gmra.mxu0 %v1308
    %v1397 = vpop.f32.mrf.mxu0
    %v1398 = vadd.f32 0.0, %v1397
    %1399 = vdwg.mxu0
    %1400 = vmatpush.msra.mxu0 %v1377
    %1401 = vmatpush.msra.mxu0 %v1373
    %1402 = vmatpush.msra.mxu0 %v1369
    %1403 = vmatpush.msra.mxu0 %v1365
    %1404 = vmatpush.msra.mxu0 %v1361
    %1405 = vmatpush.msra.mxu0 %v1357
    %1406 = vmatpush.msra.mxu0 %v1353
    %1407 = vmatpush.msra.mxu0 %v1349
    %1408 = vmatpush.msra.mxu0 %v1345
    %1409 = vmatpush.msra.mxu0 %v1341
    %1410 = vmatpush.msra.mxu0 %v1337
    %1411 = vmatpush.msra.mxu0 %v1333
    %1412 = vmatpush.msra.mxu0 %v1329
    %1413 = vmatpush.msra.mxu0 %v1325
    %1414 = vmatpush.msra.mxu0 %v1321
    %1415 = vmatpush.msra.mxu0 %v1317
    %1416 = vmatmul.f32.gmra.mxu0 %v1308
    %v1417 = vpop.f32.mrf.mxu0
    %v1418 = vadd.f32 0.0, %v1417
    %1419 = vdwg.mxu0
    %1420 = vmatpush.msra.mxu0 %v1378
    %1421 = vmatpush.msra.mxu0 %v1374
    %1422 = vmatpush.msra.mxu0 %v1370
    %1423 = vmatpush.msra.mxu0 %v1366
    %1424 = vmatpush.msra.mxu0 %v1362
    %1425 = vmatpush.msra.mxu0 %v1358
    %1426 = vmatpush.msra.mxu0 %v1354
    %1427 = vmatpush.msra.mxu0 %v1350
    %1428 = vmatpush.msra.mxu0 %v1346
    %1429 = vmatpush.msra.mxu0 %v1342
    %1430 = vmatpush.msra.mxu0 %v1338
    %1431 = vmatpush.msra.mxu0 %v1334
    %1432 = vmatpush.msra.mxu0 %v1330
    %1433 = vmatpush.msra.mxu0 %v1326
    %1434 = vmatpush.msra.mxu0 %v1322
    %1435 = vmatpush.msra.mxu0 %v1318
    %1436 = vmatmul.f32.gmra.mxu0 %v1308
    %v1437 = vpop.f32.mrf.mxu0
    %v1438 = vadd.f32 0.0, %v1437
    %1439 = vdwg.mxu0
    %1440 = vmatpush.msra.mxu0 %v1379
    %1441 = vmatpush.msra.mxu0 %v1375
    %1442 = vmatpush.msra.mxu0 %v1371
    %1443 = vmatpush.msra.mxu0 %v1367
    %1444 = vmatpush.msra.mxu0 %v1363
    %1445 = vmatpush.msra.mxu0 %v1359
    %1446 = vmatpush.msra.mxu0 %v1355
    %1447 = vmatpush.msra.mxu0 %v1351
    %1448 = vmatpush.msra.mxu0 %v1347
    %1449 = vmatpush.msra.mxu0 %v1343
    %1450 = vmatpush.msra.mxu0 %v1339
    %1451 = vmatpush.msra.mxu0 %v1335
    %1452 = vmatpush.msra.mxu0 %v1331
    %1453 = vmatpush.msra.mxu0 %v1327
    %1454 = vmatpush.msra.mxu0 %v1323
    %1455 = vmatpush.msra.mxu0 %v1319
    %1456 = vmatmul.f32.gmra.mxu0 %v1308
    %v1457 = vpop.f32.mrf.mxu0
    %v1458 = vadd.f32 0.0, %v1457
    %1459 = vdwg.mxu0
    %v1460 = vadd.f32 %v1312, %v1398
    %v1461 = vadd.f32 %v1313, %v1418
    %v1462 = vadd.f32 %v1314, %v1438
    %v1463 = vadd.f32 %v1315, %v1458
    %v1464 = vxor.u32 %v1460, 2147483648
    %v1465 = vmul.f32 %v1464, 1.442695
    %v1466 = vpow.pop %v1465
    %v1467 = vadd.f32 %v1466, 1.0
    %v1468 = vrcp.pop %v1467
    %v1469 = vmul.f32 %v1467, %v1468
    %v1470 = vsub.f32 1.0, %v1469
    %v1471 = vmul.f32 %v1468, %v1470
    %v1472 = vadd.f32 %v1468, %v1471
    %vm1473 = vweird.f32 %v1467
    %vm1474 = vweird.f32 %v1468
    %vm1475 = vmor %vm1473, %vm1474
    %v1476 = vsel %vm1475, %v1468, %v1472
    %v1477 = vand.u32 2147483647, %v1467
    %vm1478 = vcmp.eq.f32.partialorder %v1477, 8.507059e+37
    %v1479 = vand.u32 %v1467, 2147483648
    %v1480 = vor.u32 1.1754944e-38, %v1479
    %v1481 = vsel %vm1478, %v1480, %v1476
    %v1482 = vmul.f32 1.0, %v1481
    %v1483 = vxor.u32 %v1461, 2147483648
    %v1484 = vmul.f32 %v1483, 1.442695
    %v1485 = vpow.pop %v1484
    %v1486 = vadd.f32 %v1485, 1.0
    %v1487 = vrcp.pop %v1486
    %v1488 = vmul.f32 %v1486, %v1487
    %v1489 = vsub.f32 1.0, %v1488
    %v1490 = vmul.f32 %v1487, %v1489
    %v1491 = vadd.f32 %v1487, %v1490
    %vm1492 = vweird.f32 %v1486
    %vm1493 = vweird.f32 %v1487
    %vm1494 = vmor %vm1492, %vm1493
    %v1495 = vsel %vm1494, %v1487, %v1491
    %v1496 = vand.u32 2147483647, %v1486
    %vm1497 = vcmp.eq.f32.partialorder %v1496, 8.507059e+37
    %v1498 = vand.u32 %v1486, 2147483648
    %v1499 = vor.u32 1.1754944e-38, %v1498
    %v1500 = vsel %vm1497, %v1499, %v1495
    %v1501 = vmul.f32 1.0, %v1500
    %v1502 = vtanh.pop %v1462
    %v1503 = vxor.u32 %v1463, 2147483648
    %v1504 = vmul.f32 %v1503, 1.442695
    %v1505 = vpow.pop %v1504
    %v1506 = vadd.f32 %v1505, 1.0
    %v1507 = vrcp.pop %v1506
    %v1508 = vmul.f32 %v1506, %v1507
    %v1509 = vsub.f32 1.0, %v1508
    %v1510 = vmul.f32 %v1507, %v1509
    %v1511 = vadd.f32 %v1507, %v1510
    %vm1512 = vweird.f32 %v1506
    %vm1513 = vweird.f32 %v1507
    %vm1514 = vmor %vm1512, %vm1513
    %v1515 = vsel %vm1514, %v1507, %v1511
    %v1516 = vand.u32 2147483647, %v1506
    %vm1517 = vcmp.eq.f32.partialorder %v1516, 8.507059e+37
    %v1518 = vand.u32 %v1506, 2147483648
    %v1519 = vor.u32 1.1754944e-38, %v1518
    %v1520 = vsel %vm1517, %v1519, %v1515
    %v1521 = vmul.f32 1.0, %v1520
    %v1522 = vmul.f32 %v1501, %v1306
    %v1523 = vmul.f32 %v1482, %v1502
    %v1524 = vadd.f32 %v1522, %v1523
    %v1525 = vtanh.pop %v1524
    %v1526 = vmul.f32 %v1521, %v1525
    %s1527 = scalar_lea.vmem [#allocation3], 32
    %1528 = vst [vmem:[%s1527] sm:$0xff] %v1526
    %s1529 = scalar_lea.vmem [#allocation2], 160
    %v1530 = vld [vmem:[%s1529] sm:$0xff]
    %v1531 = vld [vmem:[%s1529 + $0x8] sm:$0xff]
    %v1532 = vld [vmem:[%s1529 + $0x10] sm:$0xff]
    %v1533 = vld [vmem:[%s1529 + $0x18] sm:$0xff]
    %v1534 = vld [vmem:[#allocation10] sm:$0xff]
    %v1535 = vld [vmem:[#allocation10 + $0x8] sm:$0xff]
    %v1536 = vld [vmem:[#allocation10 + $0x10] sm:$0xff]
    %v1537 = vld [vmem:[#allocation10 + $0x18] sm:$0xff]
    %v1538 = vld [vmem:[#allocation10 + $0x20] sm:$0xff]
    %v1539 = vld [vmem:[#allocation10 + $0x28] sm:$0xff]
    %v1540 = vld [vmem:[#allocation10 + $0x30] sm:$0xff]
    %v1541 = vld [vmem:[#allocation10 + $0x38] sm:$0xff]
    %v1542 = vld [vmem:[#allocation10 + $0x40] sm:$0xff]
    %v1543 = vld [vmem:[#allocation10 + $0x48] sm:$0xff]
    %v1544 = vld [vmem:[#allocation10 + $0x50] sm:$0xff]
    %v1545 = vld [vmem:[#allocation10 + $0x58] sm:$0xff]
    %v1546 = vld [vmem:[#allocation10 + $0x60] sm:$0xff]
    %v1547 = vld [vmem:[#allocation10 + $0x68] sm:$0xff]
    %v1548 = vld [vmem:[#allocation10 + $0x70] sm:$0xff]
    %v1549 = vld [vmem:[#allocation10 + $0x78] sm:$0xff]
    %v1550 = vld [vmem:[#allocation10 + $0x80] sm:$0xff]
    %v1551 = vld [vmem:[#allocation10 + $0x88] sm:$0xff]
    %v1552 = vld [vmem:[#allocation10 + $0x90] sm:$0xff]
    %v1553 = vld [vmem:[#allocation10 + $0x98] sm:$0xff]
    %v1554 = vld [vmem:[#allocation10 + $0xa0] sm:$0xff]
    %v1555 = vld [vmem:[#allocation10 + $0xa8] sm:$0xff]
    %v1556 = vld [vmem:[#allocation10 + $0xb0] sm:$0xff]
    %v1557 = vld [vmem:[#allocation10 + $0xb8] sm:$0xff]
    %v1558 = vld [vmem:[#allocation10 + $0xc0] sm:$0xff]
    %v1559 = vld [vmem:[#allocation10 + $0xc8] sm:$0xff]
    %v1560 = vld [vmem:[#allocation10 + $0xd0] sm:$0xff]
    %v1561 = vld [vmem:[#allocation10 + $0xd8] sm:$0xff]
    %v1562 = vld [vmem:[#allocation10 + $0xe0] sm:$0xff]
    %v1563 = vld [vmem:[#allocation10 + $0xe8] sm:$0xff]
    %v1564 = vld [vmem:[#allocation10 + $0xf0] sm:$0xff]
    %v1565 = vld [vmem:[#allocation10 + $0xf8] sm:$0xff]
    %v1566 = vld [vmem:[#allocation10 + $0x100] sm:$0xff]
    %v1567 = vld [vmem:[#allocation10 + $0x108] sm:$0xff]
    %v1568 = vld [vmem:[#allocation10 + $0x110] sm:$0xff]
    %v1569 = vld [vmem:[#allocation10 + $0x118] sm:$0xff]
    %v1570 = vld [vmem:[#allocation10 + $0x120] sm:$0xff]
    %v1571 = vld [vmem:[#allocation10 + $0x128] sm:$0xff]
    %v1572 = vld [vmem:[#allocation10 + $0x130] sm:$0xff]
    %v1573 = vld [vmem:[#allocation10 + $0x138] sm:$0xff]
    %v1574 = vld [vmem:[#allocation10 + $0x140] sm:$0xff]
    %v1575 = vld [vmem:[#allocation10 + $0x148] sm:$0xff]
    %v1576 = vld [vmem:[#allocation10 + $0x150] sm:$0xff]
    %v1577 = vld [vmem:[#allocation10 + $0x158] sm:$0xff]
    %v1578 = vld [vmem:[#allocation10 + $0x160] sm:$0xff]
    %v1579 = vld [vmem:[#allocation10 + $0x168] sm:$0xff]
    %v1580 = vld [vmem:[#allocation10 + $0x170] sm:$0xff]
    %v1581 = vld [vmem:[#allocation10 + $0x178] sm:$0xff]
    %v1582 = vld [vmem:[#allocation10 + $0x180] sm:$0xff]
    %v1583 = vld [vmem:[#allocation10 + $0x188] sm:$0xff]
    %v1584 = vld [vmem:[#allocation10 + $0x190] sm:$0xff]
    %v1585 = vld [vmem:[#allocation10 + $0x198] sm:$0xff]
    %v1586 = vld [vmem:[#allocation10 + $0x1a0] sm:$0xff]
    %v1587 = vld [vmem:[#allocation10 + $0x1a8] sm:$0xff]
    %v1588 = vld [vmem:[#allocation10 + $0x1b0] sm:$0xff]
    %v1589 = vld [vmem:[#allocation10 + $0x1b8] sm:$0xff]
    %v1590 = vld [vmem:[#allocation10 + $0x1c0] sm:$0xff]
    %v1591 = vld [vmem:[#allocation10 + $0x1c8] sm:$0xff]
    %v1592 = vld [vmem:[#allocation10 + $0x1d0] sm:$0xff]
    %v1593 = vld [vmem:[#allocation10 + $0x1d8] sm:$0xff]
    %v1594 = vld [vmem:[#allocation10 + $0x1e0] sm:$0xff]
    %v1595 = vld [vmem:[#allocation10 + $0x1e8] sm:$0xff]
    %v1596 = vld [vmem:[#allocation10 + $0x1f0] sm:$0xff]
    %v1597 = vld [vmem:[#allocation10 + $0x1f8] sm:$0xff]
    %1598 = vmatpush.msra.mxu0 %v1594
    %1599 = vmatpush.msra.mxu0 %v1590
    %1600 = vmatpush.msra.mxu0 %v1586
    %1601 = vmatpush.msra.mxu0 %v1582
    %1602 = vmatpush.msra.mxu0 %v1578
    %1603 = vmatpush.msra.mxu0 %v1574
    %1604 = vmatpush.msra.mxu0 %v1570
    %1605 = vmatpush.msra.mxu0 %v1566
    %1606 = vmatpush.msra.mxu0 %v1562
    %1607 = vmatpush.msra.mxu0 %v1558
    %1608 = vmatpush.msra.mxu0 %v1554
    %1609 = vmatpush.msra.mxu0 %v1550
    %1610 = vmatpush.msra.mxu0 %v1546
    %1611 = vmatpush.msra.mxu0 %v1542
    %1612 = vmatpush.msra.mxu0 %v1538
    %1613 = vmatpush.msra.mxu0 %v1534
    %1614 = vmatmul.f32.gmra.mxu0 %v1526
    %v1615 = vpop.f32.mrf.mxu0
    %v1616 = vadd.f32 0.0, %v1615
    %1617 = vdwg.mxu0
    %1618 = vmatpush.msra.mxu0 %v1595
    %1619 = vmatpush.msra.mxu0 %v1591
    %1620 = vmatpush.msra.mxu0 %v1587
    %1621 = vmatpush.msra.mxu0 %v1583
    %1622 = vmatpush.msra.mxu0 %v1579
    %1623 = vmatpush.msra.mxu0 %v1575
    %1624 = vmatpush.msra.mxu0 %v1571
    %1625 = vmatpush.msra.mxu0 %v1567
    %1626 = vmatpush.msra.mxu0 %v1563
    %1627 = vmatpush.msra.mxu0 %v1559
    %1628 = vmatpush.msra.mxu0 %v1555
    %1629 = vmatpush.msra.mxu0 %v1551
    %1630 = vmatpush.msra.mxu0 %v1547
    %1631 = vmatpush.msra.mxu0 %v1543
    %1632 = vmatpush.msra.mxu0 %v1539
    %1633 = vmatpush.msra.mxu0 %v1535
    %1634 = vmatmul.f32.gmra.mxu0 %v1526
    %v1635 = vpop.f32.mrf.mxu0
    %v1636 = vadd.f32 0.0, %v1635
    %1637 = vdwg.mxu0
    %1638 = vmatpush.msra.mxu0 %v1596
    %1639 = vmatpush.msra.mxu0 %v1592
    %1640 = vmatpush.msra.mxu0 %v1588
    %1641 = vmatpush.msra.mxu0 %v1584
    %1642 = vmatpush.msra.mxu0 %v1580
    %1643 = vmatpush.msra.mxu0 %v1576
    %1644 = vmatpush.msra.mxu0 %v1572
    %1645 = vmatpush.msra.mxu0 %v1568
    %1646 = vmatpush.msra.mxu0 %v1564
    %1647 = vmatpush.msra.mxu0 %v1560
    %1648 = vmatpush.msra.mxu0 %v1556
    %1649 = vmatpush.msra.mxu0 %v1552
    %1650 = vmatpush.msra.mxu0 %v1548
    %1651 = vmatpush.msra.mxu0 %v1544
    %1652 = vmatpush.msra.mxu0 %v1540
    %1653 = vmatpush.msra.mxu0 %v1536
    %1654 = vmatmul.f32.gmra.mxu0 %v1526
    %v1655 = vpop.f32.mrf.mxu0
    %v1656 = vadd.f32 0.0, %v1655
    %1657 = vdwg.mxu0
    %1658 = vmatpush.msra.mxu0 %v1597
    %1659 = vmatpush.msra.mxu0 %v1593
    %1660 = vmatpush.msra.mxu0 %v1589
    %1661 = vmatpush.msra.mxu0 %v1585
    %1662 = vmatpush.msra.mxu0 %v1581
    %1663 = vmatpush.msra.mxu0 %v1577
    %1664 = vmatpush.msra.mxu0 %v1573
    %1665 = vmatpush.msra.mxu0 %v1569
    %1666 = vmatpush.msra.mxu0 %v1565
    %1667 = vmatpush.msra.mxu0 %v1561
    %1668 = vmatpush.msra.mxu0 %v1557
    %1669 = vmatpush.msra.mxu0 %v1553
    %1670 = vmatpush.msra.mxu0 %v1549
    %1671 = vmatpush.msra.mxu0 %v1545
    %1672 = vmatpush.msra.mxu0 %v1541
    %1673 = vmatpush.msra.mxu0 %v1537
    %1674 = vmatmul.f32.gmra.mxu0 %v1526
    %v1675 = vpop.f32.mrf.mxu0
    %v1676 = vadd.f32 0.0, %v1675
    %1677 = vdwg.mxu0
    %v1678 = vadd.f32 %v1530, %v1616
    %v1679 = vadd.f32 %v1531, %v1636
    %v1680 = vadd.f32 %v1532, %v1656
    %v1681 = vadd.f32 %v1533, %v1676
    %v1682 = vxor.u32 %v1678, 2147483648
    %v1683 = vmul.f32 %v1682, 1.442695
    %v1684 = vpow.pop %v1683
    %v1685 = vadd.f32 %v1684, 1.0
    %v1686 = vrcp.pop %v1685
    %v1687 = vmul.f32 %v1685, %v1686
    %v1688 = vsub.f32 1.0, %v1687
    %v1689 = vmul.f32 %v1686, %v1688
    %v1690 = vadd.f32 %v1686, %v1689
    %vm1691 = vweird.f32 %v1685
    %vm1692 = vweird.f32 %v1686
    %vm1693 = vmor %vm1691, %vm1692
    %v1694 = vsel %vm1693, %v1686, %v1690
    %v1695 = vand.u32 2147483647, %v1685
    %vm1696 = vcmp.eq.f32.partialorder %v1695, 8.507059e+37
    %v1697 = vand.u32 %v1685, 2147483648
    %v1698 = vor.u32 1.1754944e-38, %v1697
    %v1699 = vsel %vm1696, %v1698, %v1694
    %v1700 = vmul.f32 1.0, %v1699
    %v1701 = vxor.u32 %v1679, 2147483648
    %v1702 = vmul.f32 %v1701, 1.442695
    %v1703 = vpow.pop %v1702
    %v1704 = vadd.f32 %v1703, 1.0
    %v1705 = vrcp.pop %v1704
    %v1706 = vmul.f32 %v1704, %v1705
    %v1707 = vsub.f32 1.0, %v1706
    %v1708 = vmul.f32 %v1705, %v1707
    %v1709 = vadd.f32 %v1705, %v1708
    %vm1710 = vweird.f32 %v1704
    %vm1711 = vweird.f32 %v1705
    %vm1712 = vmor %vm1710, %vm1711
    %v1713 = vsel %vm1712, %v1705, %v1709
    %v1714 = vand.u32 2147483647, %v1704
    %vm1715 = vcmp.eq.f32.partialorder %v1714, 8.507059e+37
    %v1716 = vand.u32 %v1704, 2147483648
    %v1717 = vor.u32 1.1754944e-38, %v1716
    %v1718 = vsel %vm1715, %v1717, %v1713
    %v1719 = vmul.f32 1.0, %v1718
    %v1720 = vtanh.pop %v1680
    %v1721 = vxor.u32 %v1681, 2147483648
    %v1722 = vmul.f32 %v1721, 1.442695
    %v1723 = vpow.pop %v1722
    %v1724 = vadd.f32 %v1723, 1.0
    %v1725 = vrcp.pop %v1724
    %v1726 = vmul.f32 %v1724, %v1725
    %v1727 = vsub.f32 1.0, %v1726
    %v1728 = vmul.f32 %v1725, %v1727
    %v1729 = vadd.f32 %v1725, %v1728
    %vm1730 = vweird.f32 %v1724
    %vm1731 = vweird.f32 %v1725
    %vm1732 = vmor %vm1730, %vm1731
    %v1733 = vsel %vm1732, %v1725, %v1729
    %v1734 = vand.u32 2147483647, %v1724
    %vm1735 = vcmp.eq.f32.partialorder %v1734, 8.507059e+37
    %v1736 = vand.u32 %v1724, 2147483648
    %v1737 = vor.u32 1.1754944e-38, %v1736
    %v1738 = vsel %vm1735, %v1737, %v1733
    %v1739 = vmul.f32 1.0, %v1738
    %v1740 = vmul.f32 %v1719, %v1524
    %v1741 = vmul.f32 %v1700, %v1720
    %v1742 = vadd.f32 %v1740, %v1741
    %v1743 = vtanh.pop %v1742
    %v1744 = vmul.f32 %v1739, %v1743
    %s1745 = scalar_lea.vmem [#allocation3], 40
    %1746 = vst [vmem:[%s1745] sm:$0xff] %v1744
    %s1747 = scalar_lea.vmem [#allocation2], 192
    %v1748 = vld [vmem:[%s1747] sm:$0xff]
    %v1749 = vld [vmem:[%s1747 + $0x8] sm:$0xff]
    %v1750 = vld [vmem:[%s1747 + $0x10] sm:$0xff]
    %v1751 = vld [vmem:[%s1747 + $0x18] sm:$0xff]
    %v1752 = vld [vmem:[#allocation10] sm:$0xff]
    %v1753 = vld [vmem:[#allocation10 + $0x8] sm:$0xff]
    %v1754 = vld [vmem:[#allocation10 + $0x10] sm:$0xff]
    %v1755 = vld [vmem:[#allocation10 + $0x18] sm:$0xff]
    %v1756 = vld [vmem:[#allocation10 + $0x20] sm:$0xff]
    %v1757 = vld [vmem:[#allocation10 + $0x28] sm:$0xff]
    %v1758 = vld [vmem:[#allocation10 + $0x30] sm:$0xff]
    %v1759 = vld [vmem:[#allocation10 + $0x38] sm:$0xff]
    %v1760 = vld [vmem:[#allocation10 + $0x40] sm:$0xff]
    %v1761 = vld [vmem:[#allocation10 + $0x48] sm:$0xff]
    %v1762 = vld [vmem:[#allocation10 + $0x50] sm:$0xff]
    %v1763 = vld [vmem:[#allocation10 + $0x58] sm:$0xff]
    %v1764 = vld [vmem:[#allocation10 + $0x60] sm:$0xff]
    %v1765 = vld [vmem:[#allocation10 + $0x68] sm:$0xff]
    %v1766 = vld [vmem:[#allocation10 + $0x70] sm:$0xff]
    %v1767 = vld [vmem:[#allocation10 + $0x78] sm:$0xff]
    %v1768 = vld [vmem:[#allocation10 + $0x80] sm:$0xff]
    %v1769 = vld [vmem:[#allocation10 + $0x88] sm:$0xff]
    %v1770 = vld [vmem:[#allocation10 + $0x90] sm:$0xff]
    %v1771 = vld [vmem:[#allocation10 + $0x98] sm:$0xff]
    %v1772 = vld [vmem:[#allocation10 + $0xa0] sm:$0xff]
    %v1773 = vld [vmem:[#allocation10 + $0xa8] sm:$0xff]
    %v1774 = vld [vmem:[#allocation10 + $0xb0] sm:$0xff]
    %v1775 = vld [vmem:[#allocation10 + $0xb8] sm:$0xff]
    %v1776 = vld [vmem:[#allocation10 + $0xc0] sm:$0xff]
    %v1777 = vld [vmem:[#allocation10 + $0xc8] sm:$0xff]
    %v1778 = vld [vmem:[#allocation10 + $0xd0] sm:$0xff]
    %v1779 = vld [vmem:[#allocation10 + $0xd8] sm:$0xff]
    %v1780 = vld [vmem:[#allocation10 + $0xe0] sm:$0xff]
    %v1781 = vld [vmem:[#allocation10 + $0xe8] sm:$0xff]
    %v1782 = vld [vmem:[#allocation10 + $0xf0] sm:$0xff]
    %v1783 = vld [vmem:[#allocation10 + $0xf8] sm:$0xff]
    %v1784 = vld [vmem:[#allocation10 + $0x100] sm:$0xff]
    %v1785 = vld [vmem:[#allocation10 + $0x108] sm:$0xff]
    %v1786 = vld [vmem:[#allocation10 + $0x110] sm:$0xff]
    %v1787 = vld [vmem:[#allocation10 + $0x118] sm:$0xff]
    %v1788 = vld [vmem:[#allocation10 + $0x120] sm:$0xff]
    %v1789 = vld [vmem:[#allocation10 + $0x128] sm:$0xff]
    %v1790 = vld [vmem:[#allocation10 + $0x130] sm:$0xff]
    %v1791 = vld [vmem:[#allocation10 + $0x138] sm:$0xff]
    %v1792 = vld [vmem:[#allocation10 + $0x140] sm:$0xff]
    %v1793 = vld [vmem:[#allocation10 + $0x148] sm:$0xff]
    %v1794 = vld [vmem:[#allocation10 + $0x150] sm:$0xff]
    %v1795 = vld [vmem:[#allocation10 + $0x158] sm:$0xff]
    %v1796 = vld [vmem:[#allocation10 + $0x160] sm:$0xff]
    %v1797 = vld [vmem:[#allocation10 + $0x168] sm:$0xff]
    %v1798 = vld [vmem:[#allocation10 + $0x170] sm:$0xff]
    %v1799 = vld [vmem:[#allocation10 + $0x178] sm:$0xff]
    %v1800 = vld [vmem:[#allocation10 + $0x180] sm:$0xff]
    %v1801 = vld [vmem:[#allocation10 + $0x188] sm:$0xff]
    %v1802 = vld [vmem:[#allocation10 + $0x190] sm:$0xff]
    %v1803 = vld [vmem:[#allocation10 + $0x198] sm:$0xff]
    %v1804 = vld [vmem:[#allocation10 + $0x1a0] sm:$0xff]
    %v1805 = vld [vmem:[#allocation10 + $0x1a8] sm:$0xff]
    %v1806 = vld [vmem:[#allocation10 + $0x1b0] sm:$0xff]
    %v1807 = vld [vmem:[#allocation10 + $0x1b8] sm:$0xff]
    %v1808 = vld [vmem:[#allocation10 + $0x1c0] sm:$0xff]
    %v1809 = vld [vmem:[#allocation10 + $0x1c8] sm:$0xff]
    %v1810 = vld [vmem:[#allocation10 + $0x1d0] sm:$0xff]
    %v1811 = vld [vmem:[#allocation10 + $0x1d8] sm:$0xff]
    %v1812 = vld [vmem:[#allocation10 + $0x1e0] sm:$0xff]
    %v1813 = vld [vmem:[#allocation10 + $0x1e8] sm:$0xff]
    %v1814 = vld [vmem:[#allocation10 + $0x1f0] sm:$0xff]
    %v1815 = vld [vmem:[#allocation10 + $0x1f8] sm:$0xff]
    %1816 = vmatpush.msra.mxu0 %v1812
    %1817 = vmatpush.msra.mxu0 %v1808
    %1818 = vmatpush.msra.mxu0 %v1804
    %1819 = vmatpush.msra.mxu0 %v1800
    %1820 = vmatpush.msra.mxu0 %v1796
    %1821 = vmatpush.msra.mxu0 %v1792
    %1822 = vmatpush.msra.mxu0 %v1788
    %1823 = vmatpush.msra.mxu0 %v1784
    %1824 = vmatpush.msra.mxu0 %v1780
    %1825 = vmatpush.msra.mxu0 %v1776
    %1826 = vmatpush.msra.mxu0 %v1772
    %1827 = vmatpush.msra.mxu0 %v1768
    %1828 = vmatpush.msra.mxu0 %v1764
    %1829 = vmatpush.msra.mxu0 %v1760
    %1830 = vmatpush.msra.mxu0 %v1756
    %1831 = vmatpush.msra.mxu0 %v1752
    %1832 = vmatmul.f32.gmra.mxu0 %v1744
    %v1833 = vpop.f32.mrf.mxu0
    %v1834 = vadd.f32 0.0, %v1833
    %1835 = vdwg.mxu0
    %1836 = vmatpush.msra.mxu0 %v1813
    %1837 = vmatpush.msra.mxu0 %v1809
    %1838 = vmatpush.msra.mxu0 %v1805
    %1839 = vmatpush.msra.mxu0 %v1801
    %1840 = vmatpush.msra.mxu0 %v1797
    %1841 = vmatpush.msra.mxu0 %v1793
    %1842 = vmatpush.msra.mxu0 %v1789
    %1843 = vmatpush.msra.mxu0 %v1785
    %1844 = vmatpush.msra.mxu0 %v1781
    %1845 = vmatpush.msra.mxu0 %v1777
    %1846 = vmatpush.msra.mxu0 %v1773
    %1847 = vmatpush.msra.mxu0 %v1769
    %1848 = vmatpush.msra.mxu0 %v1765
    %1849 = vmatpush.msra.mxu0 %v1761
    %1850 = vmatpush.msra.mxu0 %v1757
    %1851 = vmatpush.msra.mxu0 %v1753
    %1852 = vmatmul.f32.gmra.mxu0 %v1744
    %v1853 = vpop.f32.mrf.mxu0
    %v1854 = vadd.f32 0.0, %v1853
    %1855 = vdwg.mxu0
    %1856 = vmatpush.msra.mxu0 %v1814
    %1857 = vmatpush.msra.mxu0 %v1810
    %1858 = vmatpush.msra.mxu0 %v1806
    %1859 = vmatpush.msra.mxu0 %v1802
    %1860 = vmatpush.msra.mxu0 %v1798
    %1861 = vmatpush.msra.mxu0 %v1794
    %1862 = vmatpush.msra.mxu0 %v1790
    %1863 = vmatpush.msra.mxu0 %v1786
    %1864 = vmatpush.msra.mxu0 %v1782
    %1865 = vmatpush.msra.mxu0 %v1778
    %1866 = vmatpush.msra.mxu0 %v1774
    %1867 = vmatpush.msra.mxu0 %v1770
    %1868 = vmatpush.msra.mxu0 %v1766
    %1869 = vmatpush.msra.mxu0 %v1762
    %1870 = vmatpush.msra.mxu0 %v1758
    %1871 = vmatpush.msra.mxu0 %v1754
    %1872 = vmatmul.f32.gmra.mxu0 %v1744
    %v1873 = vpop.f32.mrf.mxu0
    %v1874 = vadd.f32 0.0, %v1873
    %1875 = vdwg.mxu0
    %1876 = vmatpush.msra.mxu0 %v1815
    %1877 = vmatpush.msra.mxu0 %v1811
    %1878 = vmatpush.msra.mxu0 %v1807
    %1879 = vmatpush.msra.mxu0 %v1803
    %1880 = vmatpush.msra.mxu0 %v1799
    %1881 = vmatpush.msra.mxu0 %v1795
    %1882 = vmatpush.msra.mxu0 %v1791
    %1883 = vmatpush.msra.mxu0 %v1787
    %1884 = vmatpush.msra.mxu0 %v1783
    %1885 = vmatpush.msra.mxu0 %v1779
    %1886 = vmatpush.msra.mxu0 %v1775
    %1887 = vmatpush.msra.mxu0 %v1771
    %1888 = vmatpush.msra.mxu0 %v1767
    %1889 = vmatpush.msra.mxu0 %v1763
    %1890 = vmatpush.msra.mxu0 %v1759
    %1891 = vmatpush.msra.mxu0 %v1755
    %1892 = vmatmul.f32.gmra.mxu0 %v1744
    %v1893 = vpop.f32.mrf.mxu0
    %v1894 = vadd.f32 0.0, %v1893
    %1895 = vdwg.mxu0
    %v1896 = vadd.f32 %v1748, %v1834
    %v1897 = vadd.f32 %v1749, %v1854
    %v1898 = vadd.f32 %v1750, %v1874
    %v1899 = vadd.f32 %v1751, %v1894
    %v1900 = vxor.u32 %v1896, 2147483648
    %v1901 = vmul.f32 %v1900, 1.442695
    %v1902 = vpow.pop %v1901
    %v1903 = vadd.f32 %v1902, 1.0
    %v1904 = vrcp.pop %v1903
    %v1905 = vmul.f32 %v1903, %v1904
    %v1906 = vsub.f32 1.0, %v1905
    %v1907 = vmul.f32 %v1904, %v1906
    %v1908 = vadd.f32 %v1904, %v1907
    %vm1909 = vweird.f32 %v1903
    %vm1910 = vweird.f32 %v1904
    %vm1911 = vmor %vm1909, %vm1910
    %v1912 = vsel %vm1911, %v1904, %v1908
    %v1913 = vand.u32 2147483647, %v1903
    %vm1914 = vcmp.eq.f32.partialorder %v1913, 8.507059e+37
    %v1915 = vand.u32 %v1903, 2147483648
    %v1916 = vor.u32 1.1754944e-38, %v1915
    %v1917 = vsel %vm1914, %v1916, %v1912
    %v1918 = vmul.f32 1.0, %v1917
    %v1919 = vxor.u32 %v1897, 2147483648
    %v1920 = vmul.f32 %v1919, 1.442695
    %v1921 = vpow.pop %v1920
    %v1922 = vadd.f32 %v1921, 1.0
    %v1923 = vrcp.pop %v1922
    %v1924 = vmul.f32 %v1922, %v1923
    %v1925 = vsub.f32 1.0, %v1924
    %v1926 = vmul.f32 %v1923, %v1925
    %v1927 = vadd.f32 %v1923, %v1926
    %vm1928 = vweird.f32 %v1922
    %vm1929 = vweird.f32 %v1923
    %vm1930 = vmor %vm1928, %vm1929
    %v1931 = vsel %vm1930, %v1923, %v1927
    %v1932 = vand.u32 2147483647, %v1922
    %vm1933 = vcmp.eq.f32.partialorder %v1932, 8.507059e+37
    %v1934 = vand.u32 %v1922, 2147483648
    %v1935 = vor.u32 1.1754944e-38, %v1934
    %v1936 = vsel %vm1933, %v1935, %v1931
    %v1937 = vmul.f32 1.0, %v1936
    %v1938 = vtanh.pop %v1898
    %v1939 = vxor.u32 %v1899, 2147483648
    %v1940 = vmul.f32 %v1939, 1.442695
    %v1941 = vpow.pop %v1940
    %v1942 = vadd.f32 %v1941, 1.0
    %v1943 = vrcp.pop %v1942
    %v1944 = vmul.f32 %v1942, %v1943
    %v1945 = vsub.f32 1.0, %v1944
    %v1946 = vmul.f32 %v1943, %v1945
    %v1947 = vadd.f32 %v1943, %v1946
    %vm1948 = vweird.f32 %v1942
    %vm1949 = vweird.f32 %v1943
    %vm1950 = vmor %vm1948, %vm1949
    %v1951 = vsel %vm1950, %v1943, %v1947
    %v1952 = vand.u32 2147483647, %v1942
    %vm1953 = vcmp.eq.f32.partialorder %v1952, 8.507059e+37
    %v1954 = vand.u32 %v1942, 2147483648
    %v1955 = vor.u32 1.1754944e-38, %v1954
    %v1956 = vsel %vm1953, %v1955, %v1951
    %v1957 = vmul.f32 1.0, %v1956
    %v1958 = vmul.f32 %v1937, %v1742
    %v1959 = vmul.f32 %v1918, %v1938
    %v1960 = vadd.f32 %v1958, %v1959
    %v1961 = vtanh.pop %v1960
    %v1962 = vmul.f32 %v1957, %v1961
    %s1963 = scalar_lea.vmem [#allocation3], 48
    %1964 = vst [vmem:[%s1963] sm:$0xff] %v1962
    %s1965 = scalar_lea.vmem [#allocation2], 224
    %v1966 = vld [vmem:[%s1965] sm:$0xff]
    %v1967 = vld [vmem:[%s1965 + $0x8] sm:$0xff]
    %v1968 = vld [vmem:[%s1965 + $0x10] sm:$0xff]
    %v1969 = vld [vmem:[%s1965 + $0x18] sm:$0xff]
    %v1970 = vld [vmem:[#allocation10] sm:$0xff]
    %v1971 = vld [vmem:[#allocation10 + $0x8] sm:$0xff]
    %v1972 = vld [vmem:[#allocation10 + $0x10] sm:$0xff]
    %v1973 = vld [vmem:[#allocation10 + $0x18] sm:$0xff]
    %v1974 = vld [vmem:[#allocation10 + $0x20] sm:$0xff]
    %v1975 = vld [vmem:[#allocation10 + $0x28] sm:$0xff]
    %v1976 = vld [vmem:[#allocation10 + $0x30] sm:$0xff]
    %v1977 = vld [vmem:[#allocation10 + $0x38] sm:$0xff]
    %v1978 = vld [vmem:[#allocation10 + $0x40] sm:$0xff]
    %v1979 = vld [vmem:[#allocation10 + $0x48] sm:$0xff]
    %v1980 = vld [vmem:[#allocation10 + $0x50] sm:$0xff]
    %v1981 = vld [vmem:[#allocation10 + $0x58] sm:$0xff]
    %v1982 = vld [vmem:[#allocation10 + $0x60] sm:$0xff]
    %v1983 = vld [vmem:[#allocation10 + $0x68] sm:$0xff]
    %v1984 = vld [vmem:[#allocation10 + $0x70] sm:$0xff]
    %v1985 = vld [vmem:[#allocation10 + $0x78] sm:$0xff]
    %v1986 = vld [vmem:[#allocation10 + $0x80] sm:$0xff]
    %v1987 = vld [vmem:[#allocation10 + $0x88] sm:$0xff]
    %v1988 = vld [vmem:[#allocation10 + $0x90] sm:$0xff]
    %v1989 = vld [vmem:[#allocation10 + $0x98] sm:$0xff]
    %v1990 = vld [vmem:[#allocation10 + $0xa0] sm:$0xff]
    %v1991 = vld [vmem:[#allocation10 + $0xa8] sm:$0xff]
    %v1992 = vld [vmem:[#allocation10 + $0xb0] sm:$0xff]
    %v1993 = vld [vmem:[#allocation10 + $0xb8] sm:$0xff]
    %v1994 = vld [vmem:[#allocation10 + $0xc0] sm:$0xff]
    %v1995 = vld [vmem:[#allocation10 + $0xc8] sm:$0xff]
    %v1996 = vld [vmem:[#allocation10 + $0xd0] sm:$0xff]
    %v1997 = vld [vmem:[#allocation10 + $0xd8] sm:$0xff]
    %v1998 = vld [vmem:[#allocation10 + $0xe0] sm:$0xff]
    %v1999 = vld [vmem:[#allocation10 + $0xe8] sm:$0xff]
    %v2000 = vld [vmem:[#allocation10 + $0xf0] sm:$0xff]
    %v2001 = vld [vmem:[#allocation10 + $0xf8] sm:$0xff]
    %v2002 = vld [vmem:[#allocation10 + $0x100] sm:$0xff]
    %v2003 = vld [vmem:[#allocation10 + $0x108] sm:$0xff]
    %v2004 = vld [vmem:[#allocation10 + $0x110] sm:$0xff]
    %v2005 = vld [vmem:[#allocation10 + $0x118] sm:$0xff]
    %v2006 = vld [vmem:[#allocation10 + $0x120] sm:$0xff]
    %v2007 = vld [vmem:[#allocation10 + $0x128] sm:$0xff]
    %v2008 = vld [vmem:[#allocation10 + $0x130] sm:$0xff]
    %v2009 = vld [vmem:[#allocation10 + $0x138] sm:$0xff]
    %v2010 = vld [vmem:[#allocation10 + $0x140] sm:$0xff]
    %v2011 = vld [vmem:[#allocation10 + $0x148] sm:$0xff]
    %v2012 = vld [vmem:[#allocation10 + $0x150] sm:$0xff]
    %v2013 = vld [vmem:[#allocation10 + $0x158] sm:$0xff]
    %v2014 = vld [vmem:[#allocation10 + $0x160] sm:$0xff]
    %v2015 = vld [vmem:[#allocation10 + $0x168] sm:$0xff]
    %v2016 = vld [vmem:[#allocation10 + $0x170] sm:$0xff]
    %v2017 = vld [vmem:[#allocation10 + $0x178] sm:$0xff]
    %v2018 = vld [vmem:[#allocation10 + $0x180] sm:$0xff]
    %v2019 = vld [vmem:[#allocation10 + $0x188] sm:$0xff]
    %v2020 = vld [vmem:[#allocation10 + $0x190] sm:$0xff]
    %v2021 = vld [vmem:[#allocation10 + $0x198] sm:$0xff]
    %v2022 = vld [vmem:[#allocation10 + $0x1a0] sm:$0xff]
    %v2023 = vld [vmem:[#allocation10 + $0x1a8] sm:$0xff]
    %v2024 = vld [vmem:[#allocation10 + $0x1b0] sm:$0xff]
    %v2025 = vld [vmem:[#allocation10 + $0x1b8] sm:$0xff]
    %v2026 = vld [vmem:[#allocation10 + $0x1c0] sm:$0xff]
    %v2027 = vld [vmem:[#allocation10 + $0x1c8] sm:$0xff]
    %v2028 = vld [vmem:[#allocation10 + $0x1d0] sm:$0xff]
    %v2029 = vld [vmem:[#allocation10 + $0x1d8] sm:$0xff]
    %v2030 = vld [vmem:[#allocation10 + $0x1e0] sm:$0xff]
    %v2031 = vld [vmem:[#allocation10 + $0x1e8] sm:$0xff]
    %v2032 = vld [vmem:[#allocation10 + $0x1f0] sm:$0xff]
    %v2033 = vld [vmem:[#allocation10 + $0x1f8] sm:$0xff]
    %2034 = vmatpush.msra.mxu0 %v2030
    %2035 = vmatpush.msra.mxu0 %v2026
    %2036 = vmatpush.msra.mxu0 %v2022
    %2037 = vmatpush.msra.mxu0 %v2018
    %2038 = vmatpush.msra.mxu0 %v2014
    %2039 = vmatpush.msra.mxu0 %v2010
    %2040 = vmatpush.msra.mxu0 %v2006
    %2041 = vmatpush.msra.mxu0 %v2002
    %2042 = vmatpush.msra.mxu0 %v1998
    %2043 = vmatpush.msra.mxu0 %v1994
    %2044 = vmatpush.msra.mxu0 %v1990
    %2045 = vmatpush.msra.mxu0 %v1986
    %2046 = vmatpush.msra.mxu0 %v1982
    %2047 = vmatpush.msra.mxu0 %v1978
    %2048 = vmatpush.msra.mxu0 %v1974
    %2049 = vmatpush.msra.mxu0 %v1970
    %2050 = vmatmul.f32.gmra.mxu0 %v1962
    %v2051 = vpop.f32.mrf.mxu0
    %v2052 = vadd.f32 0.0, %v2051
    %2053 = vdwg.mxu0
    %2054 = vmatpush.msra.mxu0 %v2031
    %2055 = vmatpush.msra.mxu0 %v2027
    %2056 = vmatpush.msra.mxu0 %v2023
    %2057 = vmatpush.msra.mxu0 %v2019
    %2058 = vmatpush.msra.mxu0 %v2015
    %2059 = vmatpush.msra.mxu0 %v2011
    %2060 = vmatpush.msra.mxu0 %v2007
    %2061 = vmatpush.msra.mxu0 %v2003
    %2062 = vmatpush.msra.mxu0 %v1999
    %2063 = vmatpush.msra.mxu0 %v1995
    %2064 = vmatpush.msra.mxu0 %v1991
    %2065 = vmatpush.msra.mxu0 %v1987
    %2066 = vmatpush.msra.mxu0 %v1983
    %2067 = vmatpush.msra.mxu0 %v1979
    %2068 = vmatpush.msra.mxu0 %v1975
    %2069 = vmatpush.msra.mxu0 %v1971
    %2070 = vmatmul.f32.gmra.mxu0 %v1962
    %v2071 = vpop.f32.mrf.mxu0
    %v2072 = vadd.f32 0.0, %v2071
    %2073 = vdwg.mxu0
    %2074 = vmatpush.msra.mxu0 %v2032
    %2075 = vmatpush.msra.mxu0 %v2028
    %2076 = vmatpush.msra.mxu0 %v2024
    %2077 = vmatpush.msra.mxu0 %v2020
    %2078 = vmatpush.msra.mxu0 %v2016
    %2079 = vmatpush.msra.mxu0 %v2012
    %2080 = vmatpush.msra.mxu0 %v2008
    %2081 = vmatpush.msra.mxu0 %v2004
    %2082 = vmatpush.msra.mxu0 %v2000
    %2083 = vmatpush.msra.mxu0 %v1996
    %2084 = vmatpush.msra.mxu0 %v1992
    %2085 = vmatpush.msra.mxu0 %v1988
    %2086 = vmatpush.msra.mxu0 %v1984
    %2087 = vmatpush.msra.mxu0 %v1980
    %2088 = vmatpush.msra.mxu0 %v1976
    %2089 = vmatpush.msra.mxu0 %v1972
    %2090 = vmatmul.f32.gmra.mxu0 %v1962
    %v2091 = vpop.f32.mrf.mxu0
    %v2092 = vadd.f32 0.0, %v2091
    %2093 = vdwg.mxu0
    %2094 = vmatpush.msra.mxu0 %v2033
    %2095 = vmatpush.msra.mxu0 %v2029
    %2096 = vmatpush.msra.mxu0 %v2025
    %2097 = vmatpush.msra.mxu0 %v2021
    %2098 = vmatpush.msra.mxu0 %v2017
    %2099 = vmatpush.msra.mxu0 %v2013
    %2100 = vmatpush.msra.mxu0 %v2009
    %2101 = vmatpush.msra.mxu0 %v2005
    %2102 = vmatpush.msra.mxu0 %v2001
    %2103 = vmatpush.msra.mxu0 %v1997
    %2104 = vmatpush.msra.mxu0 %v1993
    %2105 = vmatpush.msra.mxu0 %v1989
    %2106 = vmatpush.msra.mxu0 %v1985
    %2107 = vmatpush.msra.mxu0 %v1981
    %2108 = vmatpush.msra.mxu0 %v1977
    %2109 = vmatpush.msra.mxu0 %v1973
    %2110 = vmatmul.f32.gmra.mxu0 %v1962
    %v2111 = vpop.f32.mrf.mxu0
    %v2112 = vadd.f32 0.0, %v2111
    %2113 = vdwg.mxu0
    %v2114 = vadd.f32 %v1966, %v2052
    %v2115 = vadd.f32 %v1967, %v2072
    %v2116 = vadd.f32 %v1968, %v2092
    %v2117 = vadd.f32 %v1969, %v2112
    %v2118 = vxor.u32 %v2114, 2147483648
    %v2119 = vmul.f32 %v2118, 1.442695
    %v2120 = vpow.pop %v2119
    %v2121 = vadd.f32 %v2120, 1.0
    %v2122 = vrcp.pop %v2121
    %v2123 = vmul.f32 %v2121, %v2122
    %v2124 = vsub.f32 1.0, %v2123
    %v2125 = vmul.f32 %v2122, %v2124
    %v2126 = vadd.f32 %v2122, %v2125
    %vm2127 = vweird.f32 %v2121
    %vm2128 = vweird.f32 %v2122
    %vm2129 = vmor %vm2127, %vm2128
    %v2130 = vsel %vm2129, %v2122, %v2126
    %v2131 = vand.u32 2147483647, %v2121
    %vm2132 = vcmp.eq.f32.partialorder %v2131, 8.507059e+37
    %v2133 = vand.u32 %v2121, 2147483648
    %v2134 = vor.u32 1.1754944e-38, %v2133
    %v2135 = vsel %vm2132, %v2134, %v2130
    %v2136 = vmul.f32 1.0, %v2135
    %v2137 = vxor.u32 %v2115, 2147483648
    %v2138 = vmul.f32 %v2137, 1.442695
    %v2139 = vpow.pop %v2138
    %v2140 = vadd.f32 %v2139, 1.0
    %v2141 = vrcp.pop %v2140
    %v2142 = vmul.f32 %v2140, %v2141
    %v2143 = vsub.f32 1.0, %v2142
    %v2144 = vmul.f32 %v2141, %v2143
    %v2145 = vadd.f32 %v2141, %v2144
    %vm2146 = vweird.f32 %v2140
    %vm2147 = vweird.f32 %v2141
    %vm2148 = vmor %vm2146, %vm2147
    %v2149 = vsel %vm2148, %v2141, %v2145
    %v2150 = vand.u32 2147483647, %v2140
    %vm2151 = vcmp.eq.f32.partialorder %v2150, 8.507059e+37
    %v2152 = vand.u32 %v2140, 2147483648
    %v2153 = vor.u32 1.1754944e-38, %v2152
    %v2154 = vsel %vm2151, %v2153, %v2149
    %v2155 = vmul.f32 1.0, %v2154
    %v2156 = vtanh.pop %v2116
    %v2157 = vxor.u32 %v2117, 2147483648
    %v2158 = vmul.f32 %v2157, 1.442695
    %v2159 = vpow.pop %v2158
    %v2160 = vadd.f32 %v2159, 1.0
    %v2161 = vrcp.pop %v2160
    %v2162 = vmul.f32 %v2160, %v2161
    %v2163 = vsub.f32 1.0, %v2162
    %v2164 = vmul.f32 %v2161, %v2163
    %v2165 = vadd.f32 %v2161, %v2164
    %vm2166 = vweird.f32 %v2160
    %vm2167 = vweird.f32 %v2161
    %vm2168 = vmor %vm2166, %vm2167
    %v2169 = vsel %vm2168, %v2161, %v2165
    %v2170 = vand.u32 2147483647, %v2160
    %vm2171 = vcmp.eq.f32.partialorder %v2170, 8.507059e+37
    %v2172 = vand.u32 %v2160, 2147483648
    %v2173 = vor.u32 1.1754944e-38, %v2172
    %v2174 = vsel %vm2171, %v2173, %v2169
    %v2175 = vmul.f32 1.0, %v2174
    %v2176 = vmul.f32 %v2155, %v1960
    %v2177 = vmul.f32 %v2136, %v2156
    %v2178 = vadd.f32 %v2176, %v2177
    %v2179 = vtanh.pop %v2178
    %v2180 = vmul.f32 %v2175, %v2179
    %s2181 = scalar_lea.vmem [#allocation3], 56
    %2182 = vst [vmem:[%s2181] sm:$0xff] %v2180
    %v2183 = vld [vmem:[#allocation3] sm:$0xff]
    %v2184 = vld [vmem:[#allocation3 + $0x8] sm:$0xff]
    %v2185 = vld [vmem:[#allocation3 + $0x10] sm:$0xff]
    %v2186 = vld [vmem:[#allocation3 + $0x18] sm:$0xff]
    %v2187 = vld [vmem:[#allocation3 + $0x20] sm:$0xff]
    %v2188 = vld [vmem:[#allocation3 + $0x28] sm:$0xff]
    %v2189 = vld [vmem:[#allocation3 + $0x30] sm:$0xff]
    %v2190 = vld [vmem:[#allocation3 + $0x38] sm:$0xff]
    %v2191 = vld [vmem:[#allocation9] sm:$0xff]
    %v2192 = vld [vmem:[#allocation9 + $0x8] sm:$0xff]
    %v2193 = vld [vmem:[#allocation9 + $0x10] sm:$0xff]
    %v2194 = vld [vmem:[#allocation9 + $0x18] sm:$0xff]
    %v2195 = vld [vmem:[#allocation9 + $0x20] sm:$0xff]
    %v2196 = vld [vmem:[#allocation9 + $0x28] sm:$0xff]
    %v2197 = vld [vmem:[#allocation9 + $0x30] sm:$0xff]
    %v2198 = vld [vmem:[#allocation9 + $0x38] sm:$0xff]
    %v2199 = vld [vmem:[#allocation9 + $0x40] sm:$0xff]
    %v2200 = vld [vmem:[#allocation9 + $0x48] sm:$0xff]
    %v2201 = vld [vmem:[#allocation9 + $0x50] sm:$0xff]
    %v2202 = vld [vmem:[#allocation9 + $0x58] sm:$0xff]
    %v2203 = vld [vmem:[#allocation9 + $0x60] sm:$0xff]
    %v2204 = vld [vmem:[#allocation9 + $0x68] sm:$0xff]
    %v2205 = vld [vmem:[#allocation9 + $0x70] sm:$0xff]
    %v2206 = vld [vmem:[#allocation9 + $0x78] sm:$0xff]
    %v2207 = vld [vmem:[#allocation9 + $0x80] sm:$0xff]
    %v2208 = vld [vmem:[#allocation9 + $0x88] sm:$0xff]
    %v2209 = vld [vmem:[#allocation9 + $0x90] sm:$0xff]
    %v2210 = vld [vmem:[#allocation9 + $0x98] sm:$0xff]
    %v2211 = vld [vmem:[#allocation9 + $0xa0] sm:$0xff]
    %v2212 = vld [vmem:[#allocation9 + $0xa8] sm:$0xff]
    %v2213 = vld [vmem:[#allocation9 + $0xb0] sm:$0xff]
    %v2214 = vld [vmem:[#allocation9 + $0xb8] sm:$0xff]
    %v2215 = vld [vmem:[#allocation9 + $0xc0] sm:$0xff]
    %v2216 = vld [vmem:[#allocation9 + $0xc8] sm:$0xff]
    %v2217 = vld [vmem:[#allocation9 + $0xd0] sm:$0xff]
    %v2218 = vld [vmem:[#allocation9 + $0xd8] sm:$0xff]
    %v2219 = vld [vmem:[#allocation9 + $0xe0] sm:$0xff]
    %v2220 = vld [vmem:[#allocation9 + $0xe8] sm:$0xff]
    %v2221 = vld [vmem:[#allocation9 + $0xf0] sm:$0xff]
    %v2222 = vld [vmem:[#allocation9 + $0xf8] sm:$0xff]
    %v2223 = vld [vmem:[#allocation9 + $0x100] sm:$0xff]
    %v2224 = vld [vmem:[#allocation9 + $0x108] sm:$0xff]
    %v2225 = vld [vmem:[#allocation9 + $0x110] sm:$0xff]
    %v2226 = vld [vmem:[#allocation9 + $0x118] sm:$0xff]
    %v2227 = vld [vmem:[#allocation9 + $0x120] sm:$0xff]
    %v2228 = vld [vmem:[#allocation9 + $0x128] sm:$0xff]
    %v2229 = vld [vmem:[#allocation9 + $0x130] sm:$0xff]
    %v2230 = vld [vmem:[#allocation9 + $0x138] sm:$0xff]
    %v2231 = vld [vmem:[#allocation9 + $0x140] sm:$0xff]
    %v2232 = vld [vmem:[#allocation9 + $0x148] sm:$0xff]
    %v2233 = vld [vmem:[#allocation9 + $0x150] sm:$0xff]
    %v2234 = vld [vmem:[#allocation9 + $0x158] sm:$0xff]
    %v2235 = vld [vmem:[#allocation9 + $0x160] sm:$0xff]
    %v2236 = vld [vmem:[#allocation9 + $0x168] sm:$0xff]
    %v2237 = vld [vmem:[#allocation9 + $0x170] sm:$0xff]
    %v2238 = vld [vmem:[#allocation9 + $0x178] sm:$0xff]
    %v2239 = vld [vmem:[#allocation9 + $0x180] sm:$0xff]
    %v2240 = vld [vmem:[#allocation9 + $0x188] sm:$0xff]
    %v2241 = vld [vmem:[#allocation9 + $0x190] sm:$0xff]
    %v2242 = vld [vmem:[#allocation9 + $0x198] sm:$0xff]
    %v2243 = vld [vmem:[#allocation9 + $0x1a0] sm:$0xff]
    %v2244 = vld [vmem:[#allocation9 + $0x1a8] sm:$0xff]
    %v2245 = vld [vmem:[#allocation9 + $0x1b0] sm:$0xff]
    %v2246 = vld [vmem:[#allocation9 + $0x1b8] sm:$0xff]
    %v2247 = vld [vmem:[#allocation9 + $0x1c0] sm:$0xff]
    %v2248 = vld [vmem:[#allocation9 + $0x1c8] sm:$0xff]
    %v2249 = vld [vmem:[#allocation9 + $0x1d0] sm:$0xff]
    %v2250 = vld [vmem:[#allocation9 + $0x1d8] sm:$0xff]
    %v2251 = vld [vmem:[#allocation9 + $0x1e0] sm:$0xff]
    %v2252 = vld [vmem:[#allocation9 + $0x1e8] sm:$0xff]
    %v2253 = vld [vmem:[#allocation9 + $0x1f0] sm:$0xff]
    %v2254 = vld [vmem:[#allocation9 + $0x1f8] sm:$0xff]
    %2255 = vmatpush.msra.mxu0 %v2251
    %2256 = vmatpush.msra.mxu0 %v2247
    %2257 = vmatpush.msra.mxu0 %v2243
    %2258 = vmatpush.msra.mxu0 %v2239
    %2259 = vmatpush.msra.mxu0 %v2235
    %2260 = vmatpush.msra.mxu0 %v2231
    %2261 = vmatpush.msra.mxu0 %v2227
    %2262 = vmatpush.msra.mxu0 %v2223
    %2263 = vmatpush.msra.mxu0 %v2219
    %2264 = vmatpush.msra.mxu0 %v2215
    %2265 = vmatpush.msra.mxu0 %v2211
    %2266 = vmatpush.msra.mxu0 %v2207
    %2267 = vmatpush.msra.mxu0 %v2203
    %2268 = vmatpush.msra.mxu0 %v2199
    %2269 = vmatpush.msra.mxu0 %v2195
    %2270 = vmatpush.msra.mxu0 %v2191
    %2271 = vmatmul.f32.gmra.mxu0 %v2183
    %v2272 = vpop.f32.mrf.mxu0
    %v2273 = vadd.f32 0.0, %v2272
    %2274 = vmatmul.f32.gmra.mxu0 %v2184
    %v2275 = vpop.f32.mrf.mxu0
    %v2276 = vadd.f32 0.0, %v2275
    %2277 = vmatmul.f32.gmra.mxu0 %v2185
    %v2278 = vpop.f32.mrf.mxu0
    %v2279 = vadd.f32 0.0, %v2278
    %2280 = vmatmul.f32.gmra.mxu0 %v2186
    %v2281 = vpop.f32.mrf.mxu0
    %v2282 = vadd.f32 0.0, %v2281
    %2283 = vmatmul.f32.gmra.mxu0 %v2187
    %v2284 = vpop.f32.mrf.mxu0
    %v2285 = vadd.f32 0.0, %v2284
    %2286 = vmatmul.f32.gmra.mxu0 %v2188
    %v2287 = vpop.f32.mrf.mxu0
    %v2288 = vadd.f32 0.0, %v2287
    %2289 = vmatmul.f32.gmra.mxu0 %v2189
    %v2290 = vpop.f32.mrf.mxu0
    %v2291 = vadd.f32 0.0, %v2290
    %2292 = vmatmul.f32.gmra.mxu0 %v2190
    %v2293 = vpop.f32.mrf.mxu0
    %v2294 = vadd.f32 0.0, %v2293
    %2295 = vdwg.mxu0
    %2296 = vmatpush.msra.mxu0 %v2252
    %2297 = vmatpush.msra.mxu0 %v2248
    %2298 = vmatpush.msra.mxu0 %v2244
    %2299 = vmatpush.msra.mxu0 %v2240
    %2300 = vmatpush.msra.mxu0 %v2236
    %2301 = vmatpush.msra.mxu0 %v2232
    %2302 = vmatpush.msra.mxu0 %v2228
    %2303 = vmatpush.msra.mxu0 %v2224
    %2304 = vmatpush.msra.mxu0 %v2220
    %2305 = vmatpush.msra.mxu0 %v2216
    %2306 = vmatpush.msra.mxu0 %v2212
    %2307 = vmatpush.msra.mxu0 %v2208
    %2308 = vmatpush.msra.mxu0 %v2204
    %2309 = vmatpush.msra.mxu0 %v2200
    %2310 = vmatpush.msra.mxu0 %v2196
    %2311 = vmatpush.msra.mxu0 %v2192
    %2312 = vmatmul.f32.gmra.mxu0 %v2183
    %v2313 = vpop.f32.mrf.mxu0
    %v2314 = vadd.f32 0.0, %v2313
    %2315 = vmatmul.f32.gmra.mxu0 %v2184
    %v2316 = vpop.f32.mrf.mxu0
    %v2317 = vadd.f32 0.0, %v2316
    %2318 = vmatmul.f32.gmra.mxu0 %v2185
    %v2319 = vpop.f32.mrf.mxu0
    %v2320 = vadd.f32 0.0, %v2319
    %2321 = vmatmul.f32.gmra.mxu0 %v2186
    %v2322 = vpop.f32.mrf.mxu0
    %v2323 = vadd.f32 0.0, %v2322
    %2324 = vmatmul.f32.gmra.mxu0 %v2187
    %v2325 = vpop.f32.mrf.mxu0
    %v2326 = vadd.f32 0.0, %v2325
    %2327 = vmatmul.f32.gmra.mxu0 %v2188
    %v2328 = vpop.f32.mrf.mxu0
    %v2329 = vadd.f32 0.0, %v2328
    %2330 = vmatmul.f32.gmra.mxu0 %v2189
    %v2331 = vpop.f32.mrf.mxu0
    %v2332 = vadd.f32 0.0, %v2331
    %2333 = vmatmul.f32.gmra.mxu0 %v2190
    %v2334 = vpop.f32.mrf.mxu0
    %v2335 = vadd.f32 0.0, %v2334
    %2336 = vdwg.mxu0
    %2337 = vmatpush.msra.mxu0 %v2253
    %2338 = vmatpush.msra.mxu0 %v2249
    %2339 = vmatpush.msra.mxu0 %v2245
    %2340 = vmatpush.msra.mxu0 %v2241
    %2341 = vmatpush.msra.mxu0 %v2237
    %2342 = vmatpush.msra.mxu0 %v2233
    %2343 = vmatpush.msra.mxu0 %v2229
    %2344 = vmatpush.msra.mxu0 %v2225
    %2345 = vmatpush.msra.mxu0 %v2221
    %2346 = vmatpush.msra.mxu0 %v2217
    %2347 = vmatpush.msra.mxu0 %v2213
    %2348 = vmatpush.msra.mxu0 %v2209
    %2349 = vmatpush.msra.mxu0 %v2205
    %2350 = vmatpush.msra.mxu0 %v2201
    %2351 = vmatpush.msra.mxu0 %v2197
    %2352 = vmatpush.msra.mxu0 %v2193
    %2353 = vmatmul.f32.gmra.mxu0 %v2183
    %v2354 = vpop.f32.mrf.mxu0
    %v2355 = vadd.f32 0.0, %v2354
    %2356 = vmatmul.f32.gmra.mxu0 %v2184
    %v2357 = vpop.f32.mrf.mxu0
    %v2358 = vadd.f32 0.0, %v2357
    %2359 = vmatmul.f32.gmra.mxu0 %v2185
    %v2360 = vpop.f32.mrf.mxu0
    %v2361 = vadd.f32 0.0, %v2360
    %2362 = vmatmul.f32.gmra.mxu0 %v2186
    %v2363 = vpop.f32.mrf.mxu0
    %v2364 = vadd.f32 0.0, %v2363
    %2365 = vmatmul.f32.gmra.mxu0 %v2187
    %v2366 = vpop.f32.mrf.mxu0
    %v2367 = vadd.f32 0.0, %v2366
    %2368 = vmatmul.f32.gmra.mxu0 %v2188
    %v2369 = vpop.f32.mrf.mxu0
    %v2370 = vadd.f32 0.0, %v2369
    %2371 = vmatmul.f32.gmra.mxu0 %v2189
    %v2372 = vpop.f32.mrf.mxu0
    %v2373 = vadd.f32 0.0, %v2372
    %2374 = vmatmul.f32.gmra.mxu0 %v2190
    %v2375 = vpop.f32.mrf.mxu0
    %v2376 = vadd.f32 0.0, %v2375
    %2377 = vdwg.mxu0
    %2378 = vmatpush.msra.mxu0 %v2254
    %2379 = vmatpush.msra.mxu0 %v2250
    %2380 = vmatpush.msra.mxu0 %v2246
    %2381 = vmatpush.msra.mxu0 %v2242
    %2382 = vmatpush.msra.mxu0 %v2238
    %2383 = vmatpush.msra.mxu0 %v2234
    %2384 = vmatpush.msra.mxu0 %v2230
    %2385 = vmatpush.msra.mxu0 %v2226
    %2386 = vmatpush.msra.mxu0 %v2222
    %2387 = vmatpush.msra.mxu0 %v2218
    %2388 = vmatpush.msra.mxu0 %v2214
    %2389 = vmatpush.msra.mxu0 %v2210
    %2390 = vmatpush.msra.mxu0 %v2206
    %2391 = vmatpush.msra.mxu0 %v2202
    %2392 = vmatpush.msra.mxu0 %v2198
    %2393 = vmatpush.msra.mxu0 %v2194
    %2394 = vmatmul.f32.gmra.mxu0 %v2183
    %v2395 = vpop.f32.mrf.mxu0
    %v2396 = vadd.f32 0.0, %v2395
    %2397 = vmatmul.f32.gmra.mxu0 %v2184
    %v2398 = vpop.f32.mrf.mxu0
    %v2399 = vadd.f32 0.0, %v2398
    %2400 = vmatmul.f32.gmra.mxu0 %v2185
    %v2401 = vpop.f32.mrf.mxu0
    %v2402 = vadd.f32 0.0, %v2401
    %2403 = vmatmul.f32.gmra.mxu0 %v2186
    %v2404 = vpop.f32.mrf.mxu0
    %v2405 = vadd.f32 0.0, %v2404
    %2406 = vmatmul.f32.gmra.mxu0 %v2187
    %v2407 = vpop.f32.mrf.mxu0
    %v2408 = vadd.f32 0.0, %v2407
    %2409 = vmatmul.f32.gmra.mxu0 %v2188
    %v2410 = vpop.f32.mrf.mxu0
    %v2411 = vadd.f32 0.0, %v2410
    %2412 = vmatmul.f32.gmra.mxu0 %v2189
    %v2413 = vpop.f32.mrf.mxu0
    %v2414 = vadd.f32 0.0, %v2413
    %2415 = vmatmul.f32.gmra.mxu0 %v2190
    %v2416 = vpop.f32.mrf.mxu0
    %v2417 = vadd.f32 0.0, %v2416
    %2418 = vdwg.mxu0
    %v2419 = vld [vmem:[%s7] sm:$0xf]
    %v2421 = vperm.slane %v2419, 0
    %v2422 = vperm.slane %v2419, 1
    %v2423 = vperm.slane %v2419, 2
    %v2424 = vperm.slane %v2419, 3
    %v2429 = vadd.f32 %v2273, %v2421
    %v2430 = vadd.f32 %v2314, %v2422
    %v2431 = vadd.f32 %v2355, %v2423
    %v2432 = vadd.f32 %v2396, %v2424
    %v2433 = vadd.f32 %v2276, %v2421
    %v2434 = vadd.f32 %v2317, %v2422
    %v2435 = vadd.f32 %v2358, %v2423
    %v2436 = vadd.f32 %v2399, %v2424
    %v2437 = vadd.f32 %v2279, %v2421
    %v2438 = vadd.f32 %v2320, %v2422
    %v2439 = vadd.f32 %v2361, %v2423
    %v2440 = vadd.f32 %v2402, %v2424
    %v2441 = vadd.f32 %v2282, %v2421
    %v2442 = vadd.f32 %v2323, %v2422
    %v2443 = vadd.f32 %v2364, %v2423
    %v2444 = vadd.f32 %v2405, %v2424
    %v2445 = vadd.f32 %v2285, %v2421
    %v2446 = vadd.f32 %v2326, %v2422
    %v2447 = vadd.f32 %v2367, %v2423
    %v2448 = vadd.f32 %v2408, %v2424
    %v2449 = vadd.f32 %v2288, %v2421
    %v2450 = vadd.f32 %v2329, %v2422
    %v2451 = vadd.f32 %v2370, %v2423
    %v2452 = vadd.f32 %v2411, %v2424
    %v2453 = vadd.f32 %v2291, %v2421
    %v2454 = vadd.f32 %v2332, %v2422
    %v2455 = vadd.f32 %v2373, %v2423
    %v2456 = vadd.f32 %v2414, %v2424
    %v2457 = vadd.f32 %v2294, %v2421
    %v2458 = vadd.f32 %v2335, %v2422
    %v2459 = vadd.f32 %v2376, %v2423
    %v2460 = vadd.f32 %v2417, %v2424
    %2461 = vst [vmem:[#allocation2] sm:$0xff] %v2429
    %2462 = vst [vmem:[#allocation2 + $0x8] sm:$0xff] %v2430
    %2463 = vst [vmem:[#allocation2 + $0x10] sm:$0xff] %v2431
    %2464 = vst [vmem:[#allocation2 + $0x18] sm:$0xff] %v2432
    %2465 = vst [vmem:[#allocation2 + $0x20] sm:$0xff] %v2433
    %2466 = vst [vmem:[#allocation2 + $0x28] sm:$0xff] %v2434
    %2467 = vst [vmem:[#allocation2 + $0x30] sm:$0xff] %v2435
    %2468 = vst [vmem:[#allocation2 + $0x38] sm:$0xff] %v2436
    %2469 = vst [vmem:[#allocation2 + $0x40] sm:$0xff] %v2437
    %2470 = vst [vmem:[#allocation2 + $0x48] sm:$0xff] %v2438
    %2471 = vst [vmem:[#allocation2 + $0x50] sm:$0xff] %v2439
    %2472 = vst [vmem:[#allocation2 + $0x58] sm:$0xff] %v2440
    %2473 = vst [vmem:[#allocation2 + $0x60] sm:$0xff] %v2441
    %2474 = vst [vmem:[#allocation2 + $0x68] sm:$0xff] %v2442
    %2475 = vst [vmem:[#allocation2 + $0x70] sm:$0xff] %v2443
    %2476 = vst [vmem:[#allocation2 + $0x78] sm:$0xff] %v2444
    %2477 = vst [vmem:[#allocation2 + $0x80] sm:$0xff] %v2445
    %2478 = vst [vmem:[#allocation2 + $0x88] sm:$0xff] %v2446
    %2479 = vst [vmem:[#allocation2 + $0x90] sm:$0xff] %v2447
    %2480 = vst [vmem:[#allocation2 + $0x98] sm:$0xff] %v2448
    %2481 = vst [vmem:[#allocation2 + $0xa0] sm:$0xff] %v2449
    %2482 = vst [vmem:[#allocation2 + $0xa8] sm:$0xff] %v2450
    %2483 = vst [vmem:[#allocation2 + $0xb0] sm:$0xff] %v2451
    %2484 = vst [vmem:[#allocation2 + $0xb8] sm:$0xff] %v2452
    %2485 = vst [vmem:[#allocation2 + $0xc0] sm:$0xff] %v2453
    %2486 = vst [vmem:[#allocation2 + $0xc8] sm:$0xff] %v2454
    %2487 = vst [vmem:[#allocation2 + $0xd0] sm:$0xff] %v2455
    %2488 = vst [vmem:[#allocation2 + $0xd8] sm:$0xff] %v2456
    %2489 = vst [vmem:[#allocation2 + $0xe0] sm:$0xff] %v2457
    %2490 = vst [vmem:[#allocation2 + $0xe8] sm:$0xff] %v2458
    %2491 = vst [vmem:[#allocation2 + $0xf0] sm:$0xff] %v2459
    %2492 = vst [vmem:[#allocation2 + $0xf8] sm:$0xff] %v2460
    %v2493 = vld [vmem:[#allocation2] sm:$0xff]
    %v2494 = vld [vmem:[#allocation2 + $0x8] sm:$0xff]
    %v2495 = vld [vmem:[#allocation2 + $0x10] sm:$0xff]
    %v2496 = vld [vmem:[#allocation2 + $0x18] sm:$0xff]
    %v2497 = vld [vmem:[#allocation12] sm:$0xff]
    %v2498 = vld [vmem:[#allocation12 + $0x8] sm:$0xff]
    %v2499 = vld [vmem:[#allocation12 + $0x10] sm:$0xff]
    %v2500 = vld [vmem:[#allocation12 + $0x18] sm:$0xff]
    %v2501 = vld [vmem:[#allocation12 + $0x20] sm:$0xff]
    %v2502 = vld [vmem:[#allocation12 + $0x28] sm:$0xff]
    %v2503 = vld [vmem:[#allocation12 + $0x30] sm:$0xff]
    %v2504 = vld [vmem:[#allocation12 + $0x38] sm:$0xff]
    %v2505 = vld [vmem:[#allocation12 + $0x40] sm:$0xff]
    %v2506 = vld [vmem:[#allocation12 + $0x48] sm:$0xff]
    %v2507 = vld [vmem:[#allocation12 + $0x50] sm:$0xff]
    %v2508 = vld [vmem:[#allocation12 + $0x58] sm:$0xff]
    %v2509 = vld [vmem:[#allocation12 + $0x60] sm:$0xff]
    %v2510 = vld [vmem:[#allocation12 + $0x68] sm:$0xff]
    %v2511 = vld [vmem:[#allocation12 + $0x70] sm:$0xff]
    %v2512 = vld [vmem:[#allocation12 + $0x78] sm:$0xff]
    %v2513 = vld [vmem:[#allocation12 + $0x80] sm:$0xff]
    %v2514 = vld [vmem:[#allocation12 + $0x88] sm:$0xff]
    %v2515 = vld [vmem:[#allocation12 + $0x90] sm:$0xff]
    %v2516 = vld [vmem:[#allocation12 + $0x98] sm:$0xff]
    %v2517 = vld [vmem:[#allocation12 + $0xa0] sm:$0xff]
    %v2518 = vld [vmem:[#allocation12 + $0xa8] sm:$0xff]
    %v2519 = vld [vmem:[#allocation12 + $0xb0] sm:$0xff]
    %v2520 = vld [vmem:[#allocation12 + $0xb8] sm:$0xff]
    %v2521 = vld [vmem:[#allocation12 + $0xc0] sm:$0xff]
    %v2522 = vld [vmem:[#allocation12 + $0xc8] sm:$0xff]
    %v2523 = vld [vmem:[#allocation12 + $0xd0] sm:$0xff]
    %v2524 = vld [vmem:[#allocation12 + $0xd8] sm:$0xff]
    %v2525 = vld [vmem:[#allocation12 + $0xe0] sm:$0xff]
    %v2526 = vld [vmem:[#allocation12 + $0xe8] sm:$0xff]
    %v2527 = vld [vmem:[#allocation12 + $0xf0] sm:$0xff]
    %v2528 = vld [vmem:[#allocation12 + $0xf8] sm:$0xff]
    %v2529 = vld [vmem:[#allocation12 + $0x100] sm:$0xff]
    %v2530 = vld [vmem:[#allocation12 + $0x108] sm:$0xff]
    %v2531 = vld [vmem:[#allocation12 + $0x110] sm:$0xff]
    %v2532 = vld [vmem:[#allocation12 + $0x118] sm:$0xff]
    %v2533 = vld [vmem:[#allocation12 + $0x120] sm:$0xff]
    %v2534 = vld [vmem:[#allocation12 + $0x128] sm:$0xff]
    %v2535 = vld [vmem:[#allocation12 + $0x130] sm:$0xff]
    %v2536 = vld [vmem:[#allocation12 + $0x138] sm:$0xff]
    %v2537 = vld [vmem:[#allocation12 + $0x140] sm:$0xff]
    %v2538 = vld [vmem:[#allocation12 + $0x148] sm:$0xff]
    %v2539 = vld [vmem:[#allocation12 + $0x150] sm:$0xff]
    %v2540 = vld [vmem:[#allocation12 + $0x158] sm:$0xff]
    %v2541 = vld [vmem:[#allocation12 + $0x160] sm:$0xff]
    %v2542 = vld [vmem:[#allocation12 + $0x168] sm:$0xff]
    %v2543 = vld [vmem:[#allocation12 + $0x170] sm:$0xff]
    %v2544 = vld [vmem:[#allocation12 + $0x178] sm:$0xff]
    %v2545 = vld [vmem:[#allocation12 + $0x180] sm:$0xff]
    %v2546 = vld [vmem:[#allocation12 + $0x188] sm:$0xff]
    %v2547 = vld [vmem:[#allocation12 + $0x190] sm:$0xff]
    %v2548 = vld [vmem:[#allocation12 + $0x198] sm:$0xff]
    %v2549 = vld [vmem:[#allocation12 + $0x1a0] sm:$0xff]
    %v2550 = vld [vmem:[#allocation12 + $0x1a8] sm:$0xff]
    %v2551 = vld [vmem:[#allocation12 + $0x1b0] sm:$0xff]
    %v2552 = vld [vmem:[#allocation12 + $0x1b8] sm:$0xff]
    %v2553 = vld [vmem:[#allocation12 + $0x1c0] sm:$0xff]
    %v2554 = vld [vmem:[#allocation12 + $0x1c8] sm:$0xff]
    %v2555 = vld [vmem:[#allocation12 + $0x1d0] sm:$0xff]
    %v2556 = vld [vmem:[#allocation12 + $0x1d8] sm:$0xff]
    %v2557 = vld [vmem:[#allocation12 + $0x1e0] sm:$0xff]
    %v2558 = vld [vmem:[#allocation12 + $0x1e8] sm:$0xff]
    %v2559 = vld [vmem:[#allocation12 + $0x1f0] sm:$0xff]
    %v2560 = vld [vmem:[#allocation12 + $0x1f8] sm:$0xff]
    %2561 = vmatpush.msra.mxu0 %v2557
    %2562 = vmatpush.msra.mxu0 %v2553
    %2563 = vmatpush.msra.mxu0 %v2549
    %2564 = vmatpush.msra.mxu0 %v2545
    %2565 = vmatpush.msra.mxu0 %v2541
    %2566 = vmatpush.msra.mxu0 %v2537
    %2567 = vmatpush.msra.mxu0 %v2533
    %2568 = vmatpush.msra.mxu0 %v2529
    %2569 = vmatpush.msra.mxu0 %v2525
    %2570 = vmatpush.msra.mxu0 %v2521
    %2571 = vmatpush.msra.mxu0 %v2517
    %2572 = vmatpush.msra.mxu0 %v2513
    %2573 = vmatpush.msra.mxu0 %v2509
    %2574 = vmatpush.msra.mxu0 %v2505
    %2575 = vmatpush.msra.mxu0 %v2501
    %2576 = vmatpush.msra.mxu0 %v2497
    %2577 = vmatmul.f32.gmra.mxu0 0.0
    %v2578 = vpop.f32.mrf.mxu0
    %v2579 = vadd.f32 0.0, %v2578
    %2580 = vdwg.mxu0
    %2581 = vmatpush.msra.mxu0 %v2558
    %2582 = vmatpush.msra.mxu0 %v2554
    %2583 = vmatpush.msra.mxu0 %v2550
    %2584 = vmatpush.msra.mxu0 %v2546
    %2585 = vmatpush.msra.mxu0 %v2542
    %2586 = vmatpush.msra.mxu0 %v2538
    %2587 = vmatpush.msra.mxu0 %v2534
    %2588 = vmatpush.msra.mxu0 %v2530
    %2589 = vmatpush.msra.mxu0 %v2526
    %2590 = vmatpush.msra.mxu0 %v2522
    %2591 = vmatpush.msra.mxu0 %v2518
    %2592 = vmatpush.msra.mxu0 %v2514
    %2593 = vmatpush.msra.mxu0 %v2510
    %2594 = vmatpush.msra.mxu0 %v2506
    %2595 = vmatpush.msra.mxu0 %v2502
    %2596 = vmatpush.msra.mxu0 %v2498
    %2597 = vmatmul.f32.gmra.mxu0 0.0
    %v2598 = vpop.f32.mrf.mxu0
    %v2599 = vadd.f32 0.0, %v2598
    %2600 = vdwg.mxu0
    %2601 = vmatpush.msra.mxu0 %v2559
    %2602 = vmatpush.msra.mxu0 %v2555
    %2603 = vmatpush.msra.mxu0 %v2551
    %2604 = vmatpush.msra.mxu0 %v2547
    %2605 = vmatpush.msra.mxu0 %v2543
    %2606 = vmatpush.msra.mxu0 %v2539
    %2607 = vmatpush.msra.mxu0 %v2535
    %2608 = vmatpush.msra.mxu0 %v2531
    %2609 = vmatpush.msra.mxu0 %v2527
    %2610 = vmatpush.msra.mxu0 %v2523
    %2611 = vmatpush.msra.mxu0 %v2519
    %2612 = vmatpush.msra.mxu0 %v2515
    %2613 = vmatpush.msra.mxu0 %v2511
    %2614 = vmatpush.msra.mxu0 %v2507
    %2615 = vmatpush.msra.mxu0 %v2503
    %2616 = vmatpush.msra.mxu0 %v2499
    %2617 = vmatmul.f32.gmra.mxu0 0.0
    %v2618 = vpop.f32.mrf.mxu0
    %v2619 = vadd.f32 0.0, %v2618
    %2620 = vdwg.mxu0
    %2621 = vmatpush.msra.mxu0 %v2560
    %2622 = vmatpush.msra.mxu0 %v2556
    %2623 = vmatpush.msra.mxu0 %v2552
    %2624 = vmatpush.msra.mxu0 %v2548
    %2625 = vmatpush.msra.mxu0 %v2544
    %2626 = vmatpush.msra.mxu0 %v2540
    %2627 = vmatpush.msra.mxu0 %v2536
    %2628 = vmatpush.msra.mxu0 %v2532
    %2629 = vmatpush.msra.mxu0 %v2528
    %2630 = vmatpush.msra.mxu0 %v2524
    %2631 = vmatpush.msra.mxu0 %v2520
    %2632 = vmatpush.msra.mxu0 %v2516
    %2633 = vmatpush.msra.mxu0 %v2512
    %2634 = vmatpush.msra.mxu0 %v2508
    %2635 = vmatpush.msra.mxu0 %v2504
    %2636 = vmatpush.msra.mxu0 %v2500
    %2637 = vmatmul.f32.gmra.mxu0 0.0
    %v2638 = vpop.f32.mrf.mxu0
    %v2639 = vadd.f32 0.0, %v2638
    %2640 = vdwg.mxu0
    %v2641 = vadd.f32 %v2493, %v2579
    %v2642 = vadd.f32 %v2494, %v2599
    %v2643 = vadd.f32 %v2495, %v2619
    %v2644 = vadd.f32 %v2496, %v2639
    %v2645 = vxor.u32 %v2641, 2147483648
    %v2646 = vmul.f32 %v2645, 1.442695
    %v2647 = vpow.pop %v2646
    %v2648 = vadd.f32 %v2647, 1.0
    %v2649 = vrcp.pop %v2648
    %v2650 = vmul.f32 %v2648, %v2649
    %v2651 = vsub.f32 1.0, %v2650
    %v2652 = vmul.f32 %v2649, %v2651
    %v2653 = vadd.f32 %v2649, %v2652
    %vm2654 = vweird.f32 %v2648
    %vm2655 = vweird.f32 %v2649
    %vm2656 = vmor %vm2654, %vm2655
    %v2657 = vsel %vm2656, %v2649, %v2653
    %v2658 = vand.u32 2147483647, %v2648
    %vm2659 = vcmp.eq.f32.partialorder %v2658, 8.507059e+37
    %v2660 = vand.u32 %v2648, 2147483648
    %v2661 = vor.u32 1.1754944e-38, %v2660
    %v2662 = vsel %vm2659, %v2661, %v2657
    %v2663 = vmul.f32 1.0, %v2662
    %v2664 = vxor.u32 %v2642, 2147483648
    %v2665 = vmul.f32 %v2664, 1.442695
    %v2666 = vpow.pop %v2665
    %v2667 = vadd.f32 %v2666, 1.0
    %v2668 = vrcp.pop %v2667
    %v2669 = vmul.f32 %v2667, %v2668
    %v2670 = vsub.f32 1.0, %v2669
    %v2671 = vmul.f32 %v2668, %v2670
    %v2672 = vadd.f32 %v2668, %v2671
    %vm2673 = vweird.f32 %v2667
    %vm2674 = vweird.f32 %v2668
    %vm2675 = vmor %vm2673, %vm2674
    %v2676 = vsel %vm2675, %v2668, %v2672
    %v2677 = vand.u32 2147483647, %v2667
    %vm2678 = vcmp.eq.f32.partialorder %v2677, 8.507059e+37
    %v2679 = vand.u32 %v2667, 2147483648
    %v2680 = vor.u32 1.1754944e-38, %v2679
    %v2681 = vsel %vm2678, %v2680, %v2676
    %v2682 = vmul.f32 1.0, %v2681
    %v2683 = vtanh.pop %v2643
    %v2684 = vxor.u32 %v2644, 2147483648
    %v2685 = vmul.f32 %v2684, 1.442695
    %v2686 = vpow.pop %v2685
    %v2687 = vadd.f32 %v2686, 1.0
    %v2688 = vrcp.pop %v2687
    %v2689 = vmul.f32 %v2687, %v2688
    %v2690 = vsub.f32 1.0, %v2689
    %v2691 = vmul.f32 %v2688, %v2690
    %v2692 = vadd.f32 %v2688, %v2691
    %vm2693 = vweird.f32 %v2687
    %vm2694 = vweird.f32 %v2688
    %vm2695 = vmor %vm2693, %vm2694
    %v2696 = vsel %vm2695, %v2688, %v2692
    %v2697 = vand.u32 2147483647, %v2687
    %vm2698 = vcmp.eq.f32.partialorder %v2697, 8.507059e+37
    %v2699 = vand.u32 %v2687, 2147483648
    %v2700 = vor.u32 1.1754944e-38, %v2699
    %v2701 = vsel %vm2698, %v2700, %v2696
    %v2702 = vmul.f32 1.0, %v2701
    %v2703 = vmul.f32 %v2682, 0.0
    %v2704 = vmul.f32 %v2663, %v2683
    %v2705 = vadd.f32 %v2703, %v2704
    %v2706 = vtanh.pop %v2705
    %v2707 = vmul.f32 %v2702, %v2706
    %vm2708 = vcmp.eq.s32.totalorder %v130, 0
    %v2709 = vsel %vm2708, 1, 0
    %2710 = vset.pattern.permute.xlu0 0
    %2711 = vperm.xlu0 %2710, %v2709
    %v2712 = vpop.permute.xlu0 %2711
    %vm2713 = vcmp.eq.s32.totalorder %v2712, 1
    %v2714 = vsel %vm2713, %v2707, 0.0
    %v2715 = vld [vmem:[%s657] sm:$0xff]
    %v2716 = vld [vmem:[%s657 + $0x8] sm:$0xff]
    %v2717 = vld [vmem:[%s657 + $0x10] sm:$0xff]
    %v2718 = vld [vmem:[%s657 + $0x18] sm:$0xff]
    %2719 = vmatpush.msra.mxu0 %v2557
    %2720 = vmatpush.msra.mxu0 %v2553
    %2721 = vmatpush.msra.mxu0 %v2549
    %2722 = vmatpush.msra.mxu0 %v2545
    %2723 = vmatpush.msra.mxu0 %v2541
    %2724 = vmatpush.msra.mxu0 %v2537
    %2725 = vmatpush.msra.mxu0 %v2533
    %2726 = vmatpush.msra.mxu0 %v2529
    %2727 = vmatpush.msra.mxu0 %v2525
    %2728 = vmatpush.msra.mxu0 %v2521
    %2729 = vmatpush.msra.mxu0 %v2517
    %2730 = vmatpush.msra.mxu0 %v2513
    %2731 = vmatpush.msra.mxu0 %v2509
    %2732 = vmatpush.msra.mxu0 %v2505
    %2733 = vmatpush.msra.mxu0 %v2501
    %2734 = vmatpush.msra.mxu0 %v2497
    %2735 = vmatmul.f32.gmra.mxu0 %v2707
    %v2736 = vpop.f32.mrf.mxu0
    %v2737 = vadd.f32 0.0, %v2736
    %2738 = vdwg.mxu0
    %2739 = vmatpush.msra.mxu0 %v2558
    %2740 = vmatpush.msra.mxu0 %v2554
    %2741 = vmatpush.msra.mxu0 %v2550
    %2742 = vmatpush.msra.mxu0 %v2546
    %2743 = vmatpush.msra.mxu0 %v2542
    %2744 = vmatpush.msra.mxu0 %v2538
    %2745 = vmatpush.msra.mxu0 %v2534
    %2746 = vmatpush.msra.mxu0 %v2530
    %2747 = vmatpush.msra.mxu0 %v2526
    %2748 = vmatpush.msra.mxu0 %v2522
    %2749 = vmatpush.msra.mxu0 %v2518
    %2750 = vmatpush.msra.mxu0 %v2514
    %2751 = vmatpush.msra.mxu0 %v2510
    %2752 = vmatpush.msra.mxu0 %v2506
    %2753 = vmatpush.msra.mxu0 %v2502
    %2754 = vmatpush.msra.mxu0 %v2498
    %2755 = vmatmul.f32.gmra.mxu0 %v2707
    %v2756 = vpop.f32.mrf.mxu0
    %v2757 = vadd.f32 0.0, %v2756
    %2758 = vdwg.mxu0
    %2759 = vmatpush.msra.mxu0 %v2559
    %2760 = vmatpush.msra.mxu0 %v2555
    %2761 = vmatpush.msra.mxu0 %v2551
    %2762 = vmatpush.msra.mxu0 %v2547
    %2763 = vmatpush.msra.mxu0 %v2543
    %2764 = vmatpush.msra.mxu0 %v2539
    %2765 = vmatpush.msra.mxu0 %v2535
    %2766 = vmatpush.msra.mxu0 %v2531
    %2767 = vmatpush.msra.mxu0 %v2527
    %2768 = vmatpush.msra.mxu0 %v2523
    %2769 = vmatpush.msra.mxu0 %v2519
    %2770 = vmatpush.msra.mxu0 %v2515
    %2771 = vmatpush.msra.mxu0 %v2511
    %2772 = vmatpush.msra.mxu0 %v2507
    %2773 = vmatpush.msra.mxu0 %v2503
    %2774 = vmatpush.msra.mxu0 %v2499
    %2775 = vmatmul.f32.gmra.mxu0 %v2707
    %v2776 = vpop.f32.mrf.mxu0
    %v2777 = vadd.f32 0.0, %v2776
    %2778 = vdwg.mxu0
    %2779 = vmatpush.msra.mxu0 %v2560
    %2780 = vmatpush.msra.mxu0 %v2556
    %2781 = vmatpush.msra.mxu0 %v2552
    %2782 = vmatpush.msra.mxu0 %v2548
    %2783 = vmatpush.msra.mxu0 %v2544
    %2784 = vmatpush.msra.mxu0 %v2540
    %2785 = vmatpush.msra.mxu0 %v2536
    %2786 = vmatpush.msra.mxu0 %v2532
    %2787 = vmatpush.msra.mxu0 %v2528
    %2788 = vmatpush.msra.mxu0 %v2524
    %2789 = vmatpush.msra.mxu0 %v2520
    %2790 = vmatpush.msra.mxu0 %v2516
    %2791 = vmatpush.msra.mxu0 %v2512
    %2792 = vmatpush.msra.mxu0 %v2508
    %2793 = vmatpush.msra.mxu0 %v2504
    %2794 = vmatpush.msra.mxu0 %v2500
    %2795 = vmatmul.f32.gmra.mxu0 %v2707
    %v2796 = vpop.f32.mrf.mxu0
    %v2797 = vadd.f32 0.0, %v2796
    %2798 = vdwg.mxu0
    %v2799 = vadd.f32 %v2715, %v2737
    %v2800 = vadd.f32 %v2716, %v2757
    %v2801 = vadd.f32 %v2717, %v2777
    %v2802 = vadd.f32 %v2718, %v2797
    %v2803 = vxor.u32 %v2799, 2147483648
    %v2804 = vmul.f32 %v2803, 1.442695
    %v2805 = vpow.pop %v2804
    %v2806 = vadd.f32 %v2805, 1.0
    %v2807 = vrcp.pop %v2806
    %v2808 = vmul.f32 %v2806, %v2807
    %v2809 = vsub.f32 1.0, %v2808
    %v2810 = vmul.f32 %v2807, %v2809
    %v2811 = vadd.f32 %v2807, %v2810
    %vm2812 = vweird.f32 %v2806
    %vm2813 = vweird.f32 %v2807
    %vm2814 = vmor %vm2812, %vm2813
    %v2815 = vsel %vm2814, %v2807, %v2811
    %v2816 = vand.u32 2147483647, %v2806
    %vm2817 = vcmp.eq.f32.partialorder %v2816, 8.507059e+37
    %v2818 = vand.u32 %v2806, 2147483648
    %v2819 = vor.u32 1.1754944e-38, %v2818
    %v2820 = vsel %vm2817, %v2819, %v2815
    %v2821 = vmul.f32 1.0, %v2820
    %v2822 = vxor.u32 %v2800, 2147483648
    %v2823 = vmul.f32 %v2822, 1.442695
    %v2824 = vpow.pop %v2823
    %v2825 = vadd.f32 %v2824, 1.0
    %v2826 = vrcp.pop %v2825
    %v2827 = vmul.f32 %v2825, %v2826
    %v2828 = vsub.f32 1.0, %v2827
    %v2829 = vmul.f32 %v2826, %v2828
    %v2830 = vadd.f32 %v2826, %v2829
    %vm2831 = vweird.f32 %v2825
    %vm2832 = vweird.f32 %v2826
    %vm2833 = vmor %vm2831, %vm2832
    %v2834 = vsel %vm2833, %v2826, %v2830
    %v2835 = vand.u32 2147483647, %v2825
    %vm2836 = vcmp.eq.f32.partialorder %v2835, 8.507059e+37
    %v2837 = vand.u32 %v2825, 2147483648
    %v2838 = vor.u32 1.1754944e-38, %v2837
    %v2839 = vsel %vm2836, %v2838, %v2834
    %v2840 = vmul.f32 1.0, %v2839
    %v2841 = vtanh.pop %v2801
    %v2842 = vxor.u32 %v2802, 2147483648
    %v2843 = vmul.f32 %v2842, 1.442695
    %v2844 = vpow.pop %v2843
    %v2845 = vadd.f32 %v2844, 1.0
    %v2846 = vrcp.pop %v2845
    %v2847 = vmul.f32 %v2845, %v2846
    %v2848 = vsub.f32 1.0, %v2847
    %v2849 = vmul.f32 %v2846, %v2848
    %v2850 = vadd.f32 %v2846, %v2849
    %vm2851 = vweird.f32 %v2845
    %vm2852 = vweird.f32 %v2846
    %vm2853 = vmor %vm2851, %vm2852
    %v2854 = vsel %vm2853, %v2846, %v2850
    %v2855 = vand.u32 2147483647, %v2845
    %vm2856 = vcmp.eq.f32.partialorder %v2855, 8.507059e+37
    %v2857 = vand.u32 %v2845, 2147483648
    %v2858 = vor.u32 1.1754944e-38, %v2857
    %v2859 = vsel %vm2856, %v2858, %v2854
    %v2860 = vmul.f32 1.0, %v2859
    %v2861 = vmul.f32 %v2840, %v2705
    %v2862 = vmul.f32 %v2821, %v2841
    %v2863 = vadd.f32 %v2861, %v2862
    %v2864 = vtanh.pop %v2863
    %v2865 = vmul.f32 %v2860, %v2864
    %vm2866 = vcmp.eq.s32.totalorder %v130, 1
    %v2867 = vsel %vm2866, 1, 0
    %2868 = vset.pattern.permute.xlu0 0
    %2869 = vperm.xlu0 %2868, %v2867
    %v2870 = vpop.permute.xlu0 %2869
    %vm2871 = vcmp.eq.s32.totalorder %v2870, 1
    %v2872 = vsel %vm2871, %v2865, %v2714
    %v2873 = vld [vmem:[%s875] sm:$0xff]
    %v2874 = vld [vmem:[%s875 + $0x8] sm:$0xff]
    %v2875 = vld [vmem:[%s875 + $0x10] sm:$0xff]
    %v2876 = vld [vmem:[%s875 + $0x18] sm:$0xff]
    %2877 = vmatpush.msra.mxu0 %v2557
    %2878 = vmatpush.msra.mxu0 %v2553
    %2879 = vmatpush.msra.mxu0 %v2549
    %2880 = vmatpush.msra.mxu0 %v2545
    %2881 = vmatpush.msra.mxu0 %v2541
    %2882 = vmatpush.msra.mxu0 %v2537
    %2883 = vmatpush.msra.mxu0 %v2533
    %2884 = vmatpush.msra.mxu0 %v2529
    %2885 = vmatpush.msra.mxu0 %v2525
    %2886 = vmatpush.msra.mxu0 %v2521
    %2887 = vmatpush.msra.mxu0 %v2517
    %2888 = vmatpush.msra.mxu0 %v2513
    %2889 = vmatpush.msra.mxu0 %v2509
    %2890 = vmatpush.msra.mxu0 %v2505
    %2891 = vmatpush.msra.mxu0 %v2501
    %2892 = vmatpush.msra.mxu0 %v2497
    %2893 = vmatmul.f32.gmra.mxu0 %v2865
    %v2894 = vpop.f32.mrf.mxu0
    %v2895 = vadd.f32 0.0, %v2894
    %2896 = vdwg.mxu0
    %2897 = vmatpush.msra.mxu0 %v2558
    %2898 = vmatpush.msra.mxu0 %v2554
    %2899 = vmatpush.msra.mxu0 %v2550
    %2900 = vmatpush.msra.mxu0 %v2546
    %2901 = vmatpush.msra.mxu0 %v2542
    %2902 = vmatpush.msra.mxu0 %v2538
    %2903 = vmatpush.msra.mxu0 %v2534
    %2904 = vmatpush.msra.mxu0 %v2530
    %2905 = vmatpush.msra.mxu0 %v2526
    %2906 = vmatpush.msra.mxu0 %v2522
    %2907 = vmatpush.msra.mxu0 %v2518
    %2908 = vmatpush.msra.mxu0 %v2514
    %2909 = vmatpush.msra.mxu0 %v2510
    %2910 = vmatpush.msra.mxu0 %v2506
    %2911 = vmatpush.msra.mxu0 %v2502
    %2912 = vmatpush.msra.mxu0 %v2498
    %2913 = vmatmul.f32.gmra.mxu0 %v2865
    %v2914 = vpop.f32.mrf.mxu0
    %v2915 = vadd.f32 0.0, %v2914
    %2916 = vdwg.mxu0
    %2917 = vmatpush.msra.mxu0 %v2559
    %2918 = vmatpush.msra.mxu0 %v2555
    %2919 = vmatpush.msra.mxu0 %v2551
    %2920 = vmatpush.msra.mxu0 %v2547
    %2921 = vmatpush.msra.mxu0 %v2543
    %2922 = vmatpush.msra.mxu0 %v2539
    %2923 = vmatpush.msra.mxu0 %v2535
    %2924 = vmatpush.msra.mxu0 %v2531
    %2925 = vmatpush.msra.mxu0 %v2527
    %2926 = vmatpush.msra.mxu0 %v2523
    %2927 = vmatpush.msra.mxu0 %v2519
    %2928 = vmatpush.msra.mxu0 %v2515
    %2929 = vmatpush.msra.mxu0 %v2511
    %2930 = vmatpush.msra.mxu0 %v2507
    %2931 = vmatpush.msra.mxu0 %v2503
    %2932 = vmatpush.msra.mxu0 %v2499
    %2933 = vmatmul.f32.gmra.mxu0 %v2865
    %v2934 = vpop.f32.mrf.mxu0
    %v2935 = vadd.f32 0.0, %v2934
    %2936 = vdwg.mxu0
    %2937 = vmatpush.msra.mxu0 %v2560
    %2938 = vmatpush.msra.mxu0 %v2556
    %2939 = vmatpush.msra.mxu0 %v2552
    %2940 = vmatpush.msra.mxu0 %v2548
    %2941 = vmatpush.msra.mxu0 %v2544
    %2942 = vmatpush.msra.mxu0 %v2540
    %2943 = vmatpush.msra.mxu0 %v2536
    %2944 = vmatpush.msra.mxu0 %v2532
    %2945 = vmatpush.msra.mxu0 %v2528
    %2946 = vmatpush.msra.mxu0 %v2524
    %2947 = vmatpush.msra.mxu0 %v2520
    %2948 = vmatpush.msra.mxu0 %v2516
    %2949 = vmatpush.msra.mxu0 %v2512
    %2950 = vmatpush.msra.mxu0 %v2508
    %2951 = vmatpush.msra.mxu0 %v2504
    %2952 = vmatpush.msra.mxu0 %v2500
    %2953 = vmatmul.f32.gmra.mxu0 %v2865
    %v2954 = vpop.f32.mrf.mxu0
    %v2955 = vadd.f32 0.0, %v2954
    %2956 = vdwg.mxu0
    %v2957 = vadd.f32 %v2873, %v2895
    %v2958 = vadd.f32 %v2874, %v2915
    %v2959 = vadd.f32 %v2875, %v2935
    %v2960 = vadd.f32 %v2876, %v2955
    %v2961 = vxor.u32 %v2957, 2147483648
    %v2962 = vmul.f32 %v2961, 1.442695
    %v2963 = vpow.pop %v2962
    %v2964 = vadd.f32 %v2963, 1.0
    %v2965 = vrcp.pop %v2964
    %v2966 = vmul.f32 %v2964, %v2965
    %v2967 = vsub.f32 1.0, %v2966
    %v2968 = vmul.f32 %v2965, %v2967
    %v2969 = vadd.f32 %v2965, %v2968
    %vm2970 = vweird.f32 %v2964
    %vm2971 = vweird.f32 %v2965
    %vm2972 = vmor %vm2970, %vm2971
    %v2973 = vsel %vm2972, %v2965, %v2969
    %v2974 = vand.u32 2147483647, %v2964
    %vm2975 = vcmp.eq.f32.partialorder %v2974, 8.507059e+37
    %v2976 = vand.u32 %v2964, 2147483648
    %v2977 = vor.u32 1.1754944e-38, %v2976
    %v2978 = vsel %vm2975, %v2977, %v2973
    %v2979 = vmul.f32 1.0, %v2978
    %v2980 = vxor.u32 %v2958, 2147483648
    %v2981 = vmul.f32 %v2980, 1.442695
    %v2982 = vpow.pop %v2981
    %v2983 = vadd.f32 %v2982, 1.0
    %v2984 = vrcp.pop %v2983
    %v2985 = vmul.f32 %v2983, %v2984
    %v2986 = vsub.f32 1.0, %v2985
    %v2987 = vmul.f32 %v2984, %v2986
    %v2988 = vadd.f32 %v2984, %v2987
    %vm2989 = vweird.f32 %v2983
    %vm2990 = vweird.f32 %v2984
    %vm2991 = vmor %vm2989, %vm2990
    %v2992 = vsel %vm2991, %v2984, %v2988
    %v2993 = vand.u32 2147483647, %v2983
    %vm2994 = vcmp.eq.f32.partialorder %v2993, 8.507059e+37
    %v2995 = vand.u32 %v2983, 2147483648
    %v2996 = vor.u32 1.1754944e-38, %v2995
    %v2997 = vsel %vm2994, %v2996, %v2992
    %v2998 = vmul.f32 1.0, %v2997
    %v2999 = vtanh.pop %v2959
    %v3000 = vxor.u32 %v2960, 2147483648
    %v3001 = vmul.f32 %v3000, 1.442695
    %v3002 = vpow.pop %v3001
    %v3003 = vadd.f32 %v3002, 1.0
    %v3004 = vrcp.pop %v3003
    %v3005 = vmul.f32 %v3003, %v3004
    %v3006 = vsub.f32 1.0, %v3005
    %v3007 = vmul.f32 %v3004, %v3006
    %v3008 = vadd.f32 %v3004, %v3007
    %vm3009 = vweird.f32 %v3003
    %vm3010 = vweird.f32 %v3004
    %vm3011 = vmor %vm3009, %vm3010
    %v3012 = vsel %vm3011, %v3004, %v3008
    %v3013 = vand.u32 2147483647, %v3003
    %vm3014 = vcmp.eq.f32.partialorder %v3013, 8.507059e+37
    %v3015 = vand.u32 %v3003, 2147483648
    %v3016 = vor.u32 1.1754944e-38, %v3015
    %v3017 = vsel %vm3014, %v3016, %v3012
    %v3018 = vmul.f32 1.0, %v3017
    %v3019 = vmul.f32 %v2998, %v2863
    %v3020 = vmul.f32 %v2979, %v2999
    %v3021 = vadd.f32 %v3019, %v3020
    %v3022 = vtanh.pop %v3021
    %v3023 = vmul.f32 %v3018, %v3022
    %vm3024 = vcmp.eq.s32.totalorder %v130, 2
    %v3025 = vsel %vm3024, 1, 0
    %3026 = vset.pattern.permute.xlu0 0
    %3027 = vperm.xlu0 %3026, %v3025
    %v3028 = vpop.permute.xlu0 %3027
    %vm3029 = vcmp.eq.s32.totalorder %v3028, 1
    %v3030 = vsel %vm3029, %v3023, %v2872
    %v3031 = vld [vmem:[%s1093] sm:$0xff]
    %v3032 = vld [vmem:[%s1093 + $0x8] sm:$0xff]
    %v3033 = vld [vmem:[%s1093 + $0x10] sm:$0xff]
    %v3034 = vld [vmem:[%s1093 + $0x18] sm:$0xff]
    %3035 = vmatpush.msra.mxu0 %v2557
    %3036 = vmatpush.msra.mxu0 %v2553
    %3037 = vmatpush.msra.mxu0 %v2549
    %3038 = vmatpush.msra.mxu0 %v2545
    %3039 = vmatpush.msra.mxu0 %v2541
    %3040 = vmatpush.msra.mxu0 %v2537
    %3041 = vmatpush.msra.mxu0 %v2533
    %3042 = vmatpush.msra.mxu0 %v2529
    %3043 = vmatpush.msra.mxu0 %v2525
    %3044 = vmatpush.msra.mxu0 %v2521
    %3045 = vmatpush.msra.mxu0 %v2517
    %3046 = vmatpush.msra.mxu0 %v2513
    %3047 = vmatpush.msra.mxu0 %v2509
    %3048 = vmatpush.msra.mxu0 %v2505
    %3049 = vmatpush.msra.mxu0 %v2501
    %3050 = vmatpush.msra.mxu0 %v2497
    %3051 = vmatmul.f32.gmra.mxu0 %v3023
    %v3052 = vpop.f32.mrf.mxu0
    %v3053 = vadd.f32 0.0, %v3052
    %3054 = vdwg.mxu0
    %3055 = vmatpush.msra.mxu0 %v2558
    %3056 = vmatpush.msra.mxu0 %v2554
    %3057 = vmatpush.msra.mxu0 %v2550
    %3058 = vmatpush.msra.mxu0 %v2546
    %3059 = vmatpush.msra.mxu0 %v2542
    %3060 = vmatpush.msra.mxu0 %v2538
    %3061 = vmatpush.msra.mxu0 %v2534
    %3062 = vmatpush.msra.mxu0 %v2530
    %3063 = vmatpush.msra.mxu0 %v2526
    %3064 = vmatpush.msra.mxu0 %v2522
    %3065 = vmatpush.msra.mxu0 %v2518
    %3066 = vmatpush.msra.mxu0 %v2514
    %3067 = vmatpush.msra.mxu0 %v2510
    %3068 = vmatpush.msra.mxu0 %v2506
    %3069 = vmatpush.msra.mxu0 %v2502
    %3070 = vmatpush.msra.mxu0 %v2498
    %3071 = vmatmul.f32.gmra.mxu0 %v3023
    %v3072 = vpop.f32.mrf.mxu0
    %v3073 = vadd.f32 0.0, %v3072
    %3074 = vdwg.mxu0
    %3075 = vmatpush.msra.mxu0 %v2559
    %3076 = vmatpush.msra.mxu0 %v2555
    %3077 = vmatpush.msra.mxu0 %v2551
    %3078 = vmatpush.msra.mxu0 %v2547
    %3079 = vmatpush.msra.mxu0 %v2543
    %3080 = vmatpush.msra.mxu0 %v2539
    %3081 = vmatpush.msra.mxu0 %v2535
    %3082 = vmatpush.msra.mxu0 %v2531
    %3083 = vmatpush.msra.mxu0 %v2527
    %3084 = vmatpush.msra.mxu0 %v2523
    %3085 = vmatpush.msra.mxu0 %v2519
    %3086 = vmatpush.msra.mxu0 %v2515
    %3087 = vmatpush.msra.mxu0 %v2511
    %3088 = vmatpush.msra.mxu0 %v2507
    %3089 = vmatpush.msra.mxu0 %v2503
    %3090 = vmatpush.msra.mxu0 %v2499
    %3091 = vmatmul.f32.gmra.mxu0 %v3023
    %v3092 = vpop.f32.mrf.mxu0
    %v3093 = vadd.f32 0.0, %v3092
    %3094 = vdwg.mxu0
    %3095 = vmatpush.msra.mxu0 %v2560
    %3096 = vmatpush.msra.mxu0 %v2556
    %3097 = vmatpush.msra.mxu0 %v2552
    %3098 = vmatpush.msra.mxu0 %v2548
    %3099 = vmatpush.msra.mxu0 %v2544
    %3100 = vmatpush.msra.mxu0 %v2540
    %3101 = vmatpush.msra.mxu0 %v2536
    %3102 = vmatpush.msra.mxu0 %v2532
    %3103 = vmatpush.msra.mxu0 %v2528
    %3104 = vmatpush.msra.mxu0 %v2524
    %3105 = vmatpush.msra.mxu0 %v2520
    %3106 = vmatpush.msra.mxu0 %v2516
    %3107 = vmatpush.msra.mxu0 %v2512
    %3108 = vmatpush.msra.mxu0 %v2508
    %3109 = vmatpush.msra.mxu0 %v2504
    %3110 = vmatpush.msra.mxu0 %v2500
    %3111 = vmatmul.f32.gmra.mxu0 %v3023
    %v3112 = vpop.f32.mrf.mxu0
    %v3113 = vadd.f32 0.0, %v3112
    %3114 = vdwg.mxu0
    %v3115 = vadd.f32 %v3031, %v3053
    %v3116 = vadd.f32 %v3032, %v3073
    %v3117 = vadd.f32 %v3033, %v3093
    %v3118 = vadd.f32 %v3034, %v3113
    %v3119 = vxor.u32 %v3115, 2147483648
    %v3120 = vmul.f32 %v3119, 1.442695
    %v3121 = vpow.pop %v3120
    %v3122 = vadd.f32 %v3121, 1.0
    %v3123 = vrcp.pop %v3122
    %v3124 = vmul.f32 %v3122, %v3123
    %v3125 = vsub.f32 1.0, %v3124
    %v3126 = vmul.f32 %v3123, %v3125
    %v3127 = vadd.f32 %v3123, %v3126
    %vm3128 = vweird.f32 %v3122
    %vm3129 = vweird.f32 %v3123
    %vm3130 = vmor %vm3128, %vm3129
    %v3131 = vsel %vm3130, %v3123, %v3127
    %v3132 = vand.u32 2147483647, %v3122
    %vm3133 = vcmp.eq.f32.partialorder %v3132, 8.507059e+37
    %v3134 = vand.u32 %v3122, 2147483648
    %v3135 = vor.u32 1.1754944e-38, %v3134
    %v3136 = vsel %vm3133, %v3135, %v3131
    %v3137 = vmul.f32 1.0, %v3136
    %v3138 = vxor.u32 %v3116, 2147483648
    %v3139 = vmul.f32 %v3138, 1.442695
    %v3140 = vpow.pop %v3139
    %v3141 = vadd.f32 %v3140, 1.0
    %v3142 = vrcp.pop %v3141
    %v3143 = vmul.f32 %v3141, %v3142
    %v3144 = vsub.f32 1.0, %v3143
    %v3145 = vmul.f32 %v3142, %v3144
    %v3146 = vadd.f32 %v3142, %v3145
    %vm3147 = vweird.f32 %v3141
    %vm3148 = vweird.f32 %v3142
    %vm3149 = vmor %vm3147, %vm3148
    %v3150 = vsel %vm3149, %v3142, %v3146
    %v3151 = vand.u32 2147483647, %v3141
    %vm3152 = vcmp.eq.f32.partialorder %v3151, 8.507059e+37
    %v3153 = vand.u32 %v3141, 2147483648
    %v3154 = vor.u32 1.1754944e-38, %v3153
    %v3155 = vsel %vm3152, %v3154, %v3150
    %v3156 = vmul.f32 1.0, %v3155
    %v3157 = vtanh.pop %v3117
    %v3158 = vxor.u32 %v3118, 2147483648
    %v3159 = vmul.f32 %v3158, 1.442695
    %v3160 = vpow.pop %v3159
    %v3161 = vadd.f32 %v3160, 1.0
    %v3162 = vrcp.pop %v3161
    %v3163 = vmul.f32 %v3161, %v3162
    %v3164 = vsub.f32 1.0, %v3163
    %v3165 = vmul.f32 %v3162, %v3164
    %v3166 = vadd.f32 %v3162, %v3165
    %vm3167 = vweird.f32 %v3161
    %vm3168 = vweird.f32 %v3162
    %vm3169 = vmor %vm3167, %vm3168
    %v3170 = vsel %vm3169, %v3162, %v3166
    %v3171 = vand.u32 2147483647, %v3161
    %vm3172 = vcmp.eq.f32.partialorder %v3171, 8.507059e+37
    %v3173 = vand.u32 %v3161, 2147483648
    %v3174 = vor.u32 1.1754944e-38, %v3173
    %v3175 = vsel %vm3172, %v3174, %v3170
    %v3176 = vmul.f32 1.0, %v3175
    %v3177 = vmul.f32 %v3156, %v3021
    %v3178 = vmul.f32 %v3137, %v3157
    %v3179 = vadd.f32 %v3177, %v3178
    %v3180 = vtanh.pop %v3179
    %v3181 = vmul.f32 %v3176, %v3180
    %vm3182 = vcmp.eq.s32.totalorder %v130, 3
    %v3183 = vsel %vm3182, 1, 0
    %3184 = vset.pattern.permute.xlu0 0
    %3185 = vperm.xlu0 %3184, %v3183
    %v3186 = vpop.permute.xlu0 %3185
    %vm3187 = vcmp.eq.s32.totalorder %v3186, 1
    %v3188 = vsel %vm3187, %v3181, %v3030
    %v3189 = vld [vmem:[%s1311] sm:$0xff]
    %v3190 = vld [vmem:[%s1311 + $0x8] sm:$0xff]
    %v3191 = vld [vmem:[%s1311 + $0x10] sm:$0xff]
    %v3192 = vld [vmem:[%s1311 + $0x18] sm:$0xff]
    %3193 = vmatpush.msra.mxu0 %v2557
    %3194 = vmatpush.msra.mxu0 %v2553
    %3195 = vmatpush.msra.mxu0 %v2549
    %3196 = vmatpush.msra.mxu0 %v2545
    %3197 = vmatpush.msra.mxu0 %v2541
    %3198 = vmatpush.msra.mxu0 %v2537
    %3199 = vmatpush.msra.mxu0 %v2533
    %3200 = vmatpush.msra.mxu0 %v2529
    %3201 = vmatpush.msra.mxu0 %v2525
    %3202 = vmatpush.msra.mxu0 %v2521
    %3203 = vmatpush.msra.mxu0 %v2517
    %3204 = vmatpush.msra.mxu0 %v2513
    %3205 = vmatpush.msra.mxu0 %v2509
    %3206 = vmatpush.msra.mxu0 %v2505
    %3207 = vmatpush.msra.mxu0 %v2501
    %3208 = vmatpush.msra.mxu0 %v2497
    %3209 = vmatmul.f32.gmra.mxu0 %v3181
    %v3210 = vpop.f32.mrf.mxu0
    %v3211 = vadd.f32 0.0, %v3210
    %3212 = vdwg.mxu0
    %3213 = vmatpush.msra.mxu0 %v2558
    %3214 = vmatpush.msra.mxu0 %v2554
    %3215 = vmatpush.msra.mxu0 %v2550
    %3216 = vmatpush.msra.mxu0 %v2546
    %3217 = vmatpush.msra.mxu0 %v2542
    %3218 = vmatpush.msra.mxu0 %v2538
    %3219 = vmatpush.msra.mxu0 %v2534
    %3220 = vmatpush.msra.mxu0 %v2530
    %3221 = vmatpush.msra.mxu0 %v2526
    %3222 = vmatpush.msra.mxu0 %v2522
    %3223 = vmatpush.msra.mxu0 %v2518
    %3224 = vmatpush.msra.mxu0 %v2514
    %3225 = vmatpush.msra.mxu0 %v2510
    %3226 = vmatpush.msra.mxu0 %v2506
    %3227 = vmatpush.msra.mxu0 %v2502
    %3228 = vmatpush.msra.mxu0 %v2498
    %3229 = vmatmul.f32.gmra.mxu0 %v3181
    %v3230 = vpop.f32.mrf.mxu0
    %v3231 = vadd.f32 0.0, %v3230
    %3232 = vdwg.mxu0
    %3233 = vmatpush.msra.mxu0 %v2559
    %3234 = vmatpush.msra.mxu0 %v2555
    %3235 = vmatpush.msra.mxu0 %v2551
    %3236 = vmatpush.msra.mxu0 %v2547
    %3237 = vmatpush.msra.mxu0 %v2543
    %3238 = vmatpush.msra.mxu0 %v2539
    %3239 = vmatpush.msra.mxu0 %v2535
    %3240 = vmatpush.msra.mxu0 %v2531
    %3241 = vmatpush.msra.mxu0 %v2527
    %3242 = vmatpush.msra.mxu0 %v2523
    %3243 = vmatpush.msra.mxu0 %v2519
    %3244 = vmatpush.msra.mxu0 %v2515
    %3245 = vmatpush.msra.mxu0 %v2511
    %3246 = vmatpush.msra.mxu0 %v2507
    %3247 = vmatpush.msra.mxu0 %v2503
    %3248 = vmatpush.msra.mxu0 %v2499
    %3249 = vmatmul.f32.gmra.mxu0 %v3181
    %v3250 = vpop.f32.mrf.mxu0
    %v3251 = vadd.f32 0.0, %v3250
    %3252 = vdwg.mxu0
    %3253 = vmatpush.msra.mxu0 %v2560
    %3254 = vmatpush.msra.mxu0 %v2556
    %3255 = vmatpush.msra.mxu0 %v2552
    %3256 = vmatpush.msra.mxu0 %v2548
    %3257 = vmatpush.msra.mxu0 %v2544
    %3258 = vmatpush.msra.mxu0 %v2540
    %3259 = vmatpush.msra.mxu0 %v2536
    %3260 = vmatpush.msra.mxu0 %v2532
    %3261 = vmatpush.msra.mxu0 %v2528
    %3262 = vmatpush.msra.mxu0 %v2524
    %3263 = vmatpush.msra.mxu0 %v2520
    %3264 = vmatpush.msra.mxu0 %v2516
    %3265 = vmatpush.msra.mxu0 %v2512
    %3266 = vmatpush.msra.mxu0 %v2508
    %3267 = vmatpush.msra.mxu0 %v2504
    %3268 = vmatpush.msra.mxu0 %v2500
    %3269 = vmatmul.f32.gmra.mxu0 %v3181
    %v3270 = vpop.f32.mrf.mxu0
    %v3271 = vadd.f32 0.0, %v3270
    %3272 = vdwg.mxu0
    %v3273 = vadd.f32 %v3189, %v3211
    %v3274 = vadd.f32 %v3190, %v3231
    %v3275 = vadd.f32 %v3191, %v3251
    %v3276 = vadd.f32 %v3192, %v3271
    %v3277 = vxor.u32 %v3273, 2147483648
    %v3278 = vmul.f32 %v3277, 1.442695
    %v3279 = vpow.pop %v3278
    %v3280 = vadd.f32 %v3279, 1.0
    %v3281 = vrcp.pop %v3280
    %v3282 = vmul.f32 %v3280, %v3281
    %v3283 = vsub.f32 1.0, %v3282
    %v3284 = vmul.f32 %v3281, %v3283
    %v3285 = vadd.f32 %v3281, %v3284
    %vm3286 = vweird.f32 %v3280
    %vm3287 = vweird.f32 %v3281
    %vm3288 = vmor %vm3286, %vm3287
    %v3289 = vsel %vm3288, %v3281, %v3285
    %v3290 = vand.u32 2147483647, %v3280
    %vm3291 = vcmp.eq.f32.partialorder %v3290, 8.507059e+37
    %v3292 = vand.u32 %v3280, 2147483648
    %v3293 = vor.u32 1.1754944e-38, %v3292
    %v3294 = vsel %vm3291, %v3293, %v3289
    %v3295 = vmul.f32 1.0, %v3294
    %v3296 = vxor.u32 %v3274, 2147483648
    %v3297 = vmul.f32 %v3296, 1.442695
    %v3298 = vpow.pop %v3297
    %v3299 = vadd.f32 %v3298, 1.0
    %v3300 = vrcp.pop %v3299
    %v3301 = vmul.f32 %v3299, %v3300
    %v3302 = vsub.f32 1.0, %v3301
    %v3303 = vmul.f32 %v3300, %v3302
    %v3304 = vadd.f32 %v3300, %v3303
    %vm3305 = vweird.f32 %v3299
    %vm3306 = vweird.f32 %v3300
    %vm3307 = vmor %vm3305, %vm3306
    %v3308 = vsel %vm3307, %v3300, %v3304
    %v3309 = vand.u32 2147483647, %v3299
    %vm3310 = vcmp.eq.f32.partialorder %v3309, 8.507059e+37
    %v3311 = vand.u32 %v3299, 2147483648
    %v3312 = vor.u32 1.1754944e-38, %v3311
    %v3313 = vsel %vm3310, %v3312, %v3308
    %v3314 = vmul.f32 1.0, %v3313
    %v3315 = vtanh.pop %v3275
    %v3316 = vxor.u32 %v3276, 2147483648
    %v3317 = vmul.f32 %v3316, 1.442695
    %v3318 = vpow.pop %v3317
    %v3319 = vadd.f32 %v3318, 1.0
    %v3320 = vrcp.pop %v3319
    %v3321 = vmul.f32 %v3319, %v3320
    %v3322 = vsub.f32 1.0, %v3321
    %v3323 = vmul.f32 %v3320, %v3322
    %v3324 = vadd.f32 %v3320, %v3323
    %vm3325 = vweird.f32 %v3319
    %vm3326 = vweird.f32 %v3320
    %vm3327 = vmor %vm3325, %vm3326
    %v3328 = vsel %vm3327, %v3320, %v3324
    %v3329 = vand.u32 2147483647, %v3319
    %vm3330 = vcmp.eq.f32.partialorder %v3329, 8.507059e+37
    %v3331 = vand.u32 %v3319, 2147483648
    %v3332 = vor.u32 1.1754944e-38, %v3331
    %v3333 = vsel %vm3330, %v3332, %v3328
    %v3334 = vmul.f32 1.0, %v3333
    %v3335 = vmul.f32 %v3314, %v3179
    %v3336 = vmul.f32 %v3295, %v3315
    %v3337 = vadd.f32 %v3335, %v3336
    %v3338 = vtanh.pop %v3337
    %v3339 = vmul.f32 %v3334, %v3338
    %vm3340 = vcmp.eq.s32.totalorder %v130, 4
    %v3341 = vsel %vm3340, 1, 0
    %3342 = vset.pattern.permute.xlu0 0
    %3343 = vperm.xlu0 %3342, %v3341
    %v3344 = vpop.permute.xlu0 %3343
    %vm3345 = vcmp.eq.s32.totalorder %v3344, 1
    %v3346 = vsel %vm3345, %v3339, %v3188
    %v3347 = vld [vmem:[%s1529] sm:$0xff]
    %v3348 = vld [vmem:[%s1529 + $0x8] sm:$0xff]
    %v3349 = vld [vmem:[%s1529 + $0x10] sm:$0xff]
    %v3350 = vld [vmem:[%s1529 + $0x18] sm:$0xff]
    %3351 = vmatpush.msra.mxu0 %v2557
    %3352 = vmatpush.msra.mxu0 %v2553
    %3353 = vmatpush.msra.mxu0 %v2549
    %3354 = vmatpush.msra.mxu0 %v2545
    %3355 = vmatpush.msra.mxu0 %v2541
    %3356 = vmatpush.msra.mxu0 %v2537
    %3357 = vmatpush.msra.mxu0 %v2533
    %3358 = vmatpush.msra.mxu0 %v2529
    %3359 = vmatpush.msra.mxu0 %v2525
    %3360 = vmatpush.msra.mxu0 %v2521
    %3361 = vmatpush.msra.mxu0 %v2517
    %3362 = vmatpush.msra.mxu0 %v2513
    %3363 = vmatpush.msra.mxu0 %v2509
    %3364 = vmatpush.msra.mxu0 %v2505
    %3365 = vmatpush.msra.mxu0 %v2501
    %3366 = vmatpush.msra.mxu0 %v2497
    %3367 = vmatmul.f32.gmra.mxu0 %v3339
    %v3368 = vpop.f32.mrf.mxu0
    %v3369 = vadd.f32 0.0, %v3368
    %3370 = vdwg.mxu0
    %3371 = vmatpush.msra.mxu0 %v2558
    %3372 = vmatpush.msra.mxu0 %v2554
    %3373 = vmatpush.msra.mxu0 %v2550
    %3374 = vmatpush.msra.mxu0 %v2546
    %3375 = vmatpush.msra.mxu0 %v2542
    %3376 = vmatpush.msra.mxu0 %v2538
    %3377 = vmatpush.msra.mxu0 %v2534
    %3378 = vmatpush.msra.mxu0 %v2530
    %3379 = vmatpush.msra.mxu0 %v2526
    %3380 = vmatpush.msra.mxu0 %v2522
    %3381 = vmatpush.msra.mxu0 %v2518
    %3382 = vmatpush.msra.mxu0 %v2514
    %3383 = vmatpush.msra.mxu0 %v2510
    %3384 = vmatpush.msra.mxu0 %v2506
    %3385 = vmatpush.msra.mxu0 %v2502
    %3386 = vmatpush.msra.mxu0 %v2498
    %3387 = vmatmul.f32.gmra.mxu0 %v3339
    %v3388 = vpop.f32.mrf.mxu0
    %v3389 = vadd.f32 0.0, %v3388
    %3390 = vdwg.mxu0
    %3391 = vmatpush.msra.mxu0 %v2559
    %3392 = vmatpush.msra.mxu0 %v2555
    %3393 = vmatpush.msra.mxu0 %v2551
    %3394 = vmatpush.msra.mxu0 %v2547
    %3395 = vmatpush.msra.mxu0 %v2543
    %3396 = vmatpush.msra.mxu0 %v2539
    %3397 = vmatpush.msra.mxu0 %v2535
    %3398 = vmatpush.msra.mxu0 %v2531
    %3399 = vmatpush.msra.mxu0 %v2527
    %3400 = vmatpush.msra.mxu0 %v2523
    %3401 = vmatpush.msra.mxu0 %v2519
    %3402 = vmatpush.msra.mxu0 %v2515
    %3403 = vmatpush.msra.mxu0 %v2511
    %3404 = vmatpush.msra.mxu0 %v2507
    %3405 = vmatpush.msra.mxu0 %v2503
    %3406 = vmatpush.msra.mxu0 %v2499
    %3407 = vmatmul.f32.gmra.mxu0 %v3339
    %v3408 = vpop.f32.mrf.mxu0
    %v3409 = vadd.f32 0.0, %v3408
    %3410 = vdwg.mxu0
    %3411 = vmatpush.msra.mxu0 %v2560
    %3412 = vmatpush.msra.mxu0 %v2556
    %3413 = vmatpush.msra.mxu0 %v2552
    %3414 = vmatpush.msra.mxu0 %v2548
    %3415 = vmatpush.msra.mxu0 %v2544
    %3416 = vmatpush.msra.mxu0 %v2540
    %3417 = vmatpush.msra.mxu0 %v2536
    %3418 = vmatpush.msra.mxu0 %v2532
    %3419 = vmatpush.msra.mxu0 %v2528
    %3420 = vmatpush.msra.mxu0 %v2524
    %3421 = vmatpush.msra.mxu0 %v2520
    %3422 = vmatpush.msra.mxu0 %v2516
    %3423 = vmatpush.msra.mxu0 %v2512
    %3424 = vmatpush.msra.mxu0 %v2508
    %3425 = vmatpush.msra.mxu0 %v2504
    %3426 = vmatpush.msra.mxu0 %v2500
    %3427 = vmatmul.f32.gmra.mxu0 %v3339
    %v3428 = vpop.f32.mrf.mxu0
    %v3429 = vadd.f32 0.0, %v3428
    %3430 = vdwg.mxu0
    %v3431 = vadd.f32 %v3347, %v3369
    %v3432 = vadd.f32 %v3348, %v3389
    %v3433 = vadd.f32 %v3349, %v3409
    %v3434 = vadd.f32 %v3350, %v3429
    %v3435 = vxor.u32 %v3431, 2147483648
    %v3436 = vmul.f32 %v3435, 1.442695
    %v3437 = vpow.pop %v3436
    %v3438 = vadd.f32 %v3437, 1.0
    %v3439 = vrcp.pop %v3438
    %v3440 = vmul.f32 %v3438, %v3439
    %v3441 = vsub.f32 1.0, %v3440
    %v3442 = vmul.f32 %v3439, %v3441
    %v3443 = vadd.f32 %v3439, %v3442
    %vm3444 = vweird.f32 %v3438
    %vm3445 = vweird.f32 %v3439
    %vm3446 = vmor %vm3444, %vm3445
    %v3447 = vsel %vm3446, %v3439, %v3443
    %v3448 = vand.u32 2147483647, %v3438
    %vm3449 = vcmp.eq.f32.partialorder %v3448, 8.507059e+37
    %v3450 = vand.u32 %v3438, 2147483648
    %v3451 = vor.u32 1.1754944e-38, %v3450
    %v3452 = vsel %vm3449, %v3451, %v3447
    %v3453 = vmul.f32 1.0, %v3452
    %v3454 = vxor.u32 %v3432, 2147483648
    %v3455 = vmul.f32 %v3454, 1.442695
    %v3456 = vpow.pop %v3455
    %v3457 = vadd.f32 %v3456, 1.0
    %v3458 = vrcp.pop %v3457
    %v3459 = vmul.f32 %v3457, %v3458
    %v3460 = vsub.f32 1.0, %v3459
    %v3461 = vmul.f32 %v3458, %v3460
    %v3462 = vadd.f32 %v3458, %v3461
    %vm3463 = vweird.f32 %v3457
    %vm3464 = vweird.f32 %v3458
    %vm3465 = vmor %vm3463, %vm3464
    %v3466 = vsel %vm3465, %v3458, %v3462
    %v3467 = vand.u32 2147483647, %v3457
    %vm3468 = vcmp.eq.f32.partialorder %v3467, 8.507059e+37
    %v3469 = vand.u32 %v3457, 2147483648
    %v3470 = vor.u32 1.1754944e-38, %v3469
    %v3471 = vsel %vm3468, %v3470, %v3466
    %v3472 = vmul.f32 1.0, %v3471
    %v3473 = vtanh.pop %v3433
    %v3474 = vxor.u32 %v3434, 2147483648
    %v3475 = vmul.f32 %v3474, 1.442695
    %v3476 = vpow.pop %v3475
    %v3477 = vadd.f32 %v3476, 1.0
    %v3478 = vrcp.pop %v3477
    %v3479 = vmul.f32 %v3477, %v3478
    %v3480 = vsub.f32 1.0, %v3479
    %v3481 = vmul.f32 %v3478, %v3480
    %v3482 = vadd.f32 %v3478, %v3481
    %vm3483 = vweird.f32 %v3477
    %vm3484 = vweird.f32 %v3478
    %vm3485 = vmor %vm3483, %vm3484
    %v3486 = vsel %vm3485, %v3478, %v3482
    %v3487 = vand.u32 2147483647, %v3477
    %vm3488 = vcmp.eq.f32.partialorder %v3487, 8.507059e+37
    %v3489 = vand.u32 %v3477, 2147483648
    %v3490 = vor.u32 1.1754944e-38, %v3489
    %v3491 = vsel %vm3488, %v3490, %v3486
    %v3492 = vmul.f32 1.0, %v3491
    %v3493 = vmul.f32 %v3472, %v3337
    %v3494 = vmul.f32 %v3453, %v3473
    %v3495 = vadd.f32 %v3493, %v3494
    %v3496 = vtanh.pop %v3495
    %v3497 = vmul.f32 %v3492, %v3496
    %vm3498 = vcmp.eq.s32.totalorder %v130, 5
    %v3499 = vsel %vm3498, 1, 0
    %3500 = vset.pattern.permute.xlu0 0
    %3501 = vperm.xlu0 %3500, %v3499
    %v3502 = vpop.permute.xlu0 %3501
    %vm3503 = vcmp.eq.s32.totalorder %v3502, 1
    %v3504 = vsel %vm3503, %v3497, %v3346
    %v3505 = vld [vmem:[%s1747] sm:$0xff]
    %v3506 = vld [vmem:[%s1747 + $0x8] sm:$0xff]
    %v3507 = vld [vmem:[%s1747 + $0x10] sm:$0xff]
    %v3508 = vld [vmem:[%s1747 + $0x18] sm:$0xff]
    %3509 = vmatpush.msra.mxu0 %v2557
    %3510 = vmatpush.msra.mxu0 %v2553
    %3511 = vmatpush.msra.mxu0 %v2549
    %3512 = vmatpush.msra.mxu0 %v2545
    %3513 = vmatpush.msra.mxu0 %v2541
    %3514 = vmatpush.msra.mxu0 %v2537
    %3515 = vmatpush.msra.mxu0 %v2533
    %3516 = vmatpush.msra.mxu0 %v2529
    %3517 = vmatpush.msra.mxu0 %v2525
    %3518 = vmatpush.msra.mxu0 %v2521
    %3519 = vmatpush.msra.mxu0 %v2517
    %3520 = vmatpush.msra.mxu0 %v2513
    %3521 = vmatpush.msra.mxu0 %v2509
    %3522 = vmatpush.msra.mxu0 %v2505
    %3523 = vmatpush.msra.mxu0 %v2501
    %3524 = vmatpush.msra.mxu0 %v2497
    %3525 = vmatmul.f32.gmra.mxu0 %v3497
    %v3526 = vpop.f32.mrf.mxu0
    %v3527 = vadd.f32 0.0, %v3526
    %3528 = vdwg.mxu0
    %3529 = vmatpush.msra.mxu0 %v2558
    %3530 = vmatpush.msra.mxu0 %v2554
    %3531 = vmatpush.msra.mxu0 %v2550
    %3532 = vmatpush.msra.mxu0 %v2546
    %3533 = vmatpush.msra.mxu0 %v2542
    %3534 = vmatpush.msra.mxu0 %v2538
    %3535 = vmatpush.msra.mxu0 %v2534
    %3536 = vmatpush.msra.mxu0 %v2530
    %3537 = vmatpush.msra.mxu0 %v2526
    %3538 = vmatpush.msra.mxu0 %v2522
    %3539 = vmatpush.msra.mxu0 %v2518
    %3540 = vmatpush.msra.mxu0 %v2514
    %3541 = vmatpush.msra.mxu0 %v2510
    %3542 = vmatpush.msra.mxu0 %v2506
    %3543 = vmatpush.msra.mxu0 %v2502
    %3544 = vmatpush.msra.mxu0 %v2498
    %3545 = vmatmul.f32.gmra.mxu0 %v3497
    %v3546 = vpop.f32.mrf.mxu0
    %v3547 = vadd.f32 0.0, %v3546
    %3548 = vdwg.mxu0
    %3549 = vmatpush.msra.mxu0 %v2559
    %3550 = vmatpush.msra.mxu0 %v2555
    %3551 = vmatpush.msra.mxu0 %v2551
    %3552 = vmatpush.msra.mxu0 %v2547
    %3553 = vmatpush.msra.mxu0 %v2543
    %3554 = vmatpush.msra.mxu0 %v2539
    %3555 = vmatpush.msra.mxu0 %v2535
    %3556 = vmatpush.msra.mxu0 %v2531
    %3557 = vmatpush.msra.mxu0 %v2527
    %3558 = vmatpush.msra.mxu0 %v2523
    %3559 = vmatpush.msra.mxu0 %v2519
    %3560 = vmatpush.msra.mxu0 %v2515
    %3561 = vmatpush.msra.mxu0 %v2511
    %3562 = vmatpush.msra.mxu0 %v2507
    %3563 = vmatpush.msra.mxu0 %v2503
    %3564 = vmatpush.msra.mxu0 %v2499
    %3565 = vmatmul.f32.gmra.mxu0 %v3497
    %v3566 = vpop.f32.mrf.mxu0
    %v3567 = vadd.f32 0.0, %v3566
    %3568 = vdwg.mxu0
    %3569 = vmatpush.msra.mxu0 %v2560
    %3570 = vmatpush.msra.mxu0 %v2556
    %3571 = vmatpush.msra.mxu0 %v2552
    %3572 = vmatpush.msra.mxu0 %v2548
    %3573 = vmatpush.msra.mxu0 %v2544
    %3574 = vmatpush.msra.mxu0 %v2540
    %3575 = vmatpush.msra.mxu0 %v2536
    %3576 = vmatpush.msra.mxu0 %v2532
    %3577 = vmatpush.msra.mxu0 %v2528
    %3578 = vmatpush.msra.mxu0 %v2524
    %3579 = vmatpush.msra.mxu0 %v2520
    %3580 = vmatpush.msra.mxu0 %v2516
    %3581 = vmatpush.msra.mxu0 %v2512
    %3582 = vmatpush.msra.mxu0 %v2508
    %3583 = vmatpush.msra.mxu0 %v2504
    %3584 = vmatpush.msra.mxu0 %v2500
    %3585 = vmatmul.f32.gmra.mxu0 %v3497
    %v3586 = vpop.f32.mrf.mxu0
    %v3587 = vadd.f32 0.0, %v3586
    %3588 = vdwg.mxu0
    %v3589 = vadd.f32 %v3505, %v3527
    %v3590 = vadd.f32 %v3506, %v3547
    %v3591 = vadd.f32 %v3507, %v3567
    %v3592 = vadd.f32 %v3508, %v3587
    %v3593 = vxor.u32 %v3589, 2147483648
    %v3594 = vmul.f32 %v3593, 1.442695
    %v3595 = vpow.pop %v3594
    %v3596 = vadd.f32 %v3595, 1.0
    %v3597 = vrcp.pop %v3596
    %v3598 = vmul.f32 %v3596, %v3597
    %v3599 = vsub.f32 1.0, %v3598
    %v3600 = vmul.f32 %v3597, %v3599
    %v3601 = vadd.f32 %v3597, %v3600
    %vm3602 = vweird.f32 %v3596
    %vm3603 = vweird.f32 %v3597
    %vm3604 = vmor %vm3602, %vm3603
    %v3605 = vsel %vm3604, %v3597, %v3601
    %v3606 = vand.u32 2147483647, %v3596
    %vm3607 = vcmp.eq.f32.partialorder %v3606, 8.507059e+37
    %v3608 = vand.u32 %v3596, 2147483648
    %v3609 = vor.u32 1.1754944e-38, %v3608
    %v3610 = vsel %vm3607, %v3609, %v3605
    %v3611 = vmul.f32 1.0, %v3610
    %v3612 = vxor.u32 %v3590, 2147483648
    %v3613 = vmul.f32 %v3612, 1.442695
    %v3614 = vpow.pop %v3613
    %v3615 = vadd.f32 %v3614, 1.0
    %v3616 = vrcp.pop %v3615
    %v3617 = vmul.f32 %v3615, %v3616
    %v3618 = vsub.f32 1.0, %v3617
    %v3619 = vmul.f32 %v3616, %v3618
    %v3620 = vadd.f32 %v3616, %v3619
    %vm3621 = vweird.f32 %v3615
    %vm3622 = vweird.f32 %v3616
    %vm3623 = vmor %vm3621, %vm3622
    %v3624 = vsel %vm3623, %v3616, %v3620
    %v3625 = vand.u32 2147483647, %v3615
    %vm3626 = vcmp.eq.f32.partialorder %v3625, 8.507059e+37
    %v3627 = vand.u32 %v3615, 2147483648
    %v3628 = vor.u32 1.1754944e-38, %v3627
    %v3629 = vsel %vm3626, %v3628, %v3624
    %v3630 = vmul.f32 1.0, %v3629
    %v3631 = vtanh.pop %v3591
    %v3632 = vxor.u32 %v3592, 2147483648
    %v3633 = vmul.f32 %v3632, 1.442695
    %v3634 = vpow.pop %v3633
    %v3635 = vadd.f32 %v3634, 1.0
    %v3636 = vrcp.pop %v3635
    %v3637 = vmul.f32 %v3635, %v3636
    %v3638 = vsub.f32 1.0, %v3637
    %v3639 = vmul.f32 %v3636, %v3638
    %v3640 = vadd.f32 %v3636, %v3639
    %vm3641 = vweird.f32 %v3635
    %vm3642 = vweird.f32 %v3636
    %vm3643 = vmor %vm3641, %vm3642
    %v3644 = vsel %vm3643, %v3636, %v3640
    %v3645 = vand.u32 2147483647, %v3635
    %vm3646 = vcmp.eq.f32.partialorder %v3645, 8.507059e+37
    %v3647 = vand.u32 %v3635, 2147483648
    %v3648 = vor.u32 1.1754944e-38, %v3647
    %v3649 = vsel %vm3646, %v3648, %v3644
    %v3650 = vmul.f32 1.0, %v3649
    %v3651 = vmul.f32 %v3630, %v3495
    %v3652 = vmul.f32 %v3611, %v3631
    %v3653 = vadd.f32 %v3651, %v3652
    %v3654 = vtanh.pop %v3653
    %v3655 = vmul.f32 %v3650, %v3654
    %vm3656 = vcmp.eq.s32.totalorder %v130, 6
    %v3657 = vsel %vm3656, 1, 0
    %3658 = vset.pattern.permute.xlu0 0
    %3659 = vperm.xlu0 %3658, %v3657
    %v3660 = vpop.permute.xlu0 %3659
    %vm3661 = vcmp.eq.s32.totalorder %v3660, 1
    %v3662 = vsel %vm3661, %v3655, %v3504
    %v3663 = vld [vmem:[%s1965] sm:$0xff]
    %v3664 = vld [vmem:[%s1965 + $0x8] sm:$0xff]
    %v3665 = vld [vmem:[%s1965 + $0x10] sm:$0xff]
    %v3666 = vld [vmem:[%s1965 + $0x18] sm:$0xff]
    %3667 = vmatpush.msra.mxu0 %v2557
    %3668 = vmatpush.msra.mxu0 %v2553
    %3669 = vmatpush.msra.mxu0 %v2549
    %3670 = vmatpush.msra.mxu0 %v2545
    %3671 = vmatpush.msra.mxu0 %v2541
    %3672 = vmatpush.msra.mxu0 %v2537
    %3673 = vmatpush.msra.mxu0 %v2533
    %3674 = vmatpush.msra.mxu0 %v2529
    %3675 = vmatpush.msra.mxu0 %v2525
    %3676 = vmatpush.msra.mxu0 %v2521
    %3677 = vmatpush.msra.mxu0 %v2517
    %3678 = vmatpush.msra.mxu0 %v2513
    %3679 = vmatpush.msra.mxu0 %v2509
    %3680 = vmatpush.msra.mxu0 %v2505
    %3681 = vmatpush.msra.mxu0 %v2501
    %3682 = vmatpush.msra.mxu0 %v2497
    %3683 = vmatmul.f32.gmra.mxu0 %v3655
    %v3684 = vpop.f32.mrf.mxu0
    %v3685 = vadd.f32 0.0, %v3684
    %3686 = vdwg.mxu0
    %3687 = vmatpush.msra.mxu0 %v2558
    %3688 = vmatpush.msra.mxu0 %v2554
    %3689 = vmatpush.msra.mxu0 %v2550
    %3690 = vmatpush.msra.mxu0 %v2546
    %3691 = vmatpush.msra.mxu0 %v2542
    %3692 = vmatpush.msra.mxu0 %v2538
    %3693 = vmatpush.msra.mxu0 %v2534
    %3694 = vmatpush.msra.mxu0 %v2530
    %3695 = vmatpush.msra.mxu0 %v2526
    %3696 = vmatpush.msra.mxu0 %v2522
    %3697 = vmatpush.msra.mxu0 %v2518
    %3698 = vmatpush.msra.mxu0 %v2514
    %3699 = vmatpush.msra.mxu0 %v2510
    %3700 = vmatpush.msra.mxu0 %v2506
    %3701 = vmatpush.msra.mxu0 %v2502
    %3702 = vmatpush.msra.mxu0 %v2498
    %3703 = vmatmul.f32.gmra.mxu0 %v3655
    %v3704 = vpop.f32.mrf.mxu0
    %v3705 = vadd.f32 0.0, %v3704
    %3706 = vdwg.mxu0
    %3707 = vmatpush.msra.mxu0 %v2559
    %3708 = vmatpush.msra.mxu0 %v2555
    %3709 = vmatpush.msra.mxu0 %v2551
    %3710 = vmatpush.msra.mxu0 %v2547
    %3711 = vmatpush.msra.mxu0 %v2543
    %3712 = vmatpush.msra.mxu0 %v2539
    %3713 = vmatpush.msra.mxu0 %v2535
    %3714 = vmatpush.msra.mxu0 %v2531
    %3715 = vmatpush.msra.mxu0 %v2527
    %3716 = vmatpush.msra.mxu0 %v2523
    %3717 = vmatpush.msra.mxu0 %v2519
    %3718 = vmatpush.msra.mxu0 %v2515
    %3719 = vmatpush.msra.mxu0 %v2511
    %3720 = vmatpush.msra.mxu0 %v2507
    %3721 = vmatpush.msra.mxu0 %v2503
    %3722 = vmatpush.msra.mxu0 %v2499
    %3723 = vmatmul.f32.gmra.mxu0 %v3655
    %v3724 = vpop.f32.mrf.mxu0
    %v3725 = vadd.f32 0.0, %v3724
    %3726 = vdwg.mxu0
    %3727 = vmatpush.msra.mxu0 %v2560
    %3728 = vmatpush.msra.mxu0 %v2556
    %3729 = vmatpush.msra.mxu0 %v2552
    %3730 = vmatpush.msra.mxu0 %v2548
    %3731 = vmatpush.msra.mxu0 %v2544
    %3732 = vmatpush.msra.mxu0 %v2540
    %3733 = vmatpush.msra.mxu0 %v2536
    %3734 = vmatpush.msra.mxu0 %v2532
    %3735 = vmatpush.msra.mxu0 %v2528
    %3736 = vmatpush.msra.mxu0 %v2524
    %3737 = vmatpush.msra.mxu0 %v2520
    %3738 = vmatpush.msra.mxu0 %v2516
    %3739 = vmatpush.msra.mxu0 %v2512
    %3740 = vmatpush.msra.mxu0 %v2508
    %3741 = vmatpush.msra.mxu0 %v2504
    %3742 = vmatpush.msra.mxu0 %v2500
    %3743 = vmatmul.f32.gmra.mxu0 %v3655
    %v3744 = vpop.f32.mrf.mxu0
    %v3745 = vadd.f32 0.0, %v3744
    %3746 = vdwg.mxu0
    %v3747 = vadd.f32 %v3663, %v3685
    %v3748 = vadd.f32 %v3664, %v3705
    %v3749 = vadd.f32 %v3665, %v3725
    %v3750 = vadd.f32 %v3666, %v3745
    %v3751 = vxor.u32 %v3747, 2147483648
    %v3752 = vmul.f32 %v3751, 1.442695
    %v3753 = vpow.pop %v3752
    %v3754 = vadd.f32 %v3753, 1.0
    %v3755 = vrcp.pop %v3754
    %v3756 = vmul.f32 %v3754, %v3755
    %v3757 = vsub.f32 1.0, %v3756
    %v3758 = vmul.f32 %v3755, %v3757
    %v3759 = vadd.f32 %v3755, %v3758
    %vm3760 = vweird.f32 %v3754
    %vm3761 = vweird.f32 %v3755
    %vm3762 = vmor %vm3760, %vm3761
    %v3763 = vsel %vm3762, %v3755, %v3759
    %v3764 = vand.u32 2147483647, %v3754
    %vm3765 = vcmp.eq.f32.partialorder %v3764, 8.507059e+37
    %v3766 = vand.u32 %v3754, 2147483648
    %v3767 = vor.u32 1.1754944e-38, %v3766
    %v3768 = vsel %vm3765, %v3767, %v3763
    %v3769 = vmul.f32 1.0, %v3768
    %v3770 = vxor.u32 %v3748, 2147483648
    %v3771 = vmul.f32 %v3770, 1.442695
    %v3772 = vpow.pop %v3771
    %v3773 = vadd.f32 %v3772, 1.0
    %v3774 = vrcp.pop %v3773
    %v3775 = vmul.f32 %v3773, %v3774
    %v3776 = vsub.f32 1.0, %v3775
    %v3777 = vmul.f32 %v3774, %v3776
    %v3778 = vadd.f32 %v3774, %v3777
    %vm3779 = vweird.f32 %v3773
    %vm3780 = vweird.f32 %v3774
    %vm3781 = vmor %vm3779, %vm3780
    %v3782 = vsel %vm3781, %v3774, %v3778
    %v3783 = vand.u32 2147483647, %v3773
    %vm3784 = vcmp.eq.f32.partialorder %v3783, 8.507059e+37
    %v3785 = vand.u32 %v3773, 2147483648
    %v3786 = vor.u32 1.1754944e-38, %v3785
    %v3787 = vsel %vm3784, %v3786, %v3782
    %v3788 = vmul.f32 1.0, %v3787
    %v3789 = vtanh.pop %v3749
    %v3790 = vxor.u32 %v3750, 2147483648
    %v3791 = vmul.f32 %v3790, 1.442695
    %v3792 = vpow.pop %v3791
    %v3793 = vadd.f32 %v3792, 1.0
    %v3794 = vrcp.pop %v3793
    %v3795 = vmul.f32 %v3793, %v3794
    %v3796 = vsub.f32 1.0, %v3795
    %v3797 = vmul.f32 %v3794, %v3796
    %v3798 = vadd.f32 %v3794, %v3797
    %vm3799 = vweird.f32 %v3793
    %vm3800 = vweird.f32 %v3794
    %vm3801 = vmor %vm3799, %vm3800
    %v3802 = vsel %vm3801, %v3794, %v3798
    %v3803 = vand.u32 2147483647, %v3793
    %vm3804 = vcmp.eq.f32.partialorder %v3803, 8.507059e+37
    %v3805 = vand.u32 %v3793, 2147483648
    %v3806 = vor.u32 1.1754944e-38, %v3805
    %v3807 = vsel %vm3804, %v3806, %v3802
    %v3808 = vmul.f32 1.0, %v3807
    %v3809 = vmul.f32 %v3788, %v3653
    %v3810 = vmul.f32 %v3769, %v3789
    %v3811 = vadd.f32 %v3809, %v3810
    %v3812 = vtanh.pop %v3811
    %v3813 = vmul.f32 %v3808, %v3812
    %vm3814 = vcmp.eq.s32.totalorder %v130, 7
    %v3815 = vsel %vm3814, 1, 0
    %3816 = vset.pattern.permute.xlu0 0
    %3817 = vperm.xlu0 %3816, %v3815
    %v3818 = vpop.permute.xlu0 %3817
    %vm3819 = vcmp.eq.s32.totalorder %v3818, 1
    %v3820 = vsel %vm3819, %v3813, %v3662
    %v3821 = vld [vmem:[#allocation13] sm:$0xff]
    %v3822 = vld [vmem:[#allocation13 + $0x8] sm:$0xff]
    %v3823 = vld [vmem:[#allocation13 + $0x10] sm:$0xff]
    %v3824 = vld [vmem:[#allocation13 + $0x18] sm:$0xff]
    %v3825 = vld [vmem:[#allocation13 + $0x20] sm:$0xff]
    %v3826 = vld [vmem:[#allocation13 + $0x28] sm:$0xff]
    %v3827 = vld [vmem:[#allocation13 + $0x30] sm:$0xff]
    %v3828 = vld [vmem:[#allocation13 + $0x38] sm:$0xff]
    %v3829 = vld [vmem:[#allocation13 + $0x40] sm:$0xff]
    %v3830 = vld [vmem:[#allocation13 + $0x48] sm:$0xff]
    %v3831 = vld [vmem:[#allocation13 + $0x50] sm:$0xff]
    %v3832 = vld [vmem:[#allocation13 + $0x58] sm:$0xff]
    %v3833 = vld [vmem:[#allocation13 + $0x60] sm:$0xff]
    %v3834 = vld [vmem:[#allocation13 + $0x68] sm:$0xff]
    %v3835 = vld [vmem:[#allocation13 + $0x70] sm:$0xff]
    %v3836 = vld [vmem:[#allocation13 + $0x78] sm:$0xff]
    %v3837 = vld [vmem:[%s9] sm:$0x1]
    %v3839 = vperm.slane %v3837, 0
    %3841 = vmatpush.msra.mxu0 %v3836
    %3842 = vmatpush.msra.mxu0 %v3835
    %3843 = vmatpush.msra.mxu0 %v3834
    %3844 = vmatpush.msra.mxu0 %v3833
    %3845 = vmatpush.msra.mxu0 %v3832
    %3846 = vmatpush.msra.mxu0 %v3831
    %3847 = vmatpush.msra.mxu0 %v3830
    %3848 = vmatpush.msra.mxu0 %v3829
    %3849 = vmatpush.msra.mxu0 %v3828
    %3850 = vmatpush.msra.mxu0 %v3827
    %3851 = vmatpush.msra.mxu0 %v3826
    %3852 = vmatpush.msra.mxu0 %v3825
    %3853 = vmatpush.msra.mxu0 %v3824
    %3854 = vmatpush.msra.mxu0 %v3823
    %3855 = vmatpush.msra.mxu0 %v3822
    %3856 = vmatpush.msra.mxu0 %v3821
    %3857 = vmatmul.f32.gmra.mxu0 %v3820
    %v3858 = vpop.f32.mrf.mxu0
    %v3859 = vadd.f32 %v3839, %v3858
    %3860 = vdwg.mxu0
    %3861 = vst [vmem:[#allocation15] sm:$0xff] %v3859
    // Predicated region
    $region66: #{tpu_custom_call.1} parent=1 // pred_check
      _
    $region67: #{tpu_custom_call.1} parent=1 // pred_check_branch
      %3863 = sbr.rel (0) target = $region69
    $region68: #{tpu_custom_call.1} parent=1 // pred_region
      %3865 = vsyncadd [#allocation6], 0
      %s3867 = sshll.u32 [#allocation15], 4
      %s3868 = int_to_ptr.vmem [resolvable:$true] %s3867
      %s3869 = sshll.u32 %s10, 4
      %s3870 = int_to_ptr.hbm [resolvable:$true] %s3869
      %3872 = dma.vmem_to_hbm [thread:$0]  %s3868, 128, %s3870, [#allocation6]
    $region69: #{tpu_custom_call.1} parent=1 // pred_fallthru
      _
    // Predicated region
    $region70: #{tpu_custom_call.1} parent=1 // pred_check
      _
    $region71: #{tpu_custom_call.1} parent=1 // pred_check_branch
      %3874 = sbr.rel (0) target = $region73
    $region72: #{tpu_custom_call.1} parent=1 // pred_region
      %3876 = dma.done [#allocation6], 128
    $region73: #{tpu_custom_call.1} parent=1 // pred_fallthru
      _
    %3877 = vsyncpa [#allocation5], 1
    %3878 = vsyncpa [#allocation8], 1
    %3879 = vsyncpa [#allocation11], 1
    %3880 = vsyncpa [#allocation14], 1
    %3881 = vsyncpa [#allocation6], 1

// kernel: tpu_custom_call.1
$region0: #{tpu_custom_call.1}
  #allocation0 [shape = 'u32[]', space=smem, size = 0x4, offset = 0x4, fixed_abs, tag = 'smem constant byte address 0x4 - core index']
  #allocation1 [shape = 'u32[72,128]{1,0:T(1,128)}', space=vmem, size = 0x9000, scoped, tag = 'internal scratch']
  #allocation2 [shape = 'f32[8,8,512]{2,1,0:T(8,128)}', space=vmem, size = 0x20000, scoped, tag = 'scratch operand']
  #allocation3 [shape = 'f32[8,8,128]{2,1,0:T(8,128)}', space=vmem, size = 0x8000, scoped, tag = 'scratch operand']
  %s0 = inlined_call_operand.hbm [shape: f32[1,8,8,128], index: 0, kind: input, shape index: {}]
  %s1 = inlined_call_operand.vmem [shape: s32[8,1], index: 1, kind: input, shape index: {}]
  %s2 = inlined_call_operand.hbm [shape: f32[128,512], index: 2, kind: input, shape index: {}]
  %s3 = inlined_call_operand.hbm [shape: f32[128,512], index: 3, kind: input, shape index: {}]
  %s4 = inlined_call_operand.hbm [shape: f32[128,512], index: 4, kind: input, shape index: {}]
  %s5 = inlined_call_operand.hbm [shape: f32[128,512], index: 5, kind: input, shape index: {}]
  %s6 = inlined_call_operand.vmem [shape: f32[1,512], index: 6, kind: input, shape index: {}]
  %s7 = inlined_call_operand.vmem [shape: f32[1,512], index: 7, kind: input, shape index: {}]
  %s8 = inlined_call_operand.hbm [shape: f32[128,128], index: 8, kind: input, shape index: {}]
  %s9 = inlined_call_operand.vmem [shape: f32[1,128], index: 9, kind: input, shape index: {}]
  %s10 = inlined_call_operand.hbm [shape: f32[8,128], index: 10, kind: output, shape index: {}]
  %s11 = sld [smem:[#allocation0]]
  $region74: #{tpu_custom_call.1} parent=0
    _
  %s13 = ssub.s32 1, %s11
  %s14 = scalar_select 0, %s13, %s11
  $region1: #{tpu_custom_call.1} parent=0
    #allocation4 [shape = 'u8[32768]{0}', space=vmem, size = 0x8000, scoped, tag = 'input window, operand 0, single buffered']
    #allocation5 [shape = 's32[1]{0}', space=sflag, size = 0x4, scoped, tag = 'scoped memory for tpu_custom_call.1']
    #allocation6 [shape = 's32[1]{0}', space=sflag, size = 0x4, scoped, tag = 'scoped memory for tpu_custom_call.1']
    #allocation7 [shape = 'u8[262144]{0}', space=vmem, size = 0x40000, scoped, tag = 'input window, operand 2, single buffered']
    #allocation8 [shape = 's32[1]{0}', space=sflag, size = 0x4, scoped, tag = 'scoped memory for tpu_custom_call.1']
    #allocation9 [shape = 'u8[262144]{0}', space=vmem, size = 0x40000, scoped, tag = 'input window, operand 3, single buffered']
    #allocation10 [shape = 'u8[262144]{0}', space=vmem, size = 0x40000, scoped, tag = 'input window, operand 4, single buffered']
    #allocation11 [shape = 's32[1]{0}', space=sflag, size = 0x4, scoped, tag = 'scoped memory for tpu_custom_call.1']
    #allocation12 [shape = 'u8[262144]{0}', space=vmem, size = 0x40000, scoped, tag = 'input window, operand 5, single buffered']
    #allocation13 [shape = 'u8[65536]{0}', space=vmem, size = 0x10000, scoped, tag = 'input window, operand 8, single buffered']
    #allocation14 [shape = 's32[1]{0}', space=sflag, size = 0x4, scoped, tag = 'scoped memory for tpu_custom_call.1']
    #allocation15 [shape = 'u8[4096]{0}', space=vmem, size = 0x1000, scoped, tag = 'output window, operand 0, single buffered']
    %15 = vsyncpa [#allocation5], 0
    %16 = vsyncpa [#allocation8], 0
    %17 = vsyncpa [#allocation11], 0
    %18 = vsyncpa [#allocation14], 0
    %19 = vsyncpa [#allocation6], 0
    // Predicated region
    $region2: #{tpu_custom_call.1} parent=1 // pred_check
      _
    $region3: #{tpu_custom_call.1} parent=1 // pred_check_branch
      %21 = sbr.rel (0) target = $region5
    $region4: #{tpu_custom_call.1} parent=1 // pred_region
      %23 = vsyncadd [#allocation5], 0
      %s24 = sshll.u32 %s0, 4
      %s25 = int_to_ptr.hbm [resolvable:$true] %s24
      %s26 = sshll.u32 [#allocation4], 4
      %s27 = int_to_ptr.vmem [resolvable:$true] %s26
      %32 = dma.hbm_to_vmem [thread:$0]  %s25, 1024, %s27, [#allocation5], 128, 128, 8
    $region5: #{tpu_custom_call.1} parent=1 // pred_fallthru
      _
    // Predicated region
    $region6: #{tpu_custom_call.1} parent=1 // pred_check
      _
    $region7: #{tpu_custom_call.1} parent=1 // pred_check_branch
      %34 = sbr.rel (0) target = $region9
    $region8: #{tpu_custom_call.1} parent=1 // pred_region
      _
    $region9: #{tpu_custom_call.1} parent=1 // pred_fallthru
      _
    // Predicated region
    $region10: #{tpu_custom_call.1} parent=1 // pred_check
      _
    $region11: #{tpu_custom_call.1} parent=1 // pred_check_branch
      %36 = sbr.rel (0) target = $region13
    $region12: #{tpu_custom_call.1} parent=1 // pred_region
      %38 = vsyncadd [#allocation8], 0
      %s39 = sshll.u32 %s2, 4
      %s40 = int_to_ptr.hbm [resolvable:$true] %s39
      %s41 = sshll.u32 [#allocation7], 4
      %s42 = int_to_ptr.vmem [resolvable:$true] %s41
      %47 = dma.hbm_to_vmem [thread:$0]  %s40, 8192, %s42, [#allocation8], 512, 512, 32
    $region13: #{tpu_custom_call.1} parent=1 // pred_fallthru
      _
    // Predicated region
    $region14: #{tpu_custom_call.1} parent=1 // pred_check
      _
    $region15: #{tpu_custom_call.1} parent=1 // pred_check_branch
      %49 = sbr.rel (0) target = $region17
    $region16: #{tpu_custom_call.1} parent=1 // pred_region
      %51 = vsyncadd [#allocation8], 0
      %s52 = sshll.u32 %s3, 4
      %s53 = int_to_ptr.hbm [resolvable:$true] %s52
      %s54 = sshll.u32 [#allocation9], 4
      %s55 = int_to_ptr.vmem [resolvable:$true] %s54
      %60 = dma.hbm_to_vmem [thread:$0]  %s53, 8192, %s55, [#allocation8], 512, 512, 32
    $region17: #{tpu_custom_call.1} parent=1 // pred_fallthru
      _
    // Predicated region
    $region18: #{tpu_custom_call.1} parent=1 // pred_check
      _
    $region19: #{tpu_custom_call.1} parent=1 // pred_check_branch
      %62 = sbr.rel (0) target = $region21
    $region20: #{tpu_custom_call.1} parent=1 // pred_region
      %64 = vsyncadd [#allocation11], 0
      %s65 = sshll.u32 %s4, 4
      %s66 = int_to_ptr.hbm [resolvable:$true] %s65
      %s67 = sshll.u32 [#allocation10], 4
      %s68 = int_to_ptr.vmem [resolvable:$true] %s67
      %73 = dma.hbm_to_vmem [thread:$0]  %s66, 8192, %s68, [#allocation11], 512, 512, 32
    $region21: #{tpu_custom_call.1} parent=1 // pred_fallthru
      _
    // Predicated region
    $region22: #{tpu_custom_call.1} parent=1 // pred_check
      _
    $region23: #{tpu_custom_call.1} parent=1 // pred_check_branch
      %75 = sbr.rel (0) target = $region25
    $region24: #{tpu_custom_call.1} parent=1 // pred_region
      %77 = vsyncadd [#allocation11], 0
      %s78 = sshll.u32 %s5, 4
      %s79 = int_to_ptr.hbm [resolvable:$true] %s78
      %s80 = sshll.u32 [#allocation12], 4
      %s81 = int_to_ptr.vmem [resolvable:$true] %s80
      %86 = dma.hbm_to_vmem [thread:$0]  %s79, 8192, %s81, [#allocation11], 512, 512, 32
    $region25: #{tpu_custom_call.1} parent=1 // pred_fallthru
      _
    // Predicated region
    $region26: #{tpu_custom_call.1} parent=1 // pred_check
      _
    $region27: #{tpu_custom_call.1} parent=1 // pred_check_branch
      %88 = sbr.rel (0) target = $region29
    $region28: #{tpu_custom_call.1} parent=1 // pred_region
      _
    $region29: #{tpu_custom_call.1} parent=1 // pred_fallthru
      _
    // Predicated region
    $region30: #{tpu_custom_call.1} parent=1 // pred_check
      _
    $region31: #{tpu_custom_call.1} parent=1 // pred_check_branch
      %90 = sbr.rel (0) target = $region33
    $region32: #{tpu_custom_call.1} parent=1 // pred_region
      _
    $region33: #{tpu_custom_call.1} parent=1 // pred_fallthru
      _
    // Predicated region
    $region34: #{tpu_custom_call.1} parent=1 // pred_check
      _
    $region35: #{tpu_custom_call.1} parent=1 // pred_check_branch
      %92 = sbr.rel (0) target = $region37
    $region36: #{tpu_custom_call.1} parent=1 // pred_region
      %94 = vsyncadd [#allocation14], 0
      %s95 = sshll.u32 %s8, 4
      %s96 = int_to_ptr.hbm [resolvable:$true] %s95
      %s97 = sshll.u32 [#allocation13], 4
      %s98 = int_to_ptr.vmem [resolvable:$true] %s97
      %103 = dma.hbm_to_vmem [thread:$0]  %s96, 2048, %s98, [#allocation14], 128, 128, 8
    $region37: #{tpu_custom_call.1} parent=1 // pred_fallthru
      _
    // Predicated region
    $region38: #{tpu_custom_call.1} parent=1 // pred_check
      _
    $region39: #{tpu_custom_call.1} parent=1 // pred_check_branch
      %105 = sbr.rel (0) target = $region41
    $region40: #{tpu_custom_call.1} parent=1 // pred_region
      _
    $region41: #{tpu_custom_call.1} parent=1 // pred_fallthru
      _
    // Predicated region
    $region42: #{tpu_custom_call.1} parent=1 // pred_check
      _
    $region43: #{tpu_custom_call.1} parent=1 // pred_check_branch
      %107 = sbr.rel (0) target = $region45
    $region44: #{tpu_custom_call.1} parent=1 // pred_region
      %109 = dma.done [#allocation5], 1024
    $region45: #{tpu_custom_call.1} parent=1 // pred_fallthru
      _
    // Predicated region
    $region46: #{tpu_custom_call.1} parent=1 // pred_check
      _
    $region47: #{tpu_custom_call.1} parent=1 // pred_check_branch
      %111 = sbr.rel (0) target = $region49
    $region48: #{tpu_custom_call.1} parent=1 // pred_region
      %113 = dma.done [#allocation8], 8192
    $region49: #{tpu_custom_call.1} parent=1 // pred_fallthru
      _
    // Predicated region
    $region50: #{tpu_custom_call.1} parent=1 // pred_check
      _
    $region51: #{tpu_custom_call.1} parent=1 // pred_check_branch
      %115 = sbr.rel (0) target = $region53
    $region52: #{tpu_custom_call.1} parent=1 // pred_region
      %117 = dma.done [#allocation8], 8192
    $region53: #{tpu_custom_call.1} parent=1 // pred_fallthru
      _
    // Predicated region
    $region54: #{tpu_custom_call.1} parent=1 // pred_check
      _
    $region55: #{tpu_custom_call.1} parent=1 // pred_check_branch
      %119 = sbr.rel (0) target = $region57
    $region56: #{tpu_custom_call.1} parent=1 // pred_region
      %121 = dma.done [#allocation11], 8192
    $region57: #{tpu_custom_call.1} parent=1 // pred_fallthru
      _
    // Predicated region
    $region58: #{tpu_custom_call.1} parent=1 // pred_check
      _
    $region59: #{tpu_custom_call.1} parent=1 // pred_check_branch
      %123 = sbr.rel (0) target = $region61
    $region60: #{tpu_custom_call.1} parent=1 // pred_region
      %125 = dma.done [#allocation11], 8192
    $region61: #{tpu_custom_call.1} parent=1 // pred_fallthru
      _
    // Predicated region
    $region62: #{tpu_custom_call.1} parent=1 // pred_check
      _
    $region63: #{tpu_custom_call.1} parent=1 // pred_check_branch
      %127 = sbr.rel (0) target = $region65
    $region64: #{tpu_custom_call.1} parent=1 // pred_region
      %129 = dma.done [#allocation14], 2048
    $region65: #{tpu_custom_call.1} parent=1 // pred_fallthru
      _
    %v130 = vld [vmem:[%s1] sm:$0xff]
    %v131 = vld [vmem:[#allocation4] sm:$0xff]
    %v132 = vld [vmem:[#allocation4 + $0x8] sm:$0xff]
    %v133 = vld [vmem:[#allocation4 + $0x10] sm:$0xff]
    %v134 = vld [vmem:[#allocation4 + $0x18] sm:$0xff]
    %v135 = vld [vmem:[#allocation4 + $0x20] sm:$0xff]
    %v136 = vld [vmem:[#allocation4 + $0x28] sm:$0xff]
    %v137 = vld [vmem:[#allocation4 + $0x30] sm:$0xff]
    %v138 = vld [vmem:[#allocation4 + $0x38] sm:$0xff]
    %v139 = vld [vmem:[#allocation7] sm:$0xff]
    %v140 = vld [vmem:[#allocation7 + $0x8] sm:$0xff]
    %v141 = vld [vmem:[#allocation7 + $0x10] sm:$0xff]
    %v142 = vld [vmem:[#allocation7 + $0x18] sm:$0xff]
    %v143 = vld [vmem:[#allocation7 + $0x20] sm:$0xff]
    %v144 = vld [vmem:[#allocation7 + $0x28] sm:$0xff]
    %v145 = vld [vmem:[#allocation7 + $0x30] sm:$0xff]
    %v146 = vld [vmem:[#allocation7 + $0x38] sm:$0xff]
    %v147 = vld [vmem:[#allocation7 + $0x40] sm:$0xff]
    %v148 = vld [vmem:[#allocation7 + $0x48] sm:$0xff]
    %v149 = vld [vmem:[#allocation7 + $0x50] sm:$0xff]
    %v150 = vld [vmem:[#allocation7 + $0x58] sm:$0xff]
    %v151 = vld [vmem:[#allocation7 + $0x60] sm:$0xff]
    %v152 = vld [vmem:[#allocation7 + $0x68] sm:$0xff]
    %v153 = vld [vmem:[#allocation7 + $0x70] sm:$0xff]
    %v154 = vld [vmem:[#allocation7 + $0x78] sm:$0xff]
    %v155 = vld [vmem:[#allocation7 + $0x80] sm:$0xff]
    %v156 = vld [vmem:[#allocation7 + $0x88] sm:$0xff]
    %v157 = vld [vmem:[#allocation7 + $0x90] sm:$0xff]
    %v158 = vld [vmem:[#allocation7 + $0x98] sm:$0xff]
    %v159 = vld [vmem:[#allocation7 + $0xa0] sm:$0xff]
    %v160 = vld [vmem:[#allocation7 + $0xa8] sm:$0xff]
    %v161 = vld [vmem:[#allocation7 + $0xb0] sm:$0xff]
    %v162 = vld [vmem:[#allocation7 + $0xb8] sm:$0xff]
    %v163 = vld [vmem:[#allocation7 + $0xc0] sm:$0xff]
    %v164 = vld [vmem:[#allocation7 + $0xc8] sm:$0xff]
    %v165 = vld [vmem:[#allocation7 + $0xd0] sm:$0xff]
    %v166 = vld [vmem:[#allocation7 + $0xd8] sm:$0xff]
    %v167 = vld [vmem:[#allocation7 + $0xe0] sm:$0xff]
    %v168 = vld [vmem:[#allocation7 + $0xe8] sm:$0xff]
    %v169 = vld [vmem:[#allocation7 + $0xf0] sm:$0xff]
    %v170 = vld [vmem:[#allocation7 + $0xf8] sm:$0xff]
    %v171 = vld [vmem:[#allocation7 + $0x100] sm:$0xff]
    %v172 = vld [vmem:[#allocation7 + $0x108] sm:$0xff]
    %v173 = vld [vmem:[#allocation7 + $0x110] sm:$0xff]
    %v174 = vld [vmem:[#allocation7 + $0x118] sm:$0xff]
    %v175 = vld [vmem:[#allocation7 + $0x120] sm:$0xff]
    %v176 = vld [vmem:[#allocation7 + $0x128] sm:$0xff]
    %v177 = vld [vmem:[#allocation7 + $0x130] sm:$0xff]
    %v178 = vld [vmem:[#allocation7 + $0x138] sm:$0xff]
    %v179 = vld [vmem:[#allocation7 + $0x140] sm:$0xff]
    %v180 = vld [vmem:[#allocation7 + $0x148] sm:$0xff]
    %v181 = vld [vmem:[#allocation7 + $0x150] sm:$0xff]
    %v182 = vld [vmem:[#allocation7 + $0x158] sm:$0xff]
    %v183 = vld [vmem:[#allocation7 + $0x160] sm:$0xff]
    %v184 = vld [vmem:[#allocation7 + $0x168] sm:$0xff]
    %v185 = vld [vmem:[#allocation7 + $0x170] sm:$0xff]
    %v186 = vld [vmem:[#allocation7 + $0x178] sm:$0xff]
    %v187 = vld [vmem:[#allocation7 + $0x180] sm:$0xff]
    %v188 = vld [vmem:[#allocation7 + $0x188] sm:$0xff]
    %v189 = vld [vmem:[#allocation7 + $0x190] sm:$0xff]
    %v190 = vld [vmem:[#allocation7 + $0x198] sm:$0xff]
    %v191 = vld [vmem:[#allocation7 + $0x1a0] sm:$0xff]
    %v192 = vld [vmem:[#allocation7 + $0x1a8] sm:$0xff]
    %v193 = vld [vmem:[#allocation7 + $0x1b0] sm:$0xff]
    %v194 = vld [vmem:[#allocation7 + $0x1b8] sm:$0xff]
    %v195 = vld [vmem:[#allocation7 + $0x1c0] sm:$0xff]
    %v196 = vld [vmem:[#allocation7 + $0x1c8] sm:$0xff]
    %v197 = vld [vmem:[#allocation7 + $0x1d0] sm:$0xff]
    %v198 = vld [vmem:[#allocation7 + $0x1d8] sm:$0xff]
    %v199 = vld [vmem:[#allocation7 + $0x1e0] sm:$0xff]
    %v200 = vld [vmem:[#allocation7 + $0x1e8] sm:$0xff]
    %v201 = vld [vmem:[#allocation7 + $0x1f0] sm:$0xff]
    %v202 = vld [vmem:[#allocation7 + $0x1f8] sm:$0xff]
    %203 = vmatpush.msra.mxu0 %v199
    %204 = vmatpush.msra.mxu0 %v195
    %205 = vmatpush.msra.mxu0 %v191
    %206 = vmatpush.msra.mxu0 %v187
    %207 = vmatpush.msra.mxu0 %v183
    %208 = vmatpush.msra.mxu0 %v179
    %209 = vmatpush.msra.mxu0 %v175
    %210 = vmatpush.msra.mxu0 %v171
    %211 = vmatpush.msra.mxu0 %v167
    %212 = vmatpush.msra.mxu0 %v163
    %213 = vmatpush.msra.mxu0 %v159
    %214 = vmatpush.msra.mxu0 %v155
    %215 = vmatpush.msra.mxu0 %v151
    %216 = vmatpush.msra.mxu0 %v147
    %217 = vmatpush.msra.mxu0 %v143
    %218 = vmatpush.msra.mxu0 %v139
    %219 = vmatmul.f32.gmra.mxu0 %v131
    %v220 = vpop.f32.mrf.mxu0
    %v221 = vadd.f32 0.0, %v220
    %222 = vmatmul.f32.gmra.mxu0 %v132
    %v223 = vpop.f32.mrf.mxu0
    %v224 = vadd.f32 0.0, %v223
    %225 = vmatmul.f32.gmra.mxu0 %v133
    %v226 = vpop.f32.mrf.mxu0
    %v227 = vadd.f32 0.0, %v226
    %228 = vmatmul.f32.gmra.mxu0 %v134
    %v229 = vpop.f32.mrf.mxu0
    %v230 = vadd.f32 0.0, %v229
    %231 = vmatmul.f32.gmra.mxu0 %v135
    %v232 = vpop.f32.mrf.mxu0
    %v233 = vadd.f32 0.0, %v232
    %234 = vmatmul.f32.gmra.mxu0 %v136
    %v235 = vpop.f32.mrf.mxu0
    %v236 = vadd.f32 0.0, %v235
    %237 = vmatmul.f32.gmra.mxu0 %v137
    %v238 = vpop.f32.mrf.mxu0
    %v239 = vadd.f32 0.0, %v238
    %240 = vmatmul.f32.gmra.mxu0 %v138
    %v241 = vpop.f32.mrf.mxu0
    %v242 = vadd.f32 0.0, %v241
    %243 = vdwg.mxu0
    %244 = vmatpush.msra.mxu0 %v200
    %245 = vmatpush.msra.mxu0 %v196
    %246 = vmatpush.msra.mxu0 %v192
    %247 = vmatpush.msra.mxu0 %v188
    %248 = vmatpush.msra.mxu0 %v184
    %249 = vmatpush.msra.mxu0 %v180
    %250 = vmatpush.msra.mxu0 %v176
    %251 = vmatpush.msra.mxu0 %v172
    %252 = vmatpush.msra.mxu0 %v168
    %253 = vmatpush.msra.mxu0 %v164
    %254 = vmatpush.msra.mxu0 %v160
    %255 = vmatpush.msra.mxu0 %v156
    %256 = vmatpush.msra.mxu0 %v152
    %257 = vmatpush.msra.mxu0 %v148
    %258 = vmatpush.msra.mxu0 %v144
    %259 = vmatpush.msra.mxu0 %v140
    %260 = vmatmul.f32.gmra.mxu0 %v131
    %v261 = vpop.f32.mrf.mxu0
    %v262 = vadd.f32 0.0, %v261
    %263 = vmatmul.f32.gmra.mxu0 %v132
    %v264 = vpop.f32.mrf.mxu0
    %v265 = vadd.f32 0.0, %v264
    %266 = vmatmul.f32.gmra.mxu0 %v133
    %v267 = vpop.f32.mrf.mxu0
    %v268 = vadd.f32 0.0, %v267
    %269 = vmatmul.f32.gmra.mxu0 %v134
    %v270 = vpop.f32.mrf.mxu0
    %v271 = vadd.f32 0.0, %v270
    %272 = vmatmul.f32.gmra.mxu0 %v135
    %v273 = vpop.f32.mrf.mxu0
    %v274 = vadd.f32 0.0, %v273
    %275 = vmatmul.f32.gmra.mxu0 %v136
    %v276 = vpop.f32.mrf.mxu0
    %v277 = vadd.f32 0.0, %v276
    %278 = vmatmul.f32.gmra.mxu0 %v137
    %v279 = vpop.f32.mrf.mxu0
    %v280 = vadd.f32 0.0, %v279
    %281 = vmatmul.f32.gmra.mxu0 %v138
    %v282 = vpop.f32.mrf.mxu0
    %v283 = vadd.f32 0.0, %v282
    %284 = vdwg.mxu0
    %285 = vmatpush.msra.mxu0 %v201
    %286 = vmatpush.msra.mxu0 %v197
    %287 = vmatpush.msra.mxu0 %v193
    %288 = vmatpush.msra.mxu0 %v189
    %289 = vmatpush.msra.mxu0 %v185
    %290 = vmatpush.msra.mxu0 %v181
    %291 = vmatpush.msra.mxu0 %v177
    %292 = vmatpush.msra.mxu0 %v173
    %293 = vmatpush.msra.mxu0 %v169
    %294 = vmatpush.msra.mxu0 %v165
    %295 = vmatpush.msra.mxu0 %v161
    %296 = vmatpush.msra.mxu0 %v157
    %297 = vmatpush.msra.mxu0 %v153
    %298 = vmatpush.msra.mxu0 %v149
    %299 = vmatpush.msra.mxu0 %v145
    %300 = vmatpush.msra.mxu0 %v141
    %301 = vmatmul.f32.gmra.mxu0 %v131
    %v302 = vpop.f32.mrf.mxu0
    %v303 = vadd.f32 0.0, %v302
    %304 = vmatmul.f32.gmra.mxu0 %v132
    %v305 = vpop.f32.mrf.mxu0
    %v306 = vadd.f32 0.0, %v305
    %307 = vmatmul.f32.gmra.mxu0 %v133
    %v308 = vpop.f32.mrf.mxu0
    %v309 = vadd.f32 0.0, %v308
    %310 = vmatmul.f32.gmra.mxu0 %v134
    %v311 = vpop.f32.mrf.mxu0
    %v312 = vadd.f32 0.0, %v311
    %313 = vmatmul.f32.gmra.mxu0 %v135
    %v314 = vpop.f32.mrf.mxu0
    %v315 = vadd.f32 0.0, %v314
    %316 = vmatmul.f32.gmra.mxu0 %v136
    %v317 = vpop.f32.mrf.mxu0
    %v318 = vadd.f32 0.0, %v317
    %319 = vmatmul.f32.gmra.mxu0 %v137
    %v320 = vpop.f32.mrf.mxu0
    %v321 = vadd.f32 0.0, %v320
    %322 = vmatmul.f32.gmra.mxu0 %v138
    %v323 = vpop.f32.mrf.mxu0
    %v324 = vadd.f32 0.0, %v323
    %325 = vdwg.mxu0
    %326 = vmatpush.msra.mxu0 %v202
    %327 = vmatpush.msra.mxu0 %v198
    %328 = vmatpush.msra.mxu0 %v194
    %329 = vmatpush.msra.mxu0 %v190
    %330 = vmatpush.msra.mxu0 %v186
    %331 = vmatpush.msra.mxu0 %v182
    %332 = vmatpush.msra.mxu0 %v178
    %333 = vmatpush.msra.mxu0 %v174
    %334 = vmatpush.msra.mxu0 %v170
    %335 = vmatpush.msra.mxu0 %v166
    %336 = vmatpush.msra.mxu0 %v162
    %337 = vmatpush.msra.mxu0 %v158
    %338 = vmatpush.msra.mxu0 %v154
    %339 = vmatpush.msra.mxu0 %v150
    %340 = vmatpush.msra.mxu0 %v146
    %341 = vmatpush.msra.mxu0 %v142
    %342 = vmatmul.f32.gmra.mxu0 %v131
    %v343 = vpop.f32.mrf.mxu0
    %v344 = vadd.f32 0.0, %v343
    %345 = vmatmul.f32.gmra.mxu0 %v132
    %v346 = vpop.f32.mrf.mxu0
    %v347 = vadd.f32 0.0, %v346
    %348 = vmatmul.f32.gmra.mxu0 %v133
    %v349 = vpop.f32.mrf.mxu0
    %v350 = vadd.f32 0.0, %v349
    %351 = vmatmul.f32.gmra.mxu0 %v134
    %v352 = vpop.f32.mrf.mxu0
    %v353 = vadd.f32 0.0, %v352
    %354 = vmatmul.f32.gmra.mxu0 %v135
    %v355 = vpop.f32.mrf.mxu0
    %v356 = vadd.f32 0.0, %v355
    %357 = vmatmul.f32.gmra.mxu0 %v136
    %v358 = vpop.f32.mrf.mxu0
    %v359 = vadd.f32 0.0, %v358
    %360 = vmatmul.f32.gmra.mxu0 %v137
    %v361 = vpop.f32.mrf.mxu0
    %v362 = vadd.f32 0.0, %v361
    %363 = vmatmul.f32.gmra.mxu0 %v138
    %v364 = vpop.f32.mrf.mxu0
    %v365 = vadd.f32 0.0, %v364
    %366 = vdwg.mxu0
    %v367 = vld [vmem:[%s6] sm:$0xf]
    %v369 = vperm.slane %v367, 0
    %v370 = vperm.slane %v367, 1
    %v371 = vperm.slane %v367, 2
    %v372 = vperm.slane %v367, 3
    %v377 = vadd.f32 %v221, %v369
    %v378 = vadd.f32 %v262, %v370
    %v379 = vadd.f32 %v303, %v371
    %v380 = vadd.f32 %v344, %v372
    %v381 = vadd.f32 %v224, %v369
    %v382 = vadd.f32 %v265, %v370
    %v383 = vadd.f32 %v306, %v371
    %v384 = vadd.f32 %v347, %v372
    %v385 = vadd.f32 %v227, %v369
    %v386 = vadd.f32 %v268, %v370
    %v387 = vadd.f32 %v309, %v371
    %v388 = vadd.f32 %v350, %v372
    %v389 = vadd.f32 %v230, %v369
    %v390 = vadd.f32 %v271, %v370
    %v391 = vadd.f32 %v312, %v371
    %v392 = vadd.f32 %v353, %v372
    %v393 = vadd.f32 %v233, %v369
    %v394 = vadd.f32 %v274, %v370
    %v395 = vadd.f32 %v315, %v371
    %v396 = vadd.f32 %v356, %v372
    %v397 = vadd.f32 %v236, %v369
    %v398 = vadd.f32 %v277, %v370
    %v399 = vadd.f32 %v318, %v371
    %v400 = vadd.f32 %v359, %v372
    %v401 = vadd.f32 %v239, %v369
    %v402 = vadd.f32 %v280, %v370
    %v403 = vadd.f32 %v321, %v371
    %v404 = vadd.f32 %v362, %v372
    %v405 = vadd.f32 %v242, %v369
    %v406 = vadd.f32 %v283, %v370
    %v407 = vadd.f32 %v324, %v371
    %v408 = vadd.f32 %v365, %v372
    %409 = vst [vmem:[#allocation2] sm:$0xff] %v377
    %410 = vst [vmem:[#allocation2 + $0x8] sm:$0xff] %v378
    %411 = vst [vmem:[#allocation2 + $0x10] sm:$0xff] %v379
    %412 = vst [vmem:[#allocation2 + $0x18] sm:$0xff] %v380
    %413 = vst [vmem:[#allocation2 + $0x20] sm:$0xff] %v381
    %414 = vst [vmem:[#allocation2 + $0x28] sm:$0xff] %v382
    %415 = vst [vmem:[#allocation2 + $0x30] sm:$0xff] %v383
    %416 = vst [vmem:[#allocation2 + $0x38] sm:$0xff] %v384
    %417 = vst [vmem:[#allocation2 + $0x40] sm:$0xff] %v385
    %418 = vst [vmem:[#allocation2 + $0x48] sm:$0xff] %v386
    %419 = vst [vmem:[#allocation2 + $0x50] sm:$0xff] %v387
    %420 = vst [vmem:[#allocation2 + $0x58] sm:$0xff] %v388
    %421 = vst [vmem:[#allocation2 + $0x60] sm:$0xff] %v389
    %422 = vst [vmem:[#allocation2 + $0x68] sm:$0xff] %v390
    %423 = vst [vmem:[#allocation2 + $0x70] sm:$0xff] %v391
    %424 = vst [vmem:[#allocation2 + $0x78] sm:$0xff] %v392
    %425 = vst [vmem:[#allocation2 + $0x80] sm:$0xff] %v393
    %426 = vst [vmem:[#allocation2 + $0x88] sm:$0xff] %v394
    %427 = vst [vmem:[#allocation2 + $0x90] sm:$0xff] %v395
    %428 = vst [vmem:[#allocation2 + $0x98] sm:$0xff] %v396
    %429 = vst [vmem:[#allocation2 + $0xa0] sm:$0xff] %v397
    %430 = vst [vmem:[#allocation2 + $0xa8] sm:$0xff] %v398
    %431 = vst [vmem:[#allocation2 + $0xb0] sm:$0xff] %v399
    %432 = vst [vmem:[#allocation2 + $0xb8] sm:$0xff] %v400
    %433 = vst [vmem:[#allocation2 + $0xc0] sm:$0xff] %v401
    %434 = vst [vmem:[#allocation2 + $0xc8] sm:$0xff] %v402
    %435 = vst [vmem:[#allocation2 + $0xd0] sm:$0xff] %v403
    %436 = vst [vmem:[#allocation2 + $0xd8] sm:$0xff] %v404
    %437 = vst [vmem:[#allocation2 + $0xe0] sm:$0xff] %v405
    %438 = vst [vmem:[#allocation2 + $0xe8] sm:$0xff] %v406
    %439 = vst [vmem:[#allocation2 + $0xf0] sm:$0xff] %v407
    %440 = vst [vmem:[#allocation2 + $0xf8] sm:$0xff] %v408
    %v441 = vld [vmem:[#allocation2] sm:$0xff]
    %v442 = vld [vmem:[#allocation2 + $0x8] sm:$0xff]
    %v443 = vld [vmem:[#allocation2 + $0x10] sm:$0xff]
    %v444 = vld [vmem:[#allocation2 + $0x18] sm:$0xff]
    %v445 = vld [vmem:[#allocation10] sm:$0xff]
    %v446 = vld [vmem:[#allocation10 + $0x8] sm:$0xff]
    %v447 = vld [vmem:[#allocation10 + $0x10] sm:$0xff]
    %v448 = vld [vmem:[#allocation10 + $0x18] sm:$0xff]
    %v449 = vld [vmem:[#allocation10 + $0x20] sm:$0xff]
    %v450 = vld [vmem:[#allocation10 + $0x28] sm:$0xff]
    %v451 = vld [vmem:[#allocation10 + $0x30] sm:$0xff]
    %v452 = vld [vmem:[#allocation10 + $0x38] sm:$0xff]
    %v453 = vld [vmem:[#allocation10 + $0x40] sm:$0xff]
    %v454 = vld [vmem:[#allocation10 + $0x48] sm:$0xff]
    %v455 = vld [vmem:[#allocation10 + $0x50] sm:$0xff]
    %v456 = vld [vmem:[#allocation10 + $0x58] sm:$0xff]
    %v457 = vld [vmem:[#allocation10 + $0x60] sm:$0xff]
    %v458 = vld [vmem:[#allocation10 + $0x68] sm:$0xff]
    %v459 = vld [vmem:[#allocation10 + $0x70] sm:$0xff]
    %v460 = vld [vmem:[#allocation10 + $0x78] sm:$0xff]
    %v461 = vld [vmem:[#allocation10 + $0x80] sm:$0xff]
    %v462 = vld [vmem:[#allocation10 + $0x88] sm:$0xff]
    %v463 = vld [vmem:[#allocation10 + $0x90] sm:$0xff]
    %v464 = vld [vmem:[#allocation10 + $0x98] sm:$0xff]
    %v465 = vld [vmem:[#allocation10 + $0xa0] sm:$0xff]
    %v466 = vld [vmem:[#allocation10 + $0xa8] sm:$0xff]
    %v467 = vld [vmem:[#allocation10 + $0xb0] sm:$0xff]
    %v468 = vld [vmem:[#allocation10 + $0xb8] sm:$0xff]
    %v469 = vld [vmem:[#allocation10 + $0xc0] sm:$0xff]
    %v470 = vld [vmem:[#allocation10 + $0xc8] sm:$0xff]
    %v471 = vld [vmem:[#allocation10 + $0xd0] sm:$0xff]
    %v472 = vld [vmem:[#allocation10 + $0xd8] sm:$0xff]
    %v473 = vld [vmem:[#allocation10 + $0xe0] sm:$0xff]
    %v474 = vld [vmem:[#allocation10 + $0xe8] sm:$0xff]
    %v475 = vld [vmem:[#allocation10 + $0xf0] sm:$0xff]
    %v476 = vld [vmem:[#allocation10 + $0xf8] sm:$0xff]
    %v477 = vld [vmem:[#allocation10 + $0x100] sm:$0xff]
    %v478 = vld [vmem:[#allocation10 + $0x108] sm:$0xff]
    %v479 = vld [vmem:[#allocation10 + $0x110] sm:$0xff]
    %v480 = vld [vmem:[#allocation10 + $0x118] sm:$0xff]
    %v481 = vld [vmem:[#allocation10 + $0x120] sm:$0xff]
    %v482 = vld [vmem:[#allocation10 + $0x128] sm:$0xff]
    %v483 = vld [vmem:[#allocation10 + $0x130] sm:$0xff]
    %v484 = vld [vmem:[#allocation10 + $0x138] sm:$0xff]
    %v485 = vld [vmem:[#allocation10 + $0x140] sm:$0xff]
    %v486 = vld [vmem:[#allocation10 + $0x148] sm:$0xff]
    %v487 = vld [vmem:[#allocation10 + $0x150] sm:$0xff]
    %v488 = vld [vmem:[#allocation10 + $0x158] sm:$0xff]
    %v489 = vld [vmem:[#allocation10 + $0x160] sm:$0xff]
    %v490 = vld [vmem:[#allocation10 + $0x168] sm:$0xff]
    %v491 = vld [vmem:[#allocation10 + $0x170] sm:$0xff]
    %v492 = vld [vmem:[#allocation10 + $0x178] sm:$0xff]
    %v493 = vld [vmem:[#allocation10 + $0x180] sm:$0xff]
    %v494 = vld [vmem:[#allocation10 + $0x188] sm:$0xff]
    %v495 = vld [vmem:[#allocation10 + $0x190] sm:$0xff]
    %v496 = vld [vmem:[#allocation10 + $0x198] sm:$0xff]
    %v497 = vld [vmem:[#allocation10 + $0x1a0] sm:$0xff]
    %v498 = vld [vmem:[#allocation10 + $0x1a8] sm:$0xff]
    %v499 = vld [vmem:[#allocation10 + $0x1b0] sm:$0xff]
    %v500 = vld [vmem:[#allocation10 + $0x1b8] sm:$0xff]
    %v501 = vld [vmem:[#allocation10 + $0x1c0] sm:$0xff]
    %v502 = vld [vmem:[#allocation10 + $0x1c8] sm:$0xff]
    %v503 = vld [vmem:[#allocation10 + $0x1d0] sm:$0xff]
    %v504 = vld [vmem:[#allocation10 + $0x1d8] sm:$0xff]
    %v505 = vld [vmem:[#allocation10 + $0x1e0] sm:$0xff]
    %v506 = vld [vmem:[#allocation10 + $0x1e8] sm:$0xff]
    %v507 = vld [vmem:[#allocation10 + $0x1f0] sm:$0xff]
    %v508 = vld [vmem:[#allocation10 + $0x1f8] sm:$0xff]
    %509 = vmatpush.msra.mxu0 %v505
    %510 = vmatpush.msra.mxu0 %v501
    %511 = vmatpush.msra.mxu0 %v497
    %512 = vmatpush.msra.mxu0 %v493
    %513 = vmatpush.msra.mxu0 %v489
    %514 = vmatpush.msra.mxu0 %v485
    %515 = vmatpush.msra.mxu0 %v481
    %516 = vmatpush.msra.mxu0 %v477
    %517 = vmatpush.msra.mxu0 %v473
    %518 = vmatpush.msra.mxu0 %v469
    %519 = vmatpush.msra.mxu0 %v465
    %520 = vmatpush.msra.mxu0 %v461
    %521 = vmatpush.msra.mxu0 %v457
    %522 = vmatpush.msra.mxu0 %v453
    %523 = vmatpush.msra.mxu0 %v449
    %524 = vmatpush.msra.mxu0 %v445
    %525 = vmatmul.f32.gmra.mxu0 0.0
    %v526 = vpop.f32.mrf.mxu0
    %v527 = vadd.f32 0.0, %v526
    %528 = vdwg.mxu0
    %529 = vmatpush.msra.mxu0 %v506
    %530 = vmatpush.msra.mxu0 %v502
    %531 = vmatpush.msra.mxu0 %v498
    %532 = vmatpush.msra.mxu0 %v494
    %533 = vmatpush.msra.mxu0 %v490
    %534 = vmatpush.msra.mxu0 %v486
    %535 = vmatpush.msra.mxu0 %v482
    %536 = vmatpush.msra.mxu0 %v478
    %537 = vmatpush.msra.mxu0 %v474
    %538 = vmatpush.msra.mxu0 %v470
    %539 = vmatpush.msra.mxu0 %v466
    %540 = vmatpush.msra.mxu0 %v462
    %541 = vmatpush.msra.mxu0 %v458
    %542 = vmatpush.msra.mxu0 %v454
    %543 = vmatpush.msra.mxu0 %v450
    %544 = vmatpush.msra.mxu0 %v446
    %545 = vmatmul.f32.gmra.mxu0 0.0
    %v546 = vpop.f32.mrf.mxu0
    %v547 = vadd.f32 0.0, %v546
    %548 = vdwg.mxu0
    %549 = vmatpush.msra.mxu0 %v507
    %550 = vmatpush.msra.mxu0 %v503
    %551 = vmatpush.msra.mxu0 %v499
    %552 = vmatpush.msra.mxu0 %v495
    %553 = vmatpush.msra.mxu0 %v491
    %554 = vmatpush.msra.mxu0 %v487
    %555 = vmatpush.msra.mxu0 %v483
    %556 = vmatpush.msra.mxu0 %v479
    %557 = vmatpush.msra.mxu0 %v475
    %558 = vmatpush.msra.mxu0 %v471
    %559 = vmatpush.msra.mxu0 %v467
    %560 = vmatpush.msra.mxu0 %v463
    %561 = vmatpush.msra.mxu0 %v459
    %562 = vmatpush.msra.mxu0 %v455
    %563 = vmatpush.msra.mxu0 %v451
    %564 = vmatpush.msra.mxu0 %v447
    %565 = vmatmul.f32.gmra.mxu0 0.0
    %v566 = vpop.f32.mrf.mxu0
    %v567 = vadd.f32 0.0, %v566
    %568 = vdwg.mxu0
    %569 = vmatpush.msra.mxu0 %v508
    %570 = vmatpush.msra.mxu0 %v504
    %571 = vmatpush.msra.mxu0 %v500
    %572 = vmatpush.msra.mxu0 %v496
    %573 = vmatpush.msra.mxu0 %v492
    %574 = vmatpush.msra.mxu0 %v488
    %575 = vmatpush.msra.mxu0 %v484
    %576 = vmatpush.msra.mxu0 %v480
    %577 = vmatpush.msra.mxu0 %v476
    %578 = vmatpush.msra.mxu0 %v472
    %579 = vmatpush.msra.mxu0 %v468
    %580 = vmatpush.msra.mxu0 %v464
    %581 = vmatpush.msra.mxu0 %v460
    %582 = vmatpush.msra.mxu0 %v456
    %583 = vmatpush.msra.mxu0 %v452
    %584 = vmatpush.msra.mxu0 %v448
    %585 = vmatmul.f32.gmra.mxu0 0.0
    %v586 = vpop.f32.mrf.mxu0
    %v587 = vadd.f32 0.0, %v586
    %588 = vdwg.mxu0
    %v589 = vadd.f32 %v441, %v527
    %v590 = vadd.f32 %v442, %v547
    %v591 = vadd.f32 %v443, %v567
    %v592 = vadd.f32 %v444, %v587
    %v593 = vxor.u32 %v589, 2147483648
    %v594 = vmul.f32 %v593, 1.442695
    %v595 = vpow.pop %v594
    %v596 = vadd.f32 %v595, 1.0
    %v597 = vrcp.pop %v596
    %v598 = vmul.f32 %v596, %v597
    %v599 = vsub.f32 1.0, %v598
    %v600 = vmul.f32 %v597, %v599
    %v601 = vadd.f32 %v597, %v600
    %vm602 = vweird.f32 %v596
    %vm603 = vweird.f32 %v597
    %vm604 = vmor %vm602, %vm603
    %v605 = vsel %vm604, %v597, %v601
    %v606 = vand.u32 2147483647, %v596
    %vm607 = vcmp.eq.f32.partialorder %v606, 8.507059e+37
    %v608 = vand.u32 %v596, 2147483648
    %v609 = vor.u32 1.1754944e-38, %v608
    %v610 = vsel %vm607, %v609, %v605
    %v611 = vmul.f32 1.0, %v610
    %v612 = vxor.u32 %v590, 2147483648
    %v613 = vmul.f32 %v612, 1.442695
    %v614 = vpow.pop %v613
    %v615 = vadd.f32 %v614, 1.0
    %v616 = vrcp.pop %v615
    %v617 = vmul.f32 %v615, %v616
    %v618 = vsub.f32 1.0, %v617
    %v619 = vmul.f32 %v616, %v618
    %v620 = vadd.f32 %v616, %v619
    %vm621 = vweird.f32 %v615
    %vm622 = vweird.f32 %v616
    %vm623 = vmor %vm621, %vm622
    %v624 = vsel %vm623, %v616, %v620
    %v625 = vand.u32 2147483647, %v615
    %vm626 = vcmp.eq.f32.partialorder %v625, 8.507059e+37
    %v627 = vand.u32 %v615, 2147483648
    %v628 = vor.u32 1.1754944e-38, %v627
    %v629 = vsel %vm626, %v628, %v624
    %v630 = vmul.f32 1.0, %v629
    %v631 = vtanh.pop %v591
    %v632 = vxor.u32 %v592, 2147483648
    %v633 = vmul.f32 %v632, 1.442695
    %v634 = vpow.pop %v633
    %v635 = vadd.f32 %v634, 1.0
    %v636 = vrcp.pop %v635
    %v637 = vmul.f32 %v635, %v636
    %v638 = vsub.f32 1.0, %v637
    %v639 = vmul.f32 %v636, %v638
    %v640 = vadd.f32 %v636, %v639
    %vm641 = vweird.f32 %v635
    %vm642 = vweird.f32 %v636
    %vm643 = vmor %vm641, %vm642
    %v644 = vsel %vm643, %v636, %v640
    %v645 = vand.u32 2147483647, %v635
    %vm646 = vcmp.eq.f32.partialorder %v645, 8.507059e+37
    %v647 = vand.u32 %v635, 2147483648
    %v648 = vor.u32 1.1754944e-38, %v647
    %v649 = vsel %vm646, %v648, %v644
    %v650 = vmul.f32 1.0, %v649
    %v651 = vmul.f32 %v630, 0.0
    %v652 = vmul.f32 %v611, %v631
    %v653 = vadd.f32 %v651, %v652
    %v654 = vtanh.pop %v653
    %v655 = vmul.f32 %v650, %v654
    %656 = vst [vmem:[#allocation3] sm:$0xff] %v655
    %s657 = scalar_lea.vmem [#allocation2], 32
    %v658 = vld [vmem:[%s657] sm:$0xff]
    %v659 = vld [vmem:[%s657 + $0x8] sm:$0xff]
    %v660 = vld [vmem:[%s657 + $0x10] sm:$0xff]
    %v661 = vld [vmem:[%s657 + $0x18] sm:$0xff]
    %v662 = vld [vmem:[#allocation10] sm:$0xff]
    %v663 = vld [vmem:[#allocation10 + $0x8] sm:$0xff]
    %v664 = vld [vmem:[#allocation10 + $0x10] sm:$0xff]
    %v665 = vld [vmem:[#allocation10 + $0x18] sm:$0xff]
    %v666 = vld [vmem:[#allocation10 + $0x20] sm:$0xff]
    %v667 = vld [vmem:[#allocation10 + $0x28] sm:$0xff]
    %v668 = vld [vmem:[#allocation10 + $0x30] sm:$0xff]
    %v669 = vld [vmem:[#allocation10 + $0x38] sm:$0xff]
    %v670 = vld [vmem:[#allocation10 + $0x40] sm:$0xff]
    %v671 = vld [vmem:[#allocation10 + $0x48] sm:$0xff]
    %v672 = vld [vmem:[#allocation10 + $0x50] sm:$0xff]
    %v673 = vld [vmem:[#allocation10 + $0x58] sm:$0xff]
    %v674 = vld [vmem:[#allocation10 + $0x60] sm:$0xff]
    %v675 = vld [vmem:[#allocation10 + $0x68] sm:$0xff]
    %v676 = vld [vmem:[#allocation10 + $0x70] sm:$0xff]
    %v677 = vld [vmem:[#allocation10 + $0x78] sm:$0xff]
    %v678 = vld [vmem:[#allocation10 + $0x80] sm:$0xff]
    %v679 = vld [vmem:[#allocation10 + $0x88] sm:$0xff]
    %v680 = vld [vmem:[#allocation10 + $0x90] sm:$0xff]
    %v681 = vld [vmem:[#allocation10 + $0x98] sm:$0xff]
    %v682 = vld [vmem:[#allocation10 + $0xa0] sm:$0xff]
    %v683 = vld [vmem:[#allocation10 + $0xa8] sm:$0xff]
    %v684 = vld [vmem:[#allocation10 + $0xb0] sm:$0xff]
    %v685 = vld [vmem:[#allocation10 + $0xb8] sm:$0xff]
    %v686 = vld [vmem:[#allocation10 + $0xc0] sm:$0xff]
    %v687 = vld [vmem:[#allocation10 + $0xc8] sm:$0xff]
    %v688 = vld [vmem:[#allocation10 + $0xd0] sm:$0xff]
    %v689 = vld [vmem:[#allocation10 + $0xd8] sm:$0xff]
    %v690 = vld [vmem:[#allocation10 + $0xe0] sm:$0xff]
    %v691 = vld [vmem:[#allocation10 + $0xe8] sm:$0xff]
    %v692 = vld [vmem:[#allocation10 + $0xf0] sm:$0xff]
    %v693 = vld [vmem:[#allocation10 + $0xf8] sm:$0xff]
    %v694 = vld [vmem:[#allocation10 + $0x100] sm:$0xff]
    %v695 = vld [vmem:[#allocation10 + $0x108] sm:$0xff]
    %v696 = vld [vmem:[#allocation10 + $0x110] sm:$0xff]
    %v697 = vld [vmem:[#allocation10 + $0x118] sm:$0xff]
    %v698 = vld [vmem:[#allocation10 + $0x120] sm:$0xff]
    %v699 = vld [vmem:[#allocation10 + $0x128] sm:$0xff]
    %v700 = vld [vmem:[#allocation10 + $0x130] sm:$0xff]
    %v701 = vld [vmem:[#allocation10 + $0x138] sm:$0xff]
    %v702 = vld [vmem:[#allocation10 + $0x140] sm:$0xff]
    %v703 = vld [vmem:[#allocation10 + $0x148] sm:$0xff]
    %v704 = vld [vmem:[#allocation10 + $0x150] sm:$0xff]
    %v705 = vld [vmem:[#allocation10 + $0x158] sm:$0xff]
    %v706 = vld [vmem:[#allocation10 + $0x160] sm:$0xff]
    %v707 = vld [vmem:[#allocation10 + $0x168] sm:$0xff]
    %v708 = vld [vmem:[#allocation10 + $0x170] sm:$0xff]
    %v709 = vld [vmem:[#allocation10 + $0x178] sm:$0xff]
    %v710 = vld [vmem:[#allocation10 + $0x180] sm:$0xff]
    %v711 = vld [vmem:[#allocation10 + $0x188] sm:$0xff]
    %v712 = vld [vmem:[#allocation10 + $0x190] sm:$0xff]
    %v713 = vld [vmem:[#allocation10 + $0x198] sm:$0xff]
    %v714 = vld [vmem:[#allocation10 + $0x1a0] sm:$0xff]
    %v715 = vld [vmem:[#allocation10 + $0x1a8] sm:$0xff]
    %v716 = vld [vmem:[#allocation10 + $0x1b0] sm:$0xff]
    %v717 = vld [vmem:[#allocation10 + $0x1b8] sm:$0xff]
    %v718 = vld [vmem:[#allocation10 + $0x1c0] sm:$0xff]
    %v719 = vld [vmem:[#allocation10 + $0x1c8] sm:$0xff]
    %v720 = vld [vmem:[#allocation10 + $0x1d0] sm:$0xff]
    %v721 = vld [vmem:[#allocation10 + $0x1d8] sm:$0xff]
    %v722 = vld [vmem:[#allocation10 + $0x1e0] sm:$0xff]
    %v723 = vld [vmem:[#allocation10 + $0x1e8] sm:$0xff]
    %v724 = vld [vmem:[#allocation10 + $0x1f0] sm:$0xff]
    %v725 = vld [vmem:[#allocation10 + $0x1f8] sm:$0xff]
    %726 = vmatpush.msra.mxu0 %v722
    %727 = vmatpush.msra.mxu0 %v718
    %728 = vmatpush.msra.mxu0 %v714
    %729 = vmatpush.msra.mxu0 %v710
    %730 = vmatpush.msra.mxu0 %v706
    %731 = vmatpush.msra.mxu0 %v702
    %732 = vmatpush.msra.mxu0 %v698
    %733 = vmatpush.msra.mxu0 %v694
    %734 = vmatpush.msra.mxu0 %v690
    %735 = vmatpush.msra.mxu0 %v686
    %736 = vmatpush.msra.mxu0 %v682
    %737 = vmatpush.msra.mxu0 %v678
    %738 = vmatpush.msra.mxu0 %v674
    %739 = vmatpush.msra.mxu0 %v670
    %740 = vmatpush.msra.mxu0 %v666
    %741 = vmatpush.msra.mxu0 %v662
    %742 = vmatmul.f32.gmra.mxu0 %v655
    %v743 = vpop.f32.mrf.mxu0
    %v744 = vadd.f32 0.0, %v743
    %745 = vdwg.mxu0
    %746 = vmatpush.msra.mxu0 %v723
    %747 = vmatpush.msra.mxu0 %v719
    %748 = vmatpush.msra.mxu0 %v715
    %749 = vmatpush.msra.mxu0 %v711
    %750 = vmatpush.msra.mxu0 %v707
    %751 = vmatpush.msra.mxu0 %v703
    %752 = vmatpush.msra.mxu0 %v699
    %753 = vmatpush.msra.mxu0 %v695
    %754 = vmatpush.msra.mxu0 %v691
    %755 = vmatpush.msra.mxu0 %v687
    %756 = vmatpush.msra.mxu0 %v683
    %757 = vmatpush.msra.mxu0 %v679
    %758 = vmatpush.msra.mxu0 %v675
    %759 = vmatpush.msra.mxu0 %v671
    %760 = vmatpush.msra.mxu0 %v667
    %761 = vmatpush.msra.mxu0 %v663
    %762 = vmatmul.f32.gmra.mxu0 %v655
    %v763 = vpop.f32.mrf.mxu0
    %v764 = vadd.f32 0.0, %v763
    %765 = vdwg.mxu0
    %766 = vmatpush.msra.mxu0 %v724
    %767 = vmatpush.msra.mxu0 %v720
    %768 = vmatpush.msra.mxu0 %v716
    %769 = vmatpush.msra.mxu0 %v712
    %770 = vmatpush.msra.mxu0 %v708
    %771 = vmatpush.msra.mxu0 %v704
    %772 = vmatpush.msra.mxu0 %v700
    %773 = vmatpush.msra.mxu0 %v696
    %774 = vmatpush.msra.mxu0 %v692
    %775 = vmatpush.msra.mxu0 %v688
    %776 = vmatpush.msra.mxu0 %v684
    %777 = vmatpush.msra.mxu0 %v680
    %778 = vmatpush.msra.mxu0 %v676
    %779 = vmatpush.msra.mxu0 %v672
    %780 = vmatpush.msra.mxu0 %v668
    %781 = vmatpush.msra.mxu0 %v664
    %782 = vmatmul.f32.gmra.mxu0 %v655
    %v783 = vpop.f32.mrf.mxu0
    %v784 = vadd.f32 0.0, %v783
    %785 = vdwg.mxu0
    %786 = vmatpush.msra.mxu0 %v725
    %787 = vmatpush.msra.mxu0 %v721
    %788 = vmatpush.msra.mxu0 %v717
    %789 = vmatpush.msra.mxu0 %v713
    %790 = vmatpush.msra.mxu0 %v709
    %791 = vmatpush.msra.mxu0 %v705
    %792 = vmatpush.msra.mxu0 %v701
    %793 = vmatpush.msra.mxu0 %v697
    %794 = vmatpush.msra.mxu0 %v693
    %795 = vmatpush.msra.mxu0 %v689
    %796 = vmatpush.msra.mxu0 %v685
    %797 = vmatpush.msra.mxu0 %v681
    %798 = vmatpush.msra.mxu0 %v677
    %799 = vmatpush.msra.mxu0 %v673
    %800 = vmatpush.msra.mxu0 %v669
    %801 = vmatpush.msra.mxu0 %v665
    %802 = vmatmul.f32.gmra.mxu0 %v655
    %v803 = vpop.f32.mrf.mxu0
    %v804 = vadd.f32 0.0, %v803
    %805 = vdwg.mxu0
    %v806 = vadd.f32 %v658, %v744
    %v807 = vadd.f32 %v659, %v764
    %v808 = vadd.f32 %v660, %v784
    %v809 = vadd.f32 %v661, %v804
    %v810 = vxor.u32 %v806, 2147483648
    %v811 = vmul.f32 %v810, 1.442695
    %v812 = vpow.pop %v811
    %v813 = vadd.f32 %v812, 1.0
    %v814 = vrcp.pop %v813
    %v815 = vmul.f32 %v813, %v814
    %v816 = vsub.f32 1.0, %v815
    %v817 = vmul.f32 %v814, %v816
    %v818 = vadd.f32 %v814, %v817
    %vm819 = vweird.f32 %v813
    %vm820 = vweird.f32 %v814
    %vm821 = vmor %vm819, %vm820
    %v822 = vsel %vm821, %v814, %v818
    %v823 = vand.u32 2147483647, %v813
    %vm824 = vcmp.eq.f32.partialorder %v823, 8.507059e+37
    %v825 = vand.u32 %v813, 2147483648
    %v826 = vor.u32 1.1754944e-38, %v825
    %v827 = vsel %vm824, %v826, %v822
    %v828 = vmul.f32 1.0, %v827
    %v829 = vxor.u32 %v807, 2147483648
    %v830 = vmul.f32 %v829, 1.442695
    %v831 = vpow.pop %v830
    %v832 = vadd.f32 %v831, 1.0
    %v833 = vrcp.pop %v832
    %v834 = vmul.f32 %v832, %v833
    %v835 = vsub.f32 1.0, %v834
    %v836 = vmul.f32 %v833, %v835
    %v837 = vadd.f32 %v833, %v836
    %vm838 = vweird.f32 %v832
    %vm839 = vweird.f32 %v833
    %vm840 = vmor %vm838, %vm839
    %v841 = vsel %vm840, %v833, %v837
    %v842 = vand.u32 2147483647, %v832
    %vm843 = vcmp.eq.f32.partialorder %v842, 8.507059e+37
    %v844 = vand.u32 %v832, 2147483648
    %v845 = vor.u32 1.1754944e-38, %v844
    %v846 = vsel %vm843, %v845, %v841
    %v847 = vmul.f32 1.0, %v846
    %v848 = vtanh.pop %v808
    %v849 = vxor.u32 %v809, 2147483648
    %v850 = vmul.f32 %v849, 1.442695
    %v851 = vpow.pop %v850
    %v852 = vadd.f32 %v851, 1.0
    %v853 = vrcp.pop %v852
    %v854 = vmul.f32 %v852, %v853
    %v855 = vsub.f32 1.0, %v854
    %v856 = vmul.f32 %v853, %v855
    %v857 = vadd.f32 %v853, %v856
    %vm858 = vweird.f32 %v852
    %vm859 = vweird.f32 %v853
    %vm860 = vmor %vm858, %vm859
    %v861 = vsel %vm860, %v853, %v857
    %v862 = vand.u32 2147483647, %v852
    %vm863 = vcmp.eq.f32.partialorder %v862, 8.507059e+37
    %v864 = vand.u32 %v852, 2147483648
    %v865 = vor.u32 1.1754944e-38, %v864
    %v866 = vsel %vm863, %v865, %v861
    %v867 = vmul.f32 1.0, %v866
    %v868 = vmul.f32 %v847, %v653
    %v869 = vmul.f32 %v828, %v848
    %v870 = vadd.f32 %v868, %v869
    %v871 = vtanh.pop %v870
    %v872 = vmul.f32 %v867, %v871
    %s873 = scalar_lea.vmem [#allocation3], 8
    %874 = vst [vmem:[%s873] sm:$0xff] %v872
    %s875 = scalar_lea.vmem [#allocation2], 64
    %v876 = vld [vmem:[%s875] sm:$0xff]
    %v877 = vld [vmem:[%s875 + $0x8] sm:$0xff]
    %v878 = vld [vmem:[%s875 + $0x10] sm:$0xff]
    %v879 = vld [vmem:[%s875 + $0x18] sm:$0xff]
    %v880 = vld [vmem:[#allocation10] sm:$0xff]
    %v881 = vld [vmem:[#allocation10 + $0x8] sm:$0xff]
    %v882 = vld [vmem:[#allocation10 + $0x10] sm:$0xff]
    %v883 = vld [vmem:[#allocation10 + $0x18] sm:$0xff]
    %v884 = vld [vmem:[#allocation10 + $0x20] sm:$0xff]
    %v885 = vld [vmem:[#allocation10 + $0x28] sm:$0xff]
    %v886 = vld [vmem:[#allocation10 + $0x30] sm:$0xff]
    %v887 = vld [vmem:[#allocation10 + $0x38] sm:$0xff]
    %v888 = vld [vmem:[#allocation10 + $0x40] sm:$0xff]
    %v889 = vld [vmem:[#allocation10 + $0x48] sm:$0xff]
    %v890 = vld [vmem:[#allocation10 + $0x50] sm:$0xff]
    %v891 = vld [vmem:[#allocation10 + $0x58] sm:$0xff]
    %v892 = vld [vmem:[#allocation10 + $0x60] sm:$0xff]
    %v893 = vld [vmem:[#allocation10 + $0x68] sm:$0xff]
    %v894 = vld [vmem:[#allocation10 + $0x70] sm:$0xff]
    %v895 = vld [vmem:[#allocation10 + $0x78] sm:$0xff]
    %v896 = vld [vmem:[#allocation10 + $0x80] sm:$0xff]
    %v897 = vld [vmem:[#allocation10 + $0x88] sm:$0xff]
    %v898 = vld [vmem:[#allocation10 + $0x90] sm:$0xff]
    %v899 = vld [vmem:[#allocation10 + $0x98] sm:$0xff]
    %v900 = vld [vmem:[#allocation10 + $0xa0] sm:$0xff]
    %v901 = vld [vmem:[#allocation10 + $0xa8] sm:$0xff]
    %v902 = vld [vmem:[#allocation10 + $0xb0] sm:$0xff]
    %v903 = vld [vmem:[#allocation10 + $0xb8] sm:$0xff]
    %v904 = vld [vmem:[#allocation10 + $0xc0] sm:$0xff]
    %v905 = vld [vmem:[#allocation10 + $0xc8] sm:$0xff]
    %v906 = vld [vmem:[#allocation10 + $0xd0] sm:$0xff]
    %v907 = vld [vmem:[#allocation10 + $0xd8] sm:$0xff]
    %v908 = vld [vmem:[#allocation10 + $0xe0] sm:$0xff]
    %v909 = vld [vmem:[#allocation10 + $0xe8] sm:$0xff]
    %v910 = vld [vmem:[#allocation10 + $0xf0] sm:$0xff]
    %v911 = vld [vmem:[#allocation10 + $0xf8] sm:$0xff]
    %v912 = vld [vmem:[#allocation10 + $0x100] sm:$0xff]
    %v913 = vld [vmem:[#allocation10 + $0x108] sm:$0xff]
    %v914 = vld [vmem:[#allocation10 + $0x110] sm:$0xff]
    %v915 = vld [vmem:[#allocation10 + $0x118] sm:$0xff]
    %v916 = vld [vmem:[#allocation10 + $0x120] sm:$0xff]
    %v917 = vld [vmem:[#allocation10 + $0x128] sm:$0xff]
    %v918 = vld [vmem:[#allocation10 + $0x130] sm:$0xff]
    %v919 = vld [vmem:[#allocation10 + $0x138] sm:$0xff]
    %v920 = vld [vmem:[#allocation10 + $0x140] sm:$0xff]
    %v921 = vld [vmem:[#allocation10 + $0x148] sm:$0xff]
    %v922 = vld [vmem:[#allocation10 + $0x150] sm:$0xff]
    %v923 = vld [vmem:[#allocation10 + $0x158] sm:$0xff]
    %v924 = vld [vmem:[#allocation10 + $0x160] sm:$0xff]
    %v925 = vld [vmem:[#allocation10 + $0x168] sm:$0xff]
    %v926 = vld [vmem:[#allocation10 + $0x170] sm:$0xff]
    %v927 = vld [vmem:[#allocation10 + $0x178] sm:$0xff]
    %v928 = vld [vmem:[#allocation10 + $0x180] sm:$0xff]
    %v929 = vld [vmem:[#allocation10 + $0x188] sm:$0xff]
    %v930 = vld [vmem:[#allocation10 + $0x190] sm:$0xff]
    %v931 = vld [vmem:[#allocation10 + $0x198] sm:$0xff]
    %v932 = vld [vmem:[#allocation10 + $0x1a0] sm:$0xff]
    %v933 = vld [vmem:[#allocation10 + $0x1a8] sm:$0xff]
    %v934 = vld [vmem:[#allocation10 + $0x1b0] sm:$0xff]
    %v935 = vld [vmem:[#allocation10 + $0x1b8] sm:$0xff]
    %v936 = vld [vmem:[#allocation10 + $0x1c0] sm:$0xff]
    %v937 = vld [vmem:[#allocation10 + $0x1c8] sm:$0xff]
    %v938 = vld [vmem:[#allocation10 + $0x1d0] sm:$0xff]
    %v939 = vld [vmem:[#allocation10 + $0x1d8] sm:$0xff]
    %v940 = vld [vmem:[#allocation10 + $0x1e0] sm:$0xff]
    %v941 = vld [vmem:[#allocation10 + $0x1e8] sm:$0xff]
    %v942 = vld [vmem:[#allocation10 + $0x1f0] sm:$0xff]
    %v943 = vld [vmem:[#allocation10 + $0x1f8] sm:$0xff]
    %944 = vmatpush.msra.mxu0 %v940
    %945 = vmatpush.msra.mxu0 %v936
    %946 = vmatpush.msra.mxu0 %v932
    %947 = vmatpush.msra.mxu0 %v928
    %948 = vmatpush.msra.mxu0 %v924
    %949 = vmatpush.msra.mxu0 %v920
    %950 = vmatpush.msra.mxu0 %v916
    %951 = vmatpush.msra.mxu0 %v912
    %952 = vmatpush.msra.mxu0 %v908
    %953 = vmatpush.msra.mxu0 %v904
    %954 = vmatpush.msra.mxu0 %v900
    %955 = vmatpush.msra.mxu0 %v896
    %956 = vmatpush.msra.mxu0 %v892
    %957 = vmatpush.msra.mxu0 %v888
    %958 = vmatpush.msra.mxu0 %v884
    %959 = vmatpush.msra.mxu0 %v880
    %960 = vmatmul.f32.gmra.mxu0 %v872
    %v961 = vpop.f32.mrf.mxu0
    %v962 = vadd.f32 0.0, %v961
    %963 = vdwg.mxu0
    %964 = vmatpush.msra.mxu0 %v941
    %965 = vmatpush.msra.mxu0 %v937
    %966 = vmatpush.msra.mxu0 %v933
    %967 = vmatpush.msra.mxu0 %v929
    %968 = vmatpush.msra.mxu0 %v925
    %969 = vmatpush.msra.mxu0 %v921
    %970 = vmatpush.msra.mxu0 %v917
    %971 = vmatpush.msra.mxu0 %v913
    %972 = vmatpush.msra.mxu0 %v909
    %973 = vmatpush.msra.mxu0 %v905
    %974 = vmatpush.msra.mxu0 %v901
    %975 = vmatpush.msra.mxu0 %v897
    %976 = vmatpush.msra.mxu0 %v893
    %977 = vmatpush.msra.mxu0 %v889
    %978 = vmatpush.msra.mxu0 %v885
    %979 = vmatpush.msra.mxu0 %v881
    %980 = vmatmul.f32.gmra.mxu0 %v872
    %v981 = vpop.f32.mrf.mxu0
    %v982 = vadd.f32 0.0, %v981
    %983 = vdwg.mxu0
    %984 = vmatpush.msra.mxu0 %v942
    %985 = vmatpush.msra.mxu0 %v938
    %986 = vmatpush.msra.mxu0 %v934
    %987 = vmatpush.msra.mxu0 %v930
    %988 = vmatpush.msra.mxu0 %v926
    %989 = vmatpush.msra.mxu0 %v922
    %990 = vmatpush.msra.mxu0 %v918
    %991 = vmatpush.msra.mxu0 %v914
    %992 = vmatpush.msra.mxu0 %v910
    %993 = vmatpush.msra.mxu0 %v906
    %994 = vmatpush.msra.mxu0 %v902
    %995 = vmatpush.msra.mxu0 %v898
    %996 = vmatpush.msra.mxu0 %v894
    %997 = vmatpush.msra.mxu0 %v890
    %998 = vmatpush.msra.mxu0 %v886
    %999 = vmatpush.msra.mxu0 %v882
    %1000 = vmatmul.f32.gmra.mxu0 %v872
    %v1001 = vpop.f32.mrf.mxu0
    %v1002 = vadd.f32 0.0, %v1001
    %1003 = vdwg.mxu0
    %1004 = vmatpush.msra.mxu0 %v943
    %1005 = vmatpush.msra.mxu0 %v939
    %1006 = vmatpush.msra.mxu0 %v935
    %1007 = vmatpush.msra.mxu0 %v931
    %1008 = vmatpush.msra.mxu0 %v927
    %1009 = vmatpush.msra.mxu0 %v923
    %1010 = vmatpush.msra.mxu0 %v919
    %1011 = vmatpush.msra.mxu0 %v915
    %1012 = vmatpush.msra.mxu0 %v911
    %1013 = vmatpush.msra.mxu0 %v907
    %1014 = vmatpush.msra.mxu0 %v903
    %1015 = vmatpush.msra.mxu0 %v899
    %1016 = vmatpush.msra.mxu0 %v895
    %1017 = vmatpush.msra.mxu0 %v891
    %1018 = vmatpush.msra.mxu0 %v887
    %1019 = vmatpush.msra.mxu0 %v883
    %1020 = vmatmul.f32.gmra.mxu0 %v872
    %v1021 = vpop.f32.mrf.mxu0
    %v1022 = vadd.f32 0.0, %v1021
    %1023 = vdwg.mxu0
    %v1024 = vadd.f32 %v876, %v962
    %v1025 = vadd.f32 %v877, %v982
    %v1026 = vadd.f32 %v878, %v1002
    %v1027 = vadd.f32 %v879, %v1022
    %v1028 = vxor.u32 %v1024, 2147483648
    %v1029 = vmul.f32 %v1028, 1.442695
    %v1030 = vpow.pop %v1029
    %v1031 = vadd.f32 %v1030, 1.0
    %v1032 = vrcp.pop %v1031
    %v1033 = vmul.f32 %v1031, %v1032
    %v1034 = vsub.f32 1.0, %v1033
    %v1035 = vmul.f32 %v1032, %v1034
    %v1036 = vadd.f32 %v1032, %v1035
    %vm1037 = vweird.f32 %v1031
    %vm1038 = vweird.f32 %v1032
    %vm1039 = vmor %vm1037, %vm1038
    %v1040 = vsel %vm1039, %v1032, %v1036
    %v1041 = vand.u32 2147483647, %v1031
    %vm1042 = vcmp.eq.f32.partialorder %v1041, 8.507059e+37
    %v1043 = vand.u32 %v1031, 2147483648
    %v1044 = vor.u32 1.1754944e-38, %v1043
    %v1045 = vsel %vm1042, %v1044, %v1040
    %v1046 = vmul.f32 1.0, %v1045
    %v1047 = vxor.u32 %v1025, 2147483648
    %v1048 = vmul.f32 %v1047, 1.442695
    %v1049 = vpow.pop %v1048
    %v1050 = vadd.f32 %v1049, 1.0
    %v1051 = vrcp.pop %v1050
    %v1052 = vmul.f32 %v1050, %v1051
    %v1053 = vsub.f32 1.0, %v1052
    %v1054 = vmul.f32 %v1051, %v1053
    %v1055 = vadd.f32 %v1051, %v1054
    %vm1056 = vweird.f32 %v1050
    %vm1057 = vweird.f32 %v1051
    %vm1058 = vmor %vm1056, %vm1057
    %v1059 = vsel %vm1058, %v1051, %v1055
    %v1060 = vand.u32 2147483647, %v1050
    %vm1061 = vcmp.eq.f32.partialorder %v1060, 8.507059e+37
    %v1062 = vand.u32 %v1050, 2147483648
    %v1063 = vor.u32 1.1754944e-38, %v1062
    %v1064 = vsel %vm1061, %v1063, %v1059
    %v1065 = vmul.f32 1.0, %v1064
    %v1066 = vtanh.pop %v1026
    %v1067 = vxor.u32 %v1027, 2147483648
    %v1068 = vmul.f32 %v1067, 1.442695
    %v1069 = vpow.pop %v1068
    %v1070 = vadd.f32 %v1069, 1.0
    %v1071 = vrcp.pop %v1070
    %v1072 = vmul.f32 %v1070, %v1071
    %v1073 = vsub.f32 1.0, %v1072
    %v1074 = vmul.f32 %v1071, %v1073
    %v1075 = vadd.f32 %v1071, %v1074
    %vm1076 = vweird.f32 %v1070
    %vm1077 = vweird.f32 %v1071
    %vm1078 = vmor %vm1076, %vm1077
    %v1079 = vsel %vm1078, %v1071, %v1075
    %v1080 = vand.u32 2147483647, %v1070
    %vm1081 = vcmp.eq.f32.partialorder %v1080, 8.507059e+37
    %v1082 = vand.u32 %v1070, 2147483648
    %v1083 = vor.u32 1.1754944e-38, %v1082
    %v1084 = vsel %vm1081, %v1083, %v1079
    %v1085 = vmul.f32 1.0, %v1084
    %v1086 = vmul.f32 %v1065, %v870
    %v1087 = vmul.f32 %v1046, %v1066
    %v1088 = vadd.f32 %v1086, %v1087
    %v1089 = vtanh.pop %v1088
    %v1090 = vmul.f32 %v1085, %v1089
    %s1091 = scalar_lea.vmem [#allocation3], 16
    %1092 = vst [vmem:[%s1091] sm:$0xff] %v1090
    %s1093 = scalar_lea.vmem [#allocation2], 96
    %v1094 = vld [vmem:[%s1093] sm:$0xff]
    %v1095 = vld [vmem:[%s1093 + $0x8] sm:$0xff]
    %v1096 = vld [vmem:[%s1093 + $0x10] sm:$0xff]
    %v1097 = vld [vmem:[%s1093 + $0x18] sm:$0xff]
    %v1098 = vld [vmem:[#allocation10] sm:$0xff]
    %v1099 = vld [vmem:[#allocation10 + $0x8] sm:$0xff]
    %v1100 = vld [vmem:[#allocation10 + $0x10] sm:$0xff]
    %v1101 = vld [vmem:[#allocation10 + $0x18] sm:$0xff]
    %v1102 = vld [vmem:[#allocation10 + $0x20] sm:$0xff]
    %v1103 = vld [vmem:[#allocation10 + $0x28] sm:$0xff]
    %v1104 = vld [vmem:[#allocation10 + $0x30] sm:$0xff]
    %v1105 = vld [vmem:[#allocation10 + $0x38] sm:$0xff]
    %v1106 = vld [vmem:[#allocation10 + $0x40] sm:$0xff]
    %v1107 = vld [vmem:[#allocation10 + $0x48] sm:$0xff]
    %v1108 = vld [vmem:[#allocation10 + $0x50] sm:$0xff]
    %v1109 = vld [vmem:[#allocation10 + $0x58] sm:$0xff]
    %v1110 = vld [vmem:[#allocation10 + $0x60] sm:$0xff]
    %v1111 = vld [vmem:[#allocation10 + $0x68] sm:$0xff]
    %v1112 = vld [vmem:[#allocation10 + $0x70] sm:$0xff]
    %v1113 = vld [vmem:[#allocation10 + $0x78] sm:$0xff]
    %v1114 = vld [vmem:[#allocation10 + $0x80] sm:$0xff]
    %v1115 = vld [vmem:[#allocation10 + $0x88] sm:$0xff]
    %v1116 = vld [vmem:[#allocation10 + $0x90] sm:$0xff]
    %v1117 = vld [vmem:[#allocation10 + $0x98] sm:$0xff]
    %v1118 = vld [vmem:[#allocation10 + $0xa0] sm:$0xff]
    %v1119 = vld [vmem:[#allocation10 + $0xa8] sm:$0xff]
    %v1120 = vld [vmem:[#allocation10 + $0xb0] sm:$0xff]
    %v1121 = vld [vmem:[#allocation10 + $0xb8] sm:$0xff]
    %v1122 = vld [vmem:[#allocation10 + $0xc0] sm:$0xff]
    %v1123 = vld [vmem:[#allocation10 + $0xc8] sm:$0xff]
    %v1124 = vld [vmem:[#allocation10 + $0xd0] sm:$0xff]
    %v1125 = vld [vmem:[#allocation10 + $0xd8] sm:$0xff]
    %v1126 = vld [vmem:[#allocation10 + $0xe0] sm:$0xff]
    %v1127 = vld [vmem:[#allocation10 + $0xe8] sm:$0xff]
    %v1128 = vld [vmem:[#allocation10 + $0xf0] sm:$0xff]
    %v1129 = vld [vmem:[#allocation10 + $0xf8] sm:$0xff]
    %v1130 = vld [vmem:[#allocation10 + $0x100] sm:$0xff]
    %v1131 = vld [vmem:[#allocation10 + $0x108] sm:$0xff]
    %v1132 = vld [vmem:[#allocation10 + $0x110] sm:$0xff]
    %v1133 = vld [vmem:[#allocation10 + $0x118] sm:$0xff]
    %v1134 = vld [vmem:[#allocation10 + $0x120] sm:$0xff]
    %v1135 = vld [vmem:[#allocation10 + $0x128] sm:$0xff]
    %v1136 = vld [vmem:[#allocation10 + $0x130] sm:$0xff]
    %v1137 = vld [vmem:[#allocation10 + $0x138] sm:$0xff]
    %v1138 = vld [vmem:[#allocation10 + $0x140] sm:$0xff]
    %v1139 = vld [vmem:[#allocation10 + $0x148] sm:$0xff]
    %v1140 = vld [vmem:[#allocation10 + $0x150] sm:$0xff]
    %v1141 = vld [vmem:[#allocation10 + $0x158] sm:$0xff]
    %v1142 = vld [vmem:[#allocation10 + $0x160] sm:$0xff]
    %v1143 = vld [vmem:[#allocation10 + $0x168] sm:$0xff]
    %v1144 = vld [vmem:[#allocation10 + $0x170] sm:$0xff]
    %v1145 = vld [vmem:[#allocation10 + $0x178] sm:$0xff]
    %v1146 = vld [vmem:[#allocation10 + $0x180] sm:$0xff]
    %v1147 = vld [vmem:[#allocation10 + $0x188] sm:$0xff]
    %v1148 = vld [vmem:[#allocation10 + $0x190] sm:$0xff]
    %v1149 = vld [vmem:[#allocation10 + $0x198] sm:$0xff]
    %v1150 = vld [vmem:[#allocation10 + $0x1a0] sm:$0xff]
    %v1151 = vld [vmem:[#allocation10 + $0x1a8] sm:$0xff]
    %v1152 = vld [vmem:[#allocation10 + $0x1b0] sm:$0xff]
    %v1153 = vld [vmem:[#allocation10 + $0x1b8] sm:$0xff]
    %v1154 = vld [vmem:[#allocation10 + $0x1c0] sm:$0xff]
    %v1155 = vld [vmem:[#allocation10 + $0x1c8] sm:$0xff]
    %v1156 = vld [vmem:[#allocation10 + $0x1d0] sm:$0xff]
    %v1157 = vld [vmem:[#allocation10 + $0x1d8] sm:$0xff]
    %v1158 = vld [vmem:[#allocation10 + $0x1e0] sm:$0xff]
    %v1159 = vld [vmem:[#allocation10 + $0x1e8] sm:$0xff]
    %v1160 = vld [vmem:[#allocation10 + $0x1f0] sm:$0xff]
    %v1161 = vld [vmem:[#allocation10 + $0x1f8] sm:$0xff]
    %1162 = vmatpush.msra.mxu0 %v1158
    %1163 = vmatpush.msra.mxu0 %v1154
    %1164 = vmatpush.msra.mxu0 %v1150
    %1165 = vmatpush.msra.mxu0 %v1146
    %1166 = vmatpush.msra.mxu0 %v1142
    %1167 = vmatpush.msra.mxu0 %v1138
    %1168 = vmatpush.msra.mxu0 %v1134
    %1169 = vmatpush.msra.mxu0 %v1130
    %1170 = vmatpush.msra.mxu0 %v1126
    %1171 = vmatpush.msra.mxu0 %v1122
    %1172 = vmatpush.msra.mxu0 %v1118
    %1173 = vmatpush.msra.mxu0 %v1114
    %1174 = vmatpush.msra.mxu0 %v1110
    %1175 = vmatpush.msra.mxu0 %v1106
    %1176 = vmatpush.msra.mxu0 %v1102
    %1177 = vmatpush.msra.mxu0 %v1098
    %1178 = vmatmul.f32.gmra.mxu0 %v1090
    %v1179 = vpop.f32.mrf.mxu0
    %v1180 = vadd.f32 0.0, %v1179
    %1181 = vdwg.mxu0
    %1182 = vmatpush.msra.mxu0 %v1159
    %1183 = vmatpush.msra.mxu0 %v1155
    %1184 = vmatpush.msra.mxu0 %v1151
    %1185 = vmatpush.msra.mxu0 %v1147
    %1186 = vmatpush.msra.mxu0 %v1143
    %1187 = vmatpush.msra.mxu0 %v1139
    %1188 = vmatpush.msra.mxu0 %v1135
    %1189 = vmatpush.msra.mxu0 %v1131
    %1190 = vmatpush.msra.mxu0 %v1127
    %1191 = vmatpush.msra.mxu0 %v1123
    %1192 = vmatpush.msra.mxu0 %v1119
    %1193 = vmatpush.msra.mxu0 %v1115
    %1194 = vmatpush.msra.mxu0 %v1111
    %1195 = vmatpush.msra.mxu0 %v1107
    %1196 = vmatpush.msra.mxu0 %v1103
    %1197 = vmatpush.msra.mxu0 %v1099
    %1198 = vmatmul.f32.gmra.mxu0 %v1090
    %v1199 = vpop.f32.mrf.mxu0
    %v1200 = vadd.f32 0.0, %v1199
    %1201 = vdwg.mxu0
    %1202 = vmatpush.msra.mxu0 %v1160
    %1203 = vmatpush.msra.mxu0 %v1156
    %1204 = vmatpush.msra.mxu0 %v1152
    %1205 = vmatpush.msra.mxu0 %v1148
    %1206 = vmatpush.msra.mxu0 %v1144
    %1207 = vmatpush.msra.mxu0 %v1140
    %1208 = vmatpush.msra.mxu0 %v1136
    %1209 = vmatpush.msra.mxu0 %v1132
    %1210 = vmatpush.msra.mxu0 %v1128
    %1211 = vmatpush.msra.mxu0 %v1124
    %1212 = vmatpush.msra.mxu0 %v1120
    %1213 = vmatpush.msra.mxu0 %v1116
    %1214 = vmatpush.msra.mxu0 %v1112
    %1215 = vmatpush.msra.mxu0 %v1108
    %1216 = vmatpush.msra.mxu0 %v1104
    %1217 = vmatpush.msra.mxu0 %v1100
    %1218 = vmatmul.f32.gmra.mxu0 %v1090
    %v1219 = vpop.f32.mrf.mxu0
    %v1220 = vadd.f32 0.0, %v1219
    %1221 = vdwg.mxu0
    %1222 = vmatpush.msra.mxu0 %v1161
    %1223 = vmatpush.msra.mxu0 %v1157
    %1224 = vmatpush.msra.mxu0 %v1153
    %1225 = vmatpush.msra.mxu0 %v1149
    %1226 = vmatpush.msra.mxu0 %v1145
    %1227 = vmatpush.msra.mxu0 %v1141
    %1228 = vmatpush.msra.mxu0 %v1137
    %1229 = vmatpush.msra.mxu0 %v1133
    %1230 = vmatpush.msra.mxu0 %v1129
    %1231 = vmatpush.msra.mxu0 %v1125
    %1232 = vmatpush.msra.mxu0 %v1121
    %1233 = vmatpush.msra.mxu0 %v1117
    %1234 = vmatpush.msra.mxu0 %v1113
    %1235 = vmatpush.msra.mxu0 %v1109
    %1236 = vmatpush.msra.mxu0 %v1105
    %1237 = vmatpush.msra.mxu0 %v1101
    %1238 = vmatmul.f32.gmra.mxu0 %v1090
    %v1239 = vpop.f32.mrf.mxu0
    %v1240 = vadd.f32 0.0, %v1239
    %1241 = vdwg.mxu0
    %v1242 = vadd.f32 %v1094, %v1180
    %v1243 = vadd.f32 %v1095, %v1200
    %v1244 = vadd.f32 %v1096, %v1220
    %v1245 = vadd.f32 %v1097, %v1240
    %v1246 = vxor.u32 %v1242, 2147483648
    %v1247 = vmul.f32 %v1246, 1.442695
    %v1248 = vpow.pop %v1247
    %v1249 = vadd.f32 %v1248, 1.0
    %v1250 = vrcp.pop %v1249
    %v1251 = vmul.f32 %v1249, %v1250
    %v1252 = vsub.f32 1.0, %v1251
    %v1253 = vmul.f32 %v1250, %v1252
    %v1254 = vadd.f32 %v1250, %v1253
    %vm1255 = vweird.f32 %v1249
    %vm1256 = vweird.f32 %v1250
    %vm1257 = vmor %vm1255, %vm1256
    %v1258 = vsel %vm1257, %v1250, %v1254
    %v1259 = vand.u32 2147483647, %v1249
    %vm1260 = vcmp.eq.f32.partialorder %v1259, 8.507059e+37
    %v1261 = vand.u32 %v1249, 2147483648
    %v1262 = vor.u32 1.1754944e-38, %v1261
    %v1263 = vsel %vm1260, %v1262, %v1258
    %v1264 = vmul.f32 1.0, %v1263
    %v1265 = vxor.u32 %v1243, 2147483648
    %v1266 = vmul.f32 %v1265, 1.442695
    %v1267 = vpow.pop %v1266
    %v1268 = vadd.f32 %v1267, 1.0
    %v1269 = vrcp.pop %v1268
    %v1270 = vmul.f32 %v1268, %v1269
    %v1271 = vsub.f32 1.0, %v1270
    %v1272 = vmul.f32 %v1269, %v1271
    %v1273 = vadd.f32 %v1269, %v1272
    %vm1274 = vweird.f32 %v1268
    %vm1275 = vweird.f32 %v1269
    %vm1276 = vmor %vm1274, %vm1275
    %v1277 = vsel %vm1276, %v1269, %v1273
    %v1278 = vand.u32 2147483647, %v1268
    %vm1279 = vcmp.eq.f32.partialorder %v1278, 8.507059e+37
    %v1280 = vand.u32 %v1268, 2147483648
    %v1281 = vor.u32 1.1754944e-38, %v1280
    %v1282 = vsel %vm1279, %v1281, %v1277
    %v1283 = vmul.f32 1.0, %v1282
    %v1284 = vtanh.pop %v1244
    %v1285 = vxor.u32 %v1245, 2147483648
    %v1286 = vmul.f32 %v1285, 1.442695
    %v1287 = vpow.pop %v1286
    %v1288 = vadd.f32 %v1287, 1.0
    %v1289 = vrcp.pop %v1288
    %v1290 = vmul.f32 %v1288, %v1289
    %v1291 = vsub.f32 1.0, %v1290
    %v1292 = vmul.f32 %v1289, %v1291
    %v1293 = vadd.f32 %v1289, %v1292
    %vm1294 = vweird.f32 %v1288
    %vm1295 = vweird.f32 %v1289
    %vm1296 = vmor %vm1294, %vm1295
    %v1297 = vsel %vm1296, %v1289, %v1293
    %v1298 = vand.u32 2147483647, %v1288
    %vm1299 = vcmp.eq.f32.partialorder %v1298, 8.507059e+37
    %v1300 = vand.u32 %v1288, 2147483648
    %v1301 = vor.u32 1.1754944e-38, %v1300
    %v1302 = vsel %vm1299, %v1301, %v1297
    %v1303 = vmul.f32 1.0, %v1302
    %v1304 = vmul.f32 %v1283, %v1088
    %v1305 = vmul.f32 %v1264, %v1284
    %v1306 = vadd.f32 %v1304, %v1305
    %v1307 = vtanh.pop %v1306
    %v1308 = vmul.f32 %v1303, %v1307
    %s1309 = scalar_lea.vmem [#allocation3], 24
    %1310 = vst [vmem:[%s1309] sm:$0xff] %v1308
    %s1311 = scalar_lea.vmem [#allocation2], 128
    %v1312 = vld [vmem:[%s1311] sm:$0xff]
    %v1313 = vld [vmem:[%s1311 + $0x8] sm:$0xff]
    %v1314 = vld [vmem:[%s1311 + $0x10] sm:$0xff]
    %v1315 = vld [vmem:[%s1311 + $0x18] sm:$0xff]
    %v1316 = vld [vmem:[#allocation10] sm:$0xff]
    %v1317 = vld [vmem:[#allocation10 + $0x8] sm:$0xff]
    %v1318 = vld [vmem:[#allocation10 + $0x10] sm:$0xff]
    %v1319 = vld [vmem:[#allocation10 + $0x18] sm:$0xff]
    %v1320 = vld [vmem:[#allocation10 + $0x20] sm:$0xff]
    %v1321 = vld [vmem:[#allocation10 + $0x28] sm:$0xff]
    %v1322 = vld [vmem:[#allocation10 + $0x30] sm:$0xff]
    %v1323 = vld [vmem:[#allocation10 + $0x38] sm:$0xff]
    %v1324 = vld [vmem:[#allocation10 + $0x40] sm:$0xff]
    %v1325 = vld [vmem:[#allocation10 + $0x48] sm:$0xff]
    %v1326 = vld [vmem:[#allocation10 + $0x50] sm:$0xff]
    %v1327 = vld [vmem:[#allocation10 + $0x58] sm:$0xff]
    %v1328 = vld [vmem:[#allocation10 + $0x60] sm:$0xff]
    %v1329 = vld [vmem:[#allocation10 + $0x68] sm:$0xff]
    %v1330 = vld [vmem:[#allocation10 + $0x70] sm:$0xff]
    %v1331 = vld [vmem:[#allocation10 + $0x78] sm:$0xff]
    %v1332 = vld [vmem:[#allocation10 + $0x80] sm:$0xff]
    %v1333 = vld [vmem:[#allocation10 + $0x88] sm:$0xff]
    %v1334 = vld [vmem:[#allocation10 + $0x90] sm:$0xff]
    %v1335 = vld [vmem:[#allocation10 + $0x98] sm:$0xff]
    %v1336 = vld [vmem:[#allocation10 + $0xa0] sm:$0xff]
    %v1337 = vld [vmem:[#allocation10 + $0xa8] sm:$0xff]
    %v1338 = vld [vmem:[#allocation10 + $0xb0] sm:$0xff]
    %v1339 = vld [vmem:[#allocation10 + $0xb8] sm:$0xff]
    %v1340 = vld [vmem:[#allocation10 + $0xc0] sm:$0xff]
    %v1341 = vld [vmem:[#allocation10 + $0xc8] sm:$0xff]
    %v1342 = vld [vmem:[#allocation10 + $0xd0] sm:$0xff]
    %v1343 = vld [vmem:[#allocation10 + $0xd8] sm:$0xff]
    %v1344 = vld [vmem:[#allocation10 + $0xe0] sm:$0xff]
    %v1345 = vld [vmem:[#allocation10 + $0xe8] sm:$0xff]
    %v1346 = vld [vmem:[#allocation10 + $0xf0] sm:$0xff]
    %v1347 = vld [vmem:[#allocation10 + $0xf8] sm:$0xff]
    %v1348 = vld [vmem:[#allocation10 + $0x100] sm:$0xff]
    %v1349 = vld [vmem:[#allocation10 + $0x108] sm:$0xff]
    %v1350 = vld [vmem:[#allocation10 + $0x110] sm:$0xff]
    %v1351 = vld [vmem:[#allocation10 + $0x118] sm:$0xff]
    %v1352 = vld [vmem:[#allocation10 + $0x120] sm:$0xff]
    %v1353 = vld [vmem:[#allocation10 + $0x128] sm:$0xff]
    %v1354 = vld [vmem:[#allocation10 + $0x130] sm:$0xff]
    %v1355 = vld [vmem:[#allocation10 + $0x138] sm:$0xff]
    %v1356 = vld [vmem:[#allocation10 + $0x140] sm:$0xff]
    %v1357 = vld [vmem:[#allocation10 + $0x148] sm:$0xff]
    %v1358 = vld [vmem:[#allocation10 + $0x150] sm:$0xff]
    %v1359 = vld [vmem:[#allocation10 + $0x158] sm:$0xff]
    %v1360 = vld [vmem:[#allocation10 + $0x160] sm:$0xff]
    %v1361 = vld [vmem:[#allocation10 + $0x168] sm:$0xff]
    %v1362 = vld [vmem:[#allocation10 + $0x170] sm:$0xff]
    %v1363 = vld [vmem:[#allocation10 + $0x178] sm:$0xff]
    %v1364 = vld [vmem:[#allocation10 + $0x180] sm:$0xff]
    %v1365 = vld [vmem:[#allocation10 + $0x188] sm:$0xff]
    %v1366 = vld [vmem:[#allocation10 + $0x190] sm:$0xff]
    %v1367 = vld [vmem:[#allocation10 + $0x198] sm:$0xff]
    %v1368 = vld [vmem:[#allocation10 + $0x1a0] sm:$0xff]
    %v1369 = vld [vmem:[#allocation10 + $0x1a8] sm:$0xff]
    %v1370 = vld [vmem:[#allocation10 + $0x1b0] sm:$0xff]
    %v1371 = vld [vmem:[#allocation10 + $0x1b8] sm:$0xff]
    %v1372 = vld [vmem:[#allocation10 + $0x1c0] sm:$0xff]
    %v1373 = vld [vmem:[#allocation10 + $0x1c8] sm:$0xff]
    %v1374 = vld [vmem:[#allocation10 + $0x1d0] sm:$0xff]
    %v1375 = vld [vmem:[#allocation10 + $0x1d8] sm:$0xff]
    %v1376 = vld [vmem:[#allocation10 + $0x1e0] sm:$0xff]
    %v1377 = vld [vmem:[#allocation10 + $0x1e8] sm:$0xff]
    %v1378 = vld [vmem:[#allocation10 + $0x1f0] sm:$0xff]
    %v1379 = vld [vmem:[#allocation10 + $0x1f8] sm:$0xff]
    %1380 = vmatpush.msra.mxu0 %v1376
    %1381 = vmatpush.msra.mxu0 %v1372
    %1382 = vmatpush.msra.mxu0 %v1368
    %1383 = vmatpush.msra.mxu0 %v1364
    %1384 = vmatpush.msra.mxu0 %v1360
    %1385 = vmatpush.msra.mxu0 %v1356
    %1386 = vmatpush.msra.mxu0 %v1352
    %1387 = vmatpush.msra.mxu0 %v1348
    %1388 = vmatpush.msra.mxu0 %v1344
    %1389 = vmatpush.msra.mxu0 %v1340
    %1390 = vmatpush.msra.mxu0 %v1336
    %1391 = vmatpush.msra.mxu0 %v1332
    %1392 = vmatpush.msra.mxu0 %v1328
    %1393 = vmatpush.msra.mxu0 %v1324
    %1394 = vmatpush.msra.mxu0 %v1320
    %1395 = vmatpush.msra.mxu0 %v1316
    %1396 = vmatmul.f32.gmra.mxu0 %v1308
    %v1397 = vpop.f32.mrf.mxu0
    %v1398 = vadd.f32 0.0, %v1397
    %1399 = vdwg.mxu0
    %1400 = vmatpush.msra.mxu0 %v1377
    %1401 = vmatpush.msra.mxu0 %v1373
    %1402 = vmatpush.msra.mxu0 %v1369
    %1403 = vmatpush.msra.mxu0 %v1365
    %1404 = vmatpush.msra.mxu0 %v1361
    %1405 = vmatpush.msra.mxu0 %v1357
    %1406 = vmatpush.msra.mxu0 %v1353
    %1407 = vmatpush.msra.mxu0 %v1349
    %1408 = vmatpush.msra.mxu0 %v1345
    %1409 = vmatpush.msra.mxu0 %v1341
    %1410 = vmatpush.msra.mxu0 %v1337
    %1411 = vmatpush.msra.mxu0 %v1333
    %1412 = vmatpush.msra.mxu0 %v1329
    %1413 = vmatpush.msra.mxu0 %v1325
    %1414 = vmatpush.msra.mxu0 %v1321
    %1415 = vmatpush.msra.mxu0 %v1317
    %1416 = vmatmul.f32.gmra.mxu0 %v1308
    %v1417 = vpop.f32.mrf.mxu0
    %v1418 = vadd.f32 0.0, %v1417
    %1419 = vdwg.mxu0
    %1420 = vmatpush.msra.mxu0 %v1378
    %1421 = vmatpush.msra.mxu0 %v1374
    %1422 = vmatpush.msra.mxu0 %v1370
    %1423 = vmatpush.msra.mxu0 %v1366
    %1424 = vmatpush.msra.mxu0 %v1362
    %1425 = vmatpush.msra.mxu0 %v1358
    %1426 = vmatpush.msra.mxu0 %v1354
    %1427 = vmatpush.msra.mxu0 %v1350
    %1428 = vmatpush.msra.mxu0 %v1346
    %1429 = vmatpush.msra.mxu0 %v1342
    %1430 = vmatpush.msra.mxu0 %v1338
    %1431 = vmatpush.msra.mxu0 %v1334
    %1432 = vmatpush.msra.mxu0 %v1330
    %1433 = vmatpush.msra.mxu0 %v1326
    %1434 = vmatpush.msra.mxu0 %v1322
    %1435 = vmatpush.msra.mxu0 %v1318
    %1436 = vmatmul.f32.gmra.mxu0 %v1308
    %v1437 = vpop.f32.mrf.mxu0
    %v1438 = vadd.f32 0.0, %v1437
    %1439 = vdwg.mxu0
    %1440 = vmatpush.msra.mxu0 %v1379
    %1441 = vmatpush.msra.mxu0 %v1375
    %1442 = vmatpush.msra.mxu0 %v1371
    %1443 = vmatpush.msra.mxu0 %v1367
    %1444 = vmatpush.msra.mxu0 %v1363
    %1445 = vmatpush.msra.mxu0 %v1359
    %1446 = vmatpush.msra.mxu0 %v1355
    %1447 = vmatpush.msra.mxu0 %v1351
    %1448 = vmatpush.msra.mxu0 %v1347
    %1449 = vmatpush.msra.mxu0 %v1343
    %1450 = vmatpush.msra.mxu0 %v1339
    %1451 = vmatpush.msra.mxu0 %v1335
    %1452 = vmatpush.msra.mxu0 %v1331
    %1453 = vmatpush.msra.mxu0 %v1327
    %1454 = vmatpush.msra.mxu0 %v1323
    %1455 = vmatpush.msra.mxu0 %v1319
    %1456 = vmatmul.f32.gmra.mxu0 %v1308
    %v1457 = vpop.f32.mrf.mxu0
    %v1458 = vadd.f32 0.0, %v1457
    %1459 = vdwg.mxu0
    %v1460 = vadd.f32 %v1312, %v1398
    %v1461 = vadd.f32 %v1313, %v1418
    %v1462 = vadd.f32 %v1314, %v1438
    %v1463 = vadd.f32 %v1315, %v1458
    %v1464 = vxor.u32 %v1460, 2147483648
    %v1465 = vmul.f32 %v1464, 1.442695
    %v1466 = vpow.pop %v1465
    %v1467 = vadd.f32 %v1466, 1.0
    %v1468 = vrcp.pop %v1467
    %v1469 = vmul.f32 %v1467, %v1468
    %v1470 = vsub.f32 1.0, %v1469
    %v1471 = vmul.f32 %v1468, %v1470
    %v1472 = vadd.f32 %v1468, %v1471
    %vm1473 = vweird.f32 %v1467
    %vm1474 = vweird.f32 %v1468
    %vm1475 = vmor %vm1473, %vm1474
    %v1476 = vsel %vm1475, %v1468, %v1472
    %v1477 = vand.u32 2147483647, %v1467
    %vm1478 = vcmp.eq.f32.partialorder %v1477, 8.507059e+37
    %v1479 = vand.u32 %v1467, 2147483648
    %v1480 = vor.u32 1.1754944e-38, %v1479
    %v1481 = vsel %vm1478, %v1480, %v1476
    %v1482 = vmul.f32 1.0, %v1481
    %v1483 = vxor.u32 %v1461, 2147483648
    %v1484 = vmul.f32 %v1483, 1.442695
    %v1485 = vpow.pop %v1484
    %v1486 = vadd.f32 %v1485, 1.0
    %v1487 = vrcp.pop %v1486
    %v1488 = vmul.f32 %v1486, %v1487
    %v1489 = vsub.f32 1.0, %v1488
    %v1490 = vmul.f32 %v1487, %v1489
    %v1491 = vadd.f32 %v1487, %v1490
    %vm1492 = vweird.f32 %v1486
    %vm1493 = vweird.f32 %v1487
    %vm1494 = vmor %vm1492, %vm1493
    %v1495 = vsel %vm1494, %v1487, %v1491
    %v1496 = vand.u32 2147483647, %v1486
    %vm1497 = vcmp.eq.f32.partialorder %v1496, 8.507059e+37
    %v1498 = vand.u32 %v1486, 2147483648
    %v1499 = vor.u32 1.1754944e-38, %v1498
    %v1500 = vsel %vm1497, %v1499, %v1495
    %v1501 = vmul.f32 1.0, %v1500
    %v1502 = vtanh.pop %v1462
    %v1503 = vxor.u32 %v1463, 2147483648
    %v1504 = vmul.f32 %v1503, 1.442695
    %v1505 = vpow.pop %v1504
    %v1506 = vadd.f32 %v1505, 1.0
    %v1507 = vrcp.pop %v1506
    %v1508 = vmul.f32 %v1506, %v1507
    %v1509 = vsub.f32 1.0, %v1508
    %v1510 = vmul.f32 %v1507, %v1509
    %v1511 = vadd.f32 %v1507, %v1510
    %vm1512 = vweird.f32 %v1506
    %vm1513 = vweird.f32 %v1507
    %vm1514 = vmor %vm1512, %vm1513
    %v1515 = vsel %vm1514, %v1507, %v1511
    %v1516 = vand.u32 2147483647, %v1506
    %vm1517 = vcmp.eq.f32.partialorder %v1516, 8.507059e+37
    %v1518 = vand.u32 %v1506, 2147483648
    %v1519 = vor.u32 1.1754944e-38, %v1518
    %v1520 = vsel %vm1517, %v1519, %v1515
    %v1521 = vmul.f32 1.0, %v1520
    %v1522 = vmul.f32 %v1501, %v1306
    %v1523 = vmul.f32 %v1482, %v1502
    %v1524 = vadd.f32 %v1522, %v1523
    %v1525 = vtanh.pop %v1524
    %v1526 = vmul.f32 %v1521, %v1525
    %s1527 = scalar_lea.vmem [#allocation3], 32
    %1528 = vst [vmem:[%s1527] sm:$0xff] %v1526
    %s1529 = scalar_lea.vmem [#allocation2], 160
    %v1530 = vld [vmem:[%s1529] sm:$0xff]
    %v1531 = vld [vmem:[%s1529 + $0x8] sm:$0xff]
    %v1532 = vld [vmem:[%s1529 + $0x10] sm:$0xff]
    %v1533 = vld [vmem:[%s1529 + $0x18] sm:$0xff]
    %v1534 = vld [vmem:[#allocation10] sm:$0xff]
    %v1535 = vld [vmem:[#allocation10 + $0x8] sm:$0xff]
    %v1536 = vld [vmem:[#allocation10 + $0x10] sm:$0xff]
    %v1537 = vld [vmem:[#allocation10 + $0x18] sm:$0xff]
    %v1538 = vld [vmem:[#allocation10 + $0x20] sm:$0xff]
    %v1539 = vld [vmem:[#allocation10 + $0x28] sm:$0xff]
    %v1540 = vld [vmem:[#allocation10 + $0x30] sm:$0xff]
    %v1541 = vld [vmem:[#allocation10 + $0x38] sm:$0xff]
    %v1542 = vld [vmem:[#allocation10 + $0x40] sm:$0xff]
    %v1543 = vld [vmem:[#allocation10 + $0x48] sm:$0xff]
    %v1544 = vld [vmem:[#allocation10 + $0x50] sm:$0xff]
    %v1545 = vld [vmem:[#allocation10 + $0x58] sm:$0xff]
    %v1546 = vld [vmem:[#allocation10 + $0x60] sm:$0xff]
    %v1547 = vld [vmem:[#allocation10 + $0x68] sm:$0xff]
    %v1548 = vld [vmem:[#allocation10 + $0x70] sm:$0xff]
    %v1549 = vld [vmem:[#allocation10 + $0x78] sm:$0xff]
    %v1550 = vld [vmem:[#allocation10 + $0x80] sm:$0xff]
    %v1551 = vld [vmem:[#allocation10 + $0x88] sm:$0xff]
    %v1552 = vld [vmem:[#allocation10 + $0x90] sm:$0xff]
    %v1553 = vld [vmem:[#allocation10 + $0x98] sm:$0xff]
    %v1554 = vld [vmem:[#allocation10 + $0xa0] sm:$0xff]
    %v1555 = vld [vmem:[#allocation10 + $0xa8] sm:$0xff]
    %v1556 = vld [vmem:[#allocation10 + $0xb0] sm:$0xff]
    %v1557 = vld [vmem:[#allocation10 + $0xb8] sm:$0xff]
    %v1558 = vld [vmem:[#allocation10 + $0xc0] sm:$0xff]
    %v1559 = vld [vmem:[#allocation10 + $0xc8] sm:$0xff]
    %v1560 = vld [vmem:[#allocation10 + $0xd0] sm:$0xff]
    %v1561 = vld [vmem:[#allocation10 + $0xd8] sm:$0xff]
    %v1562 = vld [vmem:[#allocation10 + $0xe0] sm:$0xff]
    %v1563 = vld [vmem:[#allocation10 + $0xe8] sm:$0xff]
    %v1564 = vld [vmem:[#allocation10 + $0xf0] sm:$0xff]
    %v1565 = vld [vmem:[#allocation10 + $0xf8] sm:$0xff]
    %v1566 = vld [vmem:[#allocation10 + $0x100] sm:$0xff]
    %v1567 = vld [vmem:[#allocation10 + $0x108] sm:$0xff]
    %v1568 = vld [vmem:[#allocation10 + $0x110] sm:$0xff]
    %v1569 = vld [vmem:[#allocation10 + $0x118] sm:$0xff]
    %v1570 = vld [vmem:[#allocation10 + $0x120] sm:$0xff]
    %v1571 = vld [vmem:[#allocation10 + $0x128] sm:$0xff]
    %v1572 = vld [vmem:[#allocation10 + $0x130] sm:$0xff]
    %v1573 = vld [vmem:[#allocation10 + $0x138] sm:$0xff]
    %v1574 = vld [vmem:[#allocation10 + $0x140] sm:$0xff]
    %v1575 = vld [vmem:[#allocation10 + $0x148] sm:$0xff]
    %v1576 = vld [vmem:[#allocation10 + $0x150] sm:$0xff]
    %v1577 = vld [vmem:[#allocation10 + $0x158] sm:$0xff]
    %v1578 = vld [vmem:[#allocation10 + $0x160] sm:$0xff]
    %v1579 = vld [vmem:[#allocation10 + $0x168] sm:$0xff]
    %v1580 = vld [vmem:[#allocation10 + $0x170] sm:$0xff]
    %v1581 = vld [vmem:[#allocation10 + $0x178] sm:$0xff]
    %v1582 = vld [vmem:[#allocation10 + $0x180] sm:$0xff]
    %v1583 = vld [vmem:[#allocation10 + $0x188] sm:$0xff]
    %v1584 = vld [vmem:[#allocation10 + $0x190] sm:$0xff]
    %v1585 = vld [vmem:[#allocation10 + $0x198] sm:$0xff]
    %v1586 = vld [vmem:[#allocation10 + $0x1a0] sm:$0xff]
    %v1587 = vld [vmem:[#allocation10 + $0x1a8] sm:$0xff]
    %v1588 = vld [vmem:[#allocation10 + $0x1b0] sm:$0xff]
    %v1589 = vld [vmem:[#allocation10 + $0x1b8] sm:$0xff]
    %v1590 = vld [vmem:[#allocation10 + $0x1c0] sm:$0xff]
    %v1591 = vld [vmem:[#allocation10 + $0x1c8] sm:$0xff]
    %v1592 = vld [vmem:[#allocation10 + $0x1d0] sm:$0xff]
    %v1593 = vld [vmem:[#allocation10 + $0x1d8] sm:$0xff]
    %v1594 = vld [vmem:[#allocation10 + $0x1e0] sm:$0xff]
    %v1595 = vld [vmem:[#allocation10 + $0x1e8] sm:$0xff]
    %v1596 = vld [vmem:[#allocation10 + $0x1f0] sm:$0xff]
    %v1597 = vld [vmem:[#allocation10 + $0x1f8] sm:$0xff]
    %1598 = vmatpush.msra.mxu0 %v1594
    %1599 = vmatpush.msra.mxu0 %v1590
    %1600 = vmatpush.msra.mxu0 %v1586
    %1601 = vmatpush.msra.mxu0 %v1582
    %1602 = vmatpush.msra.mxu0 %v1578
    %1603 = vmatpush.msra.mxu0 %v1574
    %1604 = vmatpush.msra.mxu0 %v1570
    %1605 = vmatpush.msra.mxu0 %v1566
    %1606 = vmatpush.msra.mxu0 %v1562
    %1607 = vmatpush.msra.mxu0 %v1558
    %1608 = vmatpush.msra.mxu0 %v1554
    %1609 = vmatpush.msra.mxu0 %v1550
    %1610 = vmatpush.msra.mxu0 %v1546
    %1611 = vmatpush.msra.mxu0 %v1542
    %1612 = vmatpush.msra.mxu0 %v1538
    %1613 = vmatpush.msra.mxu0 %v1534
    %1614 = vmatmul.f32.gmra.mxu0 %v1526
    %v1615 = vpop.f32.mrf.mxu0
    %v1616 = vadd.f32 0.0, %v1615
    %1617 = vdwg.mxu0
    %1618 = vmatpush.msra.mxu0 %v1595
    %1619 = vmatpush.msra.mxu0 %v1591
    %1620 = vmatpush.msra.mxu0 %v1587
    %1621 = vmatpush.msra.mxu0 %v1583
    %1622 = vmatpush.msra.mxu0 %v1579
    %1623 = vmatpush.msra.mxu0 %v1575
    %1624 = vmatpush.msra.mxu0 %v1571
    %1625 = vmatpush.msra.mxu0 %v1567
    %1626 = vmatpush.msra.mxu0 %v1563
    %1627 = vmatpush.msra.mxu0 %v1559
    %1628 = vmatpush.msra.mxu0 %v1555
    %1629 = vmatpush.msra.mxu0 %v1551
    %1630 = vmatpush.msra.mxu0 %v1547
    %1631 = vmatpush.msra.mxu0 %v1543
    %1632 = vmatpush.msra.mxu0 %v1539
    %1633 = vmatpush.msra.mxu0 %v1535
    %1634 = vmatmul.f32.gmra.mxu0 %v1526
    %v1635 = vpop.f32.mrf.mxu0
    %v1636 = vadd.f32 0.0, %v1635
    %1637 = vdwg.mxu0
    %1638 = vmatpush.msra.mxu0 %v1596
    %1639 = vmatpush.msra.mxu0 %v1592
    %1640 = vmatpush.msra.mxu0 %v1588
    %1641 = vmatpush.msra.mxu0 %v1584
    %1642 = vmatpush.msra.mxu0 %v1580
    %1643 = vmatpush.msra.mxu0 %v1576
    %1644 = vmatpush.msra.mxu0 %v1572
    %1645 = vmatpush.msra.mxu0 %v1568
    %1646 = vmatpush.msra.mxu0 %v1564
    %1647 = vmatpush.msra.mxu0 %v1560
    %1648 = vmatpush.msra.mxu0 %v1556
    %1649 = vmatpush.msra.mxu0 %v1552
    %1650 = vmatpush.msra.mxu0 %v1548
    %1651 = vmatpush.msra.mxu0 %v1544
    %1652 = vmatpush.msra.mxu0 %v1540
    %1653 = vmatpush.msra.mxu0 %v1536
    %1654 = vmatmul.f32.gmra.mxu0 %v1526
    %v1655 = vpop.f32.mrf.mxu0
    %v1656 = vadd.f32 0.0, %v1655
    %1657 = vdwg.mxu0
    %1658 = vmatpush.msra.mxu0 %v1597
    %1659 = vmatpush.msra.mxu0 %v1593
    %1660 = vmatpush.msra.mxu0 %v1589
    %1661 = vmatpush.msra.mxu0 %v1585
    %1662 = vmatpush.msra.mxu0 %v1581
    %1663 = vmatpush.msra.mxu0 %v1577
    %1664 = vmatpush.msra.mxu0 %v1573
    %1665 = vmatpush.msra.mxu0 %v1569
    %1666 = vmatpush.msra.mxu0 %v1565
    %1667 = vmatpush.msra.mxu0 %v1561
    %1668 = vmatpush.msra.mxu0 %v1557
    %1669 = vmatpush.msra.mxu0 %v1553
    %1670 = vmatpush.msra.mxu0 %v1549
    %1671 = vmatpush.msra.mxu0 %v1545
    %1672 = vmatpush.msra.mxu0 %v1541
    %1673 = vmatpush.msra.mxu0 %v1537
    %1674 = vmatmul.f32.gmra.mxu0 %v1526
    %v1675 = vpop.f32.mrf.mxu0
    %v1676 = vadd.f32 0.0, %v1675
    %1677 = vdwg.mxu0
    %v1678 = vadd.f32 %v1530, %v1616
    %v1679 = vadd.f32 %v1531, %v1636
    %v1680 = vadd.f32 %v1532, %v1656
    %v1681 = vadd.f32 %v1533, %v1676
    %v1682 = vxor.u32 %v1678, 2147483648
    %v1683 = vmul.f32 %v1682, 1.442695
    %v1684 = vpow.pop %v1683
    %v1685 = vadd.f32 %v1684, 1.0
    %v1686 = vrcp.pop %v1685
    %v1687 = vmul.f32 %v1685, %v1686
    %v1688 = vsub.f32 1.0, %v1687
    %v1689 = vmul.f32 %v1686, %v1688
    %v1690 = vadd.f32 %v1686, %v1689
    %vm1691 = vweird.f32 %v1685
    %vm1692 = vweird.f32 %v1686
    %vm1693 = vmor %vm1691, %vm1692
    %v1694 = vsel %vm1693, %v1686, %v1690
    %v1695 = vand.u32 2147483647, %v1685
    %vm1696 = vcmp.eq.f32.partialorder %v1695, 8.507059e+37
    %v1697 = vand.u32 %v1685, 2147483648
    %v1698 = vor.u32 1.1754944e-38, %v1697
    %v1699 = vsel %vm1696, %v1698, %v1694
    %v1700 = vmul.f32 1.0, %v1699
    %v1701 = vxor.u32 %v1679, 2147483648
    %v1702 = vmul.f32 %v1701, 1.442695
    %v1703 = vpow.pop %v1702
    %v1704 = vadd.f32 %v1703, 1.0
    %v1705 = vrcp.pop %v1704
    %v1706 = vmul.f32 %v1704, %v1705
    %v1707 = vsub.f32 1.0, %v1706
    %v1708 = vmul.f32 %v1705, %v1707
    %v1709 = vadd.f32 %v1705, %v1708
    %vm1710 = vweird.f32 %v1704
    %vm1711 = vweird.f32 %v1705
    %vm1712 = vmor %vm1710, %vm1711
    %v1713 = vsel %vm1712, %v1705, %v1709
    %v1714 = vand.u32 2147483647, %v1704
    %vm1715 = vcmp.eq.f32.partialorder %v1714, 8.507059e+37
    %v1716 = vand.u32 %v1704, 2147483648
    %v1717 = vor.u32 1.1754944e-38, %v1716
    %v1718 = vsel %vm1715, %v1717, %v1713
    %v1719 = vmul.f32 1.0, %v1718
    %v1720 = vtanh.pop %v1680
    %v1721 = vxor.u32 %v1681, 2147483648
    %v1722 = vmul.f32 %v1721, 1.442695
    %v1723 = vpow.pop %v1722
    %v1724 = vadd.f32 %v1723, 1.0
    %v1725 = vrcp.pop %v1724
    %v1726 = vmul.f32 %v1724, %v1725
    %v1727 = vsub.f32 1.0, %v1726
    %v1728 = vmul.f32 %v1725, %v1727
    %v1729 = vadd.f32 %v1725, %v1728
    %vm1730 = vweird.f32 %v1724
    %vm1731 = vweird.f32 %v1725
    %vm1732 = vmor %vm1730, %vm1731
    %v1733 = vsel %vm1732, %v1725, %v1729
    %v1734 = vand.u32 2147483647, %v1724
    %vm1735 = vcmp.eq.f32.partialorder %v1734, 8.507059e+37
    %v1736 = vand.u32 %v1724, 2147483648
    %v1737 = vor.u32 1.1754944e-38, %v1736
    %v1738 = vsel %vm1735, %v1737, %v1733
    %v1739 = vmul.f32 1.0, %v1738
    %v1740 = vmul.f32 %v1719, %v1524
    %v1741 = vmul.f32 %v1700, %v1720
    %v1742 = vadd.f32 %v1740, %v1741
    %v1743 = vtanh.pop %v1742
    %v1744 = vmul.f32 %v1739, %v1743
    %s1745 = scalar_lea.vmem [#allocation3], 40
    %1746 = vst [vmem:[%s1745] sm:$0xff] %v1744
    %s1747 = scalar_lea.vmem [#allocation2], 192
    %v1748 = vld [vmem:[%s1747] sm:$0xff]
    %v1749 = vld [vmem:[%s1747 + $0x8] sm:$0xff]
    %v1750 = vld [vmem:[%s1747 + $0x10] sm:$0xff]
    %v1751 = vld [vmem:[%s1747 + $0x18] sm:$0xff]
    %v1752 = vld [vmem:[#allocation10] sm:$0xff]
    %v1753 = vld [vmem:[#allocation10 + $0x8] sm:$0xff]
    %v1754 = vld [vmem:[#allocation10 + $0x10] sm:$0xff]
    %v1755 = vld [vmem:[#allocation10 + $0x18] sm:$0xff]
    %v1756 = vld [vmem:[#allocation10 + $0x20] sm:$0xff]
    %v1757 = vld [vmem:[#allocation10 + $0x28] sm:$0xff]
    %v1758 = vld [vmem:[#allocation10 + $0x30] sm:$0xff]
    %v1759 = vld [vmem:[#allocation10 + $0x38] sm:$0xff]
    %v1760 = vld [vmem:[#allocation10 + $0x40] sm:$0xff]
    %v1761 = vld [vmem:[#allocation10 + $0x48] sm:$0xff]
    %v1762 = vld [vmem:[#allocation10 + $0x50] sm:$0xff]
    %v1763 = vld [vmem:[#allocation10 + $0x58] sm:$0xff]
    %v1764 = vld [vmem:[#allocation10 + $0x60] sm:$0xff]
    %v1765 = vld [vmem:[#allocation10 + $0x68] sm:$0xff]
    %v1766 = vld [vmem:[#allocation10 + $0x70] sm:$0xff]
    %v1767 = vld [vmem:[#allocation10 + $0x78] sm:$0xff]
    %v1768 = vld [vmem:[#allocation10 + $0x80] sm:$0xff]
    %v1769 = vld [vmem:[#allocation10 + $0x88] sm:$0xff]
    %v1770 = vld [vmem:[#allocation10 + $0x90] sm:$0xff]
    %v1771 = vld [vmem:[#allocation10 + $0x98] sm:$0xff]
    %v1772 = vld [vmem:[#allocation10 + $0xa0] sm:$0xff]
    %v1773 = vld [vmem:[#allocation10 + $0xa8] sm:$0xff]
    %v1774 = vld [vmem:[#allocation10 + $0xb0] sm:$0xff]
    %v1775 = vld [vmem:[#allocation10 + $0xb8] sm:$0xff]
    %v1776 = vld [vmem:[#allocation10 + $0xc0] sm:$0xff]
    %v1777 = vld [vmem:[#allocation10 + $0xc8] sm:$0xff]
    %v1778 = vld [vmem:[#allocation10 + $0xd0] sm:$0xff]
    %v1779 = vld [vmem:[#allocation10 + $0xd8] sm:$0xff]
    %v1780 = vld [vmem:[#allocation10 + $0xe0] sm:$0xff]
    %v1781 = vld [vmem:[#allocation10 + $0xe8] sm:$0xff]
    %v1782 = vld [vmem:[#allocation10 + $0xf0] sm:$0xff]
    %v1783 = vld [vmem:[#allocation10 + $0xf8] sm:$0xff]
    %v1784 = vld [vmem:[#allocation10 + $0x100] sm:$0xff]
    %v1785 = vld [vmem:[#allocation10 + $0x108] sm:$0xff]
    %v1786 = vld [vmem:[#allocation10 + $0x110] sm:$0xff]
    %v1787 = vld [vmem:[#allocation10 + $0x118] sm:$0xff]
    %v1788 = vld [vmem:[#allocation10 + $0x120] sm:$0xff]
    %v1789 = vld [vmem:[#allocation10 + $0x128] sm:$0xff]
    %v1790 = vld [vmem:[#allocation10 + $0x130] sm:$0xff]
    %v1791 = vld [vmem:[#allocation10 + $0x138] sm:$0xff]
    %v1792 = vld [vmem:[#allocation10 + $0x140] sm:$0xff]
    %v1793 = vld [vmem:[#allocation10 + $0x148] sm:$0xff]
    %v1794 = vld [vmem:[#allocation10 + $0x150] sm:$0xff]
    %v1795 = vld [vmem:[#allocation10 + $0x158] sm:$0xff]
    %v1796 = vld [vmem:[#allocation10 + $0x160] sm:$0xff]
    %v1797 = vld [vmem:[#allocation10 + $0x168] sm:$0xff]
    %v1798 = vld [vmem:[#allocation10 + $0x170] sm:$0xff]
    %v1799 = vld [vmem:[#allocation10 + $0x178] sm:$0xff]
    %v1800 = vld [vmem:[#allocation10 + $0x180] sm:$0xff]
    %v1801 = vld [vmem:[#allocation10 + $0x188] sm:$0xff]
    %v1802 = vld [vmem:[#allocation10 + $0x190] sm:$0xff]
    %v1803 = vld [vmem:[#allocation10 + $0x198] sm:$0xff]
    %v1804 = vld [vmem:[#allocation10 + $0x1a0] sm:$0xff]
    %v1805 = vld [vmem:[#allocation10 + $0x1a8] sm:$0xff]
    %v1806 = vld [vmem:[#allocation10 + $0x1b0] sm:$0xff]
    %v1807 = vld [vmem:[#allocation10 + $0x1b8] sm:$0xff]
    %v1808 = vld [vmem:[#allocation10 + $0x1c0] sm:$0xff]
    %v1809 = vld [vmem:[#allocation10 + $0x1c8] sm:$0xff]
    %v1810 = vld [vmem:[#allocation10 + $0x1d0] sm:$0xff]
    %v1811 = vld [vmem:[#allocation10 + $0x1d8] sm:$0xff]
    %v1812 = vld [vmem:[#allocation10 + $0x1e0] sm:$0xff]
    %v1813 = vld [vmem:[#allocation10 + $0x1e8] sm:$0xff]
    %v1814 = vld [vmem:[#allocation10 + $0x1f0] sm:$0xff]
    %v1815 = vld [vmem:[#allocation10 + $0x1f8] sm:$0xff]
    %1816 = vmatpush.msra.mxu0 %v1812
    %1817 = vmatpush.msra.mxu0 %v1808
    %1818 = vmatpush.msra.mxu0 %v1804
    %1819 = vmatpush.msra.mxu0 %v1800
    %1820 = vmatpush.msra.mxu0 %v1796
    %1821 = vmatpush.msra.mxu0 %v1792
    %1822 = vmatpush.msra.mxu0 %v1788
    %1823 = vmatpush.msra.mxu0 %v1784
    %1824 = vmatpush.msra.mxu0 %v1780
    %1825 = vmatpush.msra.mxu0 %v1776
    %1826 = vmatpush.msra.mxu0 %v1772
    %1827 = vmatpush.msra.mxu0 %v1768
    %1828 = vmatpush.msra.mxu0 %v1764
    %1829 = vmatpush.msra.mxu0 %v1760
    %1830 = vmatpush.msra.mxu0 %v1756
    %1831 = vmatpush.msra.mxu0 %v1752
    %1832 = vmatmul.f32.gmra.mxu0 %v1744
    %v1833 = vpop.f32.mrf.mxu0
    %v1834 = vadd.f32 0.0, %v1833
    %1835 = vdwg.mxu0
    %1836 = vmatpush.msra.mxu0 %v1813
    %1837 = vmatpush.msra.mxu0 %v1809
    %1838 = vmatpush.msra.mxu0 %v1805
    %1839 = vmatpush.msra.mxu0 %v1801
    %1840 = vmatpush.msra.mxu0 %v1797
    %1841 = vmatpush.msra.mxu0 %v1793
    %1842 = vmatpush.msra.mxu0 %v1789
    %1843 = vmatpush.msra.mxu0 %v1785
    %1844 = vmatpush.msra.mxu0 %v1781
    %1845 = vmatpush.msra.mxu0 %v1777
    %1846 = vmatpush.msra.mxu0 %v1773
    %1847 = vmatpush.msra.mxu0 %v1769
    %1848 = vmatpush.msra.mxu0 %v1765
    %1849 = vmatpush.msra.mxu0 %v1761
    %1850 = vmatpush.msra.mxu0 %v1757
    %1851 = vmatpush.msra.mxu0 %v1753
    %1852 = vmatmul.f32.gmra.mxu0 %v1744
    %v1853 = vpop.f32.mrf.mxu0
    %v1854 = vadd.f32 0.0, %v1853
    %1855 = vdwg.mxu0
    %1856 = vmatpush.msra.mxu0 %v1814
    %1857 = vmatpush.msra.mxu0 %v1810
    %1858 = vmatpush.msra.mxu0 %v1806
    %1859 = vmatpush.msra.mxu0 %v1802
    %1860 = vmatpush.msra.mxu0 %v1798
    %1861 = vmatpush.msra.mxu0 %v1794
    %1862 = vmatpush.msra.mxu0 %v1790
    %1863 = vmatpush.msra.mxu0 %v1786
    %1864 = vmatpush.msra.mxu0 %v1782
    %1865 = vmatpush.msra.mxu0 %v1778
    %1866 = vmatpush.msra.mxu0 %v1774
    %1867 = vmatpush.msra.mxu0 %v1770
    %1868 = vmatpush.msra.mxu0 %v1766
    %1869 = vmatpush.msra.mxu0 %v1762
    %1870 = vmatpush.msra.mxu0 %v1758
    %1871 = vmatpush.msra.mxu0 %v1754
    %1872 = vmatmul.f32.gmra.mxu0 %v1744
    %v1873 = vpop.f32.mrf.mxu0
    %v1874 = vadd.f32 0.0, %v1873
    %1875 = vdwg.mxu0
    %1876 = vmatpush.msra.mxu0 %v1815
    %1877 = vmatpush.msra.mxu0 %v1811
    %1878 = vmatpush.msra.mxu0 %v1807
    %1879 = vmatpush.msra.mxu0 %v1803
    %1880 = vmatpush.msra.mxu0 %v1799
    %1881 = vmatpush.msra.mxu0 %v1795
    %1882 = vmatpush.msra.mxu0 %v1791
    %1883 = vmatpush.msra.mxu0 %v1787
    %1884 = vmatpush.msra.mxu0 %v1783
    %1885 = vmatpush.msra.mxu0 %v1779
    %1886 = vmatpush.msra.mxu0 %v1775
    %1887 = vmatpush.msra.mxu0 %v1771
    %1888 = vmatpush.msra.mxu0 %v1767
    %1889 = vmatpush.msra.mxu0 %v1763
    %1890 = vmatpush.msra.mxu0 %v1759
    %1891 = vmatpush.msra.mxu0 %v1755
    %1892 = vmatmul.f32.gmra.mxu0 %v1744
    %v1893 = vpop.f32.mrf.mxu0
    %v1894 = vadd.f32 0.0, %v1893
    %1895 = vdwg.mxu0
    %v1896 = vadd.f32 %v1748, %v1834
    %v1897 = vadd.f32 %v1749, %v1854
    %v1898 = vadd.f32 %v1750, %v1874
    %v1899 = vadd.f32 %v1751, %v1894
    %v1900 = vxor.u32 %v1896, 2147483648
    %v1901 = vmul.f32 %v1900, 1.442695
    %v1902 = vpow.pop %v1901
    %v1903 = vadd.f32 %v1902, 1.0
    %v1904 = vrcp.pop %v1903
    %v1905 = vmul.f32 %v1903, %v1904
    %v1906 = vsub.f32 1.0, %v1905
    %v1907 = vmul.f32 %v1904, %v1906
    %v1908 = vadd.f32 %v1904, %v1907
    %vm1909 = vweird.f32 %v1903
    %vm1910 = vweird.f32 %v1904
    %vm1911 = vmor %vm1909, %vm1910
    %v1912 = vsel %vm1911, %v1904, %v1908
    %v1913 = vand.u32 2147483647, %v1903
    %vm1914 = vcmp.eq.f32.partialorder %v1913, 8.507059e+37
    %v1915 = vand.u32 %v1903, 2147483648
    %v1916 = vor.u32 1.1754944e-38, %v1915
    %v1917 = vsel %vm1914, %v1916, %v1912
    %v1918 = vmul.f32 1.0, %v1917
    %v1919 = vxor.u32 %v1897, 2147483648
    %v1920 = vmul.f32 %v1919, 1.442695
    %v1921 = vpow.pop %v1920
    %v1922 = vadd.f32 %v1921, 1.0
    %v1923 = vrcp.pop %v1922
    %v1924 = vmul.f32 %v1922, %v1923
    %v1925 = vsub.f32 1.0, %v1924
    %v1926 = vmul.f32 %v1923, %v1925
    %v1927 = vadd.f32 %v1923, %v1926
    %vm1928 = vweird.f32 %v1922
    %vm1929 = vweird.f32 %v1923
    %vm1930 = vmor %vm1928, %vm1929
    %v1931 = vsel %vm1930, %v1923, %v1927
    %v1932 = vand.u32 2147483647, %v1922
    %vm1933 = vcmp.eq.f32.partialorder %v1932, 8.507059e+37
    %v1934 = vand.u32 %v1922, 2147483648
    %v1935 = vor.u32 1.1754944e-38, %v1934
    %v1936 = vsel %vm1933, %v1935, %v1931
    %v1937 = vmul.f32 1.0, %v1936
    %v1938 = vtanh.pop %v1898
    %v1939 = vxor.u32 %v1899, 2147483648
    %v1940 = vmul.f32 %v1939, 1.442695
    %v1941 = vpow.pop %v1940
    %v1942 = vadd.f32 %v1941, 1.0
    %v1943 = vrcp.pop %v1942
    %v1944 = vmul.f32 %v1942, %v1943
    %v1945 = vsub.f32 1.0, %v1944
    %v1946 = vmul.f32 %v1943, %v1945
    %v1947 = vadd.f32 %v1943, %v1946
    %vm1948 = vweird.f32 %v1942
    %vm1949 = vweird.f32 %v1943
    %vm1950 = vmor %vm1948, %vm1949
    %v1951 = vsel %vm1950, %v1943, %v1947
    %v1952 = vand.u32 2147483647, %v1942
    %vm1953 = vcmp.eq.f32.partialorder %v1952, 8.507059e+37
    %v1954 = vand.u32 %v1942, 2147483648
    %v1955 = vor.u32 1.1754944e-38, %v1954
    %v1956 = vsel %vm1953, %v1955, %v1951
    %v1957 = vmul.f32 1.0, %v1956
    %v1958 = vmul.f32 %v1937, %v1742
    %v1959 = vmul.f32 %v1918, %v1938
    %v1960 = vadd.f32 %v1958, %v1959
    %v1961 = vtanh.pop %v1960
    %v1962 = vmul.f32 %v1957, %v1961
    %s1963 = scalar_lea.vmem [#allocation3], 48
    %1964 = vst [vmem:[%s1963] sm:$0xff] %v1962
    %s1965 = scalar_lea.vmem [#allocation2], 224
    %v1966 = vld [vmem:[%s1965] sm:$0xff]
    %v1967 = vld [vmem:[%s1965 + $0x8] sm:$0xff]
    %v1968 = vld [vmem:[%s1965 + $0x10] sm:$0xff]
    %v1969 = vld [vmem:[%s1965 + $0x18] sm:$0xff]
    %v1970 = vld [vmem:[#allocation10] sm:$0xff]
    %v1971 = vld [vmem:[#allocation10 + $0x8] sm:$0xff]
    %v1972 = vld [vmem:[#allocation10 + $0x10] sm:$0xff]
    %v1973 = vld [vmem:[#allocation10 + $0x18] sm:$0xff]
    %v1974 = vld [vmem:[#allocation10 + $0x20] sm:$0xff]
    %v1975 = vld [vmem:[#allocation10 + $0x28] sm:$0xff]
    %v1976 = vld [vmem:[#allocation10 + $0x30] sm:$0xff]
    %v1977 = vld [vmem:[#allocation10 + $0x38] sm:$0xff]
    %v1978 = vld [vmem:[#allocation10 + $0x40] sm:$0xff]
    %v1979 = vld [vmem:[#allocation10 + $0x48] sm:$0xff]
    %v1980 = vld [vmem:[#allocation10 + $0x50] sm:$0xff]
    %v1981 = vld [vmem:[#allocation10 + $0x58] sm:$0xff]
    %v1982 = vld [vmem:[#allocation10 + $0x60] sm:$0xff]
    %v1983 = vld [vmem:[#allocation10 + $0x68] sm:$0xff]
    %v1984 = vld [vmem:[#allocation10 + $0x70] sm:$0xff]
    %v1985 = vld [vmem:[#allocation10 + $0x78] sm:$0xff]
    %v1986 = vld [vmem:[#allocation10 + $0x80] sm:$0xff]
    %v1987 = vld [vmem:[#allocation10 + $0x88] sm:$0xff]
    %v1988 = vld [vmem:[#allocation10 + $0x90] sm:$0xff]
    %v1989 = vld [vmem:[#allocation10 + $0x98] sm:$0xff]
    %v1990 = vld [vmem:[#allocation10 + $0xa0] sm:$0xff]
    %v1991 = vld [vmem:[#allocation10 + $0xa8] sm:$0xff]
    %v1992 = vld [vmem:[#allocation10 + $0xb0] sm:$0xff]
    %v1993 = vld [vmem:[#allocation10 + $0xb8] sm:$0xff]
    %v1994 = vld [vmem:[#allocation10 + $0xc0] sm:$0xff]
    %v1995 = vld [vmem:[#allocation10 + $0xc8] sm:$0xff]
    %v1996 = vld [vmem:[#allocation10 + $0xd0] sm:$0xff]
    %v1997 = vld [vmem:[#allocation10 + $0xd8] sm:$0xff]
    %v1998 = vld [vmem:[#allocation10 + $0xe0] sm:$0xff]
    %v1999 = vld [vmem:[#allocation10 + $0xe8] sm:$0xff]
    %v2000 = vld [vmem:[#allocation10 + $0xf0] sm:$0xff]
    %v2001 = vld [vmem:[#allocation10 + $0xf8] sm:$0xff]
    %v2002 = vld [vmem:[#allocation10 + $0x100] sm:$0xff]
    %v2003 = vld [vmem:[#allocation10 + $0x108] sm:$0xff]
    %v2004 = vld [vmem:[#allocation10 + $0x110] sm:$0xff]
    %v2005 = vld [vmem:[#allocation10 + $0x118] sm:$0xff]
    %v2006 = vld [vmem:[#allocation10 + $0x120] sm:$0xff]
    %v2007 = vld [vmem:[#allocation10 + $0x128] sm:$0xff]
    %v2008 = vld [vmem:[#allocation10 + $0x130] sm:$0xff]
    %v2009 = vld [vmem:[#allocation10 + $0x138] sm:$0xff]
    %v2010 = vld [vmem:[#allocation10 + $0x140] sm:$0xff]
    %v2011 = vld [vmem:[#allocation10 + $0x148] sm:$0xff]
    %v2012 = vld [vmem:[#allocation10 + $0x150] sm:$0xff]
    %v2013 = vld [vmem:[#allocation10 + $0x158] sm:$0xff]
    %v2014 = vld [vmem:[#allocation10 + $0x160] sm:$0xff]
    %v2015 = vld [vmem:[#allocation10 + $0x168] sm:$0xff]
    %v2016 = vld [vmem:[#allocation10 + $0x170] sm:$0xff]
    %v2017 = vld [vmem:[#allocation10 + $0x178] sm:$0xff]
    %v2018 = vld [vmem:[#allocation10 + $0x180] sm:$0xff]
    %v2019 = vld [vmem:[#allocation10 + $0x188] sm:$0xff]
    %v2020 = vld [vmem:[#allocation10 + $0x190] sm:$0xff]
    %v2021 = vld [vmem:[#allocation10 + $0x198] sm:$0xff]
    %v2022 = vld [vmem:[#allocation10 + $0x1a0] sm:$0xff]
    %v2023 = vld [vmem:[#allocation10 + $0x1a8] sm:$0xff]
    %v2024 = vld [vmem:[#allocation10 + $0x1b0] sm:$0xff]
    %v2025 = vld [vmem:[#allocation10 + $0x1b8] sm:$0xff]
    %v2026 = vld [vmem:[#allocation10 + $0x1c0] sm:$0xff]
    %v2027 = vld [vmem:[#allocation10 + $0x1c8] sm:$0xff]
    %v2028 = vld [vmem:[#allocation10 + $0x1d0] sm:$0xff]
    %v2029 = vld [vmem:[#allocation10 + $0x1d8] sm:$0xff]
    %v2030 = vld [vmem:[#allocation10 + $0x1e0] sm:$0xff]
    %v2031 = vld [vmem:[#allocation10 + $0x1e8] sm:$0xff]
    %v2032 = vld [vmem:[#allocation10 + $0x1f0] sm:$0xff]
    %v2033 = vld [vmem:[#allocation10 + $0x1f8] sm:$0xff]
    %2034 = vmatpush.msra.mxu0 %v2030
    %2035 = vmatpush.msra.mxu0 %v2026
    %2036 = vmatpush.msra.mxu0 %v2022
    %2037 = vmatpush.msra.mxu0 %v2018
    %2038 = vmatpush.msra.mxu0 %v2014
    %2039 = vmatpush.msra.mxu0 %v2010
    %2040 = vmatpush.msra.mxu0 %v2006
    %2041 = vmatpush.msra.mxu0 %v2002
    %2042 = vmatpush.msra.mxu0 %v1998
    %2043 = vmatpush.msra.mxu0 %v1994
    %2044 = vmatpush.msra.mxu0 %v1990
    %2045 = vmatpush.msra.mxu0 %v1986
    %2046 = vmatpush.msra.mxu0 %v1982
    %2047 = vmatpush.msra.mxu0 %v1978
    %2048 = vmatpush.msra.mxu0 %v1974
    %2049 = vmatpush.msra.mxu0 %v1970
    %2050 = vmatmul.f32.gmra.mxu0 %v1962
    %v2051 = vpop.f32.mrf.mxu0
    %v2052 = vadd.f32 0.0, %v2051
    %2053 = vdwg.mxu0
    %2054 = vmatpush.msra.mxu0 %v2031
    %2055 = vmatpush.msra.mxu0 %v2027
    %2056 = vmatpush.msra.mxu0 %v2023
    %2057 = vmatpush.msra.mxu0 %v2019
    %2058 = vmatpush.msra.mxu0 %v2015
    %2059 = vmatpush.msra.mxu0 %v2011
    %2060 = vmatpush.msra.mxu0 %v2007
    %2061 = vmatpush.msra.mxu0 %v2003
    %2062 = vmatpush.msra.mxu0 %v1999
    %2063 = vmatpush.msra.mxu0 %v1995
    %2064 = vmatpush.msra.mxu0 %v1991
    %2065 = vmatpush.msra.mxu0 %v1987
    %2066 = vmatpush.msra.mxu0 %v1983
    %2067 = vmatpush.msra.mxu0 %v1979
    %2068 = vmatpush.msra.mxu0 %v1975
    %2069 = vmatpush.msra.mxu0 %v1971
    %2070 = vmatmul.f32.gmra.mxu0 %v1962
    %v2071 = vpop.f32.mrf.mxu0
    %v2072 = vadd.f32 0.0, %v2071
    %2073 = vdwg.mxu0
    %2074 = vmatpush.msra.mxu0 %v2032
    %2075 = vmatpush.msra.mxu0 %v2028
    %2076 = vmatpush.msra.mxu0 %v2024
    %2077 = vmatpush.msra.mxu0 %v2020
    %2078 = vmatpush.msra.mxu0 %v2016
    %2079 = vmatpush.msra.mxu0 %v2012
    %2080 = vmatpush.msra.mxu0 %v2008
    %2081 = vmatpush.msra.mxu0 %v2004
    %2082 = vmatpush.msra.mxu0 %v2000
    %2083 = vmatpush.msra.mxu0 %v1996
    %2084 = vmatpush.msra.mxu0 %v1992
    %2085 = vmatpush.msra.mxu0 %v1988
    %2086 = vmatpush.msra.mxu0 %v1984
    %2087 = vmatpush.msra.mxu0 %v1980
    %2088 = vmatpush.msra.mxu0 %v1976
    %2089 = vmatpush.msra.mxu0 %v1972
    %2090 = vmatmul.f32.gmra.mxu0 %v1962
    %v2091 = vpop.f32.mrf.mxu0
    %v2092 = vadd.f32 0.0, %v2091
    %2093 = vdwg.mxu0
    %2094 = vmatpush.msra.mxu0 %v2033
    %2095 = vmatpush.msra.mxu0 %v2029
    %2096 = vmatpush.msra.mxu0 %v2025
    %2097 = vmatpush.msra.mxu0 %v2021
    %2098 = vmatpush.msra.mxu0 %v2017
    %2099 = vmatpush.msra.mxu0 %v2013
    %2100 = vmatpush.msra.mxu0 %v2009
    %2101 = vmatpush.msra.mxu0 %v2005
    %2102 = vmatpush.msra.mxu0 %v2001
    %2103 = vmatpush.msra.mxu0 %v1997
    %2104 = vmatpush.msra.mxu0 %v1993
    %2105 = vmatpush.msra.mxu0 %v1989
    %2106 = vmatpush.msra.mxu0 %v1985
    %2107 = vmatpush.msra.mxu0 %v1981
    %2108 = vmatpush.msra.mxu0 %v1977
    %2109 = vmatpush.msra.mxu0 %v1973
    %2110 = vmatmul.f32.gmra.mxu0 %v1962
    %v2111 = vpop.f32.mrf.mxu0
    %v2112 = vadd.f32 0.0, %v2111
    %2113 = vdwg.mxu0
    %v2114 = vadd.f32 %v1966, %v2052
    %v2115 = vadd.f32 %v1967, %v2072
    %v2116 = vadd.f32 %v1968, %v2092
    %v2117 = vadd.f32 %v1969, %v2112
    %v2118 = vxor.u32 %v2114, 2147483648
    %v2119 = vmul.f32 %v2118, 1.442695
    %v2120 = vpow.pop %v2119
    %v2121 = vadd.f32 %v2120, 1.0
    %v2122 = vrcp.pop %v2121
    %v2123 = vmul.f32 %v2121, %v2122
    %v2124 = vsub.f32 1.0, %v2123
    %v2125 = vmul.f32 %v2122, %v2124
    %v2126 = vadd.f32 %v2122, %v2125
    %vm2127 = vweird.f32 %v2121
    %vm2128 = vweird.f32 %v2122
    %vm2129 = vmor %vm2127, %vm2128
    %v2130 = vsel %vm2129, %v2122, %v2126
    %v2131 = vand.u32 2147483647, %v2121
    %vm2132 = vcmp.eq.f32.partialorder %v2131, 8.507059e+37
    %v2133 = vand.u32 %v2121, 2147483648
    %v2134 = vor.u32 1.1754944e-38, %v2133
    %v2135 = vsel %vm2132, %v2134, %v2130
    %v2136 = vmul.f32 1.0, %v2135
    %v2137 = vxor.u32 %v2115, 2147483648
    %v2138 = vmul.f32 %v2137, 1.442695
    %v2139 = vpow.pop %v2138
    %v2140 = vadd.f32 %v2139, 1.0
    %v2141 = vrcp.pop %v2140
    %v2142 = vmul.f32 %v2140, %v2141
    %v2143 = vsub.f32 1.0, %v2142
    %v2144 = vmul.f32 %v2141, %v2143
    %v2145 = vadd.f32 %v2141, %v2144
    %vm2146 = vweird.f32 %v2140
    %vm2147 = vweird.f32 %v2141
    %vm2148 = vmor %vm2146, %vm2147
    %v2149 = vsel %vm2148, %v2141, %v2145
    %v2150 = vand.u32 2147483647, %v2140
    %vm2151 = vcmp.eq.f32.partialorder %v2150, 8.507059e+37
    %v2152 = vand.u32 %v2140, 2147483648
    %v2153 = vor.u32 1.1754944e-38, %v2152
    %v2154 = vsel %vm2151, %v2153, %v2149
    %v2155 = vmul.f32 1.0, %v2154
    %v2156 = vtanh.pop %v2116
    %v2157 = vxor.u32 %v2117, 2147483648
    %v2158 = vmul.f32 %v2157, 1.442695
    %v2159 = vpow.pop %v2158
    %v2160 = vadd.f32 %v2159, 1.0
    %v2161 = vrcp.pop %v2160
    %v2162 = vmul.f32 %v2160, %v2161
    %v2163 = vsub.f32 1.0, %v2162
    %v2164 = vmul.f32 %v2161, %v2163
    %v2165 = vadd.f32 %v2161, %v2164
    %vm2166 = vweird.f32 %v2160
    %vm2167 = vweird.f32 %v2161
    %vm2168 = vmor %vm2166, %vm2167
    %v2169 = vsel %vm2168, %v2161, %v2165
    %v2170 = vand.u32 2147483647, %v2160
    %vm2171 = vcmp.eq.f32.partialorder %v2170, 8.507059e+37
    %v2172 = vand.u32 %v2160, 2147483648
    %v2173 = vor.u32 1.1754944e-38, %v2172
    %v2174 = vsel %vm2171, %v2173, %v2169
    %v2175 = vmul.f32 1.0, %v2174
    %v2176 = vmul.f32 %v2155, %v1960
    %v2177 = vmul.f32 %v2136, %v2156
    %v2178 = vadd.f32 %v2176, %v2177
    %v2179 = vtanh.pop %v2178
    %v2180 = vmul.f32 %v2175, %v2179
    %s2181 = scalar_lea.vmem [#allocation3], 56
    %2182 = vst [vmem:[%s2181] sm:$0xff] %v2180
    %v2183 = vld [vmem:[#allocation3] sm:$0xff]
    %v2184 = vld [vmem:[#allocation3 + $0x8] sm:$0xff]
    %v2185 = vld [vmem:[#allocation3 + $0x10] sm:$0xff]
    %v2186 = vld [vmem:[#allocation3 + $0x18] sm:$0xff]
    %v2187 = vld [vmem:[#allocation3 + $0x20] sm:$0xff]
    %v2188 = vld [vmem:[#allocation3 + $0x28] sm:$0xff]
    %v2189 = vld [vmem:[#allocation3 + $0x30] sm:$0xff]
    %v2190 = vld [vmem:[#allocation3 + $0x38] sm:$0xff]
    %v2191 = vld [vmem:[#allocation9] sm:$0xff]
    %v2192 = vld [vmem:[#allocation9 + $0x8] sm:$0xff]
    %v2193 = vld [vmem:[#allocation9 + $0x10] sm:$0xff]
    %v2194 = vld [vmem:[#allocation9 + $0x18] sm:$0xff]
    %v2195 = vld [vmem:[#allocation9 + $0x20] sm:$0xff]
    %v2196 = vld [vmem:[#allocation9 + $0x28] sm:$0xff]
    %v2197 = vld [vmem:[#allocation9 + $0x30] sm:$0xff]
    %v2198 = vld [vmem:[#allocation9 + $0x38] sm:$0xff]
    %v2199 = vld [vmem:[#allocation9 + $0x40] sm:$0xff]
    %v2200 = vld [vmem:[#allocation9 + $0x48] sm:$0xff]
    %v2201 = vld [vmem:[#allocation9 + $0x50] sm:$0xff]
    %v2202 = vld [vmem:[#allocation9 + $0x58] sm:$0xff]
    %v2203 = vld [vmem:[#allocation9 + $0x60] sm:$0xff]
    %v2204 = vld [vmem:[#allocation9 + $0x68] sm:$0xff]
    %v2205 = vld [vmem:[#allocation9 + $0x70] sm:$0xff]
    %v2206 = vld [vmem:[#allocation9 + $0x78] sm:$0xff]
    %v2207 = vld [vmem:[#allocation9 + $0x80] sm:$0xff]
    %v2208 = vld [vmem:[#allocation9 + $0x88] sm:$0xff]
    %v2209 = vld [vmem:[#allocation9 + $0x90] sm:$0xff]
    %v2210 = vld [vmem:[#allocation9 + $0x98] sm:$0xff]
    %v2211 = vld [vmem:[#allocation9 + $0xa0] sm:$0xff]
    %v2212 = vld [vmem:[#allocation9 + $0xa8] sm:$0xff]
    %v2213 = vld [vmem:[#allocation9 + $0xb0] sm:$0xff]
    %v2214 = vld [vmem:[#allocation9 + $0xb8] sm:$0xff]
    %v2215 = vld [vmem:[#allocation9 + $0xc0] sm:$0xff]
    %v2216 = vld [vmem:[#allocation9 + $0xc8] sm:$0xff]
    %v2217 = vld [vmem:[#allocation9 + $0xd0] sm:$0xff]
    %v2218 = vld [vmem:[#allocation9 + $0xd8] sm:$0xff]
    %v2219 = vld [vmem:[#allocation9 + $0xe0] sm:$0xff]
    %v2220 = vld [vmem:[#allocation9 + $0xe8] sm:$0xff]
    %v2221 = vld [vmem:[#allocation9 + $0xf0] sm:$0xff]
    %v2222 = vld [vmem:[#allocation9 + $0xf8] sm:$0xff]
    %v2223 = vld [vmem:[#allocation9 + $0x100] sm:$0xff]
    %v2224 = vld [vmem:[#allocation9 + $0x108] sm:$0xff]
    %v2225 = vld [vmem:[#allocation9 + $0x110] sm:$0xff]
    %v2226 = vld [vmem:[#allocation9 + $0x118] sm:$0xff]
    %v2227 = vld [vmem:[#allocation9 + $0x120] sm:$0xff]
    %v2228 = vld [vmem:[#allocation9 + $0x128] sm:$0xff]
    %v2229 = vld [vmem:[#allocation9 + $0x130] sm:$0xff]
    %v2230 = vld [vmem:[#allocation9 + $0x138] sm:$0xff]
    %v2231 = vld [vmem:[#allocation9 + $0x140] sm:$0xff]
    %v2232 = vld [vmem:[#allocation9 + $0x148] sm:$0xff]
    %v2233 = vld [vmem:[#allocation9 + $0x150] sm:$0xff]
    %v2234 = vld [vmem:[#allocation9 + $0x158] sm:$0xff]
    %v2235 = vld [vmem:[#allocation9 + $0x160] sm:$0xff]
    %v2236 = vld [vmem:[#allocation9 + $0x168] sm:$0xff]
    %v2237 = vld [vmem:[#allocation9 + $0x170] sm:$0xff]
    %v2238 = vld [vmem:[#allocation9 + $0x178] sm:$0xff]
    %v2239 = vld [vmem:[#allocation9 + $0x180] sm:$0xff]
    %v2240 = vld [vmem:[#allocation9 + $0x188] sm:$0xff]
    %v2241 = vld [vmem:[#allocation9 + $0x190] sm:$0xff]
    %v2242 = vld [vmem:[#allocation9 + $0x198] sm:$0xff]
    %v2243 = vld [vmem:[#allocation9 + $0x1a0] sm:$0xff]
    %v2244 = vld [vmem:[#allocation9 + $0x1a8] sm:$0xff]
    %v2245 = vld [vmem:[#allocation9 + $0x1b0] sm:$0xff]
    %v2246 = vld [vmem:[#allocation9 + $0x1b8] sm:$0xff]
    %v2247 = vld [vmem:[#allocation9 + $0x1c0] sm:$0xff]
    %v2248 = vld [vmem:[#allocation9 + $0x1c8] sm:$0xff]
    %v2249 = vld [vmem:[#allocation9 + $0x1d0] sm:$0xff]
    %v2250 = vld [vmem:[#allocation9 + $0x1d8] sm:$0xff]
    %v2251 = vld [vmem:[#allocation9 + $0x1e0] sm:$0xff]
    %v2252 = vld [vmem:[#allocation9 + $0x1e8] sm:$0xff]
    %v2253 = vld [vmem:[#allocation9 + $0x1f0] sm:$0xff]
    %v2254 = vld [vmem:[#allocation9 + $0x1f8] sm:$0xff]
    %2255 = vmatpush.msra.mxu0 %v2251
    %2256 = vmatpush.msra.mxu0 %v2247
    %2257 = vmatpush.msra.mxu0 %v2243
    %2258 = vmatpush.msra.mxu0 %v2239
    %2259 = vmatpush.msra.mxu0 %v2235
    %2260 = vmatpush.msra.mxu0 %v2231
    %2261 = vmatpush.msra.mxu0 %v2227
    %2262 = vmatpush.msra.mxu0 %v2223
    %2263 = vmatpush.msra.mxu0 %v2219
    %2264 = vmatpush.msra.mxu0 %v2215
    %2265 = vmatpush.msra.mxu0 %v2211
    %2266 = vmatpush.msra.mxu0 %v2207
    %2267 = vmatpush.msra.mxu0 %v2203
    %2268 = vmatpush.msra.mxu0 %v2199
    %2269 = vmatpush.msra.mxu0 %v2195
    %2270 = vmatpush.msra.mxu0 %v2191
    %2271 = vmatmul.f32.gmra.mxu0 %v2183
    %v2272 = vpop.f32.mrf.mxu0
    %v2273 = vadd.f32 0.0, %v2272
    %2274 = vmatmul.f32.gmra.mxu0 %v2184
    %v2275 = vpop.f32.mrf.mxu0
    %v2276 = vadd.f32 0.0, %v2275
    %2277 = vmatmul.f32.gmra.mxu0 %v2185
    %v2278 = vpop.f32.mrf.mxu0
    %v2279 = vadd.f32 0.0, %v2278
    %2280 = vmatmul.f32.gmra.mxu0 %v2186
    %v2281 = vpop.f32.mrf.mxu0
    %v2282 = vadd.f32 0.0, %v2281
    %2283 = vmatmul.f32.gmra.mxu0 %v2187
    %v2284 = vpop.f32.mrf.mxu0
    %v2285 = vadd.f32 0.0, %v2284
    %2286 = vmatmul.f32.gmra.mxu0 %v2188
    %v2287 = vpop.f32.mrf.mxu0
    %v2288 = vadd.f32 0.0, %v2287
    %2289 = vmatmul.f32.gmra.mxu0 %v2189
    %v2290 = vpop.f32.mrf.mxu0
    %v2291 = vadd.f32 0.0, %v2290
    %2292 = vmatmul.f32.gmra.mxu0 %v2190
    %v2293 = vpop.f32.mrf.mxu0
    %v2294 = vadd.f32 0.0, %v2293
    %2295 = vdwg.mxu0
    %2296 = vmatpush.msra.mxu0 %v2252
    %2297 = vmatpush.msra.mxu0 %v2248
    %2298 = vmatpush.msra.mxu0 %v2244
    %2299 = vmatpush.msra.mxu0 %v2240
    %2300 = vmatpush.msra.mxu0 %v2236
    %2301 = vmatpush.msra.mxu0 %v2232
    %2302 = vmatpush.msra.mxu0 %v2228
    %2303 = vmatpush.msra.mxu0 %v2224
    %2304 = vmatpush.msra.mxu0 %v2220
    %2305 = vmatpush.msra.mxu0 %v2216
    %2306 = vmatpush.msra.mxu0 %v2212
    %2307 = vmatpush.msra.mxu0 %v2208
    %2308 = vmatpush.msra.mxu0 %v2204
    %2309 = vmatpush.msra.mxu0 %v2200
    %2310 = vmatpush.msra.mxu0 %v2196
    %2311 = vmatpush.msra.mxu0 %v2192
    %2312 = vmatmul.f32.gmra.mxu0 %v2183
    %v2313 = vpop.f32.mrf.mxu0
    %v2314 = vadd.f32 0.0, %v2313
    %2315 = vmatmul.f32.gmra.mxu0 %v2184
    %v2316 = vpop.f32.mrf.mxu0
    %v2317 = vadd.f32 0.0, %v2316
    %2318 = vmatmul.f32.gmra.mxu0 %v2185
    %v2319 = vpop.f32.mrf.mxu0
    %v2320 = vadd.f32 0.0, %v2319
    %2321 = vmatmul.f32.gmra.mxu0 %v2186
    %v2322 = vpop.f32.mrf.mxu0
    %v2323 = vadd.f32 0.0, %v2322
    %2324 = vmatmul.f32.gmra.mxu0 %v2187
    %v2325 = vpop.f32.mrf.mxu0
    %v2326 = vadd.f32 0.0, %v2325
    %2327 = vmatmul.f32.gmra.mxu0 %v2188
    %v2328 = vpop.f32.mrf.mxu0
    %v2329 = vadd.f32 0.0, %v2328
    %2330 = vmatmul.f32.gmra.mxu0 %v2189
    %v2331 = vpop.f32.mrf.mxu0
    %v2332 = vadd.f32 0.0, %v2331
    %2333 = vmatmul.f32.gmra.mxu0 %v2190
    %v2334 = vpop.f32.mrf.mxu0
    %v2335 = vadd.f32 0.0, %v2334
    %2336 = vdwg.mxu0
    %2337 = vmatpush.msra.mxu0 %v2253
    %2338 = vmatpush.msra.mxu0 %v2249
    %2339 = vmatpush.msra.mxu0 %v2245
    %2340 = vmatpush.msra.mxu0 %v2241
    %2341 = vmatpush.msra.mxu0 %v2237
    %2342 = vmatpush.msra.mxu0 %v2233
    %2343 = vmatpush.msra.mxu0 %v2229
    %2344 = vmatpush.msra.mxu0 %v2225
    %2345 = vmatpush.msra.mxu0 %v2221
    %2346 = vmatpush.msra.mxu0 %v2217
    %2347 = vmatpush.msra.mxu0 %v2213
    %2348 = vmatpush.msra.mxu0 %v2209
    %2349 = vmatpush.msra.mxu0 %v2205
    %2350 = vmatpush.msra.mxu0 %v2201
    %2351 = vmatpush.msra.mxu0 %v2197
    %2352 = vmatpush.msra.mxu0 %v2193
    %2353 = vmatmul.f32.gmra.mxu0 %v2183
    %v2354 = vpop.f32.mrf.mxu0
    %v2355 = vadd.f32 0.0, %v2354
    %2356 = vmatmul.f32.gmra.mxu0 %v2184
    %v2357 = vpop.f32.mrf.mxu0
    %v2358 = vadd.f32 0.0, %v2357
    %2359 = vmatmul.f32.gmra.mxu0 %v2185
    %v2360 = vpop.f32.mrf.mxu0
    %v2361 = vadd.f32 0.0, %v2360
    %2362 = vmatmul.f32.gmra.mxu0 %v2186
    %v2363 = vpop.f32.mrf.mxu0
    %v2364 = vadd.f32 0.0, %v2363
    %2365 = vmatmul.f32.gmra.mxu0 %v2187
    %v2366 = vpop.f32.mrf.mxu0
    %v2367 = vadd.f32 0.0, %v2366
    %2368 = vmatmul.f32.gmra.mxu0 %v2188
    %v2369 = vpop.f32.mrf.mxu0
    %v2370 = vadd.f32 0.0, %v2369
    %2371 = vmatmul.f32.gmra.mxu0 %v2189
    %v2372 = vpop.f32.mrf.mxu0
    %v2373 = vadd.f32 0.0, %v2372
    %2374 = vmatmul.f32.gmra.mxu0 %v2190
    %v2375 = vpop.f32.mrf.mxu0
    %v2376 = vadd.f32 0.0, %v2375
    %2377 = vdwg.mxu0
    %2378 = vmatpush.msra.mxu0 %v2254
    %2379 = vmatpush.msra.mxu0 %v2250
    %2380 = vmatpush.msra.mxu0 %v2246
    %2381 = vmatpush.msra.mxu0 %v2242
    %2382 = vmatpush.msra.mxu0 %v2238
    %2383 = vmatpush.msra.mxu0 %v2234
    %2384 = vmatpush.msra.mxu0 %v2230
    %2385 = vmatpush.msra.mxu0 %v2226
    %2386 = vmatpush.msra.mxu0 %v2222
    %2387 = vmatpush.msra.mxu0 %v2218
    %2388 = vmatpush.msra.mxu0 %v2214
    %2389 = vmatpush.msra.mxu0 %v2210
    %2390 = vmatpush.msra.mxu0 %v2206
    %2391 = vmatpush.msra.mxu0 %v2202
    %2392 = vmatpush.msra.mxu0 %v2198
    %2393 = vmatpush.msra.mxu0 %v2194
    %2394 = vmatmul.f32.gmra.mxu0 %v2183
    %v2395 = vpop.f32.mrf.mxu0
    %v2396 = vadd.f32 0.0, %v2395
    %2397 = vmatmul.f32.gmra.mxu0 %v2184
    %v2398 = vpop.f32.mrf.mxu0
    %v2399 = vadd.f32 0.0, %v2398
    %2400 = vmatmul.f32.gmra.mxu0 %v2185
    %v2401 = vpop.f32.mrf.mxu0
    %v2402 = vadd.f32 0.0, %v2401
    %2403 = vmatmul.f32.gmra.mxu0 %v2186
    %v2404 = vpop.f32.mrf.mxu0
    %v2405 = vadd.f32 0.0, %v2404
    %2406 = vmatmul.f32.gmra.mxu0 %v2187
    %v2407 = vpop.f32.mrf.mxu0
    %v2408 = vadd.f32 0.0, %v2407
    %2409 = vmatmul.f32.gmra.mxu0 %v2188
    %v2410 = vpop.f32.mrf.mxu0
    %v2411 = vadd.f32 0.0, %v2410
    %2412 = vmatmul.f32.gmra.mxu0 %v2189
    %v2413 = vpop.f32.mrf.mxu0
    %v2414 = vadd.f32 0.0, %v2413
    %2415 = vmatmul.f32.gmra.mxu0 %v2190
    %v2416 = vpop.f32.mrf.mxu0
    %v2417 = vadd.f32 0.0, %v2416
    %2418 = vdwg.mxu0
    %v2419 = vld [vmem:[%s7] sm:$0xf]
    %v2421 = vperm.slane %v2419, 0
    %v2422 = vperm.slane %v2419, 1
    %v2423 = vperm.slane %v2419, 2
    %v2424 = vperm.slane %v2419, 3
    %v2429 = vadd.f32 %v2273, %v2421
    %v2430 = vadd.f32 %v2314, %v2422
    %v2431 = vadd.f32 %v2355, %v2423
    %v2432 = vadd.f32 %v2396, %v2424
    %v2433 = vadd.f32 %v2276, %v2421
    %v2434 = vadd.f32 %v2317, %v2422
    %v2435 = vadd.f32 %v2358, %v2423
    %v2436 = vadd.f32 %v2399, %v2424
    %v2437 = vadd.f32 %v2279, %v2421
    %v2438 = vadd.f32 %v2320, %v2422
    %v2439 = vadd.f32 %v2361, %v2423
    %v2440 = vadd.f32 %v2402, %v2424
    %v2441 = vadd.f32 %v2282, %v2421
    %v2442 = vadd.f32 %v2323, %v2422
    %v2443 = vadd.f32 %v2364, %v2423
    %v2444 = vadd.f32 %v2405, %v2424
    %v2445 = vadd.f32 %v2285, %v2421
    %v2446 = vadd.f32 %v2326, %v2422
    %v2447 = vadd.f32 %v2367, %v2423
    %v2448 = vadd.f32 %v2408, %v2424
    %v2449 = vadd.f32 %v2288, %v2421
    %v2450 = vadd.f32 %v2329, %v2422
    %v2451 = vadd.f32 %v2370, %v2423
    %v2452 = vadd.f32 %v2411, %v2424
    %v2453 = vadd.f32 %v2291, %v2421
    %v2454 = vadd.f32 %v2332, %v2422
    %v2455 = vadd.f32 %v2373, %v2423
    %v2456 = vadd.f32 %v2414, %v2424
    %v2457 = vadd.f32 %v2294, %v2421
    %v2458 = vadd.f32 %v2335, %v2422
    %v2459 = vadd.f32 %v2376, %v2423
    %v2460 = vadd.f32 %v2417, %v2424
    %2461 = vst [vmem:[#allocation2] sm:$0xff] %v2429
    %2462 = vst [vmem:[#allocation2 + $0x8] sm:$0xff] %v2430
    %2463 = vst [vmem:[#allocation2 + $0x10] sm:$0xff] %v2431
    %2464 = vst [vmem:[#allocation2 + $0x18] sm:$0xff] %v2432
    %2465 = vst [vmem:[#allocation2 + $0x20] sm:$0xff] %v2433
    %2466 = vst [vmem:[#allocation2 + $0x28] sm:$0xff] %v2434
    %2467 = vst [vmem:[#allocation2 + $0x30] sm:$0xff] %v2435
    %2468 = vst [vmem:[#allocation2 + $0x38] sm:$0xff] %v2436
    %2469 = vst [vmem:[#allocation2 + $0x40] sm:$0xff] %v2437
    %2470 = vst [vmem:[#allocation2 + $0x48] sm:$0xff] %v2438
    %2471 = vst [vmem:[#allocation2 + $0x50] sm:$0xff] %v2439
    %2472 = vst [vmem:[#allocation2 + $0x58] sm:$0xff] %v2440
    %2473 = vst [vmem:[#allocation2 + $0x60] sm:$0xff] %v2441
    %2474 = vst [vmem:[#allocation2 + $0x68] sm:$0xff] %v2442
    %2475 = vst [vmem:[#allocation2 + $0x70] sm:$0xff] %v2443
    %2476 = vst [vmem:[#allocation2 + $0x78] sm:$0xff] %v2444
    %2477 = vst [vmem:[#allocation2 + $0x80] sm:$0xff] %v2445
    %2478 = vst [vmem:[#allocation2 + $0x88] sm:$0xff] %v2446
    %2479 = vst [vmem:[#allocation2 + $0x90] sm:$0xff] %v2447
    %2480 = vst [vmem:[#allocation2 + $0x98] sm:$0xff] %v2448
    %2481 = vst [vmem:[#allocation2 + $0xa0] sm:$0xff] %v2449
    %2482 = vst [vmem:[#allocation2 + $0xa8] sm:$0xff] %v2450
    %2483 = vst [vmem:[#allocation2 + $0xb0] sm:$0xff] %v2451
    %2484 = vst [vmem:[#allocation2 + $0xb8] sm:$0xff] %v2452
    %2485 = vst [vmem:[#allocation2 + $0xc0] sm:$0xff] %v2453
    %2486 = vst [vmem:[#allocation2 + $0xc8] sm:$0xff] %v2454
    %2487 = vst [vmem:[#allocation2 + $0xd0] sm:$0xff] %v2455
    %2488 = vst [vmem:[#allocation2 + $0xd8] sm:$0xff] %v2456
    %2489 = vst [vmem:[#allocation2 + $0xe0] sm:$0xff] %v2457
    %2490 = vst [vmem:[#allocation2 + $0xe8] sm:$0xff] %v2458
    %2491 = vst [vmem:[#allocation2 + $0xf0] sm:$0xff] %v2459
    %2492 = vst [vmem:[#allocation2 + $0xf8] sm:$0xff] %v2460
    %v2493 = vld [vmem:[#allocation2] sm:$0xff]
    %v2494 = vld [vmem:[#allocation2 + $0x8] sm:$0xff]
    %v2495 = vld [vmem:[#allocation2 + $0x10] sm:$0xff]
    %v2496 = vld [vmem:[#allocation2 + $0x18] sm:$0xff]
    %v2497 = vld [vmem:[#allocation12] sm:$0xff]
    %v2498 = vld [vmem:[#allocation12 + $0x8] sm:$0xff]
    %v2499 = vld [vmem:[#allocation12 + $0x10] sm:$0xff]
    %v2500 = vld [vmem:[#allocation12 + $0x18] sm:$0xff]
    %v2501 = vld [vmem:[#allocation12 + $0x20] sm:$0xff]
    %v2502 = vld [vmem:[#allocation12 + $0x28] sm:$0xff]
    %v2503 = vld [vmem:[#allocation12 + $0x30] sm:$0xff]
    %v2504 = vld [vmem:[#allocation12 + $0x38] sm:$0xff]
    %v2505 = vld [vmem:[#allocation12 + $0x40] sm:$0xff]
    %v2506 = vld [vmem:[#allocation12 + $0x48] sm:$0xff]
    %v2507 = vld [vmem:[#allocation12 + $0x50] sm:$0xff]
    %v2508 = vld [vmem:[#allocation12 + $0x58] sm:$0xff]
    %v2509 = vld [vmem:[#allocation12 + $0x60] sm:$0xff]
    %v2510 = vld [vmem:[#allocation12 + $0x68] sm:$0xff]
    %v2511 = vld [vmem:[#allocation12 + $0x70] sm:$0xff]
    %v2512 = vld [vmem:[#allocation12 + $0x78] sm:$0xff]
    %v2513 = vld [vmem:[#allocation12 + $0x80] sm:$0xff]
    %v2514 = vld [vmem:[#allocation12 + $0x88] sm:$0xff]
    %v2515 = vld [vmem:[#allocation12 + $0x90] sm:$0xff]
    %v2516 = vld [vmem:[#allocation12 + $0x98] sm:$0xff]
    %v2517 = vld [vmem:[#allocation12 + $0xa0] sm:$0xff]
    %v2518 = vld [vmem:[#allocation12 + $0xa8] sm:$0xff]
    %v2519 = vld [vmem:[#allocation12 + $0xb0] sm:$0xff]
    %v2520 = vld [vmem:[#allocation12 + $0xb8] sm:$0xff]
    %v2521 = vld [vmem:[#allocation12 + $0xc0] sm:$0xff]
    %v2522 = vld [vmem:[#allocation12 + $0xc8] sm:$0xff]
    %v2523 = vld [vmem:[#allocation12 + $0xd0] sm:$0xff]
    %v2524 = vld [vmem:[#allocation12 + $0xd8] sm:$0xff]
    %v2525 = vld [vmem:[#allocation12 + $0xe0] sm:$0xff]
    %v2526 = vld [vmem:[#allocation12 + $0xe8] sm:$0xff]
    %v2527 = vld [vmem:[#allocation12 + $0xf0] sm:$0xff]
    %v2528 = vld [vmem:[#allocation12 + $0xf8] sm:$0xff]
    %v2529 = vld [vmem:[#allocation12 + $0x100] sm:$0xff]
    %v2530 = vld [vmem:[#allocation12 + $0x108] sm:$0xff]
    %v2531 = vld [vmem:[#allocation12 + $0x110] sm:$0xff]
    %v2532 = vld [vmem:[#allocation12 + $0x118] sm:$0xff]
    %v2533 = vld [vmem:[#allocation12 + $0x120] sm:$0xff]
    %v2534 = vld [vmem:[#allocation12 + $0x128] sm:$0xff]
    %v2535 = vld [vmem:[#allocation12 + $0x130] sm:$0xff]
    %v2536 = vld [vmem:[#allocation12 + $0x138] sm:$0xff]
    %v2537 = vld [vmem:[#allocation12 + $0x140] sm:$0xff]
    %v2538 = vld [vmem:[#allocation12 + $0x148] sm:$0xff]
    %v2539 = vld [vmem:[#allocation12 + $0x150] sm:$0xff]
    %v2540 = vld [vmem:[#allocation12 + $0x158] sm:$0xff]
    %v2541 = vld [vmem:[#allocation12 + $0x160] sm:$0xff]
    %v2542 = vld [vmem:[#allocation12 + $0x168] sm:$0xff]
    %v2543 = vld [vmem:[#allocation12 + $0x170] sm:$0xff]
    %v2544 = vld [vmem:[#allocation12 + $0x178] sm:$0xff]
    %v2545 = vld [vmem:[#allocation12 + $0x180] sm:$0xff]
    %v2546 = vld [vmem:[#allocation12 + $0x188] sm:$0xff]
    %v2547 = vld [vmem:[#allocation12 + $0x190] sm:$0xff]
    %v2548 = vld [vmem:[#allocation12 + $0x198] sm:$0xff]
    %v2549 = vld [vmem:[#allocation12 + $0x1a0] sm:$0xff]
    %v2550 = vld [vmem:[#allocation12 + $0x1a8] sm:$0xff]
    %v2551 = vld [vmem:[#allocation12 + $0x1b0] sm:$0xff]
    %v2552 = vld [vmem:[#allocation12 + $0x1b8] sm:$0xff]
    %v2553 = vld [vmem:[#allocation12 + $0x1c0] sm:$0xff]
    %v2554 = vld [vmem:[#allocation12 + $0x1c8] sm:$0xff]
    %v2555 = vld [vmem:[#allocation12 + $0x1d0] sm:$0xff]
    %v2556 = vld [vmem:[#allocation12 + $0x1d8] sm:$0xff]
    %v2557 = vld [vmem:[#allocation12 + $0x1e0] sm:$0xff]
    %v2558 = vld [vmem:[#allocation12 + $0x1e8] sm:$0xff]
    %v2559 = vld [vmem:[#allocation12 + $0x1f0] sm:$0xff]
    %v2560 = vld [vmem:[#allocation12 + $0x1f8] sm:$0xff]
    %2561 = vmatpush.msra.mxu0 %v2557
    %2562 = vmatpush.msra.mxu0 %v2553
    %2563 = vmatpush.msra.mxu0 %v2549
    %2564 = vmatpush.msra.mxu0 %v2545
    %2565 = vmatpush.msra.mxu0 %v2541
    %2566 = vmatpush.msra.mxu0 %v2537
    %2567 = vmatpush.msra.mxu0 %v2533
    %2568 = vmatpush.msra.mxu0 %v2529
    %2569 = vmatpush.msra.mxu0 %v2525
    %2570 = vmatpush.msra.mxu0 %v2521
    %2571 = vmatpush.msra.mxu0 %v2517
    %2572 = vmatpush.msra.mxu0 %v2513
    %2573 = vmatpush.msra.mxu0 %v2509
    %2574 = vmatpush.msra.mxu0 %v2505
    %2575 = vmatpush.msra.mxu0 %v2501
    %2576 = vmatpush.msra.mxu0 %v2497
    %2577 = vmatmul.f32.gmra.mxu0 0.0
    %v2578 = vpop.f32.mrf.mxu0
    %v2579 = vadd.f32 0.0, %v2578
    %2580 = vdwg.mxu0
    %2581 = vmatpush.msra.mxu0 %v2558
    %2582 = vmatpush.msra.mxu0 %v2554
    %2583 = vmatpush.msra.mxu0 %v2550
    %2584 = vmatpush.msra.mxu0 %v2546
    %2585 = vmatpush.msra.mxu0 %v2542
    %2586 = vmatpush.msra.mxu0 %v2538
    %2587 = vmatpush.msra.mxu0 %v2534
    %2588 = vmatpush.msra.mxu0 %v2530
    %2589 = vmatpush.msra.mxu0 %v2526
    %2590 = vmatpush.msra.mxu0 %v2522
    %2591 = vmatpush.msra.mxu0 %v2518
    %2592 = vmatpush.msra.mxu0 %v2514
    %2593 = vmatpush.msra.mxu0 %v2510
    %2594 = vmatpush.msra.mxu0 %v2506
    %2595 = vmatpush.msra.mxu0 %v2502
    %2596 = vmatpush.msra.mxu0 %v2498
    %2597 = vmatmul.f32.gmra.mxu0 0.0
    %v2598 = vpop.f32.mrf.mxu0
    %v2599 = vadd.f32 0.0, %v2598
    %2600 = vdwg.mxu0
    %2601 = vmatpush.msra.mxu0 %v2559
    %2602 = vmatpush.msra.mxu0 %v2555
    %2603 = vmatpush.msra.mxu0 %v2551
    %2604 = vmatpush.msra.mxu0 %v2547
    %2605 = vmatpush.msra.mxu0 %v2543
    %2606 = vmatpush.msra.mxu0 %v2539
    %2607 = vmatpush.msra.mxu0 %v2535
    %2608 = vmatpush.msra.mxu0 %v2531
    %2609 = vmatpush.msra.mxu0 %v2527
    %2610 = vmatpush.msra.mxu0 %v2523
    %2611 = vmatpush.msra.mxu0 %v2519
    %2612 = vmatpush.msra.mxu0 %v2515
    %2613 = vmatpush.msra.mxu0 %v2511
    %2614 = vmatpush.msra.mxu0 %v2507
    %2615 = vmatpush.msra.mxu0 %v2503
    %2616 = vmatpush.msra.mxu0 %v2499
    %2617 = vmatmul.f32.gmra.mxu0 0.0
    %v2618 = vpop.f32.mrf.mxu0
    %v2619 = vadd.f32 0.0, %v2618
    %2620 = vdwg.mxu0
    %2621 = vmatpush.msra.mxu0 %v2560
    %2622 = vmatpush.msra.mxu0 %v2556
    %2623 = vmatpush.msra.mxu0 %v2552
    %2624 = vmatpush.msra.mxu0 %v2548
    %2625 = vmatpush.msra.mxu0 %v2544
    %2626 = vmatpush.msra.mxu0 %v2540
    %2627 = vmatpush.msra.mxu0 %v2536
    %2628 = vmatpush.msra.mxu0 %v2532
    %2629 = vmatpush.msra.mxu0 %v2528
    %2630 = vmatpush.msra.mxu0 %v2524
    %2631 = vmatpush.msra.mxu0 %v2520
    %2632 = vmatpush.msra.mxu0 %v2516
    %2633 = vmatpush.msra.mxu0 %v2512
    %2634 = vmatpush.msra.mxu0 %v2508
    %2635 = vmatpush.msra.mxu0 %v2504
    %2636 = vmatpush.msra.mxu0 %v2500
    %2637 = vmatmul.f32.gmra.mxu0 0.0
    %v2638 = vpop.f32.mrf.mxu0
    %v2639 = vadd.f32 0.0, %v2638
    %2640 = vdwg.mxu0
    %v2641 = vadd.f32 %v2493, %v2579
    %v2642 = vadd.f32 %v2494, %v2599
    %v2643 = vadd.f32 %v2495, %v2619
    %v2644 = vadd.f32 %v2496, %v2639
    %v2645 = vxor.u32 %v2641, 2147483648
    %v2646 = vmul.f32 %v2645, 1.442695
    %v2647 = vpow.pop %v2646
    %v2648 = vadd.f32 %v2647, 1.0
    %v2649 = vrcp.pop %v2648
    %v2650 = vmul.f32 %v2648, %v2649
    %v2651 = vsub.f32 1.0, %v2650
    %v2652 = vmul.f32 %v2649, %v2651
    %v2653 = vadd.f32 %v2649, %v2652
    %vm2654 = vweird.f32 %v2648
    %vm2655 = vweird.f32 %v2649
    %vm2656 = vmor %vm2654, %vm2655
    %v2657 = vsel %vm2656, %v2649, %v2653
    %v2658 = vand.u32 2147483647, %v2648
    %vm2659 = vcmp.eq.f32.partialorder %v2658, 8.507059e+37
    %v2660 = vand.u32 %v2648, 2147483648
    %v2661 = vor.u32 1.1754944e-38, %v2660
    %v2662 = vsel %vm2659, %v2661, %v2657
    %v2663 = vmul.f32 1.0, %v2662
    %v2664 = vxor.u32 %v2642, 2147483648
    %v2665 = vmul.f32 %v2664, 1.442695
    %v2666 = vpow.pop %v2665
    %v2667 = vadd.f32 %v2666, 1.0
    %v2668 = vrcp.pop %v2667
    %v2669 = vmul.f32 %v2667, %v2668
    %v2670 = vsub.f32 1.0, %v2669
    %v2671 = vmul.f32 %v2668, %v2670
    %v2672 = vadd.f32 %v2668, %v2671
    %vm2673 = vweird.f32 %v2667
    %vm2674 = vweird.f32 %v2668
    %vm2675 = vmor %vm2673, %vm2674
    %v2676 = vsel %vm2675, %v2668, %v2672
    %v2677 = vand.u32 2147483647, %v2667
    %vm2678 = vcmp.eq.f32.partialorder %v2677, 8.507059e+37
    %v2679 = vand.u32 %v2667, 2147483648
    %v2680 = vor.u32 1.1754944e-38, %v2679
    %v2681 = vsel %vm2678, %v2680, %v2676
    %v2682 = vmul.f32 1.0, %v2681
    %v2683 = vtanh.pop %v2643
    %v2684 = vxor.u32 %v2644, 2147483648
    %v2685 = vmul.f32 %v2684, 1.442695
    %v2686 = vpow.pop %v2685
    %v2687 = vadd.f32 %v2686, 1.0
    %v2688 = vrcp.pop %v2687
    %v2689 = vmul.f32 %v2687, %v2688
    %v2690 = vsub.f32 1.0, %v2689
    %v2691 = vmul.f32 %v2688, %v2690
    %v2692 = vadd.f32 %v2688, %v2691
    %vm2693 = vweird.f32 %v2687
    %vm2694 = vweird.f32 %v2688
    %vm2695 = vmor %vm2693, %vm2694
    %v2696 = vsel %vm2695, %v2688, %v2692
    %v2697 = vand.u32 2147483647, %v2687
    %vm2698 = vcmp.eq.f32.partialorder %v2697, 8.507059e+37
    %v2699 = vand.u32 %v2687, 2147483648
    %v2700 = vor.u32 1.1754944e-38, %v2699
    %v2701 = vsel %vm2698, %v2700, %v2696
    %v2702 = vmul.f32 1.0, %v2701
    %v2703 = vmul.f32 %v2682, 0.0
    %v2704 = vmul.f32 %v2663, %v2683
    %v2705 = vadd.f32 %v2703, %v2704
    %v2706 = vtanh.pop %v2705
    %v2707 = vmul.f32 %v2702, %v2706
    %vm2708 = vcmp.eq.s32.totalorder %v130, 0
    %v2709 = vsel %vm2708, 1, 0
    %2710 = vset.pattern.permute.xlu0 0
    %2711 = vperm.xlu0 %2710, %v2709
    %v2712 = vpop.permute.xlu0 %2711
    %vm2713 = vcmp.eq.s32.totalorder %v2712, 1
    %v2714 = vsel %vm2713, %v2707, 0.0
    %v2715 = vld [vmem:[%s657] sm:$0xff]
    %v2716 = vld [vmem:[%s657 + $0x8] sm:$0xff]
    %v2717 = vld [vmem:[%s657 + $0x10] sm:$0xff]
    %v2718 = vld [vmem:[%s657 + $0x18] sm:$0xff]
    %2719 = vmatpush.msra.mxu0 %v2557
    %2720 = vmatpush.msra.mxu0 %v2553
    %2721 = vmatpush.msra.mxu0 %v2549
    %2722 = vmatpush.msra.mxu0 %v2545
    %2723 = vmatpush.msra.mxu0 %v2541
    %2724 = vmatpush.msra.mxu0 %v2537
    %2725 = vmatpush.msra.mxu0 %v2533
    %2726 = vmatpush.msra.mxu0 %v2529
    %2727 = vmatpush.msra.mxu0 %v2525
    %2728 = vmatpush.msra.mxu0 %v2521
    %2729 = vmatpush.msra.mxu0 %v2517
    %2730 = vmatpush.msra.mxu0 %v2513
    %2731 = vmatpush.msra.mxu0 %v2509
    %2732 = vmatpush.msra.mxu0 %v2505
    %2733 = vmatpush.msra.mxu0 %v2501
    %2734 = vmatpush.msra.mxu0 %v2497
    %2735 = vmatmul.f32.gmra.mxu0 %v2707
    %v2736 = vpop.f32.mrf.mxu0
    %v2737 = vadd.f32 0.0, %v2736
    %2738 = vdwg.mxu0
    %2739 = vmatpush.msra.mxu0 %v2558
    %2740 = vmatpush.msra.mxu0 %v2554
    %2741 = vmatpush.msra.mxu0 %v2550
    %2742 = vmatpush.msra.mxu0 %v2546
    %2743 = vmatpush.msra.mxu0 %v2542
    %2744 = vmatpush.msra.mxu0 %v2538
    %2745 = vmatpush.msra.mxu0 %v2534
    %2746 = vmatpush.msra.mxu0 %v2530
    %2747 = vmatpush.msra.mxu0 %v2526
    %2748 = vmatpush.msra.mxu0 %v2522
    %2749 = vmatpush.msra.mxu0 %v2518
    %2750 = vmatpush.msra.mxu0 %v2514
    %2751 = vmatpush.msra.mxu0 %v2510
    %2752 = vmatpush.msra.mxu0 %v2506
    %2753 = vmatpush.msra.mxu0 %v2502
    %2754 = vmatpush.msra.mxu0 %v2498
    %2755 = vmatmul.f32.gmra.mxu0 %v2707
    %v2756 = vpop.f32.mrf.mxu0
    %v2757 = vadd.f32 0.0, %v2756
    %2758 = vdwg.mxu0
    %2759 = vmatpush.msra.mxu0 %v2559
    %2760 = vmatpush.msra.mxu0 %v2555
    %2761 = vmatpush.msra.mxu0 %v2551
    %2762 = vmatpush.msra.mxu0 %v2547
    %2763 = vmatpush.msra.mxu0 %v2543
    %2764 = vmatpush.msra.mxu0 %v2539
    %2765 = vmatpush.msra.mxu0 %v2535
    %2766 = vmatpush.msra.mxu0 %v2531
    %2767 = vmatpush.msra.mxu0 %v2527
    %2768 = vmatpush.msra.mxu0 %v2523
    %2769 = vmatpush.msra.mxu0 %v2519
    %2770 = vmatpush.msra.mxu0 %v2515
    %2771 = vmatpush.msra.mxu0 %v2511
    %2772 = vmatpush.msra.mxu0 %v2507
    %2773 = vmatpush.msra.mxu0 %v2503
    %2774 = vmatpush.msra.mxu0 %v2499
    %2775 = vmatmul.f32.gmra.mxu0 %v2707
    %v2776 = vpop.f32.mrf.mxu0
    %v2777 = vadd.f32 0.0, %v2776
    %2778 = vdwg.mxu0
    %2779 = vmatpush.msra.mxu0 %v2560
    %2780 = vmatpush.msra.mxu0 %v2556
    %2781 = vmatpush.msra.mxu0 %v2552
    %2782 = vmatpush.msra.mxu0 %v2548
    %2783 = vmatpush.msra.mxu0 %v2544
    %2784 = vmatpush.msra.mxu0 %v2540
    %2785 = vmatpush.msra.mxu0 %v2536
    %2786 = vmatpush.msra.mxu0 %v2532
    %2787 = vmatpush.msra.mxu0 %v2528
    %2788 = vmatpush.msra.mxu0 %v2524
    %2789 = vmatpush.msra.mxu0 %v2520
    %2790 = vmatpush.msra.mxu0 %v2516
    %2791 = vmatpush.msra.mxu0 %v2512
    %2792 = vmatpush.msra.mxu0 %v2508
    %2793 = vmatpush.msra.mxu0 %v2504
    %2794 = vmatpush.msra.mxu0 %v2500
    %2795 = vmatmul.f32.gmra.mxu0 %v2707
    %v2796 = vpop.f32.mrf.mxu0
    %v2797 = vadd.f32 0.0, %v2796
    %2798 = vdwg.mxu0
    %v2799 = vadd.f32 %v2715, %v2737
    %v2800 = vadd.f32 %v2716, %v2757
    %v2801 = vadd.f32 %v2717, %v2777
    %v2802 = vadd.f32 %v2718, %v2797
    %v2803 = vxor.u32 %v2799, 2147483648
    %v2804 = vmul.f32 %v2803, 1.442695
    %v2805 = vpow.pop %v2804
    %v2806 = vadd.f32 %v2805, 1.0
    %v2807 = vrcp.pop %v2806
    %v2808 = vmul.f32 %v2806, %v2807
    %v2809 = vsub.f32 1.0, %v2808
    %v2810 = vmul.f32 %v2807, %v2809
    %v2811 = vadd.f32 %v2807, %v2810
    %vm2812 = vweird.f32 %v2806
    %vm2813 = vweird.f32 %v2807
    %vm2814 = vmor %vm2812, %vm2813
    %v2815 = vsel %vm2814, %v2807, %v2811
    %v2816 = vand.u32 2147483647, %v2806
    %vm2817 = vcmp.eq.f32.partialorder %v2816, 8.507059e+37
    %v2818 = vand.u32 %v2806, 2147483648
    %v2819 = vor.u32 1.1754944e-38, %v2818
    %v2820 = vsel %vm2817, %v2819, %v2815
    %v2821 = vmul.f32 1.0, %v2820
    %v2822 = vxor.u32 %v2800, 2147483648
    %v2823 = vmul.f32 %v2822, 1.442695
    %v2824 = vpow.pop %v2823
    %v2825 = vadd.f32 %v2824, 1.0
    %v2826 = vrcp.pop %v2825
    %v2827 = vmul.f32 %v2825, %v2826
    %v2828 = vsub.f32 1.0, %v2827
    %v2829 = vmul.f32 %v2826, %v2828
    %v2830 = vadd.f32 %v2826, %v2829
    %vm2831 = vweird.f32 %v2825
    %vm2832 = vweird.f32 %v2826
    %vm2833 = vmor %vm2831, %vm2832
    %v2834 = vsel %vm2833, %v2826, %v2830
    %v2835 = vand.u32 2147483647, %v2825
    %vm2836 = vcmp.eq.f32.partialorder %v2835, 8.507059e+37
    %v2837 = vand.u32 %v2825, 2147483648
    %v2838 = vor.u32 1.1754944e-38, %v2837
    %v2839 = vsel %vm2836, %v2838, %v2834
    %v2840 = vmul.f32 1.0, %v2839
    %v2841 = vtanh.pop %v2801
    %v2842 = vxor.u32 %v2802, 2147483648
    %v2843 = vmul.f32 %v2842, 1.442695
    %v2844 = vpow.pop %v2843
    %v2845 = vadd.f32 %v2844, 1.0
    %v2846 = vrcp.pop %v2845
    %v2847 = vmul.f32 %v2845, %v2846
    %v2848 = vsub.f32 1.0, %v2847
    %v2849 = vmul.f32 %v2846, %v2848
    %v2850 = vadd.f32 %v2846, %v2849
    %vm2851 = vweird.f32 %v2845
    %vm2852 = vweird.f32 %v2846
    %vm2853 = vmor %vm2851, %vm2852
    %v2854 = vsel %vm2853, %v2846, %v2850
    %v2855 = vand.u32 2147483647, %v2845
    %vm2856 = vcmp.eq.f32.partialorder %v2855, 8.507059e+37
    %v2857 = vand.u32 %v2845, 2147483648
    %v2858 = vor.u32 1.1754944e-38, %v2857
    %v2859 = vsel %vm2856, %v2858, %v2854
    %v2860 = vmul.f32 1.0, %v2859
    %v2861 = vmul.f32 %v2840, %v2705
    %v2862 = vmul.f32 %v2821, %v2841
    %v2863 = vadd.f32 %v2861, %v2862
    %v2864 = vtanh.pop %v2863
    %v2865 = vmul.f32 %v2860, %v2864
    %vm2866 = vcmp.eq.s32.totalorder %v130, 1
    %v2867 = vsel %vm2866, 1, 0
    %2868 = vset.pattern.permute.xlu0 0
    %2869 = vperm.xlu0 %2868, %v2867
    %v2870 = vpop.permute.xlu0 %2869
    %vm2871 = vcmp.eq.s32.totalorder %v2870, 1
    %v2872 = vsel %vm2871, %v2865, %v2714
    %v2873 = vld [vmem:[%s875] sm:$0xff]
    %v2874 = vld [vmem:[%s875 + $0x8] sm:$0xff]
    %v2875 = vld [vmem:[%s875 + $0x10] sm:$0xff]
    %v2876 = vld [vmem:[%s875 + $0x18] sm:$0xff]
    %2877 = vmatpush.msra.mxu0 %v2557
    %2878 = vmatpush.msra.mxu0 %v2553
    %2879 = vmatpush.msra.mxu0 %v2549
    %2880 = vmatpush.msra.mxu0 %v2545
    %2881 = vmatpush.msra.mxu0 %v2541
    %2882 = vmatpush.msra.mxu0 %v2537
    %2883 = vmatpush.msra.mxu0 %v2533
    %2884 = vmatpush.msra.mxu0 %v2529
    %2885 = vmatpush.msra.mxu0 %v2525
    %2886 = vmatpush.msra.mxu0 %v2521
    %2887 = vmatpush.msra.mxu0 %v2517
    %2888 = vmatpush.msra.mxu0 %v2513
    %2889 = vmatpush.msra.mxu0 %v2509
    %2890 = vmatpush.msra.mxu0 %v2505
    %2891 = vmatpush.msra.mxu0 %v2501
    %2892 = vmatpush.msra.mxu0 %v2497
    %2893 = vmatmul.f32.gmra.mxu0 %v2865
    %v2894 = vpop.f32.mrf.mxu0
    %v2895 = vadd.f32 0.0, %v2894
    %2896 = vdwg.mxu0
    %2897 = vmatpush.msra.mxu0 %v2558
    %2898 = vmatpush.msra.mxu0 %v2554
    %2899 = vmatpush.msra.mxu0 %v2550
    %2900 = vmatpush.msra.mxu0 %v2546
    %2901 = vmatpush.msra.mxu0 %v2542
    %2902 = vmatpush.msra.mxu0 %v2538
    %2903 = vmatpush.msra.mxu0 %v2534
    %2904 = vmatpush.msra.mxu0 %v2530
    %2905 = vmatpush.msra.mxu0 %v2526
    %2906 = vmatpush.msra.mxu0 %v2522
    %2907 = vmatpush.msra.mxu0 %v2518
    %2908 = vmatpush.msra.mxu0 %v2514
    %2909 = vmatpush.msra.mxu0 %v2510
    %2910 = vmatpush.msra.mxu0 %v2506
    %2911 = vmatpush.msra.mxu0 %v2502
    %2912 = vmatpush.msra.mxu0 %v2498
    %2913 = vmatmul.f32.gmra.mxu0 %v2865
    %v2914 = vpop.f32.mrf.mxu0
    %v2915 = vadd.f32 0.0, %v2914
    %2916 = vdwg.mxu0
    %2917 = vmatpush.msra.mxu0 %v2559
    %2918 = vmatpush.msra.mxu0 %v2555
    %2919 = vmatpush.msra.mxu0 %v2551
    %2920 = vmatpush.msra.mxu0 %v2547
    %2921 = vmatpush.msra.mxu0 %v2543
    %2922 = vmatpush.msra.mxu0 %v2539
    %2923 = vmatpush.msra.mxu0 %v2535
    %2924 = vmatpush.msra.mxu0 %v2531
    %2925 = vmatpush.msra.mxu0 %v2527
    %2926 = vmatpush.msra.mxu0 %v2523
    %2927 = vmatpush.msra.mxu0 %v2519
    %2928 = vmatpush.msra.mxu0 %v2515
    %2929 = vmatpush.msra.mxu0 %v2511
    %2930 = vmatpush.msra.mxu0 %v2507
    %2931 = vmatpush.msra.mxu0 %v2503
    %2932 = vmatpush.msra.mxu0 %v2499
    %2933 = vmatmul.f32.gmra.mxu0 %v2865
    %v2934 = vpop.f32.mrf.mxu0
    %v2935 = vadd.f32 0.0, %v2934
    %2936 = vdwg.mxu0
    %2937 = vmatpush.msra.mxu0 %v2560
    %2938 = vmatpush.msra.mxu0 %v2556
    %2939 = vmatpush.msra.mxu0 %v2552
    %2940 = vmatpush.msra.mxu0 %v2548
    %2941 = vmatpush.msra.mxu0 %v2544
    %2942 = vmatpush.msra.mxu0 %v2540
    %2943 = vmatpush.msra.mxu0 %v2536
    %2944 = vmatpush.msra.mxu0 %v2532
    %2945 = vmatpush.msra.mxu0 %v2528
    %2946 = vmatpush.msra.mxu0 %v2524
    %2947 = vmatpush.msra.mxu0 %v2520
    %2948 = vmatpush.msra.mxu0 %v2516
    %2949 = vmatpush.msra.mxu0 %v2512
    %2950 = vmatpush.msra.mxu0 %v2508
    %2951 = vmatpush.msra.mxu0 %v2504
    %2952 = vmatpush.msra.mxu0 %v2500
    %2953 = vmatmul.f32.gmra.mxu0 %v2865
    %v2954 = vpop.f32.mrf.mxu0
    %v2955 = vadd.f32 0.0, %v2954
    %2956 = vdwg.mxu0
    %v2957 = vadd.f32 %v2873, %v2895
    %v2958 = vadd.f32 %v2874, %v2915
    %v2959 = vadd.f32 %v2875, %v2935
    %v2960 = vadd.f32 %v2876, %v2955
    %v2961 = vxor.u32 %v2957, 2147483648
    %v2962 = vmul.f32 %v2961, 1.442695
    %v2963 = vpow.pop %v2962
    %v2964 = vadd.f32 %v2963, 1.0
    %v2965 = vrcp.pop %v2964
    %v2966 = vmul.f32 %v2964, %v2965
    %v2967 = vsub.f32 1.0, %v2966
    %v2968 = vmul.f32 %v2965, %v2967
    %v2969 = vadd.f32 %v2965, %v2968
    %vm2970 = vweird.f32 %v2964
    %vm2971 = vweird.f32 %v2965
    %vm2972 = vmor %vm2970, %vm2971
    %v2973 = vsel %vm2972, %v2965, %v2969
    %v2974 = vand.u32 2147483647, %v2964
    %vm2975 = vcmp.eq.f32.partialorder %v2974, 8.507059e+37
    %v2976 = vand.u32 %v2964, 2147483648
    %v2977 = vor.u32 1.1754944e-38, %v2976
    %v2978 = vsel %vm2975, %v2977, %v2973
    %v2979 = vmul.f32 1.0, %v2978
    %v2980 = vxor.u32 %v2958, 2147483648
    %v2981 = vmul.f32 %v2980, 1.442695
    %v2982 = vpow.pop %v2981
    %v2983 = vadd.f32 %v2982, 1.0
    %v2984 = vrcp.pop %v2983
    %v2985 = vmul.f32 %v2983, %v2984
    %v2986 = vsub.f32 1.0, %v2985
    %v2987 = vmul.f32 %v2984, %v2986
    %v2988 = vadd.f32 %v2984, %v2987
    %vm2989 = vweird.f32 %v2983
    %vm2990 = vweird.f32 %v2984
    %vm2991 = vmor %vm2989, %vm2990
    %v2992 = vsel %vm2991, %v2984, %v2988
    %v2993 = vand.u32 2147483647, %v2983
    %vm2994 = vcmp.eq.f32.partialorder %v2993, 8.507059e+37
    %v2995 = vand.u32 %v2983, 2147483648
    %v2996 = vor.u32 1.1754944e-38, %v2995
    %v2997 = vsel %vm2994, %v2996, %v2992
    %v2998 = vmul.f32 1.0, %v2997
    %v2999 = vtanh.pop %v2959
    %v3000 = vxor.u32 %v2960, 2147483648
    %v3001 = vmul.f32 %v3000, 1.442695
    %v3002 = vpow.pop %v3001
    %v3003 = vadd.f32 %v3002, 1.0
    %v3004 = vrcp.pop %v3003
    %v3005 = vmul.f32 %v3003, %v3004
    %v3006 = vsub.f32 1.0, %v3005
    %v3007 = vmul.f32 %v3004, %v3006
    %v3008 = vadd.f32 %v3004, %v3007
    %vm3009 = vweird.f32 %v3003
    %vm3010 = vweird.f32 %v3004
    %vm3011 = vmor %vm3009, %vm3010
    %v3012 = vsel %vm3011, %v3004, %v3008
    %v3013 = vand.u32 2147483647, %v3003
    %vm3014 = vcmp.eq.f32.partialorder %v3013, 8.507059e+37
    %v3015 = vand.u32 %v3003, 2147483648
    %v3016 = vor.u32 1.1754944e-38, %v3015
    %v3017 = vsel %vm3014, %v3016, %v3012
    %v3018 = vmul.f32 1.0, %v3017
    %v3019 = vmul.f32 %v2998, %v2863
    %v3020 = vmul.f32 %v2979, %v2999
    %v3021 = vadd.f32 %v3019, %v3020
    %v3022 = vtanh.pop %v3021
    %v3023 = vmul.f32 %v3018, %v3022
    %vm3024 = vcmp.eq.s32.totalorder %v130, 2
    %v3025 = vsel %vm3024, 1, 0
    %3026 = vset.pattern.permute.xlu0 0
    %3027 = vperm.xlu0 %3026, %v3025
    %v3028 = vpop.permute.xlu0 %3027
    %vm3029 = vcmp.eq.s32.totalorder %v3028, 1
    %v3030 = vsel %vm3029, %v3023, %v2872
    %v3031 = vld [vmem:[%s1093] sm:$0xff]
    %v3032 = vld [vmem:[%s1093 + $0x8] sm:$0xff]
    %v3033 = vld [vmem:[%s1093 + $0x10] sm:$0xff]
    %v3034 = vld [vmem:[%s1093 + $0x18] sm:$0xff]
    %3035 = vmatpush.msra.mxu0 %v2557
    %3036 = vmatpush.msra.mxu0 %v2553
    %3037 = vmatpush.msra.mxu0 %v2549
    %3038 = vmatpush.msra.mxu0 %v2545
    %3039 = vmatpush.msra.mxu0 %v2541
    %3040 = vmatpush.msra.mxu0 %v2537
    %3041 = vmatpush.msra.mxu0 %v2533
    %3042 = vmatpush.msra.mxu0 %v2529
    %3043 = vmatpush.msra.mxu0 %v2525
    %3044 = vmatpush.msra.mxu0 %v2521
    %3045 = vmatpush.msra.mxu0 %v2517
    %3046 = vmatpush.msra.mxu0 %v2513
    %3047 = vmatpush.msra.mxu0 %v2509
    %3048 = vmatpush.msra.mxu0 %v2505
    %3049 = vmatpush.msra.mxu0 %v2501
    %3050 = vmatpush.msra.mxu0 %v2497
    %3051 = vmatmul.f32.gmra.mxu0 %v3023
    %v3052 = vpop.f32.mrf.mxu0
    %v3053 = vadd.f32 0.0, %v3052
    %3054 = vdwg.mxu0
    %3055 = vmatpush.msra.mxu0 %v2558
    %3056 = vmatpush.msra.mxu0 %v2554
    %3057 = vmatpush.msra.mxu0 %v2550
    %3058 = vmatpush.msra.mxu0 %v2546
    %3059 = vmatpush.msra.mxu0 %v2542
    %3060 = vmatpush.msra.mxu0 %v2538
    %3061 = vmatpush.msra.mxu0 %v2534
    %3062 = vmatpush.msra.mxu0 %v2530
    %3063 = vmatpush.msra.mxu0 %v2526
    %3064 = vmatpush.msra.mxu0 %v2522
    %3065 = vmatpush.msra.mxu0 %v2518
    %3066 = vmatpush.msra.mxu0 %v2514
    %3067 = vmatpush.msra.mxu0 %v2510
    %3068 = vmatpush.msra.mxu0 %v2506
    %3069 = vmatpush.msra.mxu0 %v2502
    %3070 = vmatpush.msra.mxu0 %v2498
    %3071 = vmatmul.f32.gmra.mxu0 %v3023
    %v3072 = vpop.f32.mrf.mxu0
    %v3073 = vadd.f32 0.0, %v3072
    %3074 = vdwg.mxu0
    %3075 = vmatpush.msra.mxu0 %v2559
    %3076 = vmatpush.msra.mxu0 %v2555
    %3077 = vmatpush.msra.mxu0 %v2551
    %3078 = vmatpush.msra.mxu0 %v2547
    %3079 = vmatpush.msra.mxu0 %v2543
    %3080 = vmatpush.msra.mxu0 %v2539
    %3081 = vmatpush.msra.mxu0 %v2535
    %3082 = vmatpush.msra.mxu0 %v2531
    %3083 = vmatpush.msra.mxu0 %v2527
    %3084 = vmatpush.msra.mxu0 %v2523
    %3085 = vmatpush.msra.mxu0 %v2519
    %3086 = vmatpush.msra.mxu0 %v2515
    %3087 = vmatpush.msra.mxu0 %v2511
    %3088 = vmatpush.msra.mxu0 %v2507
    %3089 = vmatpush.msra.mxu0 %v2503
    %3090 = vmatpush.msra.mxu0 %v2499
    %3091 = vmatmul.f32.gmra.mxu0 %v3023
    %v3092 = vpop.f32.mrf.mxu0
    %v3093 = vadd.f32 0.0, %v3092
    %3094 = vdwg.mxu0
    %3095 = vmatpush.msra.mxu0 %v2560
    %3096 = vmatpush.msra.mxu0 %v2556
    %3097 = vmatpush.msra.mxu0 %v2552
    %3098 = vmatpush.msra.mxu0 %v2548
    %3099 = vmatpush.msra.mxu0 %v2544
    %3100 = vmatpush.msra.mxu0 %v2540
    %3101 = vmatpush.msra.mxu0 %v2536
    %3102 = vmatpush.msra.mxu0 %v2532
    %3103 = vmatpush.msra.mxu0 %v2528
    %3104 = vmatpush.msra.mxu0 %v2524
    %3105 = vmatpush.msra.mxu0 %v2520
    %3106 = vmatpush.msra.mxu0 %v2516
    %3107 = vmatpush.msra.mxu0 %v2512
    %3108 = vmatpush.msra.mxu0 %v2508
    %3109 = vmatpush.msra.mxu0 %v2504
    %3110 = vmatpush.msra.mxu0 %v2500
    %3111 = vmatmul.f32.gmra.mxu0 %v3023
    %v3112 = vpop.f32.mrf.mxu0
    %v3113 = vadd.f32 0.0, %v3112
    %3114 = vdwg.mxu0
    %v3115 = vadd.f32 %v3031, %v3053
    %v3116 = vadd.f32 %v3032, %v3073
    %v3117 = vadd.f32 %v3033, %v3093
    %v3118 = vadd.f32 %v3034, %v3113
    %v3119 = vxor.u32 %v3115, 2147483648
    %v3120 = vmul.f32 %v3119, 1.442695
    %v3121 = vpow.pop %v3120
    %v3122 = vadd.f32 %v3121, 1.0
    %v3123 = vrcp.pop %v3122
    %v3124 = vmul.f32 %v3122, %v3123
    %v3125 = vsub.f32 1.0, %v3124
    %v3126 = vmul.f32 %v3123, %v3125
    %v3127 = vadd.f32 %v3123, %v3126
    %vm3128 = vweird.f32 %v3122
    %vm3129 = vweird.f32 %v3123
    %vm3130 = vmor %vm3128, %vm3129
    %v3131 = vsel %vm3130, %v3123, %v3127
    %v3132 = vand.u32 2147483647, %v3122
    %vm3133 = vcmp.eq.f32.partialorder %v3132, 8.507059e+37
    %v3134 = vand.u32 %v3122, 2147483648
    %v3135 = vor.u32 1.1754944e-38, %v3134
    %v3136 = vsel %vm3133, %v3135, %v3131
    %v3137 = vmul.f32 1.0, %v3136
    %v3138 = vxor.u32 %v3116, 2147483648
    %v3139 = vmul.f32 %v3138, 1.442695
    %v3140 = vpow.pop %v3139
    %v3141 = vadd.f32 %v3140, 1.0
    %v3142 = vrcp.pop %v3141
    %v3143 = vmul.f32 %v3141, %v3142
    %v3144 = vsub.f32 1.0, %v3143
    %v3145 = vmul.f32 %v3142, %v3144
    %v3146 = vadd.f32 %v3142, %v3145
    %vm3147 = vweird.f32 %v3141
    %vm3148 = vweird.f32 %v3142
    %vm3149 = vmor %vm3147, %vm3148
    %v3150 = vsel %vm3149, %v3142, %v3146
    %v3151 = vand.u32 2147483647, %v3141
    %vm3152 = vcmp.eq.f32.partialorder %v3151, 8.507059e+37
    %v3153 = vand.u32 %v3141, 2147483648
    %v3154 = vor.u32 1.1754944e-38, %v3153
    %v3155 = vsel %vm3152, %v3154, %v3150
    %v3156 = vmul.f32 1.0, %v3155
    %v3157 = vtanh.pop %v3117
    %v3158 = vxor.u32 %v3118, 2147483648
    %v3159 = vmul.f32 %v3158, 1.442695
    %v3160 = vpow.pop %v3159
    %v3161 = vadd.f32 %v3160, 1.0
    %v3162 = vrcp.pop %v3161
    %v3163 = vmul.f32 %v3161, %v3162
    %v3164 = vsub.f32 1.0, %v3163
    %v3165 = vmul.f32 %v3162, %v3164
    %v3166 = vadd.f32 %v3162, %v3165
    %vm3167 = vweird.f32 %v3161
    %vm3168 = vweird.f32 %v3162
    %vm3169 = vmor %vm3167, %vm3168
    %v3170 = vsel %vm3169, %v3162, %v3166
    %v3171 = vand.u32 2147483647, %v3161
    %vm3172 = vcmp.eq.f32.partialorder %v3171, 8.507059e+37
    %v3173 = vand.u32 %v3161, 2147483648
    %v3174 = vor.u32 1.1754944e-38, %v3173
    %v3175 = vsel %vm3172, %v3174, %v3170
    %v3176 = vmul.f32 1.0, %v3175
    %v3177 = vmul.f32 %v3156, %v3021
    %v3178 = vmul.f32 %v3137, %v3157
    %v3179 = vadd.f32 %v3177, %v3178
    %v3180 = vtanh.pop %v3179
    %v3181 = vmul.f32 %v3176, %v3180
    %vm3182 = vcmp.eq.s32.totalorder %v130, 3
    %v3183 = vsel %vm3182, 1, 0
    %3184 = vset.pattern.permute.xlu0 0
    %3185 = vperm.xlu0 %3184, %v3183
    %v3186 = vpop.permute.xlu0 %3185
    %vm3187 = vcmp.eq.s32.totalorder %v3186, 1
    %v3188 = vsel %vm3187, %v3181, %v3030
    %v3189 = vld [vmem:[%s1311] sm:$0xff]
    %v3190 = vld [vmem:[%s1311 + $0x8] sm:$0xff]
    %v3191 = vld [vmem:[%s1311 + $0x10] sm:$0xff]
    %v3192 = vld [vmem:[%s1311 + $0x18] sm:$0xff]
    %3193 = vmatpush.msra.mxu0 %v2557
    %3194 = vmatpush.msra.mxu0 %v2553
    %3195 = vmatpush.msra.mxu0 %v2549
    %3196 = vmatpush.msra.mxu0 %v2545
    %3197 = vmatpush.msra.mxu0 %v2541
    %3198 = vmatpush.msra.mxu0 %v2537
    %3199 = vmatpush.msra.mxu0 %v2533
    %3200 = vmatpush.msra.mxu0 %v2529
    %3201 = vmatpush.msra.mxu0 %v2525
    %3202 = vmatpush.msra.mxu0 %v2521
    %3203 = vmatpush.msra.mxu0 %v2517
    %3204 = vmatpush.msra.mxu0 %v2513
    %3205 = vmatpush.msra.mxu0 %v2509
    %3206 = vmatpush.msra.mxu0 %v2505
    %3207 = vmatpush.msra.mxu0 %v2501
    %3208 = vmatpush.msra.mxu0 %v2497
    %3209 = vmatmul.f32.gmra.mxu0 %v3181
    %v3210 = vpop.f32.mrf.mxu0
    %v3211 = vadd.f32 0.0, %v3210
    %3212 = vdwg.mxu0
    %3213 = vmatpush.msra.mxu0 %v2558
    %3214 = vmatpush.msra.mxu0 %v2554
    %3215 = vmatpush.msra.mxu0 %v2550
    %3216 = vmatpush.msra.mxu0 %v2546
    %3217 = vmatpush.msra.mxu0 %v2542
    %3218 = vmatpush.msra.mxu0 %v2538
    %3219 = vmatpush.msra.mxu0 %v2534
    %3220 = vmatpush.msra.mxu0 %v2530
    %3221 = vmatpush.msra.mxu0 %v2526
    %3222 = vmatpush.msra.mxu0 %v2522
    %3223 = vmatpush.msra.mxu0 %v2518
    %3224 = vmatpush.msra.mxu0 %v2514
    %3225 = vmatpush.msra.mxu0 %v2510
    %3226 = vmatpush.msra.mxu0 %v2506
    %3227 = vmatpush.msra.mxu0 %v2502
    %3228 = vmatpush.msra.mxu0 %v2498
    %3229 = vmatmul.f32.gmra.mxu0 %v3181
    %v3230 = vpop.f32.mrf.mxu0
    %v3231 = vadd.f32 0.0, %v3230
    %3232 = vdwg.mxu0
    %3233 = vmatpush.msra.mxu0 %v2559
    %3234 = vmatpush.msra.mxu0 %v2555
    %3235 = vmatpush.msra.mxu0 %v2551
    %3236 = vmatpush.msra.mxu0 %v2547
    %3237 = vmatpush.msra.mxu0 %v2543
    %3238 = vmatpush.msra.mxu0 %v2539
    %3239 = vmatpush.msra.mxu0 %v2535
    %3240 = vmatpush.msra.mxu0 %v2531
    %3241 = vmatpush.msra.mxu0 %v2527
    %3242 = vmatpush.msra.mxu0 %v2523
    %3243 = vmatpush.msra.mxu0 %v2519
    %3244 = vmatpush.msra.mxu0 %v2515
    %3245 = vmatpush.msra.mxu0 %v2511
    %3246 = vmatpush.msra.mxu0 %v2507
    %3247 = vmatpush.msra.mxu0 %v2503
    %3248 = vmatpush.msra.mxu0 %v2499
    %3249 = vmatmul.f32.gmra.mxu0 %v3181
    %v3250 = vpop.f32.mrf.mxu0
    %v3251 = vadd.f32 0.0, %v3250
    %3252 = vdwg.mxu0
    %3253 = vmatpush.msra.mxu0 %v2560
    %3254 = vmatpush.msra.mxu0 %v2556
    %3255 = vmatpush.msra.mxu0 %v2552
    %3256 = vmatpush.msra.mxu0 %v2548
    %3257 = vmatpush.msra.mxu0 %v2544
    %3258 = vmatpush.msra.mxu0 %v2540
    %3259 = vmatpush.msra.mxu0 %v2536
    %3260 = vmatpush.msra.mxu0 %v2532
    %3261 = vmatpush.msra.mxu0 %v2528
    %3262 = vmatpush.msra.mxu0 %v2524
    %3263 = vmatpush.msra.mxu0 %v2520
    %3264 = vmatpush.msra.mxu0 %v2516
    %3265 = vmatpush.msra.mxu0 %v2512
    %3266 = vmatpush.msra.mxu0 %v2508
    %3267 = vmatpush.msra.mxu0 %v2504
    %3268 = vmatpush.msra.mxu0 %v2500
    %3269 = vmatmul.f32.gmra.mxu0 %v3181
    %v3270 = vpop.f32.mrf.mxu0
    %v3271 = vadd.f32 0.0, %v3270
    %3272 = vdwg.mxu0
    %v3273 = vadd.f32 %v3189, %v3211
    %v3274 = vadd.f32 %v3190, %v3231
    %v3275 = vadd.f32 %v3191, %v3251
    %v3276 = vadd.f32 %v3192, %v3271
    %v3277 = vxor.u32 %v3273, 2147483648
    %v3278 = vmul.f32 %v3277, 1.442695
    %v3279 = vpow.pop %v3278
    %v3280 = vadd.f32 %v3279, 1.0
    %v3281 = vrcp.pop %v3280
    %v3282 = vmul.f32 %v3280, %v3281
    %v3283 = vsub.f32 1.0, %v3282
    %v3284 = vmul.f32 %v3281, %v3283
    %v3285 = vadd.f32 %v3281, %v3284
    %vm3286 = vweird.f32 %v3280
    %vm3287 = vweird.f32 %v3281
    %vm3288 = vmor %vm3286, %vm3287
    %v3289 = vsel %vm3288, %v3281, %v3285
    %v3290 = vand.u32 2147483647, %v3280
    %vm3291 = vcmp.eq.f32.partialorder %v3290, 8.507059e+37
    %v3292 = vand.u32 %v3280, 2147483648
    %v3293 = vor.u32 1.1754944e-38, %v3292
    %v3294 = vsel %vm3291, %v3293, %v3289
    %v3295 = vmul.f32 1.0, %v3294
    %v3296 = vxor.u32 %v3274, 2147483648
    %v3297 = vmul.f32 %v3296, 1.442695
    %v3298 = vpow.pop %v3297
    %v3299 = vadd.f32 %v3298, 1.0
    %v3300 = vrcp.pop %v3299
    %v3301 = vmul.f32 %v3299, %v3300
    %v3302 = vsub.f32 1.0, %v3301
    %v3303 = vmul.f32 %v3300, %v3302
    %v3304 = vadd.f32 %v3300, %v3303
    %vm3305 = vweird.f32 %v3299
    %vm3306 = vweird.f32 %v3300
    %vm3307 = vmor %vm3305, %vm3306
    %v3308 = vsel %vm3307, %v3300, %v3304
    %v3309 = vand.u32 2147483647, %v3299
    %vm3310 = vcmp.eq.f32.partialorder %v3309, 8.507059e+37
    %v3311 = vand.u32 %v3299, 2147483648
    %v3312 = vor.u32 1.1754944e-38, %v3311
    %v3313 = vsel %vm3310, %v3312, %v3308
    %v3314 = vmul.f32 1.0, %v3313
    %v3315 = vtanh.pop %v3275
    %v3316 = vxor.u32 %v3276, 2147483648
    %v3317 = vmul.f32 %v3316, 1.442695
    %v3318 = vpow.pop %v3317
    %v3319 = vadd.f32 %v3318, 1.0
    %v3320 = vrcp.pop %v3319
    %v3321 = vmul.f32 %v3319, %v3320
    %v3322 = vsub.f32 1.0, %v3321
    %v3323 = vmul.f32 %v3320, %v3322
    %v3324 = vadd.f32 %v3320, %v3323
    %vm3325 = vweird.f32 %v3319
    %vm3326 = vweird.f32 %v3320
    %vm3327 = vmor %vm3325, %vm3326
    %v3328 = vsel %vm3327, %v3320, %v3324
    %v3329 = vand.u32 2147483647, %v3319
    %vm3330 = vcmp.eq.f32.partialorder %v3329, 8.507059e+37
    %v3331 = vand.u32 %v3319, 2147483648
    %v3332 = vor.u32 1.1754944e-38, %v3331
    %v3333 = vsel %vm3330, %v3332, %v3328
    %v3334 = vmul.f32 1.0, %v3333
    %v3335 = vmul.f32 %v3314, %v3179
    %v3336 = vmul.f32 %v3295, %v3315
    %v3337 = vadd.f32 %v3335, %v3336
    %v3338 = vtanh.pop %v3337
    %v3339 = vmul.f32 %v3334, %v3338
    %vm3340 = vcmp.eq.s32.totalorder %v130, 4
    %v3341 = vsel %vm3340, 1, 0
    %3342 = vset.pattern.permute.xlu0 0
    %3343 = vperm.xlu0 %3342, %v3341
    %v3344 = vpop.permute.xlu0 %3343
    %vm3345 = vcmp.eq.s32.totalorder %v3344, 1
    %v3346 = vsel %vm3345, %v3339, %v3188
    %v3347 = vld [vmem:[%s1529] sm:$0xff]
    %v3348 = vld [vmem:[%s1529 + $0x8] sm:$0xff]
    %v3349 = vld [vmem:[%s1529 + $0x10] sm:$0xff]
    %v3350 = vld [vmem:[%s1529 + $0x18] sm:$0xff]
    %3351 = vmatpush.msra.mxu0 %v2557
    %3352 = vmatpush.msra.mxu0 %v2553
    %3353 = vmatpush.msra.mxu0 %v2549
    %3354 = vmatpush.msra.mxu0 %v2545
    %3355 = vmatpush.msra.mxu0 %v2541
    %3356 = vmatpush.msra.mxu0 %v2537
    %3357 = vmatpush.msra.mxu0 %v2533
    %3358 = vmatpush.msra.mxu0 %v2529
    %3359 = vmatpush.msra.mxu0 %v2525
    %3360 = vmatpush.msra.mxu0 %v2521
    %3361 = vmatpush.msra.mxu0 %v2517
    %3362 = vmatpush.msra.mxu0 %v2513
    %3363 = vmatpush.msra.mxu0 %v2509
    %3364 = vmatpush.msra.mxu0 %v2505
    %3365 = vmatpush.msra.mxu0 %v2501
    %3366 = vmatpush.msra.mxu0 %v2497
    %3367 = vmatmul.f32.gmra.mxu0 %v3339
    %v3368 = vpop.f32.mrf.mxu0
    %v3369 = vadd.f32 0.0, %v3368
    %3370 = vdwg.mxu0
    %3371 = vmatpush.msra.mxu0 %v2558
    %3372 = vmatpush.msra.mxu0 %v2554
    %3373 = vmatpush.msra.mxu0 %v2550
    %3374 = vmatpush.msra.mxu0 %v2546
    %3375 = vmatpush.msra.mxu0 %v2542
    %3376 = vmatpush.msra.mxu0 %v2538
    %3377 = vmatpush.msra.mxu0 %v2534
    %3378 = vmatpush.msra.mxu0 %v2530
    %3379 = vmatpush.msra.mxu0 %v2526
    %3380 = vmatpush.msra.mxu0 %v2522
    %3381 = vmatpush.msra.mxu0 %v2518
    %3382 = vmatpush.msra.mxu0 %v2514
    %3383 = vmatpush.msra.mxu0 %v2510
    %3384 = vmatpush.msra.mxu0 %v2506
    %3385 = vmatpush.msra.mxu0 %v2502
    %3386 = vmatpush.msra.mxu0 %v2498
    %3387 = vmatmul.f32.gmra.mxu0 %v3339
    %v3388 = vpop.f32.mrf.mxu0
    %v3389 = vadd.f32 0.0, %v3388
    %3390 = vdwg.mxu0
    %3391 = vmatpush.msra.mxu0 %v2559
    %3392 = vmatpush.msra.mxu0 %v2555
    %3393 = vmatpush.msra.mxu0 %v2551
    %3394 = vmatpush.msra.mxu0 %v2547
    %3395 = vmatpush.msra.mxu0 %v2543
    %3396 = vmatpush.msra.mxu0 %v2539
    %3397 = vmatpush.msra.mxu0 %v2535
    %3398 = vmatpush.msra.mxu0 %v2531
    %3399 = vmatpush.msra.mxu0 %v2527
    %3400 = vmatpush.msra.mxu0 %v2523
    %3401 = vmatpush.msra.mxu0 %v2519
    %3402 = vmatpush.msra.mxu0 %v2515
    %3403 = vmatpush.msra.mxu0 %v2511
    %3404 = vmatpush.msra.mxu0 %v2507
    %3405 = vmatpush.msra.mxu0 %v2503
    %3406 = vmatpush.msra.mxu0 %v2499
    %3407 = vmatmul.f32.gmra.mxu0 %v3339
    %v3408 = vpop.f32.mrf.mxu0
    %v3409 = vadd.f32 0.0, %v3408
    %3410 = vdwg.mxu0
    %3411 = vmatpush.msra.mxu0 %v2560
    %3412 = vmatpush.msra.mxu0 %v2556
    %3413 = vmatpush.msra.mxu0 %v2552
    %3414 = vmatpush.msra.mxu0 %v2548
    %3415 = vmatpush.msra.mxu0 %v2544
    %3416 = vmatpush.msra.mxu0 %v2540
    %3417 = vmatpush.msra.mxu0 %v2536
    %3418 = vmatpush.msra.mxu0 %v2532
    %3419 = vmatpush.msra.mxu0 %v2528
    %3420 = vmatpush.msra.mxu0 %v2524
    %3421 = vmatpush.msra.mxu0 %v2520
    %3422 = vmatpush.msra.mxu0 %v2516
    %3423 = vmatpush.msra.mxu0 %v2512
    %3424 = vmatpush.msra.mxu0 %v2508
    %3425 = vmatpush.msra.mxu0 %v2504
    %3426 = vmatpush.msra.mxu0 %v2500
    %3427 = vmatmul.f32.gmra.mxu0 %v3339
    %v3428 = vpop.f32.mrf.mxu0
    %v3429 = vadd.f32 0.0, %v3428
    %3430 = vdwg.mxu0
    %v3431 = vadd.f32 %v3347, %v3369
    %v3432 = vadd.f32 %v3348, %v3389
    %v3433 = vadd.f32 %v3349, %v3409
    %v3434 = vadd.f32 %v3350, %v3429
    %v3435 = vxor.u32 %v3431, 2147483648
    %v3436 = vmul.f32 %v3435, 1.442695
    %v3437 = vpow.pop %v3436
    %v3438 = vadd.f32 %v3437, 1.0
    %v3439 = vrcp.pop %v3438
    %v3440 = vmul.f32 %v3438, %v3439
    %v3441 = vsub.f32 1.0, %v3440
    %v3442 = vmul.f32 %v3439, %v3441
    %v3443 = vadd.f32 %v3439, %v3442
    %vm3444 = vweird.f32 %v3438
    %vm3445 = vweird.f32 %v3439
    %vm3446 = vmor %vm3444, %vm3445
    %v3447 = vsel %vm3446, %v3439, %v3443
    %v3448 = vand.u32 2147483647, %v3438
    %vm3449 = vcmp.eq.f32.partialorder %v3448, 8.507059e+37
    %v3450 = vand.u32 %v3438, 2147483648
    %v3451 = vor.u32 1.1754944e-38, %v3450
    %v3452 = vsel %vm3449, %v3451, %v3447
    %v3453 = vmul.f32 1.0, %v3452
    %v3454 = vxor.u32 %v3432, 2147483648
    %v3455 = vmul.f32 %v3454, 1.442695
    %v3456 = vpow.pop %v3455
    %v3457 = vadd.f32 %v3456, 1.0
    %v3458 = vrcp.pop %v3457
    %v3459 = vmul.f32 %v3457, %v3458
    %v3460 = vsub.f32 1.0, %v3459
    %v3461 = vmul.f32 %v3458, %v3460
    %v3462 = vadd.f32 %v3458, %v3461
    %vm3463 = vweird.f32 %v3457
    %vm3464 = vweird.f32 %v3458
    %vm3465 = vmor %vm3463, %vm3464
    %v3466 = vsel %vm3465, %v3458, %v3462
    %v3467 = vand.u32 2147483647, %v3457
    %vm3468 = vcmp.eq.f32.partialorder %v3467, 8.507059e+37
    %v3469 = vand.u32 %v3457, 2147483648
    %v3470 = vor.u32 1.1754944e-38, %v3469
    %v3471 = vsel %vm3468, %v3470, %v3466
    %v3472 = vmul.f32 1.0, %v3471
    %v3473 = vtanh.pop %v3433
    %v3474 = vxor.u32 %v3434, 2147483648
    %v3475 = vmul.f32 %v3474, 1.442695
    %v3476 = vpow.pop %v3475
    %v3477 = vadd.f32 %v3476, 1.0
    %v3478 = vrcp.pop %v3477
    %v3479 = vmul.f32 %v3477, %v3478
    %v3480 = vsub.f32 1.0, %v3479
    %v3481 = vmul.f32 %v3478, %v3480
    %v3482 = vadd.f32 %v3478, %v3481
    %vm3483 = vweird.f32 %v3477
    %vm3484 = vweird.f32 %v3478
    %vm3485 = vmor %vm3483, %vm3484
    %v3486 = vsel %vm3485, %v3478, %v3482
    %v3487 = vand.u32 2147483647, %v3477
    %vm3488 = vcmp.eq.f32.partialorder %v3487, 8.507059e+37
    %v3489 = vand.u32 %v3477, 2147483648
    %v3490 = vor.u32 1.1754944e-38, %v3489
    %v3491 = vsel %vm3488, %v3490, %v3486
    %v3492 = vmul.f32 1.0, %v3491
    %v3493 = vmul.f32 %v3472, %v3337
    %v3494 = vmul.f32 %v3453, %v3473
    %v3495 = vadd.f32 %v3493, %v3494
    %v3496 = vtanh.pop %v3495
    %v3497 = vmul.f32 %v3492, %v3496
    %vm3498 = vcmp.eq.s32.totalorder %v130, 5
    %v3499 = vsel %vm3498, 1, 0
    %3500 = vset.pattern.permute.xlu0 0
    %3501 = vperm.xlu0 %3500, %v3499
    %v3502 = vpop.permute.xlu0 %3501
    %vm3503 = vcmp.eq.s32.totalorder %v3502, 1
    %v3504 = vsel %vm3503, %v3497, %v3346
    %v3505 = vld [vmem:[%s1747] sm:$0xff]
    %v3506 = vld [vmem:[%s1747 + $0x8] sm:$0xff]
    %v3507 = vld [vmem:[%s1747 + $0x10] sm:$0xff]
    %v3508 = vld [vmem:[%s1747 + $0x18] sm:$0xff]
    %3509 = vmatpush.msra.mxu0 %v2557
    %3510 = vmatpush.msra.mxu0 %v2553
    %3511 = vmatpush.msra.mxu0 %v2549
    %3512 = vmatpush.msra.mxu0 %v2545
    %3513 = vmatpush.msra.mxu0 %v2541
    %3514 = vmatpush.msra.mxu0 %v2537
    %3515 = vmatpush.msra.mxu0 %v2533
    %3516 = vmatpush.msra.mxu0 %v2529
    %3517 = vmatpush.msra.mxu0 %v2525
    %3518 = vmatpush.msra.mxu0 %v2521
    %3519 = vmatpush.msra.mxu0 %v2517
    %3520 = vmatpush.msra.mxu0 %v2513
    %3521 = vmatpush.msra.mxu0 %v2509
    %3522 = vmatpush.msra.mxu0 %v2505
    %3523 = vmatpush.msra.mxu0 %v2501
    %3524 = vmatpush.msra.mxu0 %v2497
    %3525 = vmatmul.f32.gmra.mxu0 %v3497
    %v3526 = vpop.f32.mrf.mxu0
    %v3527 = vadd.f32 0.0, %v3526
    %3528 = vdwg.mxu0
    %3529 = vmatpush.msra.mxu0 %v2558
    %3530 = vmatpush.msra.mxu0 %v2554
    %3531 = vmatpush.msra.mxu0 %v2550
    %3532 = vmatpush.msra.mxu0 %v2546
    %3533 = vmatpush.msra.mxu0 %v2542
    %3534 = vmatpush.msra.mxu0 %v2538
    %3535 = vmatpush.msra.mxu0 %v2534
    %3536 = vmatpush.msra.mxu0 %v2530
    %3537 = vmatpush.msra.mxu0 %v2526
    %3538 = vmatpush.msra.mxu0 %v2522
    %3539 = vmatpush.msra.mxu0 %v2518
    %3540 = vmatpush.msra.mxu0 %v2514
    %3541 = vmatpush.msra.mxu0 %v2510
    %3542 = vmatpush.msra.mxu0 %v2506
    %3543 = vmatpush.msra.mxu0 %v2502
    %3544 = vmatpush.msra.mxu0 %v2498
    %3545 = vmatmul.f32.gmra.mxu0 %v3497
    %v3546 = vpop.f32.mrf.mxu0
    %v3547 = vadd.f32 0.0, %v3546
    %3548 = vdwg.mxu0
    %3549 = vmatpush.msra.mxu0 %v2559
    %3550 = vmatpush.msra.mxu0 %v2555
    %3551 = vmatpush.msra.mxu0 %v2551
    %3552 = vmatpush.msra.mxu0 %v2547
    %3553 = vmatpush.msra.mxu0 %v2543
    %3554 = vmatpush.msra.mxu0 %v2539
    %3555 = vmatpush.msra.mxu0 %v2535
    %3556 = vmatpush.msra.mxu0 %v2531
    %3557 = vmatpush.msra.mxu0 %v2527
    %3558 = vmatpush.msra.mxu0 %v2523
    %3559 = vmatpush.msra.mxu0 %v2519
    %3560 = vmatpush.msra.mxu0 %v2515
    %3561 = vmatpush.msra.mxu0 %v2511
    %3562 = vmatpush.msra.mxu0 %v2507
    %3563 = vmatpush.msra.mxu0 %v2503
    %3564 = vmatpush.msra.mxu0 %v2499
    %3565 = vmatmul.f32.gmra.mxu0 %v3497
    %v3566 = vpop.f32.mrf.mxu0
    %v3567 = vadd.f32 0.0, %v3566
    %3568 = vdwg.mxu0
    %3569 = vmatpush.msra.mxu0 %v2560
    %3570 = vmatpush.msra.mxu0 %v2556
    %3571 = vmatpush.msra.mxu0 %v2552
    %3572 = vmatpush.msra.mxu0 %v2548
    %3573 = vmatpush.msra.mxu0 %v2544
    %3574 = vmatpush.msra.mxu0 %v2540
    %3575 = vmatpush.msra.mxu0 %v2536
    %3576 = vmatpush.msra.mxu0 %v2532
    %3577 = vmatpush.msra.mxu0 %v2528
    %3578 = vmatpush.msra.mxu0 %v2524
    %3579 = vmatpush.msra.mxu0 %v2520
    %3580 = vmatpush.msra.mxu0 %v2516
    %3581 = vmatpush.msra.mxu0 %v2512
    %3582 = vmatpush.msra.mxu0 %v2508
    %3583 = vmatpush.msra.mxu0 %v2504
    %3584 = vmatpush.msra.mxu0 %v2500
    %3585 = vmatmul.f32.gmra.mxu0 %v3497
    %v3586 = vpop.f32.mrf.mxu0
    %v3587 = vadd.f32 0.0, %v3586
    %3588 = vdwg.mxu0
    %v3589 = vadd.f32 %v3505, %v3527
    %v3590 = vadd.f32 %v3506, %v3547
    %v3591 = vadd.f32 %v3507, %v3567
    %v3592 = vadd.f32 %v3508, %v3587
    %v3593 = vxor.u32 %v3589, 2147483648
    %v3594 = vmul.f32 %v3593, 1.442695
    %v3595 = vpow.pop %v3594
    %v3596 = vadd.f32 %v3595, 1.0
    %v3597 = vrcp.pop %v3596
    %v3598 = vmul.f32 %v3596, %v3597
    %v3599 = vsub.f32 1.0, %v3598
    %v3600 = vmul.f32 %v3597, %v3599
    %v3601 = vadd.f32 %v3597, %v3600
    %vm3602 = vweird.f32 %v3596
    %vm3603 = vweird.f32 %v3597
    %vm3604 = vmor %vm3602, %vm3603
    %v3605 = vsel %vm3604, %v3597, %v3601
    %v3606 = vand.u32 2147483647, %v3596
    %vm3607 = vcmp.eq.f32.partialorder %v3606, 8.507059e+37
    %v3608 = vand.u32 %v3596, 2147483648
    %v3609 = vor.u32 1.1754944e-38, %v3608
    %v3610 = vsel %vm3607, %v3609, %v3605
    %v3611 = vmul.f32 1.0, %v3610
    %v3612 = vxor.u32 %v3590, 2147483648
    %v3613 = vmul.f32 %v3612, 1.442695
    %v3614 = vpow.pop %v3613
    %v3615 = vadd.f32 %v3614, 1.0
    %v3616 = vrcp.pop %v3615
    %v3617 = vmul.f32 %v3615, %v3616
    %v3618 = vsub.f32 1.0, %v3617
    %v3619 = vmul.f32 %v3616, %v3618
    %v3620 = vadd.f32 %v3616, %v3619
    %vm3621 = vweird.f32 %v3615
    %vm3622 = vweird.f32 %v3616
    %vm3623 = vmor %vm3621, %vm3622
    %v3624 = vsel %vm3623, %v3616, %v3620
    %v3625 = vand.u32 2147483647, %v3615
    %vm3626 = vcmp.eq.f32.partialorder %v3625, 8.507059e+37
    %v3627 = vand.u32 %v3615, 2147483648
    %v3628 = vor.u32 1.1754944e-38, %v3627
    %v3629 = vsel %vm3626, %v3628, %v3624
    %v3630 = vmul.f32 1.0, %v3629
    %v3631 = vtanh.pop %v3591
    %v3632 = vxor.u32 %v3592, 2147483648
    %v3633 = vmul.f32 %v3632, 1.442695
    %v3634 = vpow.pop %v3633
    %v3635 = vadd.f32 %v3634, 1.0
    %v3636 = vrcp.pop %v3635
    %v3637 = vmul.f32 %v3635, %v3636
    %v3638 = vsub.f32 1.0, %v3637
    %v3639 = vmul.f32 %v3636, %v3638
    %v3640 = vadd.f32 %v3636, %v3639
    %vm3641 = vweird.f32 %v3635
    %vm3642 = vweird.f32 %v3636
    %vm3643 = vmor %vm3641, %vm3642
    %v3644 = vsel %vm3643, %v3636, %v3640
    %v3645 = vand.u32 2147483647, %v3635
    %vm3646 = vcmp.eq.f32.partialorder %v3645, 8.507059e+37
    %v3647 = vand.u32 %v3635, 2147483648
    %v3648 = vor.u32 1.1754944e-38, %v3647
    %v3649 = vsel %vm3646, %v3648, %v3644
    %v3650 = vmul.f32 1.0, %v3649
    %v3651 = vmul.f32 %v3630, %v3495
    %v3652 = vmul.f32 %v3611, %v3631
    %v3653 = vadd.f32 %v3651, %v3652
    %v3654 = vtanh.pop %v3653
    %v3655 = vmul.f32 %v3650, %v3654
    %vm3656 = vcmp.eq.s32.totalorder %v130, 6
    %v3657 = vsel %vm3656, 1, 0
    %3658 = vset.pattern.permute.xlu0 0
    %3659 = vperm.xlu0 %3658, %v3657
    %v3660 = vpop.permute.xlu0 %3659
    %vm3661 = vcmp.eq.s32.totalorder %v3660, 1
    %v3662 = vsel %vm3661, %v3655, %v3504
    %v3663 = vld [vmem:[%s1965] sm:$0xff]
    %v3664 = vld [vmem:[%s1965 + $0x8] sm:$0xff]
    %v3665 = vld [vmem:[%s1965 + $0x10] sm:$0xff]
    %v3666 = vld [vmem:[%s1965 + $0x18] sm:$0xff]
    %3667 = vmatpush.msra.mxu0 %v2557
    %3668 = vmatpush.msra.mxu0 %v2553
    %3669 = vmatpush.msra.mxu0 %v2549
    %3670 = vmatpush.msra.mxu0 %v2545
    %3671 = vmatpush.msra.mxu0 %v2541
    %3672 = vmatpush.msra.mxu0 %v2537
    %3673 = vmatpush.msra.mxu0 %v2533
    %3674 = vmatpush.msra.mxu0 %v2529
    %3675 = vmatpush.msra.mxu0 %v2525
    %3676 = vmatpush.msra.mxu0 %v2521
    %3677 = vmatpush.msra.mxu0 %v2517
    %3678 = vmatpush.msra.mxu0 %v2513
    %3679 = vmatpush.msra.mxu0 %v2509
    %3680 = vmatpush.msra.mxu0 %v2505
    %3681 = vmatpush.msra.mxu0 %v2501
    %3682 = vmatpush.msra.mxu0 %v2497
    %3683 = vmatmul.f32.gmra.mxu0 %v3655
    %v3684 = vpop.f32.mrf.mxu0
    %v3685 = vadd.f32 0.0, %v3684
    %3686 = vdwg.mxu0
    %3687 = vmatpush.msra.mxu0 %v2558
    %3688 = vmatpush.msra.mxu0 %v2554
    %3689 = vmatpush.msra.mxu0 %v2550
    %3690 = vmatpush.msra.mxu0 %v2546
    %3691 = vmatpush.msra.mxu0 %v2542
    %3692 = vmatpush.msra.mxu0 %v2538
    %3693 = vmatpush.msra.mxu0 %v2534
    %3694 = vmatpush.msra.mxu0 %v2530
    %3695 = vmatpush.msra.mxu0 %v2526
    %3696 = vmatpush.msra.mxu0 %v2522
    %3697 = vmatpush.msra.mxu0 %v2518
    %3698 = vmatpush.msra.mxu0 %v2514
    %3699 = vmatpush.msra.mxu0 %v2510
    %3700 = vmatpush.msra.mxu0 %v2506
    %3701 = vmatpush.msra.mxu0 %v2502
    %3702 = vmatpush.msra.mxu0 %v2498
    %3703 = vmatmul.f32.gmra.mxu0 %v3655
    %v3704 = vpop.f32.mrf.mxu0
    %v3705 = vadd.f32 0.0, %v3704
    %3706 = vdwg.mxu0
    %3707 = vmatpush.msra.mxu0 %v2559
    %3708 = vmatpush.msra.mxu0 %v2555
    %3709 = vmatpush.msra.mxu0 %v2551
    %3710 = vmatpush.msra.mxu0 %v2547
    %3711 = vmatpush.msra.mxu0 %v2543
    %3712 = vmatpush.msra.mxu0 %v2539
    %3713 = vmatpush.msra.mxu0 %v2535
    %3714 = vmatpush.msra.mxu0 %v2531
    %3715 = vmatpush.msra.mxu0 %v2527
    %3716 = vmatpush.msra.mxu0 %v2523
    %3717 = vmatpush.msra.mxu0 %v2519
    %3718 = vmatpush.msra.mxu0 %v2515
    %3719 = vmatpush.msra.mxu0 %v2511
    %3720 = vmatpush.msra.mxu0 %v2507
    %3721 = vmatpush.msra.mxu0 %v2503
    %3722 = vmatpush.msra.mxu0 %v2499
    %3723 = vmatmul.f32.gmra.mxu0 %v3655
    %v3724 = vpop.f32.mrf.mxu0
    %v3725 = vadd.f32 0.0, %v3724
    %3726 = vdwg.mxu0
    %3727 = vmatpush.msra.mxu0 %v2560
    %3728 = vmatpush.msra.mxu0 %v2556
    %3729 = vmatpush.msra.mxu0 %v2552
    %3730 = vmatpush.msra.mxu0 %v2548
    %3731 = vmatpush.msra.mxu0 %v2544
    %3732 = vmatpush.msra.mxu0 %v2540
    %3733 = vmatpush.msra.mxu0 %v2536
    %3734 = vmatpush.msra.mxu0 %v2532
    %3735 = vmatpush.msra.mxu0 %v2528
    %3736 = vmatpush.msra.mxu0 %v2524
    %3737 = vmatpush.msra.mxu0 %v2520
    %3738 = vmatpush.msra.mxu0 %v2516
    %3739 = vmatpush.msra.mxu0 %v2512
    %3740 = vmatpush.msra.mxu0 %v2508
    %3741 = vmatpush.msra.mxu0 %v2504
    %3742 = vmatpush.msra.mxu0 %v2500
    %3743 = vmatmul.f32.gmra.mxu0 %v3655
    %v3744 = vpop.f32.mrf.mxu0
    %v3745 = vadd.f32 0.0, %v3744
    %3746 = vdwg.mxu0
    %v3747 = vadd.f32 %v3663, %v3685
    %v3748 = vadd.f32 %v3664, %v3705
    %v3749 = vadd.f32 %v3665, %v3725
    %v3750 = vadd.f32 %v3666, %v3745
    %v3751 = vxor.u32 %v3747, 2147483648
    %v3752 = vmul.f32 %v3751, 1.442695
    %v3753 = vpow.pop %v3752
    %v3754 = vadd.f32 %v3753, 1.0
    %v3755 = vrcp.pop %v3754
    %v3756 = vmul.f32 %v3754, %v3755
    %v3757 = vsub.f32 1.0, %v3756
    %v3758 = vmul.f32 %v3755, %v3757
    %v3759 = vadd.f32 %v3755, %v3758
    %vm3760 = vweird.f32 %v3754
    %vm3761 = vweird.f32 %v3755
    %vm3762 = vmor %vm3760, %vm3761
    %v3763 = vsel %vm3762, %v3755, %v3759
    %v3764 = vand.u32 2147483647, %v3754
    %vm3765 = vcmp.eq.f32.partialorder %v3764, 8.507059e+37
    %v3766 = vand.u32 %v3754, 2147483648
    %v3767 = vor.u32 1.1754944e-38, %v3766
    %v3768 = vsel %vm3765, %v3767, %v3763
    %v3769 = vmul.f32 1.0, %v3768
    %v3770 = vxor.u32 %v3748, 2147483648
    %v3771 = vmul.f32 %v3770, 1.442695
    %v3772 = vpow.pop %v3771
    %v3773 = vadd.f32 %v3772, 1.0
    %v3774 = vrcp.pop %v3773
    %v3775 = vmul.f32 %v3773, %v3774
    %v3776 = vsub.f32 1.0, %v3775
    %v3777 = vmul.f32 %v3774, %v3776
    %v3778 = vadd.f32 %v3774, %v3777
    %vm3779 = vweird.f32 %v3773
    %vm3780 = vweird.f32 %v3774
    %vm3781 = vmor %vm3779, %vm3780
    %v3782 = vsel %vm3781, %v3774, %v3778
    %v3783 = vand.u32 2147483647, %v3773
    %vm3784 = vcmp.eq.f32.partialorder %v3783, 8.507059e+37
    %v3785 = vand.u32 %v3773, 2147483648
    %v3786 = vor.u32 1.1754944e-38, %v3785
    %v3787 = vsel %vm3784, %v3786, %v3782
    %v3788 = vmul.f32 1.0, %v3787
    %v3789 = vtanh.pop %v3749
    %v3790 = vxor.u32 %v3750, 2147483648
    %v3791 = vmul.f32 %v3790, 1.442695
    %v3792 = vpow.pop %v3791
    %v3793 = vadd.f32 %v3792, 1.0
    %v3794 = vrcp.pop %v3793
    %v3795 = vmul.f32 %v3793, %v3794
    %v3796 = vsub.f32 1.0, %v3795
    %v3797 = vmul.f32 %v3794, %v3796
    %v3798 = vadd.f32 %v3794, %v3797
    %vm3799 = vweird.f32 %v3793
    %vm3800 = vweird.f32 %v3794
    %vm3801 = vmor %vm3799, %vm3800
    %v3802 = vsel %vm3801, %v3794, %v3798
    %v3803 = vand.u32 2147483647, %v3793
    %vm3804 = vcmp.eq.f32.partialorder %v3803, 8.507059e+37
    %v3805 = vand.u32 %v3793, 2147483648
    %v3806 = vor.u32 1.1754944e-38, %v3805
    %v3807 = vsel %vm3804, %v3806, %v3802
    %v3808 = vmul.f32 1.0, %v3807
    %v3809 = vmul.f32 %v3788, %v3653
    %v3810 = vmul.f32 %v3769, %v3789
    %v3811 = vadd.f32 %v3809, %v3810
    %v3812 = vtanh.pop %v3811
    %v3813 = vmul.f32 %v3808, %v3812
    %vm3814 = vcmp.eq.s32.totalorder %v130, 7
    %v3815 = vsel %vm3814, 1, 0
    %3816 = vset.pattern.permute.xlu0 0
    %3817 = vperm.xlu0 %3816, %v3815
    %v3818 = vpop.permute.xlu0 %3817
    %vm3819 = vcmp.eq.s32.totalorder %v3818, 1
    %v3820 = vsel %vm3819, %v3813, %v3662
    %v3821 = vld [vmem:[#allocation13] sm:$0xff]
    %v3822 = vld [vmem:[#allocation13 + $0x8] sm:$0xff]
    %v3823 = vld [vmem:[#allocation13 + $0x10] sm:$0xff]
    %v3824 = vld [vmem:[#allocation13 + $0x18] sm:$0xff]
    %v3825 = vld [vmem:[#allocation13 + $0x20] sm:$0xff]
    %v3826 = vld [vmem:[#allocation13 + $0x28] sm:$0xff]
    %v3827 = vld [vmem:[#allocation13 + $0x30] sm:$0xff]
    %v3828 = vld [vmem:[#allocation13 + $0x38] sm:$0xff]
    %v3829 = vld [vmem:[#allocation13 + $0x40] sm:$0xff]
    %v3830 = vld [vmem:[#allocation13 + $0x48] sm:$0xff]
    %v3831 = vld [vmem:[#allocation13 + $0x50] sm:$0xff]
    %v3832 = vld [vmem:[#allocation13 + $0x58] sm:$0xff]
    %v3833 = vld [vmem:[#allocation13 + $0x60] sm:$0xff]
    %v3834 = vld [vmem:[#allocation13 + $0x68] sm:$0xff]
    %v3835 = vld [vmem:[#allocation13 + $0x70] sm:$0xff]
    %v3836 = vld [vmem:[#allocation13 + $0x78] sm:$0xff]
    %v3837 = vld [vmem:[%s9] sm:$0x1]
    %v3839 = vperm.slane %v3837, 0
    %3841 = vmatpush.msra.mxu0 %v3836
    %3842 = vmatpush.msra.mxu0 %v3835
    %3843 = vmatpush.msra.mxu0 %v3834
    %3844 = vmatpush.msra.mxu0 %v3833
    %3845 = vmatpush.msra.mxu0 %v3832
    %3846 = vmatpush.msra.mxu0 %v3831
    %3847 = vmatpush.msra.mxu0 %v3830
    %3848 = vmatpush.msra.mxu0 %v3829
    %3849 = vmatpush.msra.mxu0 %v3828
    %3850 = vmatpush.msra.mxu0 %v3827
    %3851 = vmatpush.msra.mxu0 %v3826
    %3852 = vmatpush.msra.mxu0 %v3825
    %3853 = vmatpush.msra.mxu0 %v3824
    %3854 = vmatpush.msra.mxu0 %v3823
    %3855 = vmatpush.msra.mxu0 %v3822
    %3856 = vmatpush.msra.mxu0 %v3821
    %3857 = vmatmul.f32.gmra.mxu0 %v3820
    %v3858 = vpop.f32.mrf.mxu0
    %v3859 = vadd.f32 %v3839, %v3858
    %3860 = vdwg.mxu0
    %3861 = vst [vmem:[#allocation15] sm:$0xff] %v3859
    // Predicated region
    $region66: #{tpu_custom_call.1} parent=1 // pred_check
      _
    $region67: #{tpu_custom_call.1} parent=1 // pred_check_branch
      %3863 = sbr.rel (0) target = $region69
    $region68: #{tpu_custom_call.1} parent=1 // pred_region
      %3865 = vsyncadd [#allocation6], 0
      %s3867 = sshll.u32 [#allocation15], 4
      %s3868 = int_to_ptr.vmem [resolvable:$true] %s3867
      %s3869 = sshll.u32 %s10, 4
      %s3870 = int_to_ptr.hbm [resolvable:$true] %s3869
      %3872 = dma.vmem_to_hbm [thread:$0]  %s3868, 128, %s3870, [#allocation6]
    $region69: #{tpu_custom_call.1} parent=1 // pred_fallthru
      _
    // Predicated region
    $region70: #{tpu_custom_call.1} parent=1 // pred_check
      _
    $region71: #{tpu_custom_call.1} parent=1 // pred_check_branch
      %3874 = sbr.rel (0) target = $region73
    $region72: #{tpu_custom_call.1} parent=1 // pred_region
      %3876 = dma.done [#allocation6], 128
    $region73: #{tpu_custom_call.1} parent=1 // pred_fallthru
      _
    %3877 = vsyncpa [#allocation5], 1
    %3878 = vsyncpa [#allocation8], 1
    %3879 = vsyncpa [#allocation11], 1
    %3880 = vsyncpa [#allocation14], 1
    %3881 = vsyncpa [#allocation6], 1

</llo_original>
